<compile_context>
chip_gen: v5e
topology: v5e:2x2
jax: 0.10.0
libtpu: 0.0.40
codegen_flags: <defaults>
</compile_context>

<pallas_src>
import functools

import jax
import jax.numpy as jnp
from jax import lax
from jax.experimental import pallas as pl
from jax.experimental.pallas import tpu as pltpu


def _fill_col(slab_ref, col_ref, *, bb, H, W, fs, pad, w0, ctp):
    """Build the im2col operand: col[:, t*ctp:(t+1)*ctp] holds tap t=(dh,dw).

    slab_ref: (bb, H + 2*pad, w0 + W + pad, ctp) bf16; halo and pad channels
              are zero, the interior lives at rows [pad, pad+H), cols [w0, w0+W).
    col_ref:  (bb*H*W, fs*fs*ctp) bf16.
    """
    for dh in range(fs):
        for dw in range(fs):
            t = dh * fs + dw
            c0 = w0 - pad + dw
            col_ref[:, t * ctp:(t + 1) * ctp] = (
                slab_ref[:, dh:dh + H, c0:c0 + W, :].reshape(bb * H * W, ctp))


def _conv_gn(col_ref, w_ref, p_ref, *, bb, hw, groups, eps=1e-5):
    """Fused 'same' conv (one deep-K MXU matmul) + per-sample GroupNorm.

    col_ref: (bb*hw, K) bf16 im2col operand (K = fs*fs*ctp).
    w_ref:   (K, C) bf16 tap-packed weights (zero rows for the pad channels).
    p_ref:   (3, C) f32 rows = [conv bias, GN gamma, GN beta].
    Returns the normalized output as (bb*hw, C) f32.
    """
    C = w_ref.shape[-1]
    cg = C // groups
    y = jnp.dot(col_ref[...], w_ref[...], preferred_element_type=jnp.float32)
    y = y + p_ref[0:1, :]                                   # conv bias
    y3 = y.reshape(bb, hw, C)

    # Single-pass per-sample GroupNorm: sum / sum-of-squares -> per-(sample,
    # group) mean & rstd -> one fused scale/offset pass.  Variance is clamped
    # at zero (one-pass E[x^2]-E[x]^2 can go slightly negative).
    s1 = jnp.sum(y3, axis=1)                                # (bb, C)
    s2 = jnp.sum(y3 * y3, axis=1)                           # (bb, C)
    gs1 = jnp.sum(s1.reshape(bb, groups, cg), axis=2)       # (bb, G)
    gs2 = jnp.sum(s2.reshape(bb, groups, cg), axis=2)       # (bb, G)
    inv_n = 1.0 / float(hw * cg)
    mean = gs1 * inv_n
    var = jnp.maximum(gs2 * inv_n - mean * mean, 0.0)
    rstd = lax.rsqrt(var + eps)                             # (bb, G)
    mean_c = jnp.broadcast_to(mean[:, :, None],
                              (bb, groups, cg)).reshape(bb, 1, C)
    rstd_c = jnp.broadcast_to(rstd[:, :, None],
                              (bb, groups, cg)).reshape(bb, 1, C)
    scale = p_ref[1:2, :].reshape(1, 1, C) * rstd_c         # (bb, 1, C)
    shift = p_ref[2:3, :].reshape(1, 1, C) - mean_c * scale
    return (y3 * scale + shift).reshape(bb * hw, C)


def _cgru_kernel(x_ref, w1_ref, p1_ref, w2_ref, p2_ref,
                 out_ref, h_ref, slab_ref, col_ref,
                 *, H, W, Cin, F, fs, groups1, groups2):
    bb = out_ref.shape[1]
    hw = H * W
    pad = (fs - 1) // 2
    ctp = slab_ref.shape[-1]
    w0 = slab_ref.shape[2] - W - pad   # sublane-aligned interior start along W

    # NOTE: the recurrence relies on (a) the sequence axis being the LAST grid
    # dimension and marked "arbitrary", and (b) the h/slab scratch persisting
    # across grid steps.  Do not reorder the grid or mark `s` parallel.
    @pl.when(pl.program_id(1) == 0)
    def _():
        h_ref[...] = jnp.zeros_like(h_ref)         # hidden_state=None -> zeros
        slab_ref[...] = jnp.zeros_like(slab_ref)   # zero halo + pad lanes once

    x = x_ref[0].reshape(bb, H, W, Cin)            # denser HBM block -> NHWC
    h = h_ref[...]                                 # (bb*hw, F) f32 carried state

    # Stage the conv input in the bf16 slab; channel order [h(F), x(Cin), 0..].
    slab_ref[:, pad:pad + H, w0:w0 + W, F:F + Cin] = x.astype(jnp.bfloat16)
    slab_ref[:, pad:pad + H, w0:w0 + W, 0:F] = (
        h.astype(jnp.bfloat16).reshape(bb, H, W, F))

    # gates = GroupNorm(conv1(cat(x, h))): one K = fs*fs*ctp MXU matmul.
    _fill_col(slab_ref, col_ref, bb=bb, H=H, W=W, fs=fs, pad=pad, w0=w0, ctp=ctp)
    gates = _conv_gn(col_ref, w1_ref, p1_ref, bb=bb, hw=hw, groups=groups1)
    z = jax.nn.sigmoid(gates[:, :F])               # torch.split: first F -> zgate
    r = jax.nn.sigmoid(gates[:, F:])               # next F -> rgate

    # candidate = tanh(GroupNorm(conv2(cat(x, r*h)))): only the hidden channels
    # of the slab change; the x channels are reused as-is.
    slab_ref[:, pad:pad + H, w0:w0 + W, 0:F] = (
        (r * h).astype(jnp.bfloat16).reshape(bb, H, W, F))
    _fill_col(slab_ref, col_ref, bb=bb, H=H, W=W, fs=fs, pad=pad, w0=w0, ctp=ctp)
    ht = jnp.tanh(_conv_gn(col_ref, w2_ref, p2_ref, bb=bb, hw=hw, groups=groups2))

    hnext = h + z * (ht - h)                       # == (1 - z) * h + z * ht (f32)
    h_ref[...] = hnext
    out_ref[0] = hnext.reshape(bb, hw, F)


def cgru_forward(inputs, params, *, num_features, filter_size, batch_block=None):
    """inputs: (S, B, H, W, Cin) f32.  Returns (stacked outputs, final hidden)."""
    w1, b1, g1, be1, w2, b2, g2, be2 = params
    S, B, H, W, Cin = inputs.shape
    F = num_features
    fs = filter_size
    pad = (fs - 1) // 2
    Ct = Cin + F
    assert F % 32 == 0, "GroupNorm(C // 32, C) requires num_features % 32 == 0"
    groups1 = (2 * F) // 32
    groups2 = F // 32

    # Batch block per grid step.  Default keeps >= 2 parallel blocks so the
    # batch axis can be split across v7x TensorCores; on single-TC chips
    # (v5e/v6e) pass batch_block=B to fold the whole batch into the matmul M
    # and halve the number of grid steps.
    if batch_block is None:
        batch_block = B // 2 if (B % 2 == 0 and B >= 2) else B
    bb = batch_block
    assert B % bb == 0
    nb = B // bb

    # Contraction channels padded to a multiple of 64 (lane-friendly, matches
    # MXU depth at negligible extra FLOPs); per-tap channel order [h, x, 0..].
    ctp = ((Ct + 63) // 64) * 64
    # Interior W start aligned to a sublane multiple of 8 so the per-step
    # interior writes (x, h, r*h) are plain (non-rotated) stores.
    w0 = max(8, ((pad + 7) // 8) * 8)

    def _prep_w(w):
        # HWIO with input-channel order [x, h] -> reorder to [h, x], zero-pad
        # the contraction dim to ctp, fold the fs*fs taps into K, cast bf16.
        w_hx = jnp.concatenate([w[:, :, Cin:, :], w[:, :, :Cin, :]], axis=2)
        w_p = jnp.pad(w_hx, ((0, 0), (0, 0), (0, ctp - Ct), (0, 0)))
        return w_p.reshape(fs * fs * ctp, w.shape[-1]).astype(jnp.bfloat16)

    w1k = _prep_w(w1)
    w2k = _prep_w(w2)
    p1 = jnp.concatenate([b1, g1, be1], axis=0)     # (3, 2F) f32 packed params
    p2 = jnp.concatenate([b2, g2, be2], axis=0)     # (3, F)  f32 packed params
    x_dense = inputs.reshape(S, B, H, W * Cin)      # lane dim 64 instead of 4

    kernel = functools.partial(_cgru_kernel, H=H, W=W, Cin=Cin, F=F, fs=fs,
                               groups1=groups1, groups2=groups2)

    outs = pl.pallas_call(
        kernel,
        out_shape=jax.ShapeDtypeStruct((S, B, H * W, F), jnp.float32),
        grid_spec=pltpu.PrefetchScalarGridSpec(
            num_scalar_prefetch=0,
            grid=(nb, S),           # batch blocks: parallel, sequence: recurrent
            in_specs=[
                pl.BlockSpec((1, bb, H, W * Cin), lambda ib, s: (s, ib, 0, 0)),
                pl.BlockSpec((fs * fs * ctp, 2 * F), lambda ib, s: (0, 0)),
                pl.BlockSpec((3, 2 * F), lambda ib, s: (0, 0)),
                pl.BlockSpec((fs * fs * ctp, F), lambda ib, s: (0, 0)),
                pl.BlockSpec((3, F), lambda ib, s: (0, 0)),
            ],
            out_specs=pl.BlockSpec((1, bb, H * W, F),
                                   lambda ib, s: (s, ib, 0, 0)),
            scratch_shapes=[
                pltpu.VMEM((bb * H * W, F), jnp.float32),       # carried hidden
                pltpu.VMEM((bb, H + 2 * pad, w0 + W + pad, ctp),
                           jnp.bfloat16),                       # padded slab
                pltpu.VMEM((bb * H * W, fs * fs * ctp),
                           jnp.bfloat16),                       # im2col buffer
            ],
        ),
        compiler_params=pltpu.CompilerParams(
            dimension_semantics=("parallel", "arbitrary")),
    )(x_dense, w1k, p1, w2k, p2)

    outs = outs.reshape(S, B, H, W, F)              # free: dim split only
    return outs, outs[-1]


def _ref_forward(inputs, params, *, num_features, groups1, groups2, eps=1e-5):
    """Pure-JAX f32 reference (NHWC) mirroring the PyTorch forward."""
    w1, b1, g1, be1, w2, b2, g2, be2 = params
    S, B, H, W, Cin = inputs.shape
    F = num_features

    def conv(x, w, b):
        y = lax.conv_general_dilated(x, w, (1, 1), 'SAME',
                                     dimension_numbers=('NHWC', 'HWIO', 'NHWC'))
        return y + b.reshape(1, 1, 1, -1)

    def gn(x, gamma, beta, G):
        B_, H_, W_, C = x.shape
        xr = x.reshape(B_, H_, W_, G, C // G)
        mean = xr.mean(axis=(1, 2, 4), keepdims=True)
        var = ((xr - mean) ** 2).mean(axis=(1, 2, 4), keepdims=True)
        xn = (xr - mean) / jnp.sqrt(var + eps)
        return (xn.reshape(B_, H_, W_, C) * gamma.reshape(1, 1, 1, C)
                + beta.reshape(1, 1, 1, C))

    h = jnp.zeros((B, H, W, F), jnp.float32)
    outs = []
    for t in range(S):
        x = inputs[t]
        gates = gn(conv(jnp.concatenate([x, h], -1), w1, b1), g1, be1, groups1)
        z = jax.nn.sigmoid(gates[..., :F])
        r = jax.nn.sigmoid(gates[..., F:])
        ht = jnp.tanh(gn(conv(jnp.concatenate([x, r * h], -1), w2, b2),
                         g2, be2, groups2))
        h = (1 - z) * h + z * ht
        outs.append(h)
    return jnp.stack(outs), h


if __name__ == "__main__":
    # Module config: shape=(16,16), input_channels=4, filter_size=3,
    # num_features=32 (GroupNorm needs multiples of 32), seq_len=4, batch=2.
    H = W = 16
    Cin = 4
    F = 32
    fs = 3
    S = 4
    B = 2
    Ct = Cin + F

    key = jax.random.PRNGKey(0)
    ks = jax.random.split(key, 10)

    inputs = jax.random.normal(ks[0], (S, B, H, W, Cin), jnp.float32)

    # Deterministic synthetic parameters (HWIO conv weights with input channel
    # order [x, h], per-channel GN affine) — f32, like the PyTorch module.
    w1 = 0.1 * jax.random.normal(ks[1], (fs, fs, Ct, 2 * F), jnp.float32)
    b1 = 0.05 * jax.random.normal(ks[2], (1, 2 * F), jnp.float32)
    g1 = 1.0 + 0.1 * jax.random.normal(ks[3], (1, 2 * F), jnp.float32)
    be1 = 0.1 * jax.random.normal(ks[4], (1, 2 * F), jnp.float32)
    w2 = 0.1 * jax.random.normal(ks[5], (fs, fs, Ct, F), jnp.float32)
    b2 = 0.05 * jax.random.normal(ks[6], (1, F), jnp.float32)
    g2 = 1.0 + 0.1 * jax.random.normal(ks[7], (1, F), jnp.float32)
    be2 = 0.1 * jax.random.normal(ks[8], (1, F), jnp.float32)
    params = (w1, b1, g1, be1, w2, b2, g2, be2)

    # TODO(synk): the PyTorch `inputs is None` (decoder) and externally supplied
    # `hidden_state` branches are not wired up; this kernel covers the standard
    # encoder path (inputs given, hidden initialized to zeros).

    outs, h_last = jax.jit(
        functools.partial(cgru_forward, num_features=F, filter_size=fs))(inputs, params)
    jax.block_until_ready((outs, h_last))

    ref_outs, ref_h = _ref_forward(inputs, params, num_features=F,
                                   groups1=2 * F // 32, groups2=F // 32)

    assert outs.shape == (S, B, H, W, F)
    assert h_last.shape == (B, H, W, F)
    # Tolerance reflects bf16 MXU operands (f32 accumulation, f32 VPU math).
    max_err = float(jnp.max(jnp.abs(outs - ref_outs)))
    assert jnp.allclose(outs, ref_outs, atol=3e-2, rtol=3e-2), max_err
    assert jnp.allclose(h_last, ref_h, atol=3e-2, rtol=3e-2)

    print("KERNEL_OK")
</pallas_src>

<mosaic_0001>
module attributes {stable_mosaic.version = 11 : i64} {
  func.func @_cgru_kernel(%arg0: i32, %arg1: i32, %arg2: memref<1x1x16x64xf32, #tpu.memory_space<vmem>>, %arg3: memref<576x64xbf16, #tpu.memory_space<vmem>>, %arg4: memref<3x64xf32, #tpu.memory_space<vmem>>, %arg5: memref<576x32xbf16, #tpu.memory_space<vmem>>, %arg6: memref<3x32xf32, #tpu.memory_space<vmem>>, %arg7: memref<1x1x256x32xf32, #tpu.memory_space<vmem>>, %arg8: memref<256x32xf32, #tpu.memory_space<vmem>>, %arg9: memref<1x18x25x64xbf16, #tpu.memory_space<vmem>>, %arg10: memref<256x576xbf16, #tpu.memory_space<vmem>>) attributes {dimension_semantics = [#tpu.dimension_semantics<parallel>, #tpu.dimension_semantics<arbitrary>], iteration_bounds = array<i64: 2, 4>, scalar_prefetch = 0 : i64, scratch_operands = 3 : i64, tpu.core_type = #tpu.core_type<tc>, window_params = [{transform_indices = @transform_0, window_bounds = array<i64: 1, 1, 16, 64>}, {pipeline_mode = #tpu.pipeline_mode<synchronous>, transform_indices = @transform_1, window_bounds = array<i64: 576, 64>}, {pipeline_mode = #tpu.pipeline_mode<synchronous>, transform_indices = @transform_2, window_bounds = array<i64: 3, 64>}, {pipeline_mode = #tpu.pipeline_mode<synchronous>, transform_indices = @transform_3, window_bounds = array<i64: 576, 32>}, {pipeline_mode = #tpu.pipeline_mode<synchronous>, transform_indices = @transform_4, window_bounds = array<i64: 3, 32>}, {transform_indices = @transform_5, window_bounds = array<i64: 1, 1, 256, 32>}]} {
    %c0_i32 = arith.constant 0 : i32
    %0 = arith.cmpi eq, %arg1, %c0_i32 : i32
    %1 = arith.extui %0 : i1 to i32
    %c0_i32_0 = arith.constant 0 : i32
    %2 = arith.cmpi ne, %1, %c0_i32_0 : i32
    scf.if %2 {
      %cst_157 = arith.constant 0.000000e+00 : f32
      %179 = vector.broadcast %cst_157 : f32 to vector<256x32xf32>
      %c0_158 = arith.constant 0 : index
      %c0_159 = arith.constant 0 : index
      %180 = vector.load %arg8[%c0_158, %c0_159] : memref<256x32xf32, #tpu.memory_space<vmem>>, vector<256x32xf32>
      tpu.vector_store %arg8[%c0_158, %c0_159], %179 {strides = array<i32>} : memref<256x32xf32, #tpu.memory_space<vmem>>, vector<256x32xf32>,
      %cst_160 = arith.constant 0.000000e+00 : bf16
      %181 = vector.broadcast %cst_160 : bf16 to vector<1x18x25x64xbf16>
      %c0_161 = arith.constant 0 : index
      %c0_162 = arith.constant 0 : index
      %c0_163 = arith.constant 0 : index
      %c0_164 = arith.constant 0 : index
      %182 = vector.load %arg9[%c0_161, %c0_162, %c0_163, %c0_164] : memref<1x18x25x64xbf16, #tpu.memory_space<vmem>>, vector<1x18x25x64xbf16>
      tpu.vector_store %arg9[%c0_161, %c0_162, %c0_163, %c0_164], %181 {strides = array<i32>} : memref<1x18x25x64xbf16, #tpu.memory_space<vmem>>, vector<1x18x25x64xbf16>,
    } else {
    }
    %c0 = arith.constant 0 : index
    %c0_1 = arith.constant 0 : index
    %c0_2 = arith.constant 0 : index
    %c0_3 = arith.constant 0 : index
    %3 = vector.load %arg2[%c0, %c0_1, %c0_2, %c0_3] : memref<1x1x16x64xf32, #tpu.memory_space<vmem>>, vector<1x1x16x64xf32>
    %4 = vector.shape_cast %3 : vector<1x1x16x64xf32> to vector<1x16x64xf32>
    %5 = vector.shape_cast %4 : vector<1x16x64xf32> to vector<1x16x16x4xf32>
    %c0_4 = arith.constant 0 : index
    %c0_5 = arith.constant 0 : index
    %6 = vector.load %arg8[%c0_4, %c0_5] : memref<256x32xf32, #tpu.memory_space<vmem>>, vector<256x32xf32>
    %7 = arith.truncf %5 : vector<1x16x16x4xf32> to vector<1x16x16x4xbf16>
    %c0_6 = arith.constant 0 : index
    %c1 = arith.constant 1 : index
    %c8 = arith.constant 8 : index
    %c32 = arith.constant 32 : index
    %8 = vector.load %arg9[%c0_6, %c1, %c8, %c32] : memref<1x18x25x64xbf16, #tpu.memory_space<vmem>>, vector<1x16x16x4xbf16>
    tpu.vector_store %arg9[%c0_6, %c1, %c8, %c32], %7 {strides = array<i32>} : memref<1x18x25x64xbf16, #tpu.memory_space<vmem>>, vector<1x16x16x4xbf16>,
    %9 = arith.truncf %6 : vector<256x32xf32> to vector<256x32xbf16>
    %10 = vector.shape_cast %9 : vector<256x32xbf16> to vector<1x16x16x32xbf16>
    %c0_7 = arith.constant 0 : index
    %c1_8 = arith.constant 1 : index
    %c8_9 = arith.constant 8 : index
    %c0_10 = arith.constant 0 : index
    %11 = vector.load %arg9[%c0_7, %c1_8, %c8_9, %c0_10] : memref<1x18x25x64xbf16, #tpu.memory_space<vmem>>, vector<1x16x16x32xbf16>
    tpu.vector_store %arg9[%c0_7, %c1_8, %c8_9, %c0_10], %10 {strides = array<i32>} : memref<1x18x25x64xbf16, #tpu.memory_space<vmem>>, vector<1x16x16x32xbf16>,
    %c0_11 = arith.constant 0 : index
    %c0_12 = arith.constant 0 : index
    %c7 = arith.constant 7 : index
    %c0_13 = arith.constant 0 : index
    %12 = vector.load %arg9[%c0_11, %c0_12, %c7, %c0_13] : memref<1x18x25x64xbf16, #tpu.memory_space<vmem>>, vector<1x16x16x64xbf16>
    %13 = vector.shape_cast %12 : vector<1x16x16x64xbf16> to vector<256x64xbf16>
    %c0_14 = arith.constant 0 : index
    %c0_15 = arith.constant 0 : index
    %14 = vector.load %arg10[%c0_14, %c0_15] : memref<256x576xbf16, #tpu.memory_space<vmem>>, vector<256x64xbf16>
    tpu.vector_store %arg10[%c0_14, %c0_15], %13 {strides = array<i32>} : memref<256x576xbf16, #tpu.memory_space<vmem>>, vector<256x64xbf16>,
    %c0_16 = arith.constant 0 : index
    %c0_17 = arith.constant 0 : index
    %c8_18 = arith.constant 8 : index
    %c0_19 = arith.constant 0 : index
    %15 = vector.load %arg9[%c0_16, %c0_17, %c8_18, %c0_19] : memref<1x18x25x64xbf16, #tpu.memory_space<vmem>>, vector<1x16x16x64xbf16>
    %16 = vector.shape_cast %15 : vector<1x16x16x64xbf16> to vector<256x64xbf16>
    %c0_20 = arith.constant 0 : index
    %c64 = arith.constant 64 : index
    %17 = vector.load %arg10[%c0_20, %c64] : memref<256x576xbf16, #tpu.memory_space<vmem>>, vector<256x64xbf16>
    tpu.vector_store %arg10[%c0_20, %c64], %16 {strides = array<i32>} : memref<256x576xbf16, #tpu.memory_space<vmem>>, vector<256x64xbf16>,
    %c0_21 = arith.constant 0 : index
    %c0_22 = arith.constant 0 : index
    %c9 = arith.constant 9 : index
    %c0_23 = arith.constant 0 : index
    %18 = vector.load %arg9[%c0_21, %c0_22, %c9, %c0_23] : memref<1x18x25x64xbf16, #tpu.memory_space<vmem>>, vector<1x16x16x64xbf16>
    %19 = vector.shape_cast %18 : vector<1x16x16x64xbf16> to vector<256x64xbf16>
    %c0_24 = arith.constant 0 : index
    %c128 = arith.constant 128 : index
    %20 = vector.load %arg10[%c0_24, %c128] : memref<256x576xbf16, #tpu.memory_space<vmem>>, vector<256x64xbf16>
    tpu.vector_store %arg10[%c0_24, %c128], %19 {strides = array<i32>} : memref<256x576xbf16, #tpu.memory_space<vmem>>, vector<256x64xbf16>,
    %c0_25 = arith.constant 0 : index
    %c1_26 = arith.constant 1 : index
    %c7_27 = arith.constant 7 : index
    %c0_28 = arith.constant 0 : index
    %21 = vector.load %arg9[%c0_25, %c1_26, %c7_27, %c0_28] : memref<1x18x25x64xbf16, #tpu.memory_space<vmem>>, vector<1x16x16x64xbf16>
    %22 = vector.shape_cast %21 : vector<1x16x16x64xbf16> to vector<256x64xbf16>
    %c0_29 = arith.constant 0 : index
    %c192 = arith.constant 192 : index
    %23 = vector.load %arg10[%c0_29, %c192] : memref<256x576xbf16, #tpu.memory_space<vmem>>, vector<256x64xbf16>
    tpu.vector_store %arg10[%c0_29, %c192], %22 {strides = array<i32>} : memref<256x576xbf16, #tpu.memory_space<vmem>>, vector<256x64xbf16>,
    %c0_30 = arith.constant 0 : index
    %c1_31 = arith.constant 1 : index
    %c8_32 = arith.constant 8 : index
    %c0_33 = arith.constant 0 : index
    %24 = vector.load %arg9[%c0_30, %c1_31, %c8_32, %c0_33] : memref<1x18x25x64xbf16, #tpu.memory_space<vmem>>, vector<1x16x16x64xbf16>
    %25 = vector.shape_cast %24 : vector<1x16x16x64xbf16> to vector<256x64xbf16>
    %c0_34 = arith.constant 0 : index
    %c256 = arith.constant 256 : index
    %26 = vector.load %arg10[%c0_34, %c256] : memref<256x576xbf16, #tpu.memory_space<vmem>>, vector<256x64xbf16>
    tpu.vector_store %arg10[%c0_34, %c256], %25 {strides = array<i32>} : memref<256x576xbf16, #tpu.memory_space<vmem>>, vector<256x64xbf16>,
    %c0_35 = arith.constant 0 : index
    %c1_36 = arith.constant 1 : index
    %c9_37 = arith.constant 9 : index
    %c0_38 = arith.constant 0 : index
    %27 = vector.load %arg9[%c0_35, %c1_36, %c9_37, %c0_38] : memref<1x18x25x64xbf16, #tpu.memory_space<vmem>>, vector<1x16x16x64xbf16>
    %28 = vector.shape_cast %27 : vector<1x16x16x64xbf16> to vector<256x64xbf16>
    %c0_39 = arith.constant 0 : index
    %c320 = arith.constant 320 : index
    %29 = vector.load %arg10[%c0_39, %c320] : memref<256x576xbf16, #tpu.memory_space<vmem>>, vector<256x64xbf16>
    tpu.vector_store %arg10[%c0_39, %c320], %28 {strides = array<i32>} : memref<256x576xbf16, #tpu.memory_space<vmem>>, vector<256x64xbf16>,
    %c0_40 = arith.constant 0 : index
    %c2 = arith.constant 2 : index
    %c7_41 = arith.constant 7 : index
    %c0_42 = arith.constant 0 : index
    %30 = vector.load %arg9[%c0_40, %c2, %c7_41, %c0_42] : memref<1x18x25x64xbf16, #tpu.memory_space<vmem>>, vector<1x16x16x64xbf16>
    %31 = vector.shape_cast %30 : vector<1x16x16x64xbf16> to vector<256x64xbf16>
    %c0_43 = arith.constant 0 : index
    %c384 = arith.constant 384 : index
    %32 = vector.load %arg10[%c0_43, %c384] : memref<256x576xbf16, #tpu.memory_space<vmem>>, vector<256x64xbf16>
    tpu.vector_store %arg10[%c0_43, %c384], %31 {strides = array<i32>} : memref<256x576xbf16, #tpu.memory_space<vmem>>, vector<256x64xbf16>,
    %c0_44 = arith.constant 0 : index
    %c2_45 = arith.constant 2 : index
    %c8_46 = arith.constant 8 : index
    %c0_47 = arith.constant 0 : index
    %33 = vector.load %arg9[%c0_44, %c2_45, %c8_46, %c0_47] : memref<1x18x25x64xbf16, #tpu.memory_space<vmem>>, vector<1x16x16x64xbf16>
    %34 = vector.shape_cast %33 : vector<1x16x16x64xbf16> to vector<256x64xbf16>
    %c0_48 = arith.constant 0 : index
    %c448 = arith.constant 448 : index
    %35 = vector.load %arg10[%c0_48, %c448] : memref<256x576xbf16, #tpu.memory_space<vmem>>, vector<256x64xbf16>
    tpu.vector_store %arg10[%c0_48, %c448], %34 {strides = array<i32>} : memref<256x576xbf16, #tpu.memory_space<vmem>>, vector<256x64xbf16>,
    %c0_49 = arith.constant 0 : index
    %c2_50 = arith.constant 2 : index
    %c9_51 = arith.constant 9 : index
    %c0_52 = arith.constant 0 : index
    %36 = vector.load %arg9[%c0_49, %c2_50, %c9_51, %c0_52] : memref<1x18x25x64xbf16, #tpu.memory_space<vmem>>, vector<1x16x16x64xbf16>
    %37 = vector.shape_cast %36 : vector<1x16x16x64xbf16> to vector<256x64xbf16>
    %c0_53 = arith.constant 0 : index
    %c512 = arith.constant 512 : index
    %38 = vector.load %arg10[%c0_53, %c512] : memref<256x576xbf16, #tpu.memory_space<vmem>>, vector<256x64xbf16>
    tpu.vector_store %arg10[%c0_53, %c512], %37 {strides = array<i32>} : memref<256x576xbf16, #tpu.memory_space<vmem>>, vector<256x64xbf16>,
    %c0_54 = arith.constant 0 : index
    %c0_55 = arith.constant 0 : index
    %39 = vector.load %arg10[%c0_54, %c0_55] : memref<256x576xbf16, #tpu.memory_space<vmem>>, vector<256x576xbf16>
    %c0_56 = arith.constant 0 : index
    %c0_57 = arith.constant 0 : index
    %40 = vector.load %arg3[%c0_56, %c0_57] : memref<576x64xbf16, #tpu.memory_space<vmem>>, vector<576x64xbf16>
    %cst = arith.constant dense<0.000000e+00> : vector<256x64xf32>
    %41 = tpu.matmul %39, %40, %cst {dimension_numbers = #tpu.dot_dimension_numbers<[1], [0], [0], [1], [0, 0, 1, 1], [], []>} : vector<256x576xbf16>, vector<576x64xbf16>, vector<256x64xf32> -> vector<256x64xf32>
    %c0_58 = arith.constant 0 : index
    %c0_59 = arith.constant 0 : index
    %42 = vector.load %arg4[%c0_58, %c0_59] : memref<3x64xf32, #tpu.memory_space<vmem>>, vector<1x64xf32>
    %43 = vector.broadcast %42 : vector<1x64xf32> to vector<256x64xf32>
    %44 = arith.addf %41, %43 : vector<256x64xf32>
    %45 = vector.shape_cast %44 : vector<256x64xf32> to vector<1x256x64xf32>
    %cst_60 = arith.constant dense<0.000000e+00> : vector<1x64xf32>
    %46 = vector.multi_reduction <add>, %45, %cst_60 [1] : vector<1x256x64xf32> to vector<1x64xf32>
    %47 = arith.mulf %45, %45 : vector<1x256x64xf32>
    %cst_61 = arith.constant dense<0.000000e+00> : vector<1x64xf32>
    %48 = vector.multi_reduction <add>, %47, %cst_61 [1] : vector<1x256x64xf32> to vector<1x64xf32>
    %49 = vector.shape_cast %46 : vector<1x64xf32> to vector<1x2x32xf32>
    %cst_62 = arith.constant dense<0.000000e+00> : vector<1x2xf32>
    %50 = vector.multi_reduction <add>, %49, %cst_62 [2] : vector<1x2x32xf32> to vector<1x2xf32>
    %51 = vector.shape_cast %48 : vector<1x64xf32> to vector<1x2x32xf32>
    %cst_63 = arith.constant dense<0.000000e+00> : vector<1x2xf32>
    %52 = vector.multi_reduction <add>, %51, %cst_63 [2] : vector<1x2x32xf32> to vector<1x2xf32>
    %cst_64 = arith.constant 1.22070313E-4 : f32
    %53 = vector.broadcast %cst_64 : f32 to vector<1x2xf32>
    %54 = arith.mulf %50, %53 : vector<1x2xf32>
    %cst_65 = arith.constant 1.22070313E-4 : f32
    %55 = vector.broadcast %cst_65 : f32 to vector<1x2xf32>
    %56 = arith.mulf %52, %55 : vector<1x2xf32>
    %57 = arith.mulf %54, %54 : vector<1x2xf32>
    %58 = arith.subf %56, %57 : vector<1x2xf32>
    %cst_66 = arith.constant 0.000000e+00 : f32
    %59 = vector.broadcast %cst_66 : f32 to vector<1x2xf32>
    %60 = arith.maximumf %58, %59 : vector<1x2xf32>
    %cst_67 = arith.constant 9.99999974E-6 : f32
    %61 = vector.broadcast %cst_67 : f32 to vector<1x2xf32>
    %62 = arith.addf %60, %61 : vector<1x2xf32>
    %63 = math.rsqrt %62 : vector<1x2xf32>
    %64 = vector.shape_cast %54 : vector<1x2xf32> to vector<1x2x1xf32>
    %65 = vector.shape_cast %64 : vector<1x2x1xf32> to vector<1x2x1xf32>
    %66 = vector.broadcast %65 : vector<1x2x1xf32> to vector<1x2x32xf32>
    %67 = vector.shape_cast %66 : vector<1x2x32xf32> to vector<1x1x64xf32>
    %68 = vector.shape_cast %63 : vector<1x2xf32> to vector<1x2x1xf32>
    %69 = vector.shape_cast %68 : vector<1x2x1xf32> to vector<1x2x1xf32>
    %70 = vector.broadcast %69 : vector<1x2x1xf32> to vector<1x2x32xf32>
    %71 = vector.shape_cast %70 : vector<1x2x32xf32> to vector<1x1x64xf32>
    %c1_68 = arith.constant 1 : index
    %c0_69 = arith.constant 0 : index
    %72 = vector.load %arg4[%c1_68, %c0_69] : memref<3x64xf32, #tpu.memory_space<vmem>>, vector<1x64xf32>
    %73 = vector.shape_cast %72 : vector<1x64xf32> to vector<1x1x64xf32>
    %74 = arith.mulf %73, %71 : vector<1x1x64xf32>
    %c2_70 = arith.constant 2 : index
    %c0_71 = arith.constant 0 : index
    %75 = vector.load %arg4[%c2_70, %c0_71] : memref<3x64xf32, #tpu.memory_space<vmem>>, vector<1x64xf32>
    %76 = vector.shape_cast %75 : vector<1x64xf32> to vector<1x1x64xf32>
    %77 = arith.mulf %67, %74 : vector<1x1x64xf32>
    %78 = arith.subf %76, %77 : vector<1x1x64xf32>
    %79 = vector.broadcast %74 : vector<1x1x64xf32> to vector<1x256x64xf32>
    %80 = arith.mulf %45, %79 : vector<1x256x64xf32>
    %81 = vector.broadcast %78 : vector<1x1x64xf32> to vector<1x256x64xf32>
    %82 = arith.addf %80, %81 : vector<1x256x64xf32>
    %83 = vector.shape_cast %82 : vector<1x256x64xf32> to vector<256x64xf32>
    %84 = vector.extract_strided_slice %83 {offsets = [0, 0], sizes = [256, 32], strides = [1, 1]} : vector<256x64xf32> to vector<256x32xf32>
    %85 = arith.negf %84 : vector<256x32xf32>
    %86 = math.exp %85 : vector<256x32xf32>
    %cst_72 = arith.constant 1.000000e+00 : f32
    %87 = vector.broadcast %cst_72 : f32 to vector<256x32xf32>
    %88 = arith.addf %87, %86 : vector<256x32xf32>
    %89 = arith.divf %87, %88 : vector<256x32xf32>
    %90 = vector.extract_strided_slice %83 {offsets = [0, 32], sizes = [256, 32], strides = [1, 1]} : vector<256x64xf32> to vector<256x32xf32>
    %91 = arith.negf %90 : vector<256x32xf32>
    %92 = math.exp %91 : vector<256x32xf32>
    %cst_73 = arith.constant 1.000000e+00 : f32
    %93 = vector.broadcast %cst_73 : f32 to vector<256x32xf32>
    %94 = arith.addf %93, %92 : vector<256x32xf32>
    %95 = arith.divf %93, %94 : vector<256x32xf32>
    %96 = arith.mulf %95, %6 : vector<256x32xf32>
    %97 = arith.truncf %96 : vector<256x32xf32> to vector<256x32xbf16>
    %98 = vector.shape_cast %97 : vector<256x32xbf16> to vector<1x16x16x32xbf16>
    %c0_74 = arith.constant 0 : index
    %c1_75 = arith.constant 1 : index
    %c8_76 = arith.constant 8 : index
    %c0_77 = arith.constant 0 : index
    %99 = vector.load %arg9[%c0_74, %c1_75, %c8_76, %c0_77] : memref<1x18x25x64xbf16, #tpu.memory_space<vmem>>, vector<1x16x16x32xbf16>
    tpu.vector_store %arg9[%c0_74, %c1_75, %c8_76, %c0_77], %98 {strides = array<i32>} : memref<1x18x25x64xbf16, #tpu.memory_space<vmem>>, vector<1x16x16x32xbf16>,
    %c0_78 = arith.constant 0 : index
    %c0_79 = arith.constant 0 : index
    %c7_80 = arith.constant 7 : index
    %c0_81 = arith.constant 0 : index
    %100 = vector.load %arg9[%c0_78, %c0_79, %c7_80, %c0_81] : memref<1x18x25x64xbf16, #tpu.memory_space<vmem>>, vector<1x16x16x64xbf16>
    %101 = vector.shape_cast %100 : vector<1x16x16x64xbf16> to vector<256x64xbf16>
    %c0_82 = arith.constant 0 : index
    %c0_83 = arith.constant 0 : index
    %102 = vector.load %arg10[%c0_82, %c0_83] : memref<256x576xbf16, #tpu.memory_space<vmem>>, vector<256x64xbf16>
    tpu.vector_store %arg10[%c0_82, %c0_83], %101 {strides = array<i32>} : memref<256x576xbf16, #tpu.memory_space<vmem>>, vector<256x64xbf16>,
    %c0_84 = arith.constant 0 : index
    %c0_85 = arith.constant 0 : index
    %c8_86 = arith.constant 8 : index
    %c0_87 = arith.constant 0 : index
    %103 = vector.load %arg9[%c0_84, %c0_85, %c8_86, %c0_87] : memref<1x18x25x64xbf16, #tpu.memory_space<vmem>>, vector<1x16x16x64xbf16>
    %104 = vector.shape_cast %103 : vector<1x16x16x64xbf16> to vector<256x64xbf16>
    %c0_88 = arith.constant 0 : index
    %c64_89 = arith.constant 64 : index
    %105 = vector.load %arg10[%c0_88, %c64_89] : memref<256x576xbf16, #tpu.memory_space<vmem>>, vector<256x64xbf16>
    tpu.vector_store %arg10[%c0_88, %c64_89], %104 {strides = array<i32>} : memref<256x576xbf16, #tpu.memory_space<vmem>>, vector<256x64xbf16>,
    %c0_90 = arith.constant 0 : index
    %c0_91 = arith.constant 0 : index
    %c9_92 = arith.constant 9 : index
    %c0_93 = arith.constant 0 : index
    %106 = vector.load %arg9[%c0_90, %c0_91, %c9_92, %c0_93] : memref<1x18x25x64xbf16, #tpu.memory_space<vmem>>, vector<1x16x16x64xbf16>
    %107 = vector.shape_cast %106 : vector<1x16x16x64xbf16> to vector<256x64xbf16>
    %c0_94 = arith.constant 0 : index
    %c128_95 = arith.constant 128 : index
    %108 = vector.load %arg10[%c0_94, %c128_95] : memref<256x576xbf16, #tpu.memory_space<vmem>>, vector<256x64xbf16>
    tpu.vector_store %arg10[%c0_94, %c128_95], %107 {strides = array<i32>} : memref<256x576xbf16, #tpu.memory_space<vmem>>, vector<256x64xbf16>,
    %c0_96 = arith.constant 0 : index
    %c1_97 = arith.constant 1 : index
    %c7_98 = arith.constant 7 : index
    %c0_99 = arith.constant 0 : index
    %109 = vector.load %arg9[%c0_96, %c1_97, %c7_98, %c0_99] : memref<1x18x25x64xbf16, #tpu.memory_space<vmem>>, vector<1x16x16x64xbf16>
    %110 = vector.shape_cast %109 : vector<1x16x16x64xbf16> to vector<256x64xbf16>
    %c0_100 = arith.constant 0 : index
    %c192_101 = arith.constant 192 : index
    %111 = vector.load %arg10[%c0_100, %c192_101] : memref<256x576xbf16, #tpu.memory_space<vmem>>, vector<256x64xbf16>
    tpu.vector_store %arg10[%c0_100, %c192_101], %110 {strides = array<i32>} : memref<256x576xbf16, #tpu.memory_space<vmem>>, vector<256x64xbf16>,
    %c0_102 = arith.constant 0 : index
    %c1_103 = arith.constant 1 : index
    %c8_104 = arith.constant 8 : index
    %c0_105 = arith.constant 0 : index
    %112 = vector.load %arg9[%c0_102, %c1_103, %c8_104, %c0_105] : memref<1x18x25x64xbf16, #tpu.memory_space<vmem>>, vector<1x16x16x64xbf16>
    %113 = vector.shape_cast %112 : vector<1x16x16x64xbf16> to vector<256x64xbf16>
    %c0_106 = arith.constant 0 : index
    %c256_107 = arith.constant 256 : index
    %114 = vector.load %arg10[%c0_106, %c256_107] : memref<256x576xbf16, #tpu.memory_space<vmem>>, vector<256x64xbf16>
    tpu.vector_store %arg10[%c0_106, %c256_107], %113 {strides = array<i32>} : memref<256x576xbf16, #tpu.memory_space<vmem>>, vector<256x64xbf16>,
    %c0_108 = arith.constant 0 : index
    %c1_109 = arith.constant 1 : index
    %c9_110 = arith.constant 9 : index
    %c0_111 = arith.constant 0 : index
    %115 = vector.load %arg9[%c0_108, %c1_109, %c9_110, %c0_111] : memref<1x18x25x64xbf16, #tpu.memory_space<vmem>>, vector<1x16x16x64xbf16>
    %116 = vector.shape_cast %115 : vector<1x16x16x64xbf16> to vector<256x64xbf16>
    %c0_112 = arith.constant 0 : index
    %c320_113 = arith.constant 320 : index
    %117 = vector.load %arg10[%c0_112, %c320_113] : memref<256x576xbf16, #tpu.memory_space<vmem>>, vector<256x64xbf16>
    tpu.vector_store %arg10[%c0_112, %c320_113], %116 {strides = array<i32>} : memref<256x576xbf16, #tpu.memory_space<vmem>>, vector<256x64xbf16>,
    %c0_114 = arith.constant 0 : index
    %c2_115 = arith.constant 2 : index
    %c7_116 = arith.constant 7 : index
    %c0_117 = arith.constant 0 : index
    %118 = vector.load %arg9[%c0_114, %c2_115, %c7_116, %c0_117] : memref<1x18x25x64xbf16, #tpu.memory_space<vmem>>, vector<1x16x16x64xbf16>
    %119 = vector.shape_cast %118 : vector<1x16x16x64xbf16> to vector<256x64xbf16>
    %c0_118 = arith.constant 0 : index
    %c384_119 = arith.constant 384 : index
    %120 = vector.load %arg10[%c0_118, %c384_119] : memref<256x576xbf16, #tpu.memory_space<vmem>>, vector<256x64xbf16>
    tpu.vector_store %arg10[%c0_118, %c384_119], %119 {strides = array<i32>} : memref<256x576xbf16, #tpu.memory_space<vmem>>, vector<256x64xbf16>,
    %c0_120 = arith.constant 0 : index
    %c2_121 = arith.constant 2 : index
    %c8_122 = arith.constant 8 : index
    %c0_123 = arith.constant 0 : index
    %121 = vector.load %arg9[%c0_120, %c2_121, %c8_122, %c0_123] : memref<1x18x25x64xbf16, #tpu.memory_space<vmem>>, vector<1x16x16x64xbf16>
    %122 = vector.shape_cast %121 : vector<1x16x16x64xbf16> to vector<256x64xbf16>
    %c0_124 = arith.constant 0 : index
    %c448_125 = arith.constant 448 : index
    %123 = vector.load %arg10[%c0_124, %c448_125] : memref<256x576xbf16, #tpu.memory_space<vmem>>, vector<256x64xbf16>
    tpu.vector_store %arg10[%c0_124, %c448_125], %122 {strides = array<i32>} : memref<256x576xbf16, #tpu.memory_space<vmem>>, vector<256x64xbf16>,
    %c0_126 = arith.constant 0 : index
    %c2_127 = arith.constant 2 : index
    %c9_128 = arith.constant 9 : index
    %c0_129 = arith.constant 0 : index
    %124 = vector.load %arg9[%c0_126, %c2_127, %c9_128, %c0_129] : memref<1x18x25x64xbf16, #tpu.memory_space<vmem>>, vector<1x16x16x64xbf16>
    %125 = vector.shape_cast %124 : vector<1x16x16x64xbf16> to vector<256x64xbf16>
    %c0_130 = arith.constant 0 : index
    %c512_131 = arith.constant 512 : index
    %126 = vector.load %arg10[%c0_130, %c512_131] : memref<256x576xbf16, #tpu.memory_space<vmem>>, vector<256x64xbf16>
    tpu.vector_store %arg10[%c0_130, %c512_131], %125 {strides = array<i32>} : memref<256x576xbf16, #tpu.memory_space<vmem>>, vector<256x64xbf16>,
    %c0_132 = arith.constant 0 : index
    %c0_133 = arith.constant 0 : index
    %127 = vector.load %arg10[%c0_132, %c0_133] : memref<256x576xbf16, #tpu.memory_space<vmem>>, vector<256x576xbf16>
    %c0_134 = arith.constant 0 : index
    %c0_135 = arith.constant 0 : index
    %128 = vector.load %arg5[%c0_134, %c0_135] : memref<576x32xbf16, #tpu.memory_space<vmem>>, vector<576x32xbf16>
    %cst_136 = arith.constant dense<0.000000e+00> : vector<256x32xf32>
    %129 = tpu.matmul %127, %128, %cst_136 {dimension_numbers = #tpu.dot_dimension_numbers<[1], [0], [0], [1], [0, 0, 1, 1], [], []>} : vector<256x576xbf16>, vector<576x32xbf16>, vector<256x32xf32> -> vector<256x32xf32>
    %c0_137 = arith.constant 0 : index
    %c0_138 = arith.constant 0 : index
    %130 = vector.load %arg6[%c0_137, %c0_138] : memref<3x32xf32, #tpu.memory_space<vmem>>, vector<1x32xf32>
    %131 = vector.broadcast %130 : vector<1x32xf32> to vector<256x32xf32>
    %132 = arith.addf %129, %131 : vector<256x32xf32>
    %133 = vector.shape_cast %132 : vector<256x32xf32> to vector<1x256x32xf32>
    %cst_139 = arith.constant dense<0.000000e+00> : vector<1x32xf32>
    %134 = vector.multi_reduction <add>, %133, %cst_139 [1] : vector<1x256x32xf32> to vector<1x32xf32>
    %135 = arith.mulf %133, %133 : vector<1x256x32xf32>
    %cst_140 = arith.constant dense<0.000000e+00> : vector<1x32xf32>
    %136 = vector.multi_reduction <add>, %135, %cst_140 [1] : vector<1x256x32xf32> to vector<1x32xf32>
    %137 = vector.shape_cast %134 : vector<1x32xf32> to vector<1x1x32xf32>
    %cst_141 = arith.constant dense<0.000000e+00> : vector<1x1xf32>
    %138 = vector.multi_reduction <add>, %137, %cst_141 [2] : vector<1x1x32xf32> to vector<1x1xf32>
    %139 = vector.shape_cast %136 : vector<1x32xf32> to vector<1x1x32xf32>
    %cst_142 = arith.constant dense<0.000000e+00> : vector<1x1xf32>
    %140 = vector.multi_reduction <add>, %139, %cst_142 [2] : vector<1x1x32xf32> to vector<1x1xf32>
    %cst_143 = arith.constant 1.22070313E-4 : f32
    %141 = vector.broadcast %cst_143 : f32 to vector<1x1xf32>
    %142 = arith.mulf %138, %141 : vector<1x1xf32>
    %cst_144 = arith.constant 1.22070313E-4 : f32
    %143 = vector.broadcast %cst_144 : f32 to vector<1x1xf32>
    %144 = arith.mulf %140, %143 : vector<1x1xf32>
    %145 = arith.mulf %142, %142 : vector<1x1xf32>
    %146 = arith.subf %144, %145 : vector<1x1xf32>
    %cst_145 = arith.constant 0.000000e+00 : f32
    %147 = vector.broadcast %cst_145 : f32 to vector<1x1xf32>
    %148 = arith.maximumf %146, %147 : vector<1x1xf32>
    %cst_146 = arith.constant 9.99999974E-6 : f32
    %149 = vector.broadcast %cst_146 : f32 to vector<1x1xf32>
    %150 = arith.addf %148, %149 : vector<1x1xf32>
    %151 = math.rsqrt %150 : vector<1x1xf32>
    %152 = vector.shape_cast %142 : vector<1x1xf32> to vector<1x1x1xf32>
    %153 = vector.shape_cast %152 : vector<1x1x1xf32> to vector<1x1x1xf32>
    %154 = vector.broadcast %153 : vector<1x1x1xf32> to vector<1x1x32xf32>
    %155 = vector.shape_cast %151 : vector<1x1xf32> to vector<1x1x1xf32>
    %156 = vector.shape_cast %155 : vector<1x1x1xf32> to vector<1x1x1xf32>
    %157 = vector.broadcast %156 : vector<1x1x1xf32> to vector<1x1x32xf32>
    %c1_147 = arith.constant 1 : index
    %c0_148 = arith.constant 0 : index
    %158 = vector.load %arg6[%c1_147, %c0_148] : memref<3x32xf32, #tpu.memory_space<vmem>>, vector<1x32xf32>
    %159 = vector.shape_cast %158 : vector<1x32xf32> to vector<1x1x32xf32>
    %160 = arith.mulf %159, %157 : vector<1x1x32xf32>
    %c2_149 = arith.constant 2 : index
    %c0_150 = arith.constant 0 : index
    %161 = vector.load %arg6[%c2_149, %c0_150] : memref<3x32xf32, #tpu.memory_space<vmem>>, vector<1x32xf32>
    %162 = vector.shape_cast %161 : vector<1x32xf32> to vector<1x1x32xf32>
    %163 = arith.mulf %154, %160 : vector<1x1x32xf32>
    %164 = arith.subf %162, %163 : vector<1x1x32xf32>
    %165 = vector.broadcast %160 : vector<1x1x32xf32> to vector<1x256x32xf32>
    %166 = arith.mulf %133, %165 : vector<1x256x32xf32>
    %167 = vector.broadcast %164 : vector<1x1x32xf32> to vector<1x256x32xf32>
    %168 = arith.addf %166, %167 : vector<1x256x32xf32>
    %169 = vector.shape_cast %168 : vector<1x256x32xf32> to vector<256x32xf32>
    %170 = math.tanh %169 : vector<256x32xf32>
    %171 = arith.subf %170, %6 : vector<256x32xf32>
    %172 = arith.mulf %89, %171 : vector<256x32xf32>
    %173 = arith.addf %6, %172 : vector<256x32xf32>
    %c0_151 = arith.constant 0 : index
    %c0_152 = arith.constant 0 : index
    %174 = vector.load %arg8[%c0_151, %c0_152] : memref<256x32xf32, #tpu.memory_space<vmem>>, vector<256x32xf32>
    tpu.vector_store %arg8[%c0_151, %c0_152], %173 {strides = array<i32>} : memref<256x32xf32, #tpu.memory_space<vmem>>, vector<256x32xf32>,
    %175 = vector.shape_cast %173 : vector<256x32xf32> to vector<1x256x32xf32>
    %c0_153 = arith.constant 0 : index
    %c0_154 = arith.constant 0 : index
    %c0_155 = arith.constant 0 : index
    %c0_156 = arith.constant 0 : index
    %176 = vector.load %arg7[%c0_153, %c0_154, %c0_155, %c0_156] : memref<1x1x256x32xf32, #tpu.memory_space<vmem>>, vector<1x1x256x32xf32>
    %177 = vector.shape_cast %176 : vector<1x1x256x32xf32> to vector<1x256x32xf32>
    %178 = vector.shape_cast %175 : vector<1x256x32xf32> to vector<1x1x256x32xf32>
    tpu.vector_store %arg7[%c0_153, %c0_154, %c0_155, %c0_156], %178 {strides = array<i32>} : memref<1x1x256x32xf32, #tpu.memory_space<vmem>>, vector<1x1x256x32xf32>,
    return
  }
  func.func @transform_0(%arg0: i32, %arg1: i32) -> (i32, i32, i32, i32) {
    %c0_i32 = arith.constant 0 : i32
    %c0_i32_0 = arith.constant 0 : i32
    %c0_i32_1 = arith.constant 0 : i32
    return %arg1, %arg0, %c0_i32, %c0_i32_0 : i32, i32, i32, i32
  }
  func.func @transform_1(%arg0: i32, %arg1: i32) -> (i32, i32) {
    %c0_i32 = arith.constant 0 : i32
    %c0_i32_0 = arith.constant 0 : i32
    %c0_i32_1 = arith.constant 0 : i32
    return %c0_i32, %c0_i32_0 : i32, i32
  }
  func.func @transform_2(%arg0: i32, %arg1: i32) -> (i32, i32) {
    %c0_i32 = arith.constant 0 : i32
    %c0_i32_0 = arith.constant 0 : i32
    %c0_i32_1 = arith.constant 0 : i32
    return %c0_i32, %c0_i32_0 : i32, i32
  }
  func.func @transform_3(%arg0: i32, %arg1: i32) -> (i32, i32) {
    %c0_i32 = arith.constant 0 : i32
    %c0_i32_0 = arith.constant 0 : i32
    %c0_i32_1 = arith.constant 0 : i32
    return %c0_i32, %c0_i32_0 : i32, i32
  }
  func.func @transform_4(%arg0: i32, %arg1: i32) -> (i32, i32) {
    %c0_i32 = arith.constant 0 : i32
    %c0_i32_0 = arith.constant 0 : i32
    %c0_i32_1 = arith.constant 0 : i32
    return %c0_i32, %c0_i32_0 : i32, i32
  }
  func.func @transform_5(%arg0: i32, %arg1: i32) -> (i32, i32, i32, i32) {
    %c0_i32 = arith.constant 0 : i32
    %c0_i32_0 = arith.constant 0 : i32
    %c0_i32_1 = arith.constant 0 : i32
    return %arg1, %arg0, %c0_i32, %c0_i32_0 : i32, i32, i32, i32
  }
}

</mosaic_0001>

<llo_original>
// kernel: cgru_forward.1
$region0: #{cgru_forward.1}
  #allocation0 [shape = 'u32[]', space=smem, size = 0x4, offset = 0x4, fixed_abs, tag = 'smem constant byte address 0x4 - core index']
  #allocation1 [shape = 'u32[72,128]{1,0:T(1,128)}', space=vmem, size = 0x9000, scoped, tag = 'internal scratch']
  #allocation2 [shape = 'f32[256,32]{1,0:T(8,128)}', space=vmem, size = 0x20000, scoped, tag = 'scratch operand']
  #allocation3 [shape = 'bf16[1,18,25,64]{3,2,1,0:T(8,128)(2,1)}', space=vmem, size = 0x24000, scoped, tag = 'scratch operand']
  #allocation4 [shape = 'bf16[256,576]{1,0:T(8,128)(2,1)}', space=vmem, size = 0x50000, scoped, tag = 'scratch operand']
  %s0 = inlined_call_operand.vmem [shape: f32[4,2,16,64], index: 0, kind: input, shape index: {}]
  %s1 = inlined_call_operand.vmem [shape: bf16[576,64], index: 1, kind: input, shape index: {}]
  %s2 = inlined_call_operand.vmem [shape: f32[3,64], index: 2, kind: input, shape index: {}]
  %s3 = inlined_call_operand.vmem [shape: bf16[576,32], index: 3, kind: input, shape index: {}]
  %s4 = inlined_call_operand.vmem [shape: f32[3,32], index: 4, kind: input, shape index: {}]
  %s5 = inlined_call_operand.vmem [shape: f32[4,2,256,32], index: 5, kind: output, shape index: {}]
  %s6 = sld [smem:[#allocation0]]
  $region57: #{cgru_forward.1} parent=0
    _
  %s8 = ssub.s32 1, %s6
  %s9 = scalar_select 0, %s8, %s6
  loop: start=0, step=1, limit=10
  $region2: #{cgru_forward.1} parent=0 // loop_pre_header
    _
  $region3: #{cgru_forward.1} parent=0 // loop_header
    %s11 = sphi 0, %s15
    %p12 = scmp.ge.s32.totalorder %s11, 10
    %s18 = sphi 0, %s30
    %s19 = sphi 0, %s26
    %s20 = sphi 0, %s18
    %s21 = sphi 0, %s19
    %s22 = sphi 0, %s20
    %s23 = sphi 0, %s21
    %s35 = sphi 0, %s37
    %s38 = sphi 0, %s35
    %s39 = sphi 0, %s38
    %s55 = sphi 0, %s39
    %s59 = sphi 0, %s59
    %s61 = sphi 0, %s59
    %s62 = sphi 0, %s61
    %s76 = sphi 0, %s62
    %s80 = sphi 0, %s80
    %s82 = sphi 0, %s80
    %s83 = sphi 0, %s82
    %s97 = sphi 0, %s83
    %s101 = sphi 0, %s101
    %s103 = sphi 0, %s101
    %s104 = sphi 0, %s103
    %s118 = sphi 0, %s104
    %s122 = sphi 0, %s122
    %s124 = sphi 0, %s122
    %s125 = sphi 0, %s124
    %s139 = sphi 0, %s125
    %s147 = sphi 0, %s149
    %s150 = sphi 0, %s147
    %s151 = sphi 0, %s150
    %s167 = sphi 0, %s151
  $region4: #{cgru_forward.1} parent=0 // loop_header_branch
    %14 = sbr.rel (%p12) target = $region8
  $region5: #{cgru_forward.1} parent=0 // loop_body
    %s16 = ssub.s32 %s11, 1
    %s17 = ssub.s32 %s11, 2
    %s24 = sadd.s32 1, %s19
    %p25 = scmp.ge.s32.totalorder %s24, 4
    %s26 = scalar_select %p25, 0, %s24
    %s27 = sadd.s32 1, %s18
    %s28 = scalar_select %p25, %s27, %s18
    %p29 = scmp.ge.s32.totalorder %s28, 2
    %s30 = scalar_select %p29, 0, %s28
    %s31 = ssub.s32 %s19, %s26
    %s32 = ssub.s32 %s18, %s30
    %s33 = sor.u32 %s31, %s32
    %p34 = scmp.eq.s32.totalorder %s33, 0
    %s36 = sadd.s32 %s35, 1
    %s37 = scalar_select %p34, %s35, %s36
    %p40 = pneg %p34
    %p41 = scmp.eq.s32.totalorder %s11, 7
    %p42 = por %p40, %p41
    %p43 = scmp.ne.s32.totalorder %s35, %s38
    %p44 = scmp.eq.s32.totalorder %s11, 0
    %p45 = por %p43, %p44
    %p46 = scmp.ne.s32.totalorder %s35, %s38
    %p47 = scmp.eq.s32.totalorder %s16, 7
    %p48 = por %p46, %p47
    %p49 = scmp.ne.s32.totalorder %s38, %s39
    %p50 = scmp.eq.s32.totalorder %s16, 0
    %p51 = por %p49, %p50
    %p52 = scmp.ne.s32.totalorder %s38, %s39
    %p53 = scmp.eq.s32.totalorder %s17, 7
    %p54 = por %p52, %p53
    %p56 = scmp.ne.s32.totalorder %s39, %s55
    %p57 = scmp.eq.s32.totalorder %s17, 0
    %p58 = por %p56, %p57
    %s60 = sadd.s32 %s59, 1
    %p63 = scmp.eq.s32.totalorder %s11, 7
    %p64 = scmp.ne.s32.totalorder %s59, %s61
    %p65 = scmp.eq.s32.totalorder %s11, 0
    %p66 = por %p64, %p65
    %p67 = scmp.ne.s32.totalorder %s59, %s61
    %p68 = scmp.eq.s32.totalorder %s16, 7
    %p69 = por %p67, %p68
    %p70 = scmp.ne.s32.totalorder %s61, %s62
    %p71 = scmp.eq.s32.totalorder %s16, 0
    %p72 = por %p70, %p71
    %p73 = scmp.ne.s32.totalorder %s61, %s62
    %p74 = scmp.eq.s32.totalorder %s17, 7
    %p75 = por %p73, %p74
    %p77 = scmp.ne.s32.totalorder %s62, %s76
    %p78 = scmp.eq.s32.totalorder %s17, 0
    %p79 = por %p77, %p78
    %s81 = sadd.s32 %s80, 1
    %p84 = scmp.eq.s32.totalorder %s11, 7
    %p85 = scmp.ne.s32.totalorder %s80, %s82
    %p86 = scmp.eq.s32.totalorder %s11, 0
    %p87 = por %p85, %p86
    %p88 = scmp.ne.s32.totalorder %s80, %s82
    %p89 = scmp.eq.s32.totalorder %s16, 7
    %p90 = por %p88, %p89
    %p91 = scmp.ne.s32.totalorder %s82, %s83
    %p92 = scmp.eq.s32.totalorder %s16, 0
    %p93 = por %p91, %p92
    %p94 = scmp.ne.s32.totalorder %s82, %s83
    %p95 = scmp.eq.s32.totalorder %s17, 7
    %p96 = por %p94, %p95
    %p98 = scmp.ne.s32.totalorder %s83, %s97
    %p99 = scmp.eq.s32.totalorder %s17, 0
    %p100 = por %p98, %p99
    %s102 = sadd.s32 %s101, 1
    %p105 = scmp.eq.s32.totalorder %s11, 7
    %p106 = scmp.ne.s32.totalorder %s101, %s103
    %p107 = scmp.eq.s32.totalorder %s11, 0
    %p108 = por %p106, %p107
    %p109 = scmp.ne.s32.totalorder %s101, %s103
    %p110 = scmp.eq.s32.totalorder %s16, 7
    %p111 = por %p109, %p110
    %p112 = scmp.ne.s32.totalorder %s103, %s104
    %p113 = scmp.eq.s32.totalorder %s16, 0
    %p114 = por %p112, %p113
    %p115 = scmp.ne.s32.totalorder %s103, %s104
    %p116 = scmp.eq.s32.totalorder %s17, 7
    %p117 = por %p115, %p116
    %p119 = scmp.ne.s32.totalorder %s104, %s118
    %p120 = scmp.eq.s32.totalorder %s17, 0
    %p121 = por %p119, %p120
    %s123 = sadd.s32 %s122, 1
    %p126 = scmp.eq.s32.totalorder %s11, 7
    %p127 = scmp.ne.s32.totalorder %s122, %s124
    %p128 = scmp.eq.s32.totalorder %s11, 0
    %p129 = por %p127, %p128
    %p130 = scmp.ne.s32.totalorder %s122, %s124
    %p131 = scmp.eq.s32.totalorder %s16, 7
    %p132 = por %p130, %p131
    %p133 = scmp.ne.s32.totalorder %s124, %s125
    %p134 = scmp.eq.s32.totalorder %s16, 0
    %p135 = por %p133, %p134
    %p136 = scmp.ne.s32.totalorder %s124, %s125
    %p137 = scmp.eq.s32.totalorder %s17, 7
    %p138 = por %p136, %p137
    %p140 = scmp.ne.s32.totalorder %s125, %s139
    %p141 = scmp.eq.s32.totalorder %s17, 0
    %p142 = por %p140, %p141
    %s143 = ssub.s32 %s19, %s26
    %s144 = ssub.s32 %s18, %s30
    %s145 = sor.u32 %s143, %s144
    %p146 = scmp.eq.s32.totalorder %s145, 0
    %s148 = sadd.s32 %s147, 1
    %s149 = scalar_select %p146, %s147, %s148
    %p152 = pneg %p146
    %p153 = scmp.eq.s32.totalorder %s11, 7
    %p154 = por %p152, %p153
    %p155 = scmp.ne.s32.totalorder %s147, %s150
    %p156 = scmp.eq.s32.totalorder %s11, 0
    %p157 = por %p155, %p156
    %p158 = scmp.ne.s32.totalorder %s147, %s150
    %p159 = scmp.eq.s32.totalorder %s16, 7
    %p160 = por %p158, %p159
    %p161 = scmp.ne.s32.totalorder %s150, %s151
    %p162 = scmp.eq.s32.totalorder %s16, 0
    %p163 = por %p161, %p162
    %p164 = scmp.ne.s32.totalorder %s150, %s151
    %p165 = scmp.eq.s32.totalorder %s17, 7
    %p166 = por %p164, %p165
    %p168 = scmp.ne.s32.totalorder %s151, %s167
    %p169 = scmp.eq.s32.totalorder %s17, 0
    %p170 = por %p168, %p169
    %p171 = scmp.le.s32.totalorder 1, %s11
    %p172 = scmp.lt.s32.totalorder %s11, 9
    %p173 = pnand %p171, %p172
    %p174 = pneg %p173
    // Predicated region
    $region9: #{cgru_forward.1} parent=5 // pred_check
      _
    $region10: #{cgru_forward.1} parent=5 // pred_check_branch
      %176 = sbr.rel (%p173) target = $region12
    $region11: #{cgru_forward.1} parent=5 // pred_region
      %s177 = ssub.s32 %s11, 1
      // Predicated region
      $region13: #{cgru_forward.1} parent=11 // pred_check
        %p178 = pneg %p72
      $region14: #{cgru_forward.1} parent=11 // pred_check_branch
        %180 = sbr.rel (%p178) target = $region16
      $region15: #{cgru_forward.1} parent=11 // pred_region
        _
      $region16: #{cgru_forward.1} parent=11 // pred_fallthru
        _
      // Predicated region
      $region17: #{cgru_forward.1} parent=11 // pred_check
        %p181 = pneg %p93
      $region18: #{cgru_forward.1} parent=11 // pred_check_branch
        %183 = sbr.rel (%p181) target = $region20
      $region19: #{cgru_forward.1} parent=11 // pred_region
        _
      $region20: #{cgru_forward.1} parent=11 // pred_fallthru
        _
      // Predicated region
      $region21: #{cgru_forward.1} parent=11 // pred_check
        %p184 = pneg %p114
      $region22: #{cgru_forward.1} parent=11 // pred_check_branch
        %186 = sbr.rel (%p184) target = $region24
      $region23: #{cgru_forward.1} parent=11 // pred_region
        _
      $region24: #{cgru_forward.1} parent=11 // pred_fallthru
        _
      // Predicated region
      $region25: #{cgru_forward.1} parent=11 // pred_check
        %p187 = pneg %p135
      $region26: #{cgru_forward.1} parent=11 // pred_check_branch
        %189 = sbr.rel (%p187) target = $region28
      $region27: #{cgru_forward.1} parent=11 // pred_region
        _
      $region28: #{cgru_forward.1} parent=11 // pred_fallthru
        _
    $region12: #{cgru_forward.1} parent=5 // pred_fallthru
      _
    %p190 = scmp.lt.s32.totalorder %s11, 8
    // Predicated region
    $region29: #{cgru_forward.1} parent=5 // pred_check
      %p191 = pneg %p190
    $region30: #{cgru_forward.1} parent=5 // pred_check_branch
      %193 = sbr.rel (%p191) target = $region32
    $region31: #{cgru_forward.1} parent=5 // pred_region
      // Predicated region
      $region33: #{cgru_forward.1} parent=31 // pred_check
        %p194 = pneg %p45
      $region34: #{cgru_forward.1} parent=31 // pred_check_branch
        %196 = sbr.rel (%p194) target = $region36
      $region35: #{cgru_forward.1} parent=31 // pred_region
        %p197 = scmp.lt.s32.totalorder %s19, 3
        %s198 = scalar_select %p197, %s19, 3
        %p199 = scmp.lt.s32.totalorder %s18, 1
        %s200 = scalar_select %p199, %s18, 1
        %s201 = smul.addr %s200, 2
        %s202 = smul.addr %s198, 4
        %s203 = sadd.s32 %s201, %s202
        %s204 = smul.addr %s203, 8
        %s205 = scalar_lea.vmem %s0, %s204
      $region36: #{cgru_forward.1} parent=31 // pred_fallthru
        _
    $region32: #{cgru_forward.1} parent=5 // pred_fallthru
      _
    %p206 = scmp.le.s32.totalorder 1, %s11
    %p207 = scmp.lt.s32.totalorder %s11, 9
    %p208 = pnand %p206, %p207
    %p209 = pneg %p208
    // Predicated region
    $region37: #{cgru_forward.1} parent=5 // pred_check
      _
    $region38: #{cgru_forward.1} parent=5 // pred_check_branch
      %211 = sbr.rel (%p208) target = $region40
    $region39: #{cgru_forward.1} parent=5 // pred_region
      %s212 = ssub.s32 %s11, 1
      %p213 = scmp.lt.s32.totalorder %s21, 3
      %s214 = scalar_select %p213, %s21, 3
      %p215 = scmp.lt.s32.totalorder %s20, 1
      %s216 = scalar_select %p215, %s20, 1
      %s217 = smul.addr %s216, 2
      %s218 = smul.addr %s214, 4
      %s219 = sadd.s32 %s217, %s218
      %s220 = smul.addr %s219, 8
      %s221 = scalar_lea.vmem %s0, %s220
      %p222 = pneg %p51
      %p223 = pneg %p48
      %p224 = pneg %p72
      %p225 = pneg %p69
      %p226 = pneg %p93
      %p227 = pneg %p90
      %p228 = pneg %p114
      %p229 = pneg %p111
      %p230 = pneg %p135
      %p231 = pneg %p132
      %p232 = pneg %p163
      %p233 = pneg %p160
      %p234 = scmp.lt.s32.totalorder %s21, 3
      %s235 = scalar_select %p234, %s21, 3
      %p236 = scmp.lt.s32.totalorder %s20, 1
      %s237 = scalar_select %p236, %s20, 1
      %s238 = smul.addr %s237, 32
      %s239 = smul.addr %s235, 64
      %s240 = sadd.s32 %s238, %s239
      %s241 = smul.addr %s240, 8
      %s242 = scalar_lea.vmem %s5, %s241
      %p243 = scmp.lt.s32.totalorder %s21, 3
      %s244 = scalar_select %p243, %s21, 3
      %p245 = scmp.lt.s32.totalorder %s20, 1
      %s246 = scalar_select %p245, %s20, 1
      %s247 = smul.addr %s246, 2
      %s248 = smul.addr %s244, 4
      %s249 = sadd.s32 %s247, %s248
      %s250 = smul.addr %s249, 8
      %s251 = scalar_lea.vmem %s0, %s250
      %p252 = scmp.lt.s32.totalorder %s21, 3
      %s253 = scalar_select %p252, %s21, 3
      %p254 = scmp.lt.s32.totalorder %s20, 1
      %s255 = scalar_select %p254, %s20, 1
      %s256 = smul.addr %s255, 32
      %s257 = smul.addr %s253, 64
      %s258 = sadd.s32 %s256, %s257
      %s259 = smul.addr %s258, 8
      %s260 = scalar_lea.vmem %s5, %s259
      %p262 = scmp.eq.s32.totalorder %s21, 0
      // Predicated region
      $region41: #{cgru_forward.1} parent=39 // pred_check
        %p263 = pneg %p262
      $region42: #{cgru_forward.1} parent=39 // pred_check_branch
        %265 = sbr.rel (%p263) target = $region44
      $region43: #{cgru_forward.1} parent=39 // pred_region
        %vm266 = vcmask 261120
        %267 = vst.msk [vmem:[#allocation2] sm:$0xff] %vm266, 0.0
        %268 = vst.msk [vmem:[#allocation2 + $0x8] sm:$0xff] %vm266, 0.0
        %269 = vst.msk [vmem:[#allocation2 + $0x10] sm:$0xff] %vm266, 0.0
        %270 = vst.msk [vmem:[#allocation2 + $0x18] sm:$0xff] %vm266, 0.0
        %271 = vst.msk [vmem:[#allocation2 + $0x20] sm:$0xff] %vm266, 0.0
        %272 = vst.msk [vmem:[#allocation2 + $0x28] sm:$0xff] %vm266, 0.0
        %273 = vst.msk [vmem:[#allocation2 + $0x30] sm:$0xff] %vm266, 0.0
        %274 = vst.msk [vmem:[#allocation2 + $0x38] sm:$0xff] %vm266, 0.0
        %275 = vst.msk [vmem:[#allocation2 + $0x40] sm:$0xff] %vm266, 0.0
        %276 = vst.msk [vmem:[#allocation2 + $0x48] sm:$0xff] %vm266, 0.0
        %277 = vst.msk [vmem:[#allocation2 + $0x50] sm:$0xff] %vm266, 0.0
        %278 = vst.msk [vmem:[#allocation2 + $0x58] sm:$0xff] %vm266, 0.0
        %279 = vst.msk [vmem:[#allocation2 + $0x60] sm:$0xff] %vm266, 0.0
        %280 = vst.msk [vmem:[#allocation2 + $0x68] sm:$0xff] %vm266, 0.0
        %281 = vst.msk [vmem:[#allocation2 + $0x70] sm:$0xff] %vm266, 0.0
        %282 = vst.msk [vmem:[#allocation2 + $0x78] sm:$0xff] %vm266, 0.0
        %283 = vst.msk [vmem:[#allocation2 + $0x80] sm:$0xff] %vm266, 0.0
        %284 = vst.msk [vmem:[#allocation2 + $0x88] sm:$0xff] %vm266, 0.0
        %285 = vst.msk [vmem:[#allocation2 + $0x90] sm:$0xff] %vm266, 0.0
        %286 = vst.msk [vmem:[#allocation2 + $0x98] sm:$0xff] %vm266, 0.0
        %287 = vst.msk [vmem:[#allocation2 + $0xa0] sm:$0xff] %vm266, 0.0
        %288 = vst.msk [vmem:[#allocation2 + $0xa8] sm:$0xff] %vm266, 0.0
        %289 = vst.msk [vmem:[#allocation2 + $0xb0] sm:$0xff] %vm266, 0.0
        %290 = vst.msk [vmem:[#allocation2 + $0xb8] sm:$0xff] %vm266, 0.0
        %291 = vst.msk [vmem:[#allocation2 + $0xc0] sm:$0xff] %vm266, 0.0
        %292 = vst.msk [vmem:[#allocation2 + $0xc8] sm:$0xff] %vm266, 0.0
        %293 = vst.msk [vmem:[#allocation2 + $0xd0] sm:$0xff] %vm266, 0.0
        %294 = vst.msk [vmem:[#allocation2 + $0xd8] sm:$0xff] %vm266, 0.0
        %295 = vst.msk [vmem:[#allocation2 + $0xe0] sm:$0xff] %vm266, 0.0
        %296 = vst.msk [vmem:[#allocation2 + $0xe8] sm:$0xff] %vm266, 0.0
        %297 = vst.msk [vmem:[#allocation2 + $0xf0] sm:$0xff] %vm266, 0.0
        %298 = vst.msk [vmem:[#allocation2 + $0xf8] sm:$0xff] %vm266, 0.0
        %vm299 = vcmask 519168
        %300 = vst.msk [vmem:[#allocation3] sm:$0xf] %vm299, 0
        %301 = vst.msk [vmem:[#allocation3 + $0x4] sm:$0xf] %vm299, 0
        %302 = vst.msk [vmem:[#allocation3 + $0x8] sm:$0xf] %vm299, 0
        %vm303 = vcmask 516096
        %vm304 = vsmask.f32 256
        %vm305 = vmand %vm303, %vm304
        %v306 = vld [vmem:[#allocation3 + $0xc] sm:$0x1]
        %v307 = vsel %vm305, 0, %v306
        %308 = vst [vmem:[#allocation3 + $0xc] sm:$0x1] %v307
        %309 = vst.msk [vmem:[#allocation3 + $0x10] sm:$0xf] %vm299, 0
        %310 = vst.msk [vmem:[#allocation3 + $0x14] sm:$0xf] %vm299, 0
        %311 = vst.msk [vmem:[#allocation3 + $0x18] sm:$0xf] %vm299, 0
        %v312 = vld [vmem:[#allocation3 + $0x1c] sm:$0x1]
        %v313 = vsel %vm305, 0, %v312
        %314 = vst [vmem:[#allocation3 + $0x1c] sm:$0x1] %v313
        %315 = vst.msk [vmem:[#allocation3 + $0x20] sm:$0xf] %vm299, 0
        %316 = vst.msk [vmem:[#allocation3 + $0x24] sm:$0xf] %vm299, 0
        %317 = vst.msk [vmem:[#allocation3 + $0x28] sm:$0xf] %vm299, 0
        %v318 = vld [vmem:[#allocation3 + $0x2c] sm:$0x1]
        %v319 = vsel %vm305, 0, %v318
        %320 = vst [vmem:[#allocation3 + $0x2c] sm:$0x1] %v319
        %321 = vst.msk [vmem:[#allocation3 + $0x30] sm:$0xf] %vm299, 0
        %322 = vst.msk [vmem:[#allocation3 + $0x34] sm:$0xf] %vm299, 0
        %323 = vst.msk [vmem:[#allocation3 + $0x38] sm:$0xf] %vm299, 0
        %v324 = vld [vmem:[#allocation3 + $0x3c] sm:$0x1]
        %v325 = vsel %vm305, 0, %v324
        %326 = vst [vmem:[#allocation3 + $0x3c] sm:$0x1] %v325
        %327 = vst.msk [vmem:[#allocation3 + $0x40] sm:$0xf] %vm299, 0
        %328 = vst.msk [vmem:[#allocation3 + $0x44] sm:$0xf] %vm299, 0
        %329 = vst.msk [vmem:[#allocation3 + $0x48] sm:$0xf] %vm299, 0
        %v330 = vld [vmem:[#allocation3 + $0x4c] sm:$0x1]
        %v331 = vsel %vm305, 0, %v330
        %332 = vst [vmem:[#allocation3 + $0x4c] sm:$0x1] %v331
        %333 = vst.msk [vmem:[#allocation3 + $0x50] sm:$0xf] %vm299, 0
        %334 = vst.msk [vmem:[#allocation3 + $0x54] sm:$0xf] %vm299, 0
        %335 = vst.msk [vmem:[#allocation3 + $0x58] sm:$0xf] %vm299, 0
        %v336 = vld [vmem:[#allocation3 + $0x5c] sm:$0x1]
        %v337 = vsel %vm305, 0, %v336
        %338 = vst [vmem:[#allocation3 + $0x5c] sm:$0x1] %v337
        %339 = vst.msk [vmem:[#allocation3 + $0x60] sm:$0xf] %vm299, 0
        %340 = vst.msk [vmem:[#allocation3 + $0x64] sm:$0xf] %vm299, 0
        %341 = vst.msk [vmem:[#allocation3 + $0x68] sm:$0xf] %vm299, 0
        %v342 = vld [vmem:[#allocation3 + $0x6c] sm:$0x1]
        %v343 = vsel %vm305, 0, %v342
        %344 = vst [vmem:[#allocation3 + $0x6c] sm:$0x1] %v343
        %345 = vst.msk [vmem:[#allocation3 + $0x70] sm:$0xf] %vm299, 0
        %346 = vst.msk [vmem:[#allocation3 + $0x74] sm:$0xf] %vm299, 0
        %347 = vst.msk [vmem:[#allocation3 + $0x78] sm:$0xf] %vm299, 0
        %v348 = vld [vmem:[#allocation3 + $0x7c] sm:$0x1]
        %v349 = vsel %vm305, 0, %v348
        %350 = vst [vmem:[#allocation3 + $0x7c] sm:$0x1] %v349
        %351 = vst.msk [vmem:[#allocation3 + $0x80] sm:$0xf] %vm299, 0
        %352 = vst.msk [vmem:[#allocation3 + $0x84] sm:$0xf] %vm299, 0
        %353 = vst.msk [vmem:[#allocation3 + $0x88] sm:$0xf] %vm299, 0
        %v354 = vld [vmem:[#allocation3 + $0x8c] sm:$0x1]
        %v355 = vsel %vm305, 0, %v354
        %356 = vst [vmem:[#allocation3 + $0x8c] sm:$0x1] %v355
        %357 = vst.msk [vmem:[#allocation3 + $0x90] sm:$0xf] %vm299, 0
        %358 = vst.msk [vmem:[#allocation3 + $0x94] sm:$0xf] %vm299, 0
        %359 = vst.msk [vmem:[#allocation3 + $0x98] sm:$0xf] %vm299, 0
        %v360 = vld [vmem:[#allocation3 + $0x9c] sm:$0x1]
        %v361 = vsel %vm305, 0, %v360
        %362 = vst [vmem:[#allocation3 + $0x9c] sm:$0x1] %v361
        %363 = vst.msk [vmem:[#allocation3 + $0xa0] sm:$0xf] %vm299, 0
        %364 = vst.msk [vmem:[#allocation3 + $0xa4] sm:$0xf] %vm299, 0
        %365 = vst.msk [vmem:[#allocation3 + $0xa8] sm:$0xf] %vm299, 0
        %v366 = vld [vmem:[#allocation3 + $0xac] sm:$0x1]
        %v367 = vsel %vm305, 0, %v366
        %368 = vst [vmem:[#allocation3 + $0xac] sm:$0x1] %v367
        %369 = vst.msk [vmem:[#allocation3 + $0xb0] sm:$0xf] %vm299, 0
        %370 = vst.msk [vmem:[#allocation3 + $0xb4] sm:$0xf] %vm299, 0
        %371 = vst.msk [vmem:[#allocation3 + $0xb8] sm:$0xf] %vm299, 0
        %v372 = vld [vmem:[#allocation3 + $0xbc] sm:$0x1]
        %v373 = vsel %vm305, 0, %v372
        %374 = vst [vmem:[#allocation3 + $0xbc] sm:$0x1] %v373
        %375 = vst.msk [vmem:[#allocation3 + $0xc0] sm:$0xf] %vm299, 0
        %376 = vst.msk [vmem:[#allocation3 + $0xc4] sm:$0xf] %vm299, 0
        %377 = vst.msk [vmem:[#allocation3 + $0xc8] sm:$0xf] %vm299, 0
        %v378 = vld [vmem:[#allocation3 + $0xcc] sm:$0x1]
        %v379 = vsel %vm305, 0, %v378
        %380 = vst [vmem:[#allocation3 + $0xcc] sm:$0x1] %v379
        %381 = vst.msk [vmem:[#allocation3 + $0xd0] sm:$0xf] %vm299, 0
        %382 = vst.msk [vmem:[#allocation3 + $0xd4] sm:$0xf] %vm299, 0
        %383 = vst.msk [vmem:[#allocation3 + $0xd8] sm:$0xf] %vm299, 0
        %v384 = vld [vmem:[#allocation3 + $0xdc] sm:$0x1]
        %v385 = vsel %vm305, 0, %v384
        %386 = vst [vmem:[#allocation3 + $0xdc] sm:$0x1] %v385
        %387 = vst.msk [vmem:[#allocation3 + $0xe0] sm:$0xf] %vm299, 0
        %388 = vst.msk [vmem:[#allocation3 + $0xe4] sm:$0xf] %vm299, 0
        %389 = vst.msk [vmem:[#allocation3 + $0xe8] sm:$0xf] %vm299, 0
        %v390 = vld [vmem:[#allocation3 + $0xec] sm:$0x1]
        %v391 = vsel %vm305, 0, %v390
        %392 = vst [vmem:[#allocation3 + $0xec] sm:$0x1] %v391
        %393 = vst.msk [vmem:[#allocation3 + $0xf0] sm:$0xf] %vm299, 0
        %394 = vst.msk [vmem:[#allocation3 + $0xf4] sm:$0xf] %vm299, 0
        %395 = vst.msk [vmem:[#allocation3 + $0xf8] sm:$0xf] %vm299, 0
        %v396 = vld [vmem:[#allocation3 + $0xfc] sm:$0x1]
        %v397 = vsel %vm305, 0, %v396
        %398 = vst [vmem:[#allocation3 + $0xfc] sm:$0x1] %v397
        %399 = vst.msk [vmem:[#allocation3 + $0x100] sm:$0xf] %vm299, 0
        %400 = vst.msk [vmem:[#allocation3 + $0x104] sm:$0xf] %vm299, 0
        %401 = vst.msk [vmem:[#allocation3 + $0x108] sm:$0xf] %vm299, 0
        %v402 = vld [vmem:[#allocation3 + $0x10c] sm:$0x1]
        %v403 = vsel %vm305, 0, %v402
        %404 = vst [vmem:[#allocation3 + $0x10c] sm:$0x1] %v403
        %405 = vst.msk [vmem:[#allocation3 + $0x110] sm:$0xf] %vm299, 0
        %406 = vst.msk [vmem:[#allocation3 + $0x114] sm:$0xf] %vm299, 0
        %407 = vst.msk [vmem:[#allocation3 + $0x118] sm:$0xf] %vm299, 0
        %v408 = vld [vmem:[#allocation3 + $0x11c] sm:$0x1]
        %v409 = vsel %vm305, 0, %v408
        %410 = vst [vmem:[#allocation3 + $0x11c] sm:$0x1] %v409
      $region44: #{cgru_forward.1} parent=39 // pred_fallthru
        _
      %v411 = vld [vmem:[%s251] sm:$0xff]
      %v412 = vld [vmem:[%s251 + $0x8] sm:$0xff]
      %415 = vrot.lane.b32.xlu0 %v411, 124
      %v416 = vpop.permute.xlu0 %415
      %417 = vrot.lane.b32.xlu0 %v412, 124
      %v418 = vpop.permute.xlu0 %417
      %421 = vrot.lane.b32.xlu0 %v411, 120
      %v422 = vpop.permute.xlu0 %421
      %423 = vrot.lane.b32.xlu0 %v412, 120
      %v424 = vpop.permute.xlu0 %423
      %427 = vrot.lane.b32.xlu0 %v411, 116
      %v428 = vpop.permute.xlu0 %427
      %429 = vrot.lane.b32.xlu0 %v412, 116
      %v430 = vpop.permute.xlu0 %429
      %433 = vrot.lane.b32.xlu0 %v411, 112
      %v434 = vpop.permute.xlu0 %433
      %435 = vrot.lane.b32.xlu0 %v412, 112
      %v436 = vpop.permute.xlu0 %435
      %439 = vrot.lane.b32.xlu0 %v411, 108
      %v440 = vpop.permute.xlu0 %439
      %441 = vrot.lane.b32.xlu0 %v412, 108
      %v442 = vpop.permute.xlu0 %441
      %445 = vrot.lane.b32.xlu0 %v411, 104
      %v446 = vpop.permute.xlu0 %445
      %447 = vrot.lane.b32.xlu0 %v412, 104
      %v448 = vpop.permute.xlu0 %447
      %451 = vrot.lane.b32.xlu0 %v411, 100
      %v452 = vpop.permute.xlu0 %451
      %453 = vrot.lane.b32.xlu0 %v412, 100
      %v454 = vpop.permute.xlu0 %453
      %457 = vrot.lane.b32.xlu0 %v411, 96
      %v458 = vpop.permute.xlu0 %457
      %459 = vrot.lane.b32.xlu0 %v412, 96
      %v460 = vpop.permute.xlu0 %459
      %463 = vrot.lane.b32.xlu0 %v411, 92
      %v464 = vpop.permute.xlu0 %463
      %465 = vrot.lane.b32.xlu0 %v412, 92
      %v466 = vpop.permute.xlu0 %465
      %469 = vrot.lane.b32.xlu0 %v411, 88
      %v470 = vpop.permute.xlu0 %469
      %471 = vrot.lane.b32.xlu0 %v412, 88
      %v472 = vpop.permute.xlu0 %471
      %475 = vrot.lane.b32.xlu0 %v411, 84
      %v476 = vpop.permute.xlu0 %475
      %477 = vrot.lane.b32.xlu0 %v412, 84
      %v478 = vpop.permute.xlu0 %477
      %481 = vrot.lane.b32.xlu0 %v411, 80
      %v482 = vpop.permute.xlu0 %481
      %483 = vrot.lane.b32.xlu0 %v412, 80
      %v484 = vpop.permute.xlu0 %483
      %487 = vrot.lane.b32.xlu0 %v411, 76
      %v488 = vpop.permute.xlu0 %487
      %489 = vrot.lane.b32.xlu0 %v412, 76
      %v490 = vpop.permute.xlu0 %489
      %493 = vrot.lane.b32.xlu0 %v411, 72
      %v494 = vpop.permute.xlu0 %493
      %495 = vrot.lane.b32.xlu0 %v412, 72
      %v496 = vpop.permute.xlu0 %495
      %499 = vrot.lane.b32.xlu0 %v411, 68
      %v500 = vpop.permute.xlu0 %499
      %501 = vrot.lane.b32.xlu0 %v412, 68
      %v502 = vpop.permute.xlu0 %501
      %v505 = vrot.slane %v422, 4
      %vm506 = vcmask 1047556
      %v507 = vsel %vm506, %v505, %v411
      %v508 = vrot.slane %v411, 4
      %v509 = vsel %vm506, %v422, %v508
      %v511 = vunpack.c.l.s4 1983009808
      %v512 = vunpack.c.0.s8 %v511
      %v513 = vperm.slane %v507, %v512
      %v515 = vunpack.c.l.s4 1983009808
      %v516 = vunpack.c.0.s8 %v515
      %v517 = vperm.slane %v509, %v516
      %v518 = vrot.slane %v428, 4
      %v519 = vsel %vm506, %v518, %v416
      %v520 = vrot.slane %v416, 4
      %v521 = vsel %vm506, %v428, %v520
      %v523 = vunpack.c.l.s4 1983009808
      %v524 = vunpack.c.0.s8 %v523
      %v525 = vperm.slane %v519, %v524
      %v527 = vunpack.c.l.s4 1983009808
      %v528 = vunpack.c.0.s8 %v527
      %v529 = vperm.slane %v521, %v528
      %v530 = vrot.slane %v446, 4
      %v531 = vsel %vm506, %v530, %v434
      %v532 = vrot.slane %v434, 4
      %v533 = vsel %vm506, %v446, %v532
      %v535 = vunpack.c.l.s4 1983009808
      %v536 = vunpack.c.0.s8 %v535
      %v537 = vperm.slane %v531, %v536
      %v539 = vunpack.c.l.s4 1983009808
      %v540 = vunpack.c.0.s8 %v539
      %v541 = vperm.slane %v533, %v540
      %v542 = vrot.slane %v452, 4
      %v543 = vsel %vm506, %v542, %v440
      %v544 = vrot.slane %v440, 4
      %v545 = vsel %vm506, %v452, %v544
      %v547 = vunpack.c.l.s4 1983009808
      %v548 = vunpack.c.0.s8 %v547
      %v549 = vperm.slane %v543, %v548
      %v551 = vunpack.c.l.s4 1983009808
      %v552 = vunpack.c.0.s8 %v551
      %v553 = vperm.slane %v545, %v552
      %v554 = vrot.slane %v525, 4
      %v555 = vsel %vm506, %v554, %v513
      %v556 = vrot.slane %v513, 4
      %v557 = vsel %vm506, %v525, %v556
      %v559 = vunpack.c.l.s4 1934713408
      %v560 = vunpack.c.0.s8 %v559
      %v561 = vperm.slane %v555, %v560
      %v563 = vunpack.c.l.s4 1934713408
      %v564 = vunpack.c.0.s8 %v563
      %v565 = vperm.slane %v557, %v564
      %v566 = vrot.slane %v529, 4
      %v567 = vsel %vm506, %v566, %v517
      %v568 = vrot.slane %v517, 4
      %v569 = vsel %vm506, %v529, %v568
      %v571 = vunpack.c.l.s4 1934713408
      %v572 = vunpack.c.0.s8 %v571
      %v573 = vperm.slane %v567, %v572
      %v575 = vunpack.c.l.s4 1934713408
      %v576 = vunpack.c.0.s8 %v575
      %v577 = vperm.slane %v569, %v576
      %v578 = vrot.slane %v549, 4
      %v579 = vsel %vm506, %v578, %v537
      %v580 = vrot.slane %v537, 4
      %v581 = vsel %vm506, %v549, %v580
      %v583 = vunpack.c.l.s4 1934713408
      %v584 = vunpack.c.0.s8 %v583
      %v585 = vperm.slane %v579, %v584
      %v587 = vunpack.c.l.s4 1934713408
      %v588 = vunpack.c.0.s8 %v587
      %v589 = vperm.slane %v581, %v588
      %v590 = vrot.slane %v553, 4
      %v591 = vsel %vm506, %v590, %v541
      %v592 = vrot.slane %v541, 4
      %v593 = vsel %vm506, %v553, %v592
      %v595 = vunpack.c.l.s4 1934713408
      %v596 = vunpack.c.0.s8 %v595
      %v597 = vperm.slane %v591, %v596
      %v599 = vunpack.c.l.s4 1934713408
      %v600 = vunpack.c.0.s8 %v599
      %v601 = vperm.slane %v593, %v600
      %v602 = vrot.slane %v585, 4
      %v603 = vsel %vm506, %v602, %v561
      %v604 = vrot.slane %v561, 4
      %v605 = vsel %vm506, %v585, %v604
      %v606 = vrot.slane %v589, 4
      %v607 = vsel %vm506, %v606, %v565
      %v608 = vrot.slane %v565, 4
      %v609 = vsel %vm506, %v589, %v608
      %v610 = vrot.slane %v597, 4
      %v611 = vsel %vm506, %v610, %v573
      %v612 = vrot.slane %v573, 4
      %v613 = vsel %vm506, %v597, %v612
      %v614 = vrot.slane %v601, 4
      %v615 = vsel %vm506, %v614, %v577
      %v616 = vrot.slane %v577, 4
      %v617 = vsel %vm506, %v601, %v616
      %v618 = vrot.slane %v470, 4
      %v619 = vsel %vm506, %v618, %v458
      %v620 = vrot.slane %v458, 4
      %v621 = vsel %vm506, %v470, %v620
      %v623 = vunpack.c.l.s4 1983009808
      %v624 = vunpack.c.0.s8 %v623
      %v625 = vperm.slane %v619, %v624
      %v627 = vunpack.c.l.s4 1983009808
      %v628 = vunpack.c.0.s8 %v627
      %v629 = vperm.slane %v621, %v628
      %v630 = vrot.slane %v476, 4
      %v631 = vsel %vm506, %v630, %v464
      %v632 = vrot.slane %v464, 4
      %v633 = vsel %vm506, %v476, %v632
      %v635 = vunpack.c.l.s4 1983009808
      %v636 = vunpack.c.0.s8 %v635
      %v637 = vperm.slane %v631, %v636
      %v639 = vunpack.c.l.s4 1983009808
      %v640 = vunpack.c.0.s8 %v639
      %v641 = vperm.slane %v633, %v640
      %v642 = vrot.slane %v494, 4
      %v643 = vsel %vm506, %v642, %v482
      %v644 = vrot.slane %v482, 4
      %v645 = vsel %vm506, %v494, %v644
      %v647 = vunpack.c.l.s4 1983009808
      %v648 = vunpack.c.0.s8 %v647
      %v649 = vperm.slane %v643, %v648
      %v651 = vunpack.c.l.s4 1983009808
      %v652 = vunpack.c.0.s8 %v651
      %v653 = vperm.slane %v645, %v652
      %v654 = vrot.slane %v500, 4
      %v655 = vsel %vm506, %v654, %v488
      %v656 = vrot.slane %v488, 4
      %v657 = vsel %vm506, %v500, %v656
      %v659 = vunpack.c.l.s4 1983009808
      %v660 = vunpack.c.0.s8 %v659
      %v661 = vperm.slane %v655, %v660
      %v663 = vunpack.c.l.s4 1983009808
      %v664 = vunpack.c.0.s8 %v663
      %v665 = vperm.slane %v657, %v664
      %v666 = vrot.slane %v637, 4
      %v667 = vsel %vm506, %v666, %v625
      %v668 = vrot.slane %v625, 4
      %v669 = vsel %vm506, %v637, %v668
      %v671 = vunpack.c.l.s4 1934713408
      %v672 = vunpack.c.0.s8 %v671
      %v673 = vperm.slane %v667, %v672
      %v675 = vunpack.c.l.s4 1934713408
      %v676 = vunpack.c.0.s8 %v675
      %v677 = vperm.slane %v669, %v676
      %v678 = vrot.slane %v641, 4
      %v679 = vsel %vm506, %v678, %v629
      %v680 = vrot.slane %v629, 4
      %v681 = vsel %vm506, %v641, %v680
      %v683 = vunpack.c.l.s4 1934713408
      %v684 = vunpack.c.0.s8 %v683
      %v685 = vperm.slane %v679, %v684
      %v687 = vunpack.c.l.s4 1934713408
      %v688 = vunpack.c.0.s8 %v687
      %v689 = vperm.slane %v681, %v688
      %v690 = vrot.slane %v661, 4
      %v691 = vsel %vm506, %v690, %v649
      %v692 = vrot.slane %v649, 4
      %v693 = vsel %vm506, %v661, %v692
      %v695 = vunpack.c.l.s4 1934713408
      %v696 = vunpack.c.0.s8 %v695
      %v697 = vperm.slane %v691, %v696
      %v699 = vunpack.c.l.s4 1934713408
      %v700 = vunpack.c.0.s8 %v699
      %v701 = vperm.slane %v693, %v700
      %v702 = vrot.slane %v665, 4
      %v703 = vsel %vm506, %v702, %v653
      %v704 = vrot.slane %v653, 4
      %v705 = vsel %vm506, %v665, %v704
      %v707 = vunpack.c.l.s4 1934713408
      %v708 = vunpack.c.0.s8 %v707
      %v709 = vperm.slane %v703, %v708
      %v711 = vunpack.c.l.s4 1934713408
      %v712 = vunpack.c.0.s8 %v711
      %v713 = vperm.slane %v705, %v712
      %v714 = vrot.slane %v697, 4
      %v715 = vsel %vm506, %v714, %v673
      %v716 = vrot.slane %v673, 4
      %v717 = vsel %vm506, %v697, %v716
      %v718 = vrot.slane %v701, 4
      %v719 = vsel %vm506, %v718, %v677
      %v720 = vrot.slane %v677, 4
      %v721 = vsel %vm506, %v701, %v720
      %v722 = vrot.slane %v709, 4
      %v723 = vsel %vm506, %v722, %v685
      %v724 = vrot.slane %v685, 4
      %v725 = vsel %vm506, %v709, %v724
      %v726 = vrot.slane %v713, 4
      %v727 = vsel %vm506, %v726, %v689
      %v728 = vrot.slane %v689, 4
      %v729 = vsel %vm506, %v713, %v728
      %v730 = vrot.slane %v424, 4
      %v731 = vsel %vm506, %v730, %v412
      %v732 = vrot.slane %v412, 4
      %v733 = vsel %vm506, %v424, %v732
      %v735 = vunpack.c.l.s4 1983009808
      %v736 = vunpack.c.0.s8 %v735
      %v737 = vperm.slane %v731, %v736
      %v739 = vunpack.c.l.s4 1983009808
      %v740 = vunpack.c.0.s8 %v739
      %v741 = vperm.slane %v733, %v740
      %v742 = vrot.slane %v430, 4
      %v743 = vsel %vm506, %v742, %v418
      %v744 = vrot.slane %v418, 4
      %v745 = vsel %vm506, %v430, %v744
      %v747 = vunpack.c.l.s4 1983009808
      %v748 = vunpack.c.0.s8 %v747
      %v749 = vperm.slane %v743, %v748
      %v751 = vunpack.c.l.s4 1983009808
      %v752 = vunpack.c.0.s8 %v751
      %v753 = vperm.slane %v745, %v752
      %v754 = vrot.slane %v448, 4
      %v755 = vsel %vm506, %v754, %v436
      %v756 = vrot.slane %v436, 4
      %v757 = vsel %vm506, %v448, %v756
      %v759 = vunpack.c.l.s4 1983009808
      %v760 = vunpack.c.0.s8 %v759
      %v761 = vperm.slane %v755, %v760
      %v763 = vunpack.c.l.s4 1983009808
      %v764 = vunpack.c.0.s8 %v763
      %v765 = vperm.slane %v757, %v764
      %v766 = vrot.slane %v454, 4
      %v767 = vsel %vm506, %v766, %v442
      %v768 = vrot.slane %v442, 4
      %v769 = vsel %vm506, %v454, %v768
      %v771 = vunpack.c.l.s4 1983009808
      %v772 = vunpack.c.0.s8 %v771
      %v773 = vperm.slane %v767, %v772
      %v775 = vunpack.c.l.s4 1983009808
      %v776 = vunpack.c.0.s8 %v775
      %v777 = vperm.slane %v769, %v776
      %v778 = vrot.slane %v749, 4
      %v779 = vsel %vm506, %v778, %v737
      %v780 = vrot.slane %v737, 4
      %v781 = vsel %vm506, %v749, %v780
      %v783 = vunpack.c.l.s4 1934713408
      %v784 = vunpack.c.0.s8 %v783
      %v785 = vperm.slane %v779, %v784
      %v787 = vunpack.c.l.s4 1934713408
      %v788 = vunpack.c.0.s8 %v787
      %v789 = vperm.slane %v781, %v788
      %v790 = vrot.slane %v753, 4
      %v791 = vsel %vm506, %v790, %v741
      %v792 = vrot.slane %v741, 4
      %v793 = vsel %vm506, %v753, %v792
      %v795 = vunpack.c.l.s4 1934713408
      %v796 = vunpack.c.0.s8 %v795
      %v797 = vperm.slane %v791, %v796
      %v799 = vunpack.c.l.s4 1934713408
      %v800 = vunpack.c.0.s8 %v799
      %v801 = vperm.slane %v793, %v800
      %v802 = vrot.slane %v773, 4
      %v803 = vsel %vm506, %v802, %v761
      %v804 = vrot.slane %v761, 4
      %v805 = vsel %vm506, %v773, %v804
      %v807 = vunpack.c.l.s4 1934713408
      %v808 = vunpack.c.0.s8 %v807
      %v809 = vperm.slane %v803, %v808
      %v811 = vunpack.c.l.s4 1934713408
      %v812 = vunpack.c.0.s8 %v811
      %v813 = vperm.slane %v805, %v812
      %v814 = vrot.slane %v777, 4
      %v815 = vsel %vm506, %v814, %v765
      %v816 = vrot.slane %v765, 4
      %v817 = vsel %vm506, %v777, %v816
      %v819 = vunpack.c.l.s4 1934713408
      %v820 = vunpack.c.0.s8 %v819
      %v821 = vperm.slane %v815, %v820
      %v823 = vunpack.c.l.s4 1934713408
      %v824 = vunpack.c.0.s8 %v823
      %v825 = vperm.slane %v817, %v824
      %v826 = vrot.slane %v809, 4
      %v827 = vsel %vm506, %v826, %v785
      %v828 = vrot.slane %v785, 4
      %v829 = vsel %vm506, %v809, %v828
      %v830 = vrot.slane %v813, 4
      %v831 = vsel %vm506, %v830, %v789
      %v832 = vrot.slane %v789, 4
      %v833 = vsel %vm506, %v813, %v832
      %v834 = vrot.slane %v821, 4
      %v835 = vsel %vm506, %v834, %v797
      %v836 = vrot.slane %v797, 4
      %v837 = vsel %vm506, %v821, %v836
      %v838 = vrot.slane %v825, 4
      %v839 = vsel %vm506, %v838, %v801
      %v840 = vrot.slane %v801, 4
      %v841 = vsel %vm506, %v825, %v840
      %v842 = vrot.slane %v472, 4
      %v843 = vsel %vm506, %v842, %v460
      %v844 = vrot.slane %v460, 4
      %v845 = vsel %vm506, %v472, %v844
      %v847 = vunpack.c.l.s4 1983009808
      %v848 = vunpack.c.0.s8 %v847
      %v849 = vperm.slane %v843, %v848
      %v851 = vunpack.c.l.s4 1983009808
      %v852 = vunpack.c.0.s8 %v851
      %v853 = vperm.slane %v845, %v852
      %v854 = vrot.slane %v478, 4
      %v855 = vsel %vm506, %v854, %v466
      %v856 = vrot.slane %v466, 4
      %v857 = vsel %vm506, %v478, %v856
      %v859 = vunpack.c.l.s4 1983009808
      %v860 = vunpack.c.0.s8 %v859
      %v861 = vperm.slane %v855, %v860
      %v863 = vunpack.c.l.s4 1983009808
      %v864 = vunpack.c.0.s8 %v863
      %v865 = vperm.slane %v857, %v864
      %v866 = vrot.slane %v496, 4
      %v867 = vsel %vm506, %v866, %v484
      %v868 = vrot.slane %v484, 4
      %v869 = vsel %vm506, %v496, %v868
      %v871 = vunpack.c.l.s4 1983009808
      %v872 = vunpack.c.0.s8 %v871
      %v873 = vperm.slane %v867, %v872
      %v875 = vunpack.c.l.s4 1983009808
      %v876 = vunpack.c.0.s8 %v875
      %v877 = vperm.slane %v869, %v876
      %v878 = vrot.slane %v502, 4
      %v879 = vsel %vm506, %v878, %v490
      %v880 = vrot.slane %v490, 4
      %v881 = vsel %vm506, %v502, %v880
      %v883 = vunpack.c.l.s4 1983009808
      %v884 = vunpack.c.0.s8 %v883
      %v885 = vperm.slane %v879, %v884
      %v887 = vunpack.c.l.s4 1983009808
      %v888 = vunpack.c.0.s8 %v887
      %v889 = vperm.slane %v881, %v888
      %v890 = vrot.slane %v861, 4
      %v891 = vsel %vm506, %v890, %v849
      %v892 = vrot.slane %v849, 4
      %v893 = vsel %vm506, %v861, %v892
      %v895 = vunpack.c.l.s4 1934713408
      %v896 = vunpack.c.0.s8 %v895
      %v897 = vperm.slane %v891, %v896
      %v899 = vunpack.c.l.s4 1934713408
      %v900 = vunpack.c.0.s8 %v899
      %v901 = vperm.slane %v893, %v900
      %v902 = vrot.slane %v865, 4
      %v903 = vsel %vm506, %v902, %v853
      %v904 = vrot.slane %v853, 4
      %v905 = vsel %vm506, %v865, %v904
      %v907 = vunpack.c.l.s4 1934713408
      %v908 = vunpack.c.0.s8 %v907
      %v909 = vperm.slane %v903, %v908
      %v911 = vunpack.c.l.s4 1934713408
      %v912 = vunpack.c.0.s8 %v911
      %v913 = vperm.slane %v905, %v912
      %v914 = vrot.slane %v885, 4
      %v915 = vsel %vm506, %v914, %v873
      %v916 = vrot.slane %v873, 4
      %v917 = vsel %vm506, %v885, %v916
      %v919 = vunpack.c.l.s4 1934713408
      %v920 = vunpack.c.0.s8 %v919
      %v921 = vperm.slane %v915, %v920
      %v923 = vunpack.c.l.s4 1934713408
      %v924 = vunpack.c.0.s8 %v923
      %v925 = vperm.slane %v917, %v924
      %v926 = vrot.slane %v889, 4
      %v927 = vsel %vm506, %v926, %v877
      %v928 = vrot.slane %v877, 4
      %v929 = vsel %vm506, %v889, %v928
      %v931 = vunpack.c.l.s4 1934713408
      %v932 = vunpack.c.0.s8 %v931
      %v933 = vperm.slane %v927, %v932
      %v935 = vunpack.c.l.s4 1934713408
      %v936 = vunpack.c.0.s8 %v935
      %v937 = vperm.slane %v929, %v936
      %v938 = vrot.slane %v921, 4
      %v939 = vsel %vm506, %v938, %v897
      %v940 = vrot.slane %v897, 4
      %v941 = vsel %vm506, %v921, %v940
      %v942 = vrot.slane %v925, 4
      %v943 = vsel %vm506, %v942, %v901
      %v944 = vrot.slane %v901, 4
      %v945 = vsel %vm506, %v925, %v944
      %v946 = vrot.slane %v933, 4
      %v947 = vsel %vm506, %v946, %v909
      %v948 = vrot.slane %v909, 4
      %v949 = vsel %vm506, %v933, %v948
      %v950 = vrot.slane %v937, 4
      %v951 = vsel %vm506, %v950, %v913
      %v952 = vrot.slane %v913, 4
      %v953 = vsel %vm506, %v937, %v952
      %v954 = vld [vmem:[#allocation2] sm:$0xff]
      %v955 = vld [vmem:[#allocation2 + $0x8] sm:$0xff]
      %v956 = vld [vmem:[#allocation2 + $0x10] sm:$0xff]
      %v957 = vld [vmem:[#allocation2 + $0x18] sm:$0xff]
      %v958 = vld [vmem:[#allocation2 + $0x20] sm:$0xff]
      %v959 = vld [vmem:[#allocation2 + $0x28] sm:$0xff]
      %v960 = vld [vmem:[#allocation2 + $0x30] sm:$0xff]
      %v961 = vld [vmem:[#allocation2 + $0x38] sm:$0xff]
      %v962 = vld [vmem:[#allocation2 + $0x40] sm:$0xff]
      %v963 = vld [vmem:[#allocation2 + $0x48] sm:$0xff]
      %v964 = vld [vmem:[#allocation2 + $0x50] sm:$0xff]
      %v965 = vld [vmem:[#allocation2 + $0x58] sm:$0xff]
      %v966 = vld [vmem:[#allocation2 + $0x60] sm:$0xff]
      %v967 = vld [vmem:[#allocation2 + $0x68] sm:$0xff]
      %v968 = vld [vmem:[#allocation2 + $0x70] sm:$0xff]
      %v969 = vld [vmem:[#allocation2 + $0x78] sm:$0xff]
      %v970 = vld [vmem:[#allocation2 + $0x80] sm:$0xff]
      %v971 = vld [vmem:[#allocation2 + $0x88] sm:$0xff]
      %v972 = vld [vmem:[#allocation2 + $0x90] sm:$0xff]
      %v973 = vld [vmem:[#allocation2 + $0x98] sm:$0xff]
      %v974 = vld [vmem:[#allocation2 + $0xa0] sm:$0xff]
      %v975 = vld [vmem:[#allocation2 + $0xa8] sm:$0xff]
      %v976 = vld [vmem:[#allocation2 + $0xb0] sm:$0xff]
      %v977 = vld [vmem:[#allocation2 + $0xb8] sm:$0xff]
      %v978 = vld [vmem:[#allocation2 + $0xc0] sm:$0xff]
      %v979 = vld [vmem:[#allocation2 + $0xc8] sm:$0xff]
      %v980 = vld [vmem:[#allocation2 + $0xd0] sm:$0xff]
      %v981 = vld [vmem:[#allocation2 + $0xd8] sm:$0xff]
      %v982 = vld [vmem:[#allocation2 + $0xe0] sm:$0xff]
      %v983 = vld [vmem:[#allocation2 + $0xe8] sm:$0xff]
      %v984 = vld [vmem:[#allocation2 + $0xf0] sm:$0xff]
      %v985 = vld [vmem:[#allocation2 + $0xf8] sm:$0xff]
      %v986 = vpack.c.bf16 %v603, %v603
      %v987 = vpack.c.bf16 %v715, %v715
      %v988 = vpack.c.bf16 %v605, %v605
      %v989 = vpack.c.bf16 %v717, %v717
      %v990 = vpack.c.bf16 %v607, %v607
      %v991 = vpack.c.bf16 %v719, %v719
      %v992 = vpack.c.bf16 %v609, %v609
      %v993 = vpack.c.bf16 %v721, %v721
      %v994 = vpack.c.bf16 %v611, %v611
      %v995 = vpack.c.bf16 %v723, %v723
      %v996 = vpack.c.bf16 %v613, %v613
      %v997 = vpack.c.bf16 %v725, %v725
      %v998 = vpack.c.bf16 %v615, %v615
      %v999 = vpack.c.bf16 %v727, %v727
      %v1000 = vpack.c.bf16 %v617, %v617
      %v1001 = vpack.c.bf16 %v729, %v729
      %v1002 = vpack.c.bf16 %v827, %v827
      %v1003 = vpack.c.bf16 %v939, %v939
      %v1004 = vpack.c.bf16 %v829, %v829
      %v1005 = vpack.c.bf16 %v941, %v941
      %v1006 = vpack.c.bf16 %v831, %v831
      %v1007 = vpack.c.bf16 %v943, %v943
      %v1008 = vpack.c.bf16 %v833, %v833
      %v1009 = vpack.c.bf16 %v945, %v945
      %v1010 = vpack.c.bf16 %v835, %v835
      %v1011 = vpack.c.bf16 %v947, %v947
      %v1012 = vpack.c.bf16 %v837, %v837
      %v1013 = vpack.c.bf16 %v949, %v949
      %v1014 = vpack.c.bf16 %v839, %v839
      %v1015 = vpack.c.bf16 %v951, %v951
      %v1016 = vpack.c.bf16 %v841, %v841
      %v1017 = vpack.c.bf16 %v953, %v953
      %1050 = vrot.lane.b32.xlu0 %v986, 32
      %v1051 = vpop.permute.xlu0 %1050
      %1052 = vrot.lane.b32.xlu0 %v987, 32
      %v1053 = vpop.permute.xlu0 %1052
      %1054 = vrot.lane.b32.xlu0 %v988, 32
      %v1055 = vpop.permute.xlu0 %1054
      %1056 = vrot.lane.b32.xlu0 %v989, 32
      %v1057 = vpop.permute.xlu0 %1056
      %1058 = vrot.lane.b32.xlu0 %v990, 32
      %v1059 = vpop.permute.xlu0 %1058
      %1060 = vrot.lane.b32.xlu0 %v991, 32
      %v1061 = vpop.permute.xlu0 %1060
      %1062 = vrot.lane.b32.xlu0 %v992, 32
      %v1063 = vpop.permute.xlu0 %1062
      %1064 = vrot.lane.b32.xlu0 %v993, 32
      %v1065 = vpop.permute.xlu0 %1064
      %1066 = vrot.lane.b32.xlu0 %v994, 32
      %v1067 = vpop.permute.xlu0 %1066
      %1068 = vrot.lane.b32.xlu0 %v995, 32
      %v1069 = vpop.permute.xlu0 %1068
      %1070 = vrot.lane.b32.xlu0 %v996, 32
      %v1071 = vpop.permute.xlu0 %1070
      %1072 = vrot.lane.b32.xlu0 %v997, 32
      %v1073 = vpop.permute.xlu0 %1072
      %1074 = vrot.lane.b32.xlu0 %v998, 32
      %v1075 = vpop.permute.xlu0 %1074
      %1076 = vrot.lane.b32.xlu0 %v999, 32
      %v1077 = vpop.permute.xlu0 %1076
      %1078 = vrot.lane.b32.xlu0 %v1000, 32
      %v1079 = vpop.permute.xlu0 %1078
      %1080 = vrot.lane.b32.xlu0 %v1001, 32
      %v1081 = vpop.permute.xlu0 %1080
      %1082 = vrot.lane.b32.xlu0 %v1002, 32
      %v1083 = vpop.permute.xlu0 %1082
      %1084 = vrot.lane.b32.xlu0 %v1003, 32
      %v1085 = vpop.permute.xlu0 %1084
      %1086 = vrot.lane.b32.xlu0 %v1004, 32
      %v1087 = vpop.permute.xlu0 %1086
      %1088 = vrot.lane.b32.xlu0 %v1005, 32
      %v1089 = vpop.permute.xlu0 %1088
      %1090 = vrot.lane.b32.xlu0 %v1006, 32
      %v1091 = vpop.permute.xlu0 %1090
      %1092 = vrot.lane.b32.xlu0 %v1007, 32
      %v1093 = vpop.permute.xlu0 %1092
      %1094 = vrot.lane.b32.xlu0 %v1008, 32
      %v1095 = vpop.permute.xlu0 %1094
      %1096 = vrot.lane.b32.xlu0 %v1009, 32
      %v1097 = vpop.permute.xlu0 %1096
      %1098 = vrot.lane.b32.xlu0 %v1010, 32
      %v1099 = vpop.permute.xlu0 %1098
      %1100 = vrot.lane.b32.xlu0 %v1011, 32
      %v1101 = vpop.permute.xlu0 %1100
      %1102 = vrot.lane.b32.xlu0 %v1012, 32
      %v1103 = vpop.permute.xlu0 %1102
      %1104 = vrot.lane.b32.xlu0 %v1013, 32
      %v1105 = vpop.permute.xlu0 %1104
      %1106 = vrot.lane.b32.xlu0 %v1014, 32
      %v1107 = vpop.permute.xlu0 %1106
      %1108 = vrot.lane.b32.xlu0 %v1015, 32
      %v1109 = vpop.permute.xlu0 %1108
      %1110 = vrot.lane.b32.xlu0 %v1016, 32
      %v1111 = vpop.permute.xlu0 %1110
      %1112 = vrot.lane.b32.xlu0 %v1017, 32
      %v1113 = vpop.permute.xlu0 %1112
      %s1146 = scalar_lea.vmem [#allocation3], 16
      %vm1147 = vcmask 290048
      %1148 = vst.msk [vmem:[%s1146 + $0x4] sm:$0xf] %vm1147, %v1051
      %1149 = vst.msk [vmem:[%s1146 + $0x8] sm:$0xf] %vm1147, %v1053
      %1150 = vst.msk [vmem:[%s1146 + $0x14] sm:$0xf] %vm1147, %v1055
      %1151 = vst.msk [vmem:[%s1146 + $0x18] sm:$0xf] %vm1147, %v1057
      %1152 = vst.msk [vmem:[%s1146 + $0x24] sm:$0xf] %vm1147, %v1059
      %1153 = vst.msk [vmem:[%s1146 + $0x28] sm:$0xf] %vm1147, %v1061
      %1154 = vst.msk [vmem:[%s1146 + $0x34] sm:$0xf] %vm1147, %v1063
      %1155 = vst.msk [vmem:[%s1146 + $0x38] sm:$0xf] %vm1147, %v1065
      %1156 = vst.msk [vmem:[%s1146 + $0x44] sm:$0xf] %vm1147, %v1067
      %1157 = vst.msk [vmem:[%s1146 + $0x48] sm:$0xf] %vm1147, %v1069
      %1158 = vst.msk [vmem:[%s1146 + $0x54] sm:$0xf] %vm1147, %v1071
      %1159 = vst.msk [vmem:[%s1146 + $0x58] sm:$0xf] %vm1147, %v1073
      %1160 = vst.msk [vmem:[%s1146 + $0x64] sm:$0xf] %vm1147, %v1075
      %1161 = vst.msk [vmem:[%s1146 + $0x68] sm:$0xf] %vm1147, %v1077
      %1162 = vst.msk [vmem:[%s1146 + $0x74] sm:$0xf] %vm1147, %v1079
      %1163 = vst.msk [vmem:[%s1146 + $0x78] sm:$0xf] %vm1147, %v1081
      %1164 = vst.msk [vmem:[%s1146 + $0x84] sm:$0xf] %vm1147, %v1083
      %1165 = vst.msk [vmem:[%s1146 + $0x88] sm:$0xf] %vm1147, %v1085
      %1166 = vst.msk [vmem:[%s1146 + $0x94] sm:$0xf] %vm1147, %v1087
      %1167 = vst.msk [vmem:[%s1146 + $0x98] sm:$0xf] %vm1147, %v1089
      %1168 = vst.msk [vmem:[%s1146 + $0xa4] sm:$0xf] %vm1147, %v1091
      %1169 = vst.msk [vmem:[%s1146 + $0xa8] sm:$0xf] %vm1147, %v1093
      %1170 = vst.msk [vmem:[%s1146 + $0xb4] sm:$0xf] %vm1147, %v1095
      %1171 = vst.msk [vmem:[%s1146 + $0xb8] sm:$0xf] %vm1147, %v1097
      %1172 = vst.msk [vmem:[%s1146 + $0xc4] sm:$0xf] %vm1147, %v1099
      %1173 = vst.msk [vmem:[%s1146 + $0xc8] sm:$0xf] %vm1147, %v1101
      %1174 = vst.msk [vmem:[%s1146 + $0xd4] sm:$0xf] %vm1147, %v1103
      %1175 = vst.msk [vmem:[%s1146 + $0xd8] sm:$0xf] %vm1147, %v1105
      %1176 = vst.msk [vmem:[%s1146 + $0xe4] sm:$0xf] %vm1147, %v1107
      %1177 = vst.msk [vmem:[%s1146 + $0xe8] sm:$0xf] %vm1147, %v1109
      %1178 = vst.msk [vmem:[%s1146 + $0xf4] sm:$0xf] %vm1147, %v1111
      %1179 = vst.msk [vmem:[%s1146 + $0xf8] sm:$0xf] %vm1147, %v1113
      %v1180 = vpack.c.bf16 %v954, %v954
      %v1181 = vpack.c.bf16 %v955, %v955
      %v1182 = vpack.c.bf16 %v956, %v956
      %v1183 = vpack.c.bf16 %v957, %v957
      %v1184 = vpack.c.bf16 %v958, %v958
      %v1185 = vpack.c.bf16 %v959, %v959
      %v1186 = vpack.c.bf16 %v960, %v960
      %v1187 = vpack.c.bf16 %v961, %v961
      %v1188 = vpack.c.bf16 %v962, %v962
      %v1189 = vpack.c.bf16 %v963, %v963
      %v1190 = vpack.c.bf16 %v964, %v964
      %v1191 = vpack.c.bf16 %v965, %v965
      %v1192 = vpack.c.bf16 %v966, %v966
      %v1193 = vpack.c.bf16 %v967, %v967
      %v1194 = vpack.c.bf16 %v968, %v968
      %v1195 = vpack.c.bf16 %v969, %v969
      %v1196 = vpack.c.bf16 %v970, %v970
      %v1197 = vpack.c.bf16 %v971, %v971
      %v1198 = vpack.c.bf16 %v972, %v972
      %v1199 = vpack.c.bf16 %v973, %v973
      %v1200 = vpack.c.bf16 %v974, %v974
      %v1201 = vpack.c.bf16 %v975, %v975
      %v1202 = vpack.c.bf16 %v976, %v976
      %v1203 = vpack.c.bf16 %v977, %v977
      %v1204 = vpack.c.bf16 %v978, %v978
      %v1205 = vpack.c.bf16 %v979, %v979
      %v1206 = vpack.c.bf16 %v980, %v980
      %v1207 = vpack.c.bf16 %v981, %v981
      %v1208 = vpack.c.bf16 %v982, %v982
      %v1209 = vpack.c.bf16 %v983, %v983
      %v1210 = vpack.c.bf16 %v984, %v984
      %v1211 = vpack.c.bf16 %v985, %v985
      %vm1212 = vcmask 257024
      %1213 = vst.msk [vmem:[%s1146 + $0x4] sm:$0xf] %vm1212, %v1180
      %1214 = vst.msk [vmem:[%s1146 + $0x8] sm:$0xf] %vm1212, %v1181
      %1215 = vst.msk [vmem:[%s1146 + $0x14] sm:$0xf] %vm1212, %v1182
      %1216 = vst.msk [vmem:[%s1146 + $0x18] sm:$0xf] %vm1212, %v1183
      %1217 = vst.msk [vmem:[%s1146 + $0x24] sm:$0xf] %vm1212, %v1184
      %1218 = vst.msk [vmem:[%s1146 + $0x28] sm:$0xf] %vm1212, %v1185
      %1219 = vst.msk [vmem:[%s1146 + $0x34] sm:$0xf] %vm1212, %v1186
      %1220 = vst.msk [vmem:[%s1146 + $0x38] sm:$0xf] %vm1212, %v1187
      %1221 = vst.msk [vmem:[%s1146 + $0x44] sm:$0xf] %vm1212, %v1188
      %1222 = vst.msk [vmem:[%s1146 + $0x48] sm:$0xf] %vm1212, %v1189
      %1223 = vst.msk [vmem:[%s1146 + $0x54] sm:$0xf] %vm1212, %v1190
      %1224 = vst.msk [vmem:[%s1146 + $0x58] sm:$0xf] %vm1212, %v1191
      %1225 = vst.msk [vmem:[%s1146 + $0x64] sm:$0xf] %vm1212, %v1192
      %1226 = vst.msk [vmem:[%s1146 + $0x68] sm:$0xf] %vm1212, %v1193
      %1227 = vst.msk [vmem:[%s1146 + $0x74] sm:$0xf] %vm1212, %v1194
      %1228 = vst.msk [vmem:[%s1146 + $0x78] sm:$0xf] %vm1212, %v1195
      %1229 = vst.msk [vmem:[%s1146 + $0x84] sm:$0xf] %vm1212, %v1196
      %1230 = vst.msk [vmem:[%s1146 + $0x88] sm:$0xf] %vm1212, %v1197
      %1231 = vst.msk [vmem:[%s1146 + $0x94] sm:$0xf] %vm1212, %v1198
      %1232 = vst.msk [vmem:[%s1146 + $0x98] sm:$0xf] %vm1212, %v1199
      %1233 = vst.msk [vmem:[%s1146 + $0xa4] sm:$0xf] %vm1212, %v1200
      %1234 = vst.msk [vmem:[%s1146 + $0xa8] sm:$0xf] %vm1212, %v1201
      %1235 = vst.msk [vmem:[%s1146 + $0xb4] sm:$0xf] %vm1212, %v1202
      %1236 = vst.msk [vmem:[%s1146 + $0xb8] sm:$0xf] %vm1212, %v1203
      %1237 = vst.msk [vmem:[%s1146 + $0xc4] sm:$0xf] %vm1212, %v1204
      %1238 = vst.msk [vmem:[%s1146 + $0xc8] sm:$0xf] %vm1212, %v1205
      %1239 = vst.msk [vmem:[%s1146 + $0xd4] sm:$0xf] %vm1212, %v1206
      %1240 = vst.msk [vmem:[%s1146 + $0xd8] sm:$0xf] %vm1212, %v1207
      %1241 = vst.msk [vmem:[%s1146 + $0xe4] sm:$0xf] %vm1212, %v1208
      %1242 = vst.msk [vmem:[%s1146 + $0xe8] sm:$0xf] %vm1212, %v1209
      %1243 = vst.msk [vmem:[%s1146 + $0xf4] sm:$0xf] %vm1212, %v1210
      %1244 = vst.msk [vmem:[%s1146 + $0xf8] sm:$0xf] %vm1212, %v1211
      %v1245 = vld [vmem:[#allocation3] sm:$0x8]
      %v1246 = vld [vmem:[#allocation3 + $0x4] sm:$0xf]
      %v1247 = vld [vmem:[#allocation3 + $0x8] sm:$0xf]
      %v1248 = vld [vmem:[#allocation3 + $0x10] sm:$0x8]
      %v1249 = vld [vmem:[#allocation3 + $0x14] sm:$0xf]
      %v1250 = vld [vmem:[#allocation3 + $0x18] sm:$0xf]
      %v1251 = vld [vmem:[#allocation3 + $0x20] sm:$0x8]
      %v1252 = vld [vmem:[#allocation3 + $0x24] sm:$0xf]
      %v1253 = vld [vmem:[#allocation3 + $0x28] sm:$0xf]
      %v1254 = vld [vmem:[#allocation3 + $0x30] sm:$0x8]
      %v1255 = vld [vmem:[#allocation3 + $0x34] sm:$0xf]
      %v1256 = vld [vmem:[#allocation3 + $0x38] sm:$0xf]
      %v1257 = vld [vmem:[#allocation3 + $0x40] sm:$0x8]
      %v1258 = vld [vmem:[#allocation3 + $0x44] sm:$0xf]
      %v1259 = vld [vmem:[#allocation3 + $0x48] sm:$0xf]
      %v1260 = vld [vmem:[#allocation3 + $0x50] sm:$0x8]
      %v1261 = vld [vmem:[#allocation3 + $0x54] sm:$0xf]
      %v1262 = vld [vmem:[#allocation3 + $0x58] sm:$0xf]
      %v1263 = vld [vmem:[#allocation3 + $0x60] sm:$0x8]
      %v1264 = vld [vmem:[#allocation3 + $0x64] sm:$0xf]
      %v1265 = vld [vmem:[#allocation3 + $0x68] sm:$0xf]
      %v1266 = vld [vmem:[#allocation3 + $0x70] sm:$0x8]
      %v1267 = vld [vmem:[#allocation3 + $0x74] sm:$0xf]
      %v1268 = vld [vmem:[#allocation3 + $0x78] sm:$0xf]
      %v1269 = vld [vmem:[#allocation3 + $0x80] sm:$0x8]
      %v1270 = vld [vmem:[#allocation3 + $0x84] sm:$0xf]
      %v1271 = vld [vmem:[#allocation3 + $0x88] sm:$0xf]
      %v1272 = vld [vmem:[#allocation3 + $0x90] sm:$0x8]
      %v1273 = vld [vmem:[#allocation3 + $0x94] sm:$0xf]
      %v1274 = vld [vmem:[#allocation3 + $0x98] sm:$0xf]
      %v1275 = vld [vmem:[#allocation3 + $0xa0] sm:$0x8]
      %v1276 = vld [vmem:[#allocation3 + $0xa4] sm:$0xf]
      %v1277 = vld [vmem:[#allocation3 + $0xa8] sm:$0xf]
      %v1278 = vld [vmem:[#allocation3 + $0xb0] sm:$0x8]
      %v1279 = vld [vmem:[#allocation3 + $0xb4] sm:$0xf]
      %v1280 = vld [vmem:[#allocation3 + $0xb8] sm:$0xf]
      %v1281 = vld [vmem:[#allocation3 + $0xc0] sm:$0x8]
      %v1282 = vld [vmem:[#allocation3 + $0xc4] sm:$0xf]
      %v1283 = vld [vmem:[#allocation3 + $0xc8] sm:$0xf]
      %v1284 = vld [vmem:[#allocation3 + $0xd0] sm:$0x8]
      %v1285 = vld [vmem:[#allocation3 + $0xd4] sm:$0xf]
      %v1286 = vld [vmem:[#allocation3 + $0xd8] sm:$0xf]
      %v1287 = vld [vmem:[#allocation3 + $0xe0] sm:$0x8]
      %v1288 = vld [vmem:[#allocation3 + $0xe4] sm:$0xf]
      %v1289 = vld [vmem:[#allocation3 + $0xe8] sm:$0xf]
      %v1290 = vld [vmem:[#allocation3 + $0xf0] sm:$0x8]
      %v1291 = vld [vmem:[#allocation3 + $0xf4] sm:$0xf]
      %v1292 = vld [vmem:[#allocation3 + $0xf8] sm:$0xf]
      %vm1293 = vsmask.f32 256
      %vm1294 = vsmask.f32 4368
      %vm1295 = vmor %vm1293, %vm1294
      %v1297 = vshrl.u32 %v1245, 16
      %v1299 = vrot.slane %v1297, 7
      %v1300 = vrot.slane %v1299, 4
      %v1302 = vshrl.u32 %v1246, 16
      %v1304 = vrot.slane %v1302, 7
      %v1305 = vshll.u32 %v1246, 16
      %v1307 = vor.u32 %v1304, %v1305
      %v1308 = vsel %vm1295, %v1300, %v1307
      %v1309 = vrot.slane %v1304, 4
      %v1311 = vshrl.u32 %v1247, 16
      %v1313 = vrot.slane %v1311, 7
      %v1314 = vshll.u32 %v1247, 16
      %v1316 = vor.u32 %v1313, %v1314
      %v1317 = vsel %vm1295, %v1309, %v1316
      %v1319 = vshrl.u32 %v1248, 16
      %v1321 = vrot.slane %v1319, 7
      %v1322 = vrot.slane %v1321, 4
      %v1324 = vshrl.u32 %v1249, 16
      %v1326 = vrot.slane %v1324, 7
      %v1327 = vshll.u32 %v1249, 16
      %v1329 = vor.u32 %v1326, %v1327
      %v1330 = vsel %vm1295, %v1322, %v1329
      %v1331 = vrot.slane %v1326, 4
      %v1333 = vshrl.u32 %v1250, 16
      %v1335 = vrot.slane %v1333, 7
      %v1336 = vshll.u32 %v1250, 16
      %v1338 = vor.u32 %v1335, %v1336
      %v1339 = vsel %vm1295, %v1331, %v1338
      %v1341 = vshrl.u32 %v1251, 16
      %v1343 = vrot.slane %v1341, 7
      %v1344 = vrot.slane %v1343, 4
      %v1346 = vshrl.u32 %v1252, 16
      %v1348 = vrot.slane %v1346, 7
      %v1349 = vshll.u32 %v1252, 16
      %v1351 = vor.u32 %v1348, %v1349
      %v1352 = vsel %vm1295, %v1344, %v1351
      %v1353 = vrot.slane %v1348, 4
      %v1355 = vshrl.u32 %v1253, 16
      %v1357 = vrot.slane %v1355, 7
      %v1358 = vshll.u32 %v1253, 16
      %v1360 = vor.u32 %v1357, %v1358
      %v1361 = vsel %vm1295, %v1353, %v1360
      %v1363 = vshrl.u32 %v1254, 16
      %v1365 = vrot.slane %v1363, 7
      %v1366 = vrot.slane %v1365, 4
      %v1368 = vshrl.u32 %v1255, 16
      %v1370 = vrot.slane %v1368, 7
      %v1371 = vshll.u32 %v1255, 16
      %v1373 = vor.u32 %v1370, %v1371
      %v1374 = vsel %vm1295, %v1366, %v1373
      %v1375 = vrot.slane %v1370, 4
      %v1377 = vshrl.u32 %v1256, 16
      %v1379 = vrot.slane %v1377, 7
      %v1380 = vshll.u32 %v1256, 16
      %v1382 = vor.u32 %v1379, %v1380
      %v1383 = vsel %vm1295, %v1375, %v1382
      %v1385 = vshrl.u32 %v1257, 16
      %v1387 = vrot.slane %v1385, 7
      %v1388 = vrot.slane %v1387, 4
      %v1390 = vshrl.u32 %v1258, 16
      %v1392 = vrot.slane %v1390, 7
      %v1393 = vshll.u32 %v1258, 16
      %v1395 = vor.u32 %v1392, %v1393
      %v1396 = vsel %vm1295, %v1388, %v1395
      %v1397 = vrot.slane %v1392, 4
      %v1399 = vshrl.u32 %v1259, 16
      %v1401 = vrot.slane %v1399, 7
      %v1402 = vshll.u32 %v1259, 16
      %v1404 = vor.u32 %v1401, %v1402
      %v1405 = vsel %vm1295, %v1397, %v1404
      %v1407 = vshrl.u32 %v1260, 16
      %v1409 = vrot.slane %v1407, 7
      %v1410 = vrot.slane %v1409, 4
      %v1412 = vshrl.u32 %v1261, 16
      %v1414 = vrot.slane %v1412, 7
      %v1415 = vshll.u32 %v1261, 16
      %v1417 = vor.u32 %v1414, %v1415
      %v1418 = vsel %vm1295, %v1410, %v1417
      %v1419 = vrot.slane %v1414, 4
      %v1421 = vshrl.u32 %v1262, 16
      %v1423 = vrot.slane %v1421, 7
      %v1424 = vshll.u32 %v1262, 16
      %v1426 = vor.u32 %v1423, %v1424
      %v1427 = vsel %vm1295, %v1419, %v1426
      %v1429 = vshrl.u32 %v1263, 16
      %v1431 = vrot.slane %v1429, 7
      %v1432 = vrot.slane %v1431, 4
      %v1434 = vshrl.u32 %v1264, 16
      %v1436 = vrot.slane %v1434, 7
      %v1437 = vshll.u32 %v1264, 16
      %v1439 = vor.u32 %v1436, %v1437
      %v1440 = vsel %vm1295, %v1432, %v1439
      %v1441 = vrot.slane %v1436, 4
      %v1443 = vshrl.u32 %v1265, 16
      %v1445 = vrot.slane %v1443, 7
      %v1446 = vshll.u32 %v1265, 16
      %v1448 = vor.u32 %v1445, %v1446
      %v1449 = vsel %vm1295, %v1441, %v1448
      %v1451 = vshrl.u32 %v1266, 16
      %v1453 = vrot.slane %v1451, 7
      %v1454 = vrot.slane %v1453, 4
      %v1456 = vshrl.u32 %v1267, 16
      %v1458 = vrot.slane %v1456, 7
      %v1459 = vshll.u32 %v1267, 16
      %v1461 = vor.u32 %v1458, %v1459
      %v1462 = vsel %vm1295, %v1454, %v1461
      %v1463 = vrot.slane %v1458, 4
      %v1465 = vshrl.u32 %v1268, 16
      %v1467 = vrot.slane %v1465, 7
      %v1468 = vshll.u32 %v1268, 16
      %v1470 = vor.u32 %v1467, %v1468
      %v1471 = vsel %vm1295, %v1463, %v1470
      %v1473 = vshrl.u32 %v1269, 16
      %v1475 = vrot.slane %v1473, 7
      %v1476 = vrot.slane %v1475, 4
      %v1478 = vshrl.u32 %v1270, 16
      %v1480 = vrot.slane %v1478, 7
      %v1481 = vshll.u32 %v1270, 16
      %v1483 = vor.u32 %v1480, %v1481
      %v1484 = vsel %vm1295, %v1476, %v1483
      %v1485 = vrot.slane %v1480, 4
      %v1487 = vshrl.u32 %v1271, 16
      %v1489 = vrot.slane %v1487, 7
      %v1490 = vshll.u32 %v1271, 16
      %v1492 = vor.u32 %v1489, %v1490
      %v1493 = vsel %vm1295, %v1485, %v1492
      %v1495 = vshrl.u32 %v1272, 16
      %v1497 = vrot.slane %v1495, 7
      %v1498 = vrot.slane %v1497, 4
      %v1500 = vshrl.u32 %v1273, 16
      %v1502 = vrot.slane %v1500, 7
      %v1503 = vshll.u32 %v1273, 16
      %v1505 = vor.u32 %v1502, %v1503
      %v1506 = vsel %vm1295, %v1498, %v1505
      %v1507 = vrot.slane %v1502, 4
      %v1509 = vshrl.u32 %v1274, 16
      %v1511 = vrot.slane %v1509, 7
      %v1512 = vshll.u32 %v1274, 16
      %v1514 = vor.u32 %v1511, %v1512
      %v1515 = vsel %vm1295, %v1507, %v1514
      %v1517 = vshrl.u32 %v1275, 16
      %v1519 = vrot.slane %v1517, 7
      %v1520 = vrot.slane %v1519, 4
      %v1522 = vshrl.u32 %v1276, 16
      %v1524 = vrot.slane %v1522, 7
      %v1525 = vshll.u32 %v1276, 16
      %v1527 = vor.u32 %v1524, %v1525
      %v1528 = vsel %vm1295, %v1520, %v1527
      %v1529 = vrot.slane %v1524, 4
      %v1531 = vshrl.u32 %v1277, 16
      %v1533 = vrot.slane %v1531, 7
      %v1534 = vshll.u32 %v1277, 16
      %v1536 = vor.u32 %v1533, %v1534
      %v1537 = vsel %vm1295, %v1529, %v1536
      %v1539 = vshrl.u32 %v1278, 16
      %v1541 = vrot.slane %v1539, 7
      %v1542 = vrot.slane %v1541, 4
      %v1544 = vshrl.u32 %v1279, 16
      %v1546 = vrot.slane %v1544, 7
      %v1547 = vshll.u32 %v1279, 16
      %v1549 = vor.u32 %v1546, %v1547
      %v1550 = vsel %vm1295, %v1542, %v1549
      %v1551 = vrot.slane %v1546, 4
      %v1553 = vshrl.u32 %v1280, 16
      %v1555 = vrot.slane %v1553, 7
      %v1556 = vshll.u32 %v1280, 16
      %v1558 = vor.u32 %v1555, %v1556
      %v1559 = vsel %vm1295, %v1551, %v1558
      %v1561 = vshrl.u32 %v1281, 16
      %v1563 = vrot.slane %v1561, 7
      %v1564 = vrot.slane %v1563, 4
      %v1566 = vshrl.u32 %v1282, 16
      %v1568 = vrot.slane %v1566, 7
      %v1569 = vshll.u32 %v1282, 16
      %v1571 = vor.u32 %v1568, %v1569
      %v1572 = vsel %vm1295, %v1564, %v1571
      %v1573 = vrot.slane %v1568, 4
      %v1575 = vshrl.u32 %v1283, 16
      %v1577 = vrot.slane %v1575, 7
      %v1578 = vshll.u32 %v1283, 16
      %v1580 = vor.u32 %v1577, %v1578
      %v1581 = vsel %vm1295, %v1573, %v1580
      %v1583 = vshrl.u32 %v1284, 16
      %v1585 = vrot.slane %v1583, 7
      %v1586 = vrot.slane %v1585, 4
      %v1588 = vshrl.u32 %v1285, 16
      %v1590 = vrot.slane %v1588, 7
      %v1591 = vshll.u32 %v1285, 16
      %v1593 = vor.u32 %v1590, %v1591
      %v1594 = vsel %vm1295, %v1586, %v1593
      %v1595 = vrot.slane %v1590, 4
      %v1597 = vshrl.u32 %v1286, 16
      %v1599 = vrot.slane %v1597, 7
      %v1600 = vshll.u32 %v1286, 16
      %v1602 = vor.u32 %v1599, %v1600
      %v1603 = vsel %vm1295, %v1595, %v1602
      %v1605 = vshrl.u32 %v1287, 16
      %v1607 = vrot.slane %v1605, 7
      %v1608 = vrot.slane %v1607, 4
      %v1610 = vshrl.u32 %v1288, 16
      %v1612 = vrot.slane %v1610, 7
      %v1613 = vshll.u32 %v1288, 16
      %v1615 = vor.u32 %v1612, %v1613
      %v1616 = vsel %vm1295, %v1608, %v1615
      %v1617 = vrot.slane %v1612, 4
      %v1619 = vshrl.u32 %v1289, 16
      %v1621 = vrot.slane %v1619, 7
      %v1622 = vshll.u32 %v1289, 16
      %v1624 = vor.u32 %v1621, %v1622
      %v1625 = vsel %vm1295, %v1617, %v1624
      %v1627 = vshrl.u32 %v1290, 16
      %v1629 = vrot.slane %v1627, 7
      %v1630 = vrot.slane %v1629, 4
      %v1632 = vshrl.u32 %v1291, 16
      %v1634 = vrot.slane %v1632, 7
      %v1635 = vshll.u32 %v1291, 16
      %v1637 = vor.u32 %v1634, %v1635
      %v1638 = vsel %vm1295, %v1630, %v1637
      %v1639 = vrot.slane %v1634, 4
      %v1641 = vshrl.u32 %v1292, 16
      %v1643 = vrot.slane %v1641, 7
      %v1644 = vshll.u32 %v1292, 16
      %v1646 = vor.u32 %v1643, %v1644
      %v1647 = vsel %vm1295, %v1639, %v1646
      %vm1680 = vcmask 519168
      %1681 = vst.msk [vmem:[#allocation4] sm:$0xf] %vm1680, %v1308
      %1682 = vst.msk [vmem:[#allocation4 + $0x14] sm:$0xf] %vm1680, %v1317
      %1683 = vst.msk [vmem:[#allocation4 + $0x28] sm:$0xf] %vm1680, %v1330
      %1684 = vst.msk [vmem:[#allocation4 + $0x3c] sm:$0xf] %vm1680, %v1339
      %1685 = vst.msk [vmem:[#allocation4 + $0x50] sm:$0xf] %vm1680, %v1352
      %1686 = vst.msk [vmem:[#allocation4 + $0x64] sm:$0xf] %vm1680, %v1361
      %1687 = vst.msk [vmem:[#allocation4 + $0x78] sm:$0xf] %vm1680, %v1374
      %1688 = vst.msk [vmem:[#allocation4 + $0x8c] sm:$0xf] %vm1680, %v1383
      %1689 = vst.msk [vmem:[#allocation4 + $0xa0] sm:$0xf] %vm1680, %v1396
      %1690 = vst.msk [vmem:[#allocation4 + $0xb4] sm:$0xf] %vm1680, %v1405
      %1691 = vst.msk [vmem:[#allocation4 + $0xc8] sm:$0xf] %vm1680, %v1418
      %1692 = vst.msk [vmem:[#allocation4 + $0xdc] sm:$0xf] %vm1680, %v1427
      %1693 = vst.msk [vmem:[#allocation4 + $0xf0] sm:$0xf] %vm1680, %v1440
      %1694 = vst.msk [vmem:[#allocation4 + $0x104] sm:$0xf] %vm1680, %v1449
      %1695 = vst.msk [vmem:[#allocation4 + $0x118] sm:$0xf] %vm1680, %v1462
      %1696 = vst.msk [vmem:[#allocation4 + $0x12c] sm:$0xf] %vm1680, %v1471
      %1697 = vst.msk [vmem:[#allocation4 + $0x140] sm:$0xf] %vm1680, %v1484
      %1698 = vst.msk [vmem:[#allocation4 + $0x154] sm:$0xf] %vm1680, %v1493
      %1699 = vst.msk [vmem:[#allocation4 + $0x168] sm:$0xf] %vm1680, %v1506
      %1700 = vst.msk [vmem:[#allocation4 + $0x17c] sm:$0xf] %vm1680, %v1515
      %1701 = vst.msk [vmem:[#allocation4 + $0x190] sm:$0xf] %vm1680, %v1528
      %1702 = vst.msk [vmem:[#allocation4 + $0x1a4] sm:$0xf] %vm1680, %v1537
      %1703 = vst.msk [vmem:[#allocation4 + $0x1b8] sm:$0xf] %vm1680, %v1550
      %1704 = vst.msk [vmem:[#allocation4 + $0x1cc] sm:$0xf] %vm1680, %v1559
      %1705 = vst.msk [vmem:[#allocation4 + $0x1e0] sm:$0xf] %vm1680, %v1572
      %1706 = vst.msk [vmem:[#allocation4 + $0x1f4] sm:$0xf] %vm1680, %v1581
      %1707 = vst.msk [vmem:[#allocation4 + $0x208] sm:$0xf] %vm1680, %v1594
      %1708 = vst.msk [vmem:[#allocation4 + $0x21c] sm:$0xf] %vm1680, %v1603
      %1709 = vst.msk [vmem:[#allocation4 + $0x230] sm:$0xf] %vm1680, %v1616
      %1710 = vst.msk [vmem:[#allocation4 + $0x244] sm:$0xf] %vm1680, %v1625
      %1711 = vst.msk [vmem:[#allocation4 + $0x258] sm:$0xf] %vm1680, %v1638
      %1712 = vst.msk [vmem:[#allocation4 + $0x26c] sm:$0xf] %vm1680, %v1647
      %v1713 = vld [vmem:[#allocation3 + $0x4] sm:$0xf]
      %v1714 = vld [vmem:[#allocation3 + $0x8] sm:$0xf]
      %v1715 = vld [vmem:[#allocation3 + $0x14] sm:$0xf]
      %v1716 = vld [vmem:[#allocation3 + $0x18] sm:$0xf]
      %v1717 = vld [vmem:[#allocation3 + $0x24] sm:$0xf]
      %v1718 = vld [vmem:[#allocation3 + $0x28] sm:$0xf]
      %v1719 = vld [vmem:[#allocation3 + $0x34] sm:$0xf]
      %v1720 = vld [vmem:[#allocation3 + $0x38] sm:$0xf]
      %v1721 = vld [vmem:[#allocation3 + $0x44] sm:$0xf]
      %v1722 = vld [vmem:[#allocation3 + $0x48] sm:$0xf]
      %v1723 = vld [vmem:[#allocation3 + $0x54] sm:$0xf]
      %v1724 = vld [vmem:[#allocation3 + $0x58] sm:$0xf]
      %v1725 = vld [vmem:[#allocation3 + $0x64] sm:$0xf]
      %v1726 = vld [vmem:[#allocation3 + $0x68] sm:$0xf]
      %v1727 = vld [vmem:[#allocation3 + $0x74] sm:$0xf]
      %v1728 = vld [vmem:[#allocation3 + $0x78] sm:$0xf]
      %v1729 = vld [vmem:[#allocation3 + $0x84] sm:$0xf]
      %v1730 = vld [vmem:[#allocation3 + $0x88] sm:$0xf]
      %v1731 = vld [vmem:[#allocation3 + $0x94] sm:$0xf]
      %v1732 = vld [vmem:[#allocation3 + $0x98] sm:$0xf]
      %v1733 = vld [vmem:[#allocation3 + $0xa4] sm:$0xf]
      %v1734 = vld [vmem:[#allocation3 + $0xa8] sm:$0xf]
      %v1735 = vld [vmem:[#allocation3 + $0xb4] sm:$0xf]
      %v1736 = vld [vmem:[#allocation3 + $0xb8] sm:$0xf]
      %v1737 = vld [vmem:[#allocation3 + $0xc4] sm:$0xf]
      %v1738 = vld [vmem:[#allocation3 + $0xc8] sm:$0xf]
      %v1739 = vld [vmem:[#allocation3 + $0xd4] sm:$0xf]
      %v1740 = vld [vmem:[#allocation3 + $0xd8] sm:$0xf]
      %v1741 = vld [vmem:[#allocation3 + $0xe4] sm:$0xf]
      %v1742 = vld [vmem:[#allocation3 + $0xe8] sm:$0xf]
      %v1743 = vld [vmem:[#allocation3 + $0xf4] sm:$0xf]
      %v1744 = vld [vmem:[#allocation3 + $0xf8] sm:$0xf]
      %1777 = vrot.lane.b32.xlu0 %v1713, 64
      %v1778 = vpop.permute.xlu0 %1777
      %1779 = vrot.lane.b32.xlu0 %v1714, 64
      %v1780 = vpop.permute.xlu0 %1779
      %1781 = vrot.lane.b32.xlu0 %v1715, 64
      %v1782 = vpop.permute.xlu0 %1781
      %1783 = vrot.lane.b32.xlu0 %v1716, 64
      %v1784 = vpop.permute.xlu0 %1783
      %1785 = vrot.lane.b32.xlu0 %v1717, 64
      %v1786 = vpop.permute.xlu0 %1785
      %1787 = vrot.lane.b32.xlu0 %v1718, 64
      %v1788 = vpop.permute.xlu0 %1787
      %1789 = vrot.lane.b32.xlu0 %v1719, 64
      %v1790 = vpop.permute.xlu0 %1789
      %1791 = vrot.lane.b32.xlu0 %v1720, 64
      %v1792 = vpop.permute.xlu0 %1791
      %1793 = vrot.lane.b32.xlu0 %v1721, 64
      %v1794 = vpop.permute.xlu0 %1793
      %1795 = vrot.lane.b32.xlu0 %v1722, 64
      %v1796 = vpop.permute.xlu0 %1795
      %1797 = vrot.lane.b32.xlu0 %v1723, 64
      %v1798 = vpop.permute.xlu0 %1797
      %1799 = vrot.lane.b32.xlu0 %v1724, 64
      %v1800 = vpop.permute.xlu0 %1799
      %1801 = vrot.lane.b32.xlu0 %v1725, 64
      %v1802 = vpop.permute.xlu0 %1801
      %1803 = vrot.lane.b32.xlu0 %v1726, 64
      %v1804 = vpop.permute.xlu0 %1803
      %1805 = vrot.lane.b32.xlu0 %v1727, 64
      %v1806 = vpop.permute.xlu0 %1805
      %1807 = vrot.lane.b32.xlu0 %v1728, 64
      %v1808 = vpop.permute.xlu0 %1807
      %1809 = vrot.lane.b32.xlu0 %v1729, 64
      %v1810 = vpop.permute.xlu0 %1809
      %1811 = vrot.lane.b32.xlu0 %v1730, 64
      %v1812 = vpop.permute.xlu0 %1811
      %1813 = vrot.lane.b32.xlu0 %v1731, 64
      %v1814 = vpop.permute.xlu0 %1813
      %1815 = vrot.lane.b32.xlu0 %v1732, 64
      %v1816 = vpop.permute.xlu0 %1815
      %1817 = vrot.lane.b32.xlu0 %v1733, 64
      %v1818 = vpop.permute.xlu0 %1817
      %1819 = vrot.lane.b32.xlu0 %v1734, 64
      %v1820 = vpop.permute.xlu0 %1819
      %1821 = vrot.lane.b32.xlu0 %v1735, 64
      %v1822 = vpop.permute.xlu0 %1821
      %1823 = vrot.lane.b32.xlu0 %v1736, 64
      %v1824 = vpop.permute.xlu0 %1823
      %1825 = vrot.lane.b32.xlu0 %v1737, 64
      %v1826 = vpop.permute.xlu0 %1825
      %1827 = vrot.lane.b32.xlu0 %v1738, 64
      %v1828 = vpop.permute.xlu0 %1827
      %1829 = vrot.lane.b32.xlu0 %v1739, 64
      %v1830 = vpop.permute.xlu0 %1829
      %1831 = vrot.lane.b32.xlu0 %v1740, 64
      %v1832 = vpop.permute.xlu0 %1831
      %1833 = vrot.lane.b32.xlu0 %v1741, 64
      %v1834 = vpop.permute.xlu0 %1833
      %1835 = vrot.lane.b32.xlu0 %v1742, 64
      %v1836 = vpop.permute.xlu0 %1835
      %1837 = vrot.lane.b32.xlu0 %v1743, 64
      %v1838 = vpop.permute.xlu0 %1837
      %1839 = vrot.lane.b32.xlu0 %v1744, 64
      %v1840 = vpop.permute.xlu0 %1839
      %vm1873 = vcmask 1043968
      %1874 = vst.msk [vmem:[#allocation4] sm:$0xf] %vm1873, %v1778
      %1875 = vst.msk [vmem:[#allocation4 + $0x14] sm:$0xf] %vm1873, %v1780
      %1876 = vst.msk [vmem:[#allocation4 + $0x28] sm:$0xf] %vm1873, %v1782
      %1877 = vst.msk [vmem:[#allocation4 + $0x3c] sm:$0xf] %vm1873, %v1784
      %1878 = vst.msk [vmem:[#allocation4 + $0x50] sm:$0xf] %vm1873, %v1786
      %1879 = vst.msk [vmem:[#allocation4 + $0x64] sm:$0xf] %vm1873, %v1788
      %1880 = vst.msk [vmem:[#allocation4 + $0x78] sm:$0xf] %vm1873, %v1790
      %1881 = vst.msk [vmem:[#allocation4 + $0x8c] sm:$0xf] %vm1873, %v1792
      %1882 = vst.msk [vmem:[#allocation4 + $0xa0] sm:$0xf] %vm1873, %v1794
      %1883 = vst.msk [vmem:[#allocation4 + $0xb4] sm:$0xf] %vm1873, %v1796
      %1884 = vst.msk [vmem:[#allocation4 + $0xc8] sm:$0xf] %vm1873, %v1798
      %1885 = vst.msk [vmem:[#allocation4 + $0xdc] sm:$0xf] %vm1873, %v1800
      %1886 = vst.msk [vmem:[#allocation4 + $0xf0] sm:$0xf] %vm1873, %v1802
      %1887 = vst.msk [vmem:[#allocation4 + $0x104] sm:$0xf] %vm1873, %v1804
      %1888 = vst.msk [vmem:[#allocation4 + $0x118] sm:$0xf] %vm1873, %v1806
      %1889 = vst.msk [vmem:[#allocation4 + $0x12c] sm:$0xf] %vm1873, %v1808
      %1890 = vst.msk [vmem:[#allocation4 + $0x140] sm:$0xf] %vm1873, %v1810
      %1891 = vst.msk [vmem:[#allocation4 + $0x154] sm:$0xf] %vm1873, %v1812
      %1892 = vst.msk [vmem:[#allocation4 + $0x168] sm:$0xf] %vm1873, %v1814
      %1893 = vst.msk [vmem:[#allocation4 + $0x17c] sm:$0xf] %vm1873, %v1816
      %1894 = vst.msk [vmem:[#allocation4 + $0x190] sm:$0xf] %vm1873, %v1818
      %1895 = vst.msk [vmem:[#allocation4 + $0x1a4] sm:$0xf] %vm1873, %v1820
      %1896 = vst.msk [vmem:[#allocation4 + $0x1b8] sm:$0xf] %vm1873, %v1822
      %1897 = vst.msk [vmem:[#allocation4 + $0x1cc] sm:$0xf] %vm1873, %v1824
      %1898 = vst.msk [vmem:[#allocation4 + $0x1e0] sm:$0xf] %vm1873, %v1826
      %1899 = vst.msk [vmem:[#allocation4 + $0x1f4] sm:$0xf] %vm1873, %v1828
      %1900 = vst.msk [vmem:[#allocation4 + $0x208] sm:$0xf] %vm1873, %v1830
      %1901 = vst.msk [vmem:[#allocation4 + $0x21c] sm:$0xf] %vm1873, %v1832
      %1902 = vst.msk [vmem:[#allocation4 + $0x230] sm:$0xf] %vm1873, %v1834
      %1903 = vst.msk [vmem:[#allocation4 + $0x244] sm:$0xf] %vm1873, %v1836
      %1904 = vst.msk [vmem:[#allocation4 + $0x258] sm:$0xf] %vm1873, %v1838
      %1905 = vst.msk [vmem:[#allocation4 + $0x26c] sm:$0xf] %vm1873, %v1840
      %v1906 = vld [vmem:[#allocation3 + $0x4] sm:$0xf]
      %v1907 = vld [vmem:[#allocation3 + $0x8] sm:$0xf]
      %v1908 = vld [vmem:[#allocation3 + $0xc] sm:$0x1]
      %v1909 = vld [vmem:[#allocation3 + $0x14] sm:$0xf]
      %v1910 = vld [vmem:[#allocation3 + $0x18] sm:$0xf]
      %v1911 = vld [vmem:[#allocation3 + $0x1c] sm:$0x1]
      %v1912 = vld [vmem:[#allocation3 + $0x24] sm:$0xf]
      %v1913 = vld [vmem:[#allocation3 + $0x28] sm:$0xf]
      %v1914 = vld [vmem:[#allocation3 + $0x2c] sm:$0x1]
      %v1915 = vld [vmem:[#allocation3 + $0x34] sm:$0xf]
      %v1916 = vld [vmem:[#allocation3 + $0x38] sm:$0xf]
      %v1917 = vld [vmem:[#allocation3 + $0x3c] sm:$0x1]
      %v1918 = vld [vmem:[#allocation3 + $0x44] sm:$0xf]
      %v1919 = vld [vmem:[#allocation3 + $0x48] sm:$0xf]
      %v1920 = vld [vmem:[#allocation3 + $0x4c] sm:$0x1]
      %v1921 = vld [vmem:[#allocation3 + $0x54] sm:$0xf]
      %v1922 = vld [vmem:[#allocation3 + $0x58] sm:$0xf]
      %v1923 = vld [vmem:[#allocation3 + $0x5c] sm:$0x1]
      %v1924 = vld [vmem:[#allocation3 + $0x64] sm:$0xf]
      %v1925 = vld [vmem:[#allocation3 + $0x68] sm:$0xf]
      %v1926 = vld [vmem:[#allocation3 + $0x6c] sm:$0x1]
      %v1927 = vld [vmem:[#allocation3 + $0x74] sm:$0xf]
      %v1928 = vld [vmem:[#allocation3 + $0x78] sm:$0xf]
      %v1929 = vld [vmem:[#allocation3 + $0x7c] sm:$0x1]
      %v1930 = vld [vmem:[#allocation3 + $0x84] sm:$0xf]
      %v1931 = vld [vmem:[#allocation3 + $0x88] sm:$0xf]
      %v1932 = vld [vmem:[#allocation3 + $0x8c] sm:$0x1]
      %v1933 = vld [vmem:[#allocation3 + $0x94] sm:$0xf]
      %v1934 = vld [vmem:[#allocation3 + $0x98] sm:$0xf]
      %v1935 = vld [vmem:[#allocation3 + $0x9c] sm:$0x1]
      %v1936 = vld [vmem:[#allocation3 + $0xa4] sm:$0xf]
      %v1937 = vld [vmem:[#allocation3 + $0xa8] sm:$0xf]
      %v1938 = vld [vmem:[#allocation3 + $0xac] sm:$0x1]
      %v1939 = vld [vmem:[#allocation3 + $0xb4] sm:$0xf]
      %v1940 = vld [vmem:[#allocation3 + $0xb8] sm:$0xf]
      %v1941 = vld [vmem:[#allocation3 + $0xbc] sm:$0x1]
      %v1942 = vld [vmem:[#allocation3 + $0xc4] sm:$0xf]
      %v1943 = vld [vmem:[#allocation3 + $0xc8] sm:$0xf]
      %v1944 = vld [vmem:[#allocation3 + $0xcc] sm:$0x1]
      %v1945 = vld [vmem:[#allocation3 + $0xd4] sm:$0xf]
      %v1946 = vld [vmem:[#allocation3 + $0xd8] sm:$0xf]
      %v1947 = vld [vmem:[#allocation3 + $0xdc] sm:$0x1]
      %v1948 = vld [vmem:[#allocation3 + $0xe4] sm:$0xf]
      %v1949 = vld [vmem:[#allocation3 + $0xe8] sm:$0xf]
      %v1950 = vld [vmem:[#allocation3 + $0xec] sm:$0x1]
      %v1951 = vld [vmem:[#allocation3 + $0xf4] sm:$0xf]
      %v1952 = vld [vmem:[#allocation3 + $0xf8] sm:$0xf]
      %v1953 = vld [vmem:[#allocation3 + $0xfc] sm:$0x1]
      %vm1954 = vsmask.f32 3328
      %vm1955 = vsmask.f32 7440
      %vm1956 = vmor %vm1954, %vm1955
      %v1958 = vshrl.u32 %v1906, 16
      %v1960 = vrot.slane %v1958, 4
      %v1961 = vshll.u32 %v1906, 16
      %v1963 = vrot.slane %v1961, 5
      %v1964 = vor.u32 %v1960, %v1963
      %v1965 = vrot.slane %v1964, 4
      %v1967 = vshll.u32 %v1907, 16
      %v1969 = vrot.slane %v1967, 5
      %v1970 = vsel %vm1956, %v1965, %v1969
      %v1971 = vshrl.u32 %v1907, 16
      %v1973 = vrot.slane %v1971, 4
      %v1974 = vor.u32 %v1973, %v1969
      %v1975 = vrot.slane %v1974, 4
      %v1977 = vshll.u32 %v1908, 16
      %v1979 = vrot.slane %v1977, 5
      %v1980 = vsel %vm1956, %v1975, %v1979
      %v1982 = vshrl.u32 %v1909, 16
      %v1984 = vrot.slane %v1982, 4
      %v1985 = vshll.u32 %v1909, 16
      %v1987 = vrot.slane %v1985, 5
      %v1988 = vor.u32 %v1984, %v1987
      %v1989 = vrot.slane %v1988, 4
      %v1991 = vshll.u32 %v1910, 16
      %v1993 = vrot.slane %v1991, 5
      %v1994 = vsel %vm1956, %v1989, %v1993
      %v1995 = vshrl.u32 %v1910, 16
      %v1997 = vrot.slane %v1995, 4
      %v1998 = vor.u32 %v1997, %v1993
      %v1999 = vrot.slane %v1998, 4
      %v2001 = vshll.u32 %v1911, 16
      %v2003 = vrot.slane %v2001, 5
      %v2004 = vsel %vm1956, %v1999, %v2003
      %v2006 = vshrl.u32 %v1912, 16
      %v2008 = vrot.slane %v2006, 4
      %v2009 = vshll.u32 %v1912, 16
      %v2011 = vrot.slane %v2009, 5
      %v2012 = vor.u32 %v2008, %v2011
      %v2013 = vrot.slane %v2012, 4
      %v2015 = vshll.u32 %v1913, 16
      %v2017 = vrot.slane %v2015, 5
      %v2018 = vsel %vm1956, %v2013, %v2017
      %v2019 = vshrl.u32 %v1913, 16
      %v2021 = vrot.slane %v2019, 4
      %v2022 = vor.u32 %v2021, %v2017
      %v2023 = vrot.slane %v2022, 4
      %v2025 = vshll.u32 %v1914, 16
      %v2027 = vrot.slane %v2025, 5
      %v2028 = vsel %vm1956, %v2023, %v2027
      %v2030 = vshrl.u32 %v1915, 16
      %v2032 = vrot.slane %v2030, 4
      %v2033 = vshll.u32 %v1915, 16
      %v2035 = vrot.slane %v2033, 5
      %v2036 = vor.u32 %v2032, %v2035
      %v2037 = vrot.slane %v2036, 4
      %v2039 = vshll.u32 %v1916, 16
      %v2041 = vrot.slane %v2039, 5
      %v2042 = vsel %vm1956, %v2037, %v2041
      %v2043 = vshrl.u32 %v1916, 16
      %v2045 = vrot.slane %v2043, 4
      %v2046 = vor.u32 %v2045, %v2041
      %v2047 = vrot.slane %v2046, 4
      %v2049 = vshll.u32 %v1917, 16
      %v2051 = vrot.slane %v2049, 5
      %v2052 = vsel %vm1956, %v2047, %v2051
      %v2054 = vshrl.u32 %v1918, 16
      %v2056 = vrot.slane %v2054, 4
      %v2057 = vshll.u32 %v1918, 16
      %v2059 = vrot.slane %v2057, 5
      %v2060 = vor.u32 %v2056, %v2059
      %v2061 = vrot.slane %v2060, 4
      %v2063 = vshll.u32 %v1919, 16
      %v2065 = vrot.slane %v2063, 5
      %v2066 = vsel %vm1956, %v2061, %v2065
      %v2067 = vshrl.u32 %v1919, 16
      %v2069 = vrot.slane %v2067, 4
      %v2070 = vor.u32 %v2069, %v2065
      %v2071 = vrot.slane %v2070, 4
      %v2073 = vshll.u32 %v1920, 16
      %v2075 = vrot.slane %v2073, 5
      %v2076 = vsel %vm1956, %v2071, %v2075
      %v2078 = vshrl.u32 %v1921, 16
      %v2080 = vrot.slane %v2078, 4
      %v2081 = vshll.u32 %v1921, 16
      %v2083 = vrot.slane %v2081, 5
      %v2084 = vor.u32 %v2080, %v2083
      %v2085 = vrot.slane %v2084, 4
      %v2087 = vshll.u32 %v1922, 16
      %v2089 = vrot.slane %v2087, 5
      %v2090 = vsel %vm1956, %v2085, %v2089
      %v2091 = vshrl.u32 %v1922, 16
      %v2093 = vrot.slane %v2091, 4
      %v2094 = vor.u32 %v2093, %v2089
      %v2095 = vrot.slane %v2094, 4
      %v2097 = vshll.u32 %v1923, 16
      %v2099 = vrot.slane %v2097, 5
      %v2100 = vsel %vm1956, %v2095, %v2099
      %v2102 = vshrl.u32 %v1924, 16
      %v2104 = vrot.slane %v2102, 4
      %v2105 = vshll.u32 %v1924, 16
      %v2107 = vrot.slane %v2105, 5
      %v2108 = vor.u32 %v2104, %v2107
      %v2109 = vrot.slane %v2108, 4
      %v2111 = vshll.u32 %v1925, 16
      %v2113 = vrot.slane %v2111, 5
      %v2114 = vsel %vm1956, %v2109, %v2113
      %v2115 = vshrl.u32 %v1925, 16
      %v2117 = vrot.slane %v2115, 4
      %v2118 = vor.u32 %v2117, %v2113
      %v2119 = vrot.slane %v2118, 4
      %v2121 = vshll.u32 %v1926, 16
      %v2123 = vrot.slane %v2121, 5
      %v2124 = vsel %vm1956, %v2119, %v2123
      %v2126 = vshrl.u32 %v1927, 16
      %v2128 = vrot.slane %v2126, 4
      %v2129 = vshll.u32 %v1927, 16
      %v2131 = vrot.slane %v2129, 5
      %v2132 = vor.u32 %v2128, %v2131
      %v2133 = vrot.slane %v2132, 4
      %v2135 = vshll.u32 %v1928, 16
      %v2137 = vrot.slane %v2135, 5
      %v2138 = vsel %vm1956, %v2133, %v2137
      %v2139 = vshrl.u32 %v1928, 16
      %v2141 = vrot.slane %v2139, 4
      %v2142 = vor.u32 %v2141, %v2137
      %v2143 = vrot.slane %v2142, 4
      %v2145 = vshll.u32 %v1929, 16
      %v2147 = vrot.slane %v2145, 5
      %v2148 = vsel %vm1956, %v2143, %v2147
      %v2150 = vshrl.u32 %v1930, 16
      %v2152 = vrot.slane %v2150, 4
      %v2153 = vshll.u32 %v1930, 16
      %v2155 = vrot.slane %v2153, 5
      %v2156 = vor.u32 %v2152, %v2155
      %v2157 = vrot.slane %v2156, 4
      %v2159 = vshll.u32 %v1931, 16
      %v2161 = vrot.slane %v2159, 5
      %v2162 = vsel %vm1956, %v2157, %v2161
      %v2163 = vshrl.u32 %v1931, 16
      %v2165 = vrot.slane %v2163, 4
      %v2166 = vor.u32 %v2165, %v2161
      %v2167 = vrot.slane %v2166, 4
      %v2169 = vshll.u32 %v1932, 16
      %v2171 = vrot.slane %v2169, 5
      %v2172 = vsel %vm1956, %v2167, %v2171
      %v2174 = vshrl.u32 %v1933, 16
      %v2176 = vrot.slane %v2174, 4
      %v2177 = vshll.u32 %v1933, 16
      %v2179 = vrot.slane %v2177, 5
      %v2180 = vor.u32 %v2176, %v2179
      %v2181 = vrot.slane %v2180, 4
      %v2183 = vshll.u32 %v1934, 16
      %v2185 = vrot.slane %v2183, 5
      %v2186 = vsel %vm1956, %v2181, %v2185
      %v2187 = vshrl.u32 %v1934, 16
      %v2189 = vrot.slane %v2187, 4
      %v2190 = vor.u32 %v2189, %v2185
      %v2191 = vrot.slane %v2190, 4
      %v2193 = vshll.u32 %v1935, 16
      %v2195 = vrot.slane %v2193, 5
      %v2196 = vsel %vm1956, %v2191, %v2195
      %v2198 = vshrl.u32 %v1936, 16
      %v2200 = vrot.slane %v2198, 4
      %v2201 = vshll.u32 %v1936, 16
      %v2203 = vrot.slane %v2201, 5
      %v2204 = vor.u32 %v2200, %v2203
      %v2205 = vrot.slane %v2204, 4
      %v2207 = vshll.u32 %v1937, 16
      %v2209 = vrot.slane %v2207, 5
      %v2210 = vsel %vm1956, %v2205, %v2209
      %v2211 = vshrl.u32 %v1937, 16
      %v2213 = vrot.slane %v2211, 4
      %v2214 = vor.u32 %v2213, %v2209
      %v2215 = vrot.slane %v2214, 4
      %v2217 = vshll.u32 %v1938, 16
      %v2219 = vrot.slane %v2217, 5
      %v2220 = vsel %vm1956, %v2215, %v2219
      %v2222 = vshrl.u32 %v1939, 16
      %v2224 = vrot.slane %v2222, 4
      %v2225 = vshll.u32 %v1939, 16
      %v2227 = vrot.slane %v2225, 5
      %v2228 = vor.u32 %v2224, %v2227
      %v2229 = vrot.slane %v2228, 4
      %v2231 = vshll.u32 %v1940, 16
      %v2233 = vrot.slane %v2231, 5
      %v2234 = vsel %vm1956, %v2229, %v2233
      %v2235 = vshrl.u32 %v1940, 16
      %v2237 = vrot.slane %v2235, 4
      %v2238 = vor.u32 %v2237, %v2233
      %v2239 = vrot.slane %v2238, 4
      %v2241 = vshll.u32 %v1941, 16
      %v2243 = vrot.slane %v2241, 5
      %v2244 = vsel %vm1956, %v2239, %v2243
      %v2246 = vshrl.u32 %v1942, 16
      %v2248 = vrot.slane %v2246, 4
      %v2249 = vshll.u32 %v1942, 16
      %v2251 = vrot.slane %v2249, 5
      %v2252 = vor.u32 %v2248, %v2251
      %v2253 = vrot.slane %v2252, 4
      %v2255 = vshll.u32 %v1943, 16
      %v2257 = vrot.slane %v2255, 5
      %v2258 = vsel %vm1956, %v2253, %v2257
      %v2259 = vshrl.u32 %v1943, 16
      %v2261 = vrot.slane %v2259, 4
      %v2262 = vor.u32 %v2261, %v2257
      %v2263 = vrot.slane %v2262, 4
      %v2265 = vshll.u32 %v1944, 16
      %v2267 = vrot.slane %v2265, 5
      %v2268 = vsel %vm1956, %v2263, %v2267
      %v2270 = vshrl.u32 %v1945, 16
      %v2272 = vrot.slane %v2270, 4
      %v2273 = vshll.u32 %v1945, 16
      %v2275 = vrot.slane %v2273, 5
      %v2276 = vor.u32 %v2272, %v2275
      %v2277 = vrot.slane %v2276, 4
      %v2279 = vshll.u32 %v1946, 16
      %v2281 = vrot.slane %v2279, 5
      %v2282 = vsel %vm1956, %v2277, %v2281
      %v2283 = vshrl.u32 %v1946, 16
      %v2285 = vrot.slane %v2283, 4
      %v2286 = vor.u32 %v2285, %v2281
      %v2287 = vrot.slane %v2286, 4
      %v2289 = vshll.u32 %v1947, 16
      %v2291 = vrot.slane %v2289, 5
      %v2292 = vsel %vm1956, %v2287, %v2291
      %v2294 = vshrl.u32 %v1948, 16
      %v2296 = vrot.slane %v2294, 4
      %v2297 = vshll.u32 %v1948, 16
      %v2299 = vrot.slane %v2297, 5
      %v2300 = vor.u32 %v2296, %v2299
      %v2301 = vrot.slane %v2300, 4
      %v2303 = vshll.u32 %v1949, 16
      %v2305 = vrot.slane %v2303, 5
      %v2306 = vsel %vm1956, %v2301, %v2305
      %v2307 = vshrl.u32 %v1949, 16
      %v2309 = vrot.slane %v2307, 4
      %v2310 = vor.u32 %v2309, %v2305
      %v2311 = vrot.slane %v2310, 4
      %v2313 = vshll.u32 %v1950, 16
      %v2315 = vrot.slane %v2313, 5
      %v2316 = vsel %vm1956, %v2311, %v2315
      %v2318 = vshrl.u32 %v1951, 16
      %v2320 = vrot.slane %v2318, 4
      %v2321 = vshll.u32 %v1951, 16
      %v2323 = vrot.slane %v2321, 5
      %v2324 = vor.u32 %v2320, %v2323
      %v2325 = vrot.slane %v2324, 4
      %v2327 = vshll.u32 %v1952, 16
      %v2329 = vrot.slane %v2327, 5
      %v2330 = vsel %vm1956, %v2325, %v2329
      %v2331 = vshrl.u32 %v1952, 16
      %v2333 = vrot.slane %v2331, 4
      %v2334 = vor.u32 %v2333, %v2329
      %v2335 = vrot.slane %v2334, 4
      %v2337 = vshll.u32 %v1953, 16
      %v2339 = vrot.slane %v2337, 5
      %v2340 = vsel %vm1956, %v2335, %v2339
      %2373 = vst.msk [vmem:[#allocation4 + $0x4] sm:$0xf] %vm1680, %v1970
      %2374 = vst.msk [vmem:[#allocation4 + $0x18] sm:$0xf] %vm1680, %v1980
      %2375 = vst.msk [vmem:[#allocation4 + $0x2c] sm:$0xf] %vm1680, %v1994
      %2376 = vst.msk [vmem:[#allocation4 + $0x40] sm:$0xf] %vm1680, %v2004
      %2377 = vst.msk [vmem:[#allocation4 + $0x54] sm:$0xf] %vm1680, %v2018
      %2378 = vst.msk [vmem:[#allocation4 + $0x68] sm:$0xf] %vm1680, %v2028
      %2379 = vst.msk [vmem:[#allocation4 + $0x7c] sm:$0xf] %vm1680, %v2042
      %2380 = vst.msk [vmem:[#allocation4 + $0x90] sm:$0xf] %vm1680, %v2052
      %2381 = vst.msk [vmem:[#allocation4 + $0xa4] sm:$0xf] %vm1680, %v2066
      %2382 = vst.msk [vmem:[#allocation4 + $0xb8] sm:$0xf] %vm1680, %v2076
      %2383 = vst.msk [vmem:[#allocation4 + $0xcc] sm:$0xf] %vm1680, %v2090
      %2384 = vst.msk [vmem:[#allocation4 + $0xe0] sm:$0xf] %vm1680, %v2100
      %2385 = vst.msk [vmem:[#allocation4 + $0xf4] sm:$0xf] %vm1680, %v2114
      %2386 = vst.msk [vmem:[#allocation4 + $0x108] sm:$0xf] %vm1680, %v2124
      %2387 = vst.msk [vmem:[#allocation4 + $0x11c] sm:$0xf] %vm1680, %v2138
      %2388 = vst.msk [vmem:[#allocation4 + $0x130] sm:$0xf] %vm1680, %v2148
      %2389 = vst.msk [vmem:[#allocation4 + $0x144] sm:$0xf] %vm1680, %v2162
      %2390 = vst.msk [vmem:[#allocation4 + $0x158] sm:$0xf] %vm1680, %v2172
      %2391 = vst.msk [vmem:[#allocation4 + $0x16c] sm:$0xf] %vm1680, %v2186
      %2392 = vst.msk [vmem:[#allocation4 + $0x180] sm:$0xf] %vm1680, %v2196
      %2393 = vst.msk [vmem:[#allocation4 + $0x194] sm:$0xf] %vm1680, %v2210
      %2394 = vst.msk [vmem:[#allocation4 + $0x1a8] sm:$0xf] %vm1680, %v2220
      %2395 = vst.msk [vmem:[#allocation4 + $0x1bc] sm:$0xf] %vm1680, %v2234
      %2396 = vst.msk [vmem:[#allocation4 + $0x1d0] sm:$0xf] %vm1680, %v2244
      %2397 = vst.msk [vmem:[#allocation4 + $0x1e4] sm:$0xf] %vm1680, %v2258
      %2398 = vst.msk [vmem:[#allocation4 + $0x1f8] sm:$0xf] %vm1680, %v2268
      %2399 = vst.msk [vmem:[#allocation4 + $0x20c] sm:$0xf] %vm1680, %v2282
      %2400 = vst.msk [vmem:[#allocation4 + $0x220] sm:$0xf] %vm1680, %v2292
      %2401 = vst.msk [vmem:[#allocation4 + $0x234] sm:$0xf] %vm1680, %v2306
      %2402 = vst.msk [vmem:[#allocation4 + $0x248] sm:$0xf] %vm1680, %v2316
      %2403 = vst.msk [vmem:[#allocation4 + $0x25c] sm:$0xf] %vm1680, %v2330
      %2404 = vst.msk [vmem:[#allocation4 + $0x270] sm:$0xf] %vm1680, %v2340
      %v2405 = vld [vmem:[%s1146] sm:$0x8]
      %v2406 = vld [vmem:[%s1146 + $0x4] sm:$0xf]
      %v2407 = vld [vmem:[%s1146 + $0x8] sm:$0xf]
      %v2408 = vld [vmem:[%s1146 + $0x10] sm:$0x8]
      %v2409 = vld [vmem:[%s1146 + $0x14] sm:$0xf]
      %v2410 = vld [vmem:[%s1146 + $0x18] sm:$0xf]
      %v2411 = vld [vmem:[%s1146 + $0x20] sm:$0x8]
      %v2412 = vld [vmem:[%s1146 + $0x24] sm:$0xf]
      %v2413 = vld [vmem:[%s1146 + $0x28] sm:$0xf]
      %v2414 = vld [vmem:[%s1146 + $0x30] sm:$0x8]
      %v2415 = vld [vmem:[%s1146 + $0x34] sm:$0xf]
      %v2416 = vld [vmem:[%s1146 + $0x38] sm:$0xf]
      %v2417 = vld [vmem:[%s1146 + $0x40] sm:$0x8]
      %v2418 = vld [vmem:[%s1146 + $0x44] sm:$0xf]
      %v2419 = vld [vmem:[%s1146 + $0x48] sm:$0xf]
      %v2420 = vld [vmem:[%s1146 + $0x50] sm:$0x8]
      %v2421 = vld [vmem:[%s1146 + $0x54] sm:$0xf]
      %v2422 = vld [vmem:[%s1146 + $0x58] sm:$0xf]
      %v2423 = vld [vmem:[%s1146 + $0x60] sm:$0x8]
      %v2424 = vld [vmem:[%s1146 + $0x64] sm:$0xf]
      %v2425 = vld [vmem:[%s1146 + $0x68] sm:$0xf]
      %v2426 = vld [vmem:[%s1146 + $0x70] sm:$0x8]
      %v2427 = vld [vmem:[%s1146 + $0x74] sm:$0xf]
      %v2428 = vld [vmem:[%s1146 + $0x78] sm:$0xf]
      %v2429 = vld [vmem:[%s1146 + $0x80] sm:$0x8]
      %v2430 = vld [vmem:[%s1146 + $0x84] sm:$0xf]
      %v2431 = vld [vmem:[%s1146 + $0x88] sm:$0xf]
      %v2432 = vld [vmem:[%s1146 + $0x90] sm:$0x8]
      %v2433 = vld [vmem:[%s1146 + $0x94] sm:$0xf]
      %v2434 = vld [vmem:[%s1146 + $0x98] sm:$0xf]
      %v2435 = vld [vmem:[%s1146 + $0xa0] sm:$0x8]
      %v2436 = vld [vmem:[%s1146 + $0xa4] sm:$0xf]
      %v2437 = vld [vmem:[%s1146 + $0xa8] sm:$0xf]
      %v2438 = vld [vmem:[%s1146 + $0xb0] sm:$0x8]
      %v2439 = vld [vmem:[%s1146 + $0xb4] sm:$0xf]
      %v2440 = vld [vmem:[%s1146 + $0xb8] sm:$0xf]
      %v2441 = vld [vmem:[%s1146 + $0xc0] sm:$0x8]
      %v2442 = vld [vmem:[%s1146 + $0xc4] sm:$0xf]
      %v2443 = vld [vmem:[%s1146 + $0xc8] sm:$0xf]
      %v2444 = vld [vmem:[%s1146 + $0xd0] sm:$0x8]
      %v2445 = vld [vmem:[%s1146 + $0xd4] sm:$0xf]
      %v2446 = vld [vmem:[%s1146 + $0xd8] sm:$0xf]
      %v2447 = vld [vmem:[%s1146 + $0xe0] sm:$0x8]
      %v2448 = vld [vmem:[%s1146 + $0xe4] sm:$0xf]
      %v2449 = vld [vmem:[%s1146 + $0xe8] sm:$0xf]
      %v2450 = vld [vmem:[%s1146 + $0xf0] sm:$0x8]
      %v2451 = vld [vmem:[%s1146 + $0xf4] sm:$0xf]
      %v2452 = vld [vmem:[%s1146 + $0xf8] sm:$0xf]
      %v2454 = vshrl.u32 %v2405, 16
      %v2456 = vrot.slane %v2454, 7
      %v2457 = vrot.slane %v2456, 4
      %v2459 = vshrl.u32 %v2406, 16
      %v2461 = vrot.slane %v2459, 7
      %v2462 = vshll.u32 %v2406, 16
      %v2464 = vor.u32 %v2461, %v2462
      %v2465 = vsel %vm1295, %v2457, %v2464
      %v2466 = vrot.slane %v2461, 4
      %v2468 = vshrl.u32 %v2407, 16
      %v2470 = vrot.slane %v2468, 7
      %v2471 = vshll.u32 %v2407, 16
      %v2473 = vor.u32 %v2470, %v2471
      %v2474 = vsel %vm1295, %v2466, %v2473
      %v2476 = vshrl.u32 %v2408, 16
      %v2478 = vrot.slane %v2476, 7
      %v2479 = vrot.slane %v2478, 4
      %v2481 = vshrl.u32 %v2409, 16
      %v2483 = vrot.slane %v2481, 7
      %v2484 = vshll.u32 %v2409, 16
      %v2486 = vor.u32 %v2483, %v2484
      %v2487 = vsel %vm1295, %v2479, %v2486
      %v2488 = vrot.slane %v2483, 4
      %v2490 = vshrl.u32 %v2410, 16
      %v2492 = vrot.slane %v2490, 7
      %v2493 = vshll.u32 %v2410, 16
      %v2495 = vor.u32 %v2492, %v2493
      %v2496 = vsel %vm1295, %v2488, %v2495
      %v2498 = vshrl.u32 %v2411, 16
      %v2500 = vrot.slane %v2498, 7
      %v2501 = vrot.slane %v2500, 4
      %v2503 = vshrl.u32 %v2412, 16
      %v2505 = vrot.slane %v2503, 7
      %v2506 = vshll.u32 %v2412, 16
      %v2508 = vor.u32 %v2505, %v2506
      %v2509 = vsel %vm1295, %v2501, %v2508
      %v2510 = vrot.slane %v2505, 4
      %v2512 = vshrl.u32 %v2413, 16
      %v2514 = vrot.slane %v2512, 7
      %v2515 = vshll.u32 %v2413, 16
      %v2517 = vor.u32 %v2514, %v2515
      %v2518 = vsel %vm1295, %v2510, %v2517
      %v2520 = vshrl.u32 %v2414, 16
      %v2522 = vrot.slane %v2520, 7
      %v2523 = vrot.slane %v2522, 4
      %v2525 = vshrl.u32 %v2415, 16
      %v2527 = vrot.slane %v2525, 7
      %v2528 = vshll.u32 %v2415, 16
      %v2530 = vor.u32 %v2527, %v2528
      %v2531 = vsel %vm1295, %v2523, %v2530
      %v2532 = vrot.slane %v2527, 4
      %v2534 = vshrl.u32 %v2416, 16
      %v2536 = vrot.slane %v2534, 7
      %v2537 = vshll.u32 %v2416, 16
      %v2539 = vor.u32 %v2536, %v2537
      %v2540 = vsel %vm1295, %v2532, %v2539
      %v2542 = vshrl.u32 %v2417, 16
      %v2544 = vrot.slane %v2542, 7
      %v2545 = vrot.slane %v2544, 4
      %v2547 = vshrl.u32 %v2418, 16
      %v2549 = vrot.slane %v2547, 7
      %v2550 = vshll.u32 %v2418, 16
      %v2552 = vor.u32 %v2549, %v2550
      %v2553 = vsel %vm1295, %v2545, %v2552
      %v2554 = vrot.slane %v2549, 4
      %v2556 = vshrl.u32 %v2419, 16
      %v2558 = vrot.slane %v2556, 7
      %v2559 = vshll.u32 %v2419, 16
      %v2561 = vor.u32 %v2558, %v2559
      %v2562 = vsel %vm1295, %v2554, %v2561
      %v2564 = vshrl.u32 %v2420, 16
      %v2566 = vrot.slane %v2564, 7
      %v2567 = vrot.slane %v2566, 4
      %v2569 = vshrl.u32 %v2421, 16
      %v2571 = vrot.slane %v2569, 7
      %v2572 = vshll.u32 %v2421, 16
      %v2574 = vor.u32 %v2571, %v2572
      %v2575 = vsel %vm1295, %v2567, %v2574
      %v2576 = vrot.slane %v2571, 4
      %v2578 = vshrl.u32 %v2422, 16
      %v2580 = vrot.slane %v2578, 7
      %v2581 = vshll.u32 %v2422, 16
      %v2583 = vor.u32 %v2580, %v2581
      %v2584 = vsel %vm1295, %v2576, %v2583
      %v2586 = vshrl.u32 %v2423, 16
      %v2588 = vrot.slane %v2586, 7
      %v2589 = vrot.slane %v2588, 4
      %v2591 = vshrl.u32 %v2424, 16
      %v2593 = vrot.slane %v2591, 7
      %v2594 = vshll.u32 %v2424, 16
      %v2596 = vor.u32 %v2593, %v2594
      %v2597 = vsel %vm1295, %v2589, %v2596
      %v2598 = vrot.slane %v2593, 4
      %v2600 = vshrl.u32 %v2425, 16
      %v2602 = vrot.slane %v2600, 7
      %v2603 = vshll.u32 %v2425, 16
      %v2605 = vor.u32 %v2602, %v2603
      %v2606 = vsel %vm1295, %v2598, %v2605
      %v2608 = vshrl.u32 %v2426, 16
      %v2610 = vrot.slane %v2608, 7
      %v2611 = vrot.slane %v2610, 4
      %v2613 = vshrl.u32 %v2427, 16
      %v2615 = vrot.slane %v2613, 7
      %v2616 = vshll.u32 %v2427, 16
      %v2618 = vor.u32 %v2615, %v2616
      %v2619 = vsel %vm1295, %v2611, %v2618
      %v2620 = vrot.slane %v2615, 4
      %v2622 = vshrl.u32 %v2428, 16
      %v2624 = vrot.slane %v2622, 7
      %v2625 = vshll.u32 %v2428, 16
      %v2627 = vor.u32 %v2624, %v2625
      %v2628 = vsel %vm1295, %v2620, %v2627
      %v2630 = vshrl.u32 %v2429, 16
      %v2632 = vrot.slane %v2630, 7
      %v2633 = vrot.slane %v2632, 4
      %v2635 = vshrl.u32 %v2430, 16
      %v2637 = vrot.slane %v2635, 7
      %v2638 = vshll.u32 %v2430, 16
      %v2640 = vor.u32 %v2637, %v2638
      %v2641 = vsel %vm1295, %v2633, %v2640
      %v2642 = vrot.slane %v2637, 4
      %v2644 = vshrl.u32 %v2431, 16
      %v2646 = vrot.slane %v2644, 7
      %v2647 = vshll.u32 %v2431, 16
      %v2649 = vor.u32 %v2646, %v2647
      %v2650 = vsel %vm1295, %v2642, %v2649
      %v2652 = vshrl.u32 %v2432, 16
      %v2654 = vrot.slane %v2652, 7
      %v2655 = vrot.slane %v2654, 4
      %v2657 = vshrl.u32 %v2433, 16
      %v2659 = vrot.slane %v2657, 7
      %v2660 = vshll.u32 %v2433, 16
      %v2662 = vor.u32 %v2659, %v2660
      %v2663 = vsel %vm1295, %v2655, %v2662
      %v2664 = vrot.slane %v2659, 4
      %v2666 = vshrl.u32 %v2434, 16
      %v2668 = vrot.slane %v2666, 7
      %v2669 = vshll.u32 %v2434, 16
      %v2671 = vor.u32 %v2668, %v2669
      %v2672 = vsel %vm1295, %v2664, %v2671
      %v2674 = vshrl.u32 %v2435, 16
      %v2676 = vrot.slane %v2674, 7
      %v2677 = vrot.slane %v2676, 4
      %v2679 = vshrl.u32 %v2436, 16
      %v2681 = vrot.slane %v2679, 7
      %v2682 = vshll.u32 %v2436, 16
      %v2684 = vor.u32 %v2681, %v2682
      %v2685 = vsel %vm1295, %v2677, %v2684
      %v2686 = vrot.slane %v2681, 4
      %v2688 = vshrl.u32 %v2437, 16
      %v2690 = vrot.slane %v2688, 7
      %v2691 = vshll.u32 %v2437, 16
      %v2693 = vor.u32 %v2690, %v2691
      %v2694 = vsel %vm1295, %v2686, %v2693
      %v2696 = vshrl.u32 %v2438, 16
      %v2698 = vrot.slane %v2696, 7
      %v2699 = vrot.slane %v2698, 4
      %v2701 = vshrl.u32 %v2439, 16
      %v2703 = vrot.slane %v2701, 7
      %v2704 = vshll.u32 %v2439, 16
      %v2706 = vor.u32 %v2703, %v2704
      %v2707 = vsel %vm1295, %v2699, %v2706
      %v2708 = vrot.slane %v2703, 4
      %v2710 = vshrl.u32 %v2440, 16
      %v2712 = vrot.slane %v2710, 7
      %v2713 = vshll.u32 %v2440, 16
      %v2715 = vor.u32 %v2712, %v2713
      %v2716 = vsel %vm1295, %v2708, %v2715
      %v2718 = vshrl.u32 %v2441, 16
      %v2720 = vrot.slane %v2718, 7
      %v2721 = vrot.slane %v2720, 4
      %v2723 = vshrl.u32 %v2442, 16
      %v2725 = vrot.slane %v2723, 7
      %v2726 = vshll.u32 %v2442, 16
      %v2728 = vor.u32 %v2725, %v2726
      %v2729 = vsel %vm1295, %v2721, %v2728
      %v2730 = vrot.slane %v2725, 4
      %v2732 = vshrl.u32 %v2443, 16
      %v2734 = vrot.slane %v2732, 7
      %v2735 = vshll.u32 %v2443, 16
      %v2737 = vor.u32 %v2734, %v2735
      %v2738 = vsel %vm1295, %v2730, %v2737
      %v2740 = vshrl.u32 %v2444, 16
      %v2742 = vrot.slane %v2740, 7
      %v2743 = vrot.slane %v2742, 4
      %v2745 = vshrl.u32 %v2445, 16
      %v2747 = vrot.slane %v2745, 7
      %v2748 = vshll.u32 %v2445, 16
      %v2750 = vor.u32 %v2747, %v2748
      %v2751 = vsel %vm1295, %v2743, %v2750
      %v2752 = vrot.slane %v2747, 4
      %v2754 = vshrl.u32 %v2446, 16
      %v2756 = vrot.slane %v2754, 7
      %v2757 = vshll.u32 %v2446, 16
      %v2759 = vor.u32 %v2756, %v2757
      %v2760 = vsel %vm1295, %v2752, %v2759
      %v2762 = vshrl.u32 %v2447, 16
      %v2764 = vrot.slane %v2762, 7
      %v2765 = vrot.slane %v2764, 4
      %v2767 = vshrl.u32 %v2448, 16
      %v2769 = vrot.slane %v2767, 7
      %v2770 = vshll.u32 %v2448, 16
      %v2772 = vor.u32 %v2769, %v2770
      %v2773 = vsel %vm1295, %v2765, %v2772
      %v2774 = vrot.slane %v2769, 4
      %v2776 = vshrl.u32 %v2449, 16
      %v2778 = vrot.slane %v2776, 7
      %v2779 = vshll.u32 %v2449, 16
      %v2781 = vor.u32 %v2778, %v2779
      %v2782 = vsel %vm1295, %v2774, %v2781
      %v2784 = vshrl.u32 %v2450, 16
      %v2786 = vrot.slane %v2784, 7
      %v2787 = vrot.slane %v2786, 4
      %v2789 = vshrl.u32 %v2451, 16
      %v2791 = vrot.slane %v2789, 7
      %v2792 = vshll.u32 %v2451, 16
      %v2794 = vor.u32 %v2791, %v2792
      %v2795 = vsel %vm1295, %v2787, %v2794
      %v2796 = vrot.slane %v2791, 4
      %v2798 = vshrl.u32 %v2452, 16
      %v2800 = vrot.slane %v2798, 7
      %v2801 = vshll.u32 %v2452, 16
      %v2803 = vor.u32 %v2800, %v2801
      %v2804 = vsel %vm1295, %v2796, %v2803
      %2805 = vrot.lane.b32.xlu0 %v2465, 64
      %v2806 = vpop.permute.xlu0 %2805
      %2807 = vrot.lane.b32.xlu0 %v2474, 64
      %v2808 = vpop.permute.xlu0 %2807
      %2809 = vrot.lane.b32.xlu0 %v2487, 64
      %v2810 = vpop.permute.xlu0 %2809
      %2811 = vrot.lane.b32.xlu0 %v2496, 64
      %v2812 = vpop.permute.xlu0 %2811
      %2813 = vrot.lane.b32.xlu0 %v2509, 64
      %v2814 = vpop.permute.xlu0 %2813
      %2815 = vrot.lane.b32.xlu0 %v2518, 64
      %v2816 = vpop.permute.xlu0 %2815
      %2817 = vrot.lane.b32.xlu0 %v2531, 64
      %v2818 = vpop.permute.xlu0 %2817
      %2819 = vrot.lane.b32.xlu0 %v2540, 64
      %v2820 = vpop.permute.xlu0 %2819
      %2821 = vrot.lane.b32.xlu0 %v2553, 64
      %v2822 = vpop.permute.xlu0 %2821
      %2823 = vrot.lane.b32.xlu0 %v2562, 64
      %v2824 = vpop.permute.xlu0 %2823
      %2825 = vrot.lane.b32.xlu0 %v2575, 64
      %v2826 = vpop.permute.xlu0 %2825
      %2827 = vrot.lane.b32.xlu0 %v2584, 64
      %v2828 = vpop.permute.xlu0 %2827
      %2829 = vrot.lane.b32.xlu0 %v2597, 64
      %v2830 = vpop.permute.xlu0 %2829
      %2831 = vrot.lane.b32.xlu0 %v2606, 64
      %v2832 = vpop.permute.xlu0 %2831
      %2833 = vrot.lane.b32.xlu0 %v2619, 64
      %v2834 = vpop.permute.xlu0 %2833
      %2835 = vrot.lane.b32.xlu0 %v2628, 64
      %v2836 = vpop.permute.xlu0 %2835
      %2837 = vrot.lane.b32.xlu0 %v2641, 64
      %v2838 = vpop.permute.xlu0 %2837
      %2839 = vrot.lane.b32.xlu0 %v2650, 64
      %v2840 = vpop.permute.xlu0 %2839
      %2841 = vrot.lane.b32.xlu0 %v2663, 64
      %v2842 = vpop.permute.xlu0 %2841
      %2843 = vrot.lane.b32.xlu0 %v2672, 64
      %v2844 = vpop.permute.xlu0 %2843
      %2845 = vrot.lane.b32.xlu0 %v2685, 64
      %v2846 = vpop.permute.xlu0 %2845
      %2847 = vrot.lane.b32.xlu0 %v2694, 64
      %v2848 = vpop.permute.xlu0 %2847
      %2849 = vrot.lane.b32.xlu0 %v2707, 64
      %v2850 = vpop.permute.xlu0 %2849
      %2851 = vrot.lane.b32.xlu0 %v2716, 64
      %v2852 = vpop.permute.xlu0 %2851
      %2853 = vrot.lane.b32.xlu0 %v2729, 64
      %v2854 = vpop.permute.xlu0 %2853
      %2855 = vrot.lane.b32.xlu0 %v2738, 64
      %v2856 = vpop.permute.xlu0 %2855
      %2857 = vrot.lane.b32.xlu0 %v2751, 64
      %v2858 = vpop.permute.xlu0 %2857
      %2859 = vrot.lane.b32.xlu0 %v2760, 64
      %v2860 = vpop.permute.xlu0 %2859
      %2861 = vrot.lane.b32.xlu0 %v2773, 64
      %v2862 = vpop.permute.xlu0 %2861
      %2863 = vrot.lane.b32.xlu0 %v2782, 64
      %v2864 = vpop.permute.xlu0 %2863
      %2865 = vrot.lane.b32.xlu0 %v2795, 64
      %v2866 = vpop.permute.xlu0 %2865
      %2867 = vrot.lane.b32.xlu0 %v2804, 64
      %v2868 = vpop.permute.xlu0 %2867
      %2901 = vst.msk [vmem:[#allocation4 + $0x4] sm:$0xf] %vm1873, %v2806
      %2902 = vst.msk [vmem:[#allocation4 + $0x18] sm:$0xf] %vm1873, %v2808
      %2903 = vst.msk [vmem:[#allocation4 + $0x2c] sm:$0xf] %vm1873, %v2810
      %2904 = vst.msk [vmem:[#allocation4 + $0x40] sm:$0xf] %vm1873, %v2812
      %2905 = vst.msk [vmem:[#allocation4 + $0x54] sm:$0xf] %vm1873, %v2814
      %2906 = vst.msk [vmem:[#allocation4 + $0x68] sm:$0xf] %vm1873, %v2816
      %2907 = vst.msk [vmem:[#allocation4 + $0x7c] sm:$0xf] %vm1873, %v2818
      %2908 = vst.msk [vmem:[#allocation4 + $0x90] sm:$0xf] %vm1873, %v2820
      %2909 = vst.msk [vmem:[#allocation4 + $0xa4] sm:$0xf] %vm1873, %v2822
      %2910 = vst.msk [vmem:[#allocation4 + $0xb8] sm:$0xf] %vm1873, %v2824
      %2911 = vst.msk [vmem:[#allocation4 + $0xcc] sm:$0xf] %vm1873, %v2826
      %2912 = vst.msk [vmem:[#allocation4 + $0xe0] sm:$0xf] %vm1873, %v2828
      %2913 = vst.msk [vmem:[#allocation4 + $0xf4] sm:$0xf] %vm1873, %v2830
      %2914 = vst.msk [vmem:[#allocation4 + $0x108] sm:$0xf] %vm1873, %v2832
      %2915 = vst.msk [vmem:[#allocation4 + $0x11c] sm:$0xf] %vm1873, %v2834
      %2916 = vst.msk [vmem:[#allocation4 + $0x130] sm:$0xf] %vm1873, %v2836
      %2917 = vst.msk [vmem:[#allocation4 + $0x144] sm:$0xf] %vm1873, %v2838
      %2918 = vst.msk [vmem:[#allocation4 + $0x158] sm:$0xf] %vm1873, %v2840
      %2919 = vst.msk [vmem:[#allocation4 + $0x16c] sm:$0xf] %vm1873, %v2842
      %2920 = vst.msk [vmem:[#allocation4 + $0x180] sm:$0xf] %vm1873, %v2844
      %2921 = vst.msk [vmem:[#allocation4 + $0x194] sm:$0xf] %vm1873, %v2846
      %2922 = vst.msk [vmem:[#allocation4 + $0x1a8] sm:$0xf] %vm1873, %v2848
      %2923 = vst.msk [vmem:[#allocation4 + $0x1bc] sm:$0xf] %vm1873, %v2850
      %2924 = vst.msk [vmem:[#allocation4 + $0x1d0] sm:$0xf] %vm1873, %v2852
      %2925 = vst.msk [vmem:[#allocation4 + $0x1e4] sm:$0xf] %vm1873, %v2854
      %2926 = vst.msk [vmem:[#allocation4 + $0x1f8] sm:$0xf] %vm1873, %v2856
      %2927 = vst.msk [vmem:[#allocation4 + $0x20c] sm:$0xf] %vm1873, %v2858
      %2928 = vst.msk [vmem:[#allocation4 + $0x220] sm:$0xf] %vm1873, %v2860
      %2929 = vst.msk [vmem:[#allocation4 + $0x234] sm:$0xf] %vm1873, %v2862
      %2930 = vst.msk [vmem:[#allocation4 + $0x248] sm:$0xf] %vm1873, %v2864
      %2931 = vst.msk [vmem:[#allocation4 + $0x25c] sm:$0xf] %vm1873, %v2866
      %2932 = vst.msk [vmem:[#allocation4 + $0x270] sm:$0xf] %vm1873, %v2868
      %v2933 = vld [vmem:[%s1146 + $0x4] sm:$0xf]
      %v2934 = vld [vmem:[%s1146 + $0x8] sm:$0xf]
      %v2935 = vld [vmem:[%s1146 + $0x14] sm:$0xf]
      %v2936 = vld [vmem:[%s1146 + $0x18] sm:$0xf]
      %v2937 = vld [vmem:[%s1146 + $0x24] sm:$0xf]
      %v2938 = vld [vmem:[%s1146 + $0x28] sm:$0xf]
      %v2939 = vld [vmem:[%s1146 + $0x34] sm:$0xf]
      %v2940 = vld [vmem:[%s1146 + $0x38] sm:$0xf]
      %v2941 = vld [vmem:[%s1146 + $0x44] sm:$0xf]
      %v2942 = vld [vmem:[%s1146 + $0x48] sm:$0xf]
      %v2943 = vld [vmem:[%s1146 + $0x54] sm:$0xf]
      %v2944 = vld [vmem:[%s1146 + $0x58] sm:$0xf]
      %v2945 = vld [vmem:[%s1146 + $0x64] sm:$0xf]
      %v2946 = vld [vmem:[%s1146 + $0x68] sm:$0xf]
      %v2947 = vld [vmem:[%s1146 + $0x74] sm:$0xf]
      %v2948 = vld [vmem:[%s1146 + $0x78] sm:$0xf]
      %v2949 = vld [vmem:[%s1146 + $0x84] sm:$0xf]
      %v2950 = vld [vmem:[%s1146 + $0x88] sm:$0xf]
      %v2951 = vld [vmem:[%s1146 + $0x94] sm:$0xf]
      %v2952 = vld [vmem:[%s1146 + $0x98] sm:$0xf]
      %v2953 = vld [vmem:[%s1146 + $0xa4] sm:$0xf]
      %v2954 = vld [vmem:[%s1146 + $0xa8] sm:$0xf]
      %v2955 = vld [vmem:[%s1146 + $0xb4] sm:$0xf]
      %v2956 = vld [vmem:[%s1146 + $0xb8] sm:$0xf]
      %v2957 = vld [vmem:[%s1146 + $0xc4] sm:$0xf]
      %v2958 = vld [vmem:[%s1146 + $0xc8] sm:$0xf]
      %v2959 = vld [vmem:[%s1146 + $0xd4] sm:$0xf]
      %v2960 = vld [vmem:[%s1146 + $0xd8] sm:$0xf]
      %v2961 = vld [vmem:[%s1146 + $0xe4] sm:$0xf]
      %v2962 = vld [vmem:[%s1146 + $0xe8] sm:$0xf]
      %v2963 = vld [vmem:[%s1146 + $0xf4] sm:$0xf]
      %v2964 = vld [vmem:[%s1146 + $0xf8] sm:$0xf]
      %2965 = vst.msk [vmem:[#allocation4 + $0x8] sm:$0xf] %vm1680, %v2933
      %2966 = vst.msk [vmem:[#allocation4 + $0x1c] sm:$0xf] %vm1680, %v2934
      %2967 = vst.msk [vmem:[#allocation4 + $0x30] sm:$0xf] %vm1680, %v2935
      %2968 = vst.msk [vmem:[#allocation4 + $0x44] sm:$0xf] %vm1680, %v2936
      %2969 = vst.msk [vmem:[#allocation4 + $0x58] sm:$0xf] %vm1680, %v2937
      %2970 = vst.msk [vmem:[#allocation4 + $0x6c] sm:$0xf] %vm1680, %v2938
      %2971 = vst.msk [vmem:[#allocation4 + $0x80] sm:$0xf] %vm1680, %v2939
      %2972 = vst.msk [vmem:[#allocation4 + $0x94] sm:$0xf] %vm1680, %v2940
      %2973 = vst.msk [vmem:[#allocation4 + $0xa8] sm:$0xf] %vm1680, %v2941
      %2974 = vst.msk [vmem:[#allocation4 + $0xbc] sm:$0xf] %vm1680, %v2942
      %2975 = vst.msk [vmem:[#allocation4 + $0xd0] sm:$0xf] %vm1680, %v2943
      %2976 = vst.msk [vmem:[#allocation4 + $0xe4] sm:$0xf] %vm1680, %v2944
      %2977 = vst.msk [vmem:[#allocation4 + $0xf8] sm:$0xf] %vm1680, %v2945
      %2978 = vst.msk [vmem:[#allocation4 + $0x10c] sm:$0xf] %vm1680, %v2946
      %2979 = vst.msk [vmem:[#allocation4 + $0x120] sm:$0xf] %vm1680, %v2947
      %2980 = vst.msk [vmem:[#allocation4 + $0x134] sm:$0xf] %vm1680, %v2948
      %2981 = vst.msk [vmem:[#allocation4 + $0x148] sm:$0xf] %vm1680, %v2949
      %2982 = vst.msk [vmem:[#allocation4 + $0x15c] sm:$0xf] %vm1680, %v2950
      %2983 = vst.msk [vmem:[#allocation4 + $0x170] sm:$0xf] %vm1680, %v2951
      %2984 = vst.msk [vmem:[#allocation4 + $0x184] sm:$0xf] %vm1680, %v2952
      %2985 = vst.msk [vmem:[#allocation4 + $0x198] sm:$0xf] %vm1680, %v2953
      %2986 = vst.msk [vmem:[#allocation4 + $0x1ac] sm:$0xf] %vm1680, %v2954
      %2987 = vst.msk [vmem:[#allocation4 + $0x1c0] sm:$0xf] %vm1680, %v2955
      %2988 = vst.msk [vmem:[#allocation4 + $0x1d4] sm:$0xf] %vm1680, %v2956
      %2989 = vst.msk [vmem:[#allocation4 + $0x1e8] sm:$0xf] %vm1680, %v2957
      %2990 = vst.msk [vmem:[#allocation4 + $0x1fc] sm:$0xf] %vm1680, %v2958
      %2991 = vst.msk [vmem:[#allocation4 + $0x210] sm:$0xf] %vm1680, %v2959
      %2992 = vst.msk [vmem:[#allocation4 + $0x224] sm:$0xf] %vm1680, %v2960
      %2993 = vst.msk [vmem:[#allocation4 + $0x238] sm:$0xf] %vm1680, %v2961
      %2994 = vst.msk [vmem:[#allocation4 + $0x24c] sm:$0xf] %vm1680, %v2962
      %2995 = vst.msk [vmem:[#allocation4 + $0x260] sm:$0xf] %vm1680, %v2963
      %2996 = vst.msk [vmem:[#allocation4 + $0x274] sm:$0xf] %vm1680, %v2964
      %v2997 = vld [vmem:[%s1146 + $0x4] sm:$0xf]
      %v2998 = vld [vmem:[%s1146 + $0x8] sm:$0xf]
      %v2999 = vld [vmem:[%s1146 + $0xc] sm:$0x1]
      %v3000 = vld [vmem:[%s1146 + $0x14] sm:$0xf]
      %v3001 = vld [vmem:[%s1146 + $0x18] sm:$0xf]
      %v3002 = vld [vmem:[%s1146 + $0x1c] sm:$0x1]
      %v3003 = vld [vmem:[%s1146 + $0x24] sm:$0xf]
      %v3004 = vld [vmem:[%s1146 + $0x28] sm:$0xf]
      %v3005 = vld [vmem:[%s1146 + $0x2c] sm:$0x1]
      %v3006 = vld [vmem:[%s1146 + $0x34] sm:$0xf]
      %v3007 = vld [vmem:[%s1146 + $0x38] sm:$0xf]
      %v3008 = vld [vmem:[%s1146 + $0x3c] sm:$0x1]
      %v3009 = vld [vmem:[%s1146 + $0x44] sm:$0xf]
      %v3010 = vld [vmem:[%s1146 + $0x48] sm:$0xf]
      %v3011 = vld [vmem:[%s1146 + $0x4c] sm:$0x1]
      %v3012 = vld [vmem:[%s1146 + $0x54] sm:$0xf]
      %v3013 = vld [vmem:[%s1146 + $0x58] sm:$0xf]
      %v3014 = vld [vmem:[%s1146 + $0x5c] sm:$0x1]
      %v3015 = vld [vmem:[%s1146 + $0x64] sm:$0xf]
      %v3016 = vld [vmem:[%s1146 + $0x68] sm:$0xf]
      %v3017 = vld [vmem:[%s1146 + $0x6c] sm:$0x1]
      %v3018 = vld [vmem:[%s1146 + $0x74] sm:$0xf]
      %v3019 = vld [vmem:[%s1146 + $0x78] sm:$0xf]
      %v3020 = vld [vmem:[%s1146 + $0x7c] sm:$0x1]
      %v3021 = vld [vmem:[%s1146 + $0x84] sm:$0xf]
      %v3022 = vld [vmem:[%s1146 + $0x88] sm:$0xf]
      %v3023 = vld [vmem:[%s1146 + $0x8c] sm:$0x1]
      %v3024 = vld [vmem:[%s1146 + $0x94] sm:$0xf]
      %v3025 = vld [vmem:[%s1146 + $0x98] sm:$0xf]
      %v3026 = vld [vmem:[%s1146 + $0x9c] sm:$0x1]
      %v3027 = vld [vmem:[%s1146 + $0xa4] sm:$0xf]
      %v3028 = vld [vmem:[%s1146 + $0xa8] sm:$0xf]
      %v3029 = vld [vmem:[%s1146 + $0xac] sm:$0x1]
      %v3030 = vld [vmem:[%s1146 + $0xb4] sm:$0xf]
      %v3031 = vld [vmem:[%s1146 + $0xb8] sm:$0xf]
      %v3032 = vld [vmem:[%s1146 + $0xbc] sm:$0x1]
      %v3033 = vld [vmem:[%s1146 + $0xc4] sm:$0xf]
      %v3034 = vld [vmem:[%s1146 + $0xc8] sm:$0xf]
      %v3035 = vld [vmem:[%s1146 + $0xcc] sm:$0x1]
      %v3036 = vld [vmem:[%s1146 + $0xd4] sm:$0xf]
      %v3037 = vld [vmem:[%s1146 + $0xd8] sm:$0xf]
      %v3038 = vld [vmem:[%s1146 + $0xdc] sm:$0x1]
      %v3039 = vld [vmem:[%s1146 + $0xe4] sm:$0xf]
      %v3040 = vld [vmem:[%s1146 + $0xe8] sm:$0xf]
      %v3041 = vld [vmem:[%s1146 + $0xec] sm:$0x1]
      %v3042 = vld [vmem:[%s1146 + $0xf4] sm:$0xf]
      %v3043 = vld [vmem:[%s1146 + $0xf8] sm:$0xf]
      %v3044 = vld [vmem:[%s1146 + $0xfc] sm:$0x1]
      %v3046 = vshrl.u32 %v2997, 16
      %v3048 = vrot.slane %v3046, 4
      %v3049 = vshll.u32 %v2997, 16
      %v3051 = vrot.slane %v3049, 5
      %v3052 = vor.u32 %v3048, %v3051
      %v3053 = vrot.slane %v3052, 4
      %v3055 = vshll.u32 %v2998, 16
      %v3057 = vrot.slane %v3055, 5
      %v3058 = vsel %vm1956, %v3053, %v3057
      %v3059 = vshrl.u32 %v2998, 16
      %v3061 = vrot.slane %v3059, 4
      %v3062 = vor.u32 %v3061, %v3057
      %v3063 = vrot.slane %v3062, 4
      %v3065 = vshll.u32 %v2999, 16
      %v3067 = vrot.slane %v3065, 5
      %v3068 = vsel %vm1956, %v3063, %v3067
      %v3070 = vshrl.u32 %v3000, 16
      %v3072 = vrot.slane %v3070, 4
      %v3073 = vshll.u32 %v3000, 16
      %v3075 = vrot.slane %v3073, 5
      %v3076 = vor.u32 %v3072, %v3075
      %v3077 = vrot.slane %v3076, 4
      %v3079 = vshll.u32 %v3001, 16
      %v3081 = vrot.slane %v3079, 5
      %v3082 = vsel %vm1956, %v3077, %v3081
      %v3083 = vshrl.u32 %v3001, 16
      %v3085 = vrot.slane %v3083, 4
      %v3086 = vor.u32 %v3085, %v3081
      %v3087 = vrot.slane %v3086, 4
      %v3089 = vshll.u32 %v3002, 16
      %v3091 = vrot.slane %v3089, 5
      %v3092 = vsel %vm1956, %v3087, %v3091
      %v3094 = vshrl.u32 %v3003, 16
      %v3096 = vrot.slane %v3094, 4
      %v3097 = vshll.u32 %v3003, 16
      %v3099 = vrot.slane %v3097, 5
      %v3100 = vor.u32 %v3096, %v3099
      %v3101 = vrot.slane %v3100, 4
      %v3103 = vshll.u32 %v3004, 16
      %v3105 = vrot.slane %v3103, 5
      %v3106 = vsel %vm1956, %v3101, %v3105
      %v3107 = vshrl.u32 %v3004, 16
      %v3109 = vrot.slane %v3107, 4
      %v3110 = vor.u32 %v3109, %v3105
      %v3111 = vrot.slane %v3110, 4
      %v3113 = vshll.u32 %v3005, 16
      %v3115 = vrot.slane %v3113, 5
      %v3116 = vsel %vm1956, %v3111, %v3115
      %v3118 = vshrl.u32 %v3006, 16
      %v3120 = vrot.slane %v3118, 4
      %v3121 = vshll.u32 %v3006, 16
      %v3123 = vrot.slane %v3121, 5
      %v3124 = vor.u32 %v3120, %v3123
      %v3125 = vrot.slane %v3124, 4
      %v3127 = vshll.u32 %v3007, 16
      %v3129 = vrot.slane %v3127, 5
      %v3130 = vsel %vm1956, %v3125, %v3129
      %v3131 = vshrl.u32 %v3007, 16
      %v3133 = vrot.slane %v3131, 4
      %v3134 = vor.u32 %v3133, %v3129
      %v3135 = vrot.slane %v3134, 4
      %v3137 = vshll.u32 %v3008, 16
      %v3139 = vrot.slane %v3137, 5
      %v3140 = vsel %vm1956, %v3135, %v3139
      %v3142 = vshrl.u32 %v3009, 16
      %v3144 = vrot.slane %v3142, 4
      %v3145 = vshll.u32 %v3009, 16
      %v3147 = vrot.slane %v3145, 5
      %v3148 = vor.u32 %v3144, %v3147
      %v3149 = vrot.slane %v3148, 4
      %v3151 = vshll.u32 %v3010, 16
      %v3153 = vrot.slane %v3151, 5
      %v3154 = vsel %vm1956, %v3149, %v3153
      %v3155 = vshrl.u32 %v3010, 16
      %v3157 = vrot.slane %v3155, 4
      %v3158 = vor.u32 %v3157, %v3153
      %v3159 = vrot.slane %v3158, 4
      %v3161 = vshll.u32 %v3011, 16
      %v3163 = vrot.slane %v3161, 5
      %v3164 = vsel %vm1956, %v3159, %v3163
      %v3166 = vshrl.u32 %v3012, 16
      %v3168 = vrot.slane %v3166, 4
      %v3169 = vshll.u32 %v3012, 16
      %v3171 = vrot.slane %v3169, 5
      %v3172 = vor.u32 %v3168, %v3171
      %v3173 = vrot.slane %v3172, 4
      %v3175 = vshll.u32 %v3013, 16
      %v3177 = vrot.slane %v3175, 5
      %v3178 = vsel %vm1956, %v3173, %v3177
      %v3179 = vshrl.u32 %v3013, 16
      %v3181 = vrot.slane %v3179, 4
      %v3182 = vor.u32 %v3181, %v3177
      %v3183 = vrot.slane %v3182, 4
      %v3185 = vshll.u32 %v3014, 16
      %v3187 = vrot.slane %v3185, 5
      %v3188 = vsel %vm1956, %v3183, %v3187
      %v3190 = vshrl.u32 %v3015, 16
      %v3192 = vrot.slane %v3190, 4
      %v3193 = vshll.u32 %v3015, 16
      %v3195 = vrot.slane %v3193, 5
      %v3196 = vor.u32 %v3192, %v3195
      %v3197 = vrot.slane %v3196, 4
      %v3199 = vshll.u32 %v3016, 16
      %v3201 = vrot.slane %v3199, 5
      %v3202 = vsel %vm1956, %v3197, %v3201
      %v3203 = vshrl.u32 %v3016, 16
      %v3205 = vrot.slane %v3203, 4
      %v3206 = vor.u32 %v3205, %v3201
      %v3207 = vrot.slane %v3206, 4
      %v3209 = vshll.u32 %v3017, 16
      %v3211 = vrot.slane %v3209, 5
      %v3212 = vsel %vm1956, %v3207, %v3211
      %v3214 = vshrl.u32 %v3018, 16
      %v3216 = vrot.slane %v3214, 4
      %v3217 = vshll.u32 %v3018, 16
      %v3219 = vrot.slane %v3217, 5
      %v3220 = vor.u32 %v3216, %v3219
      %v3221 = vrot.slane %v3220, 4
      %v3223 = vshll.u32 %v3019, 16
      %v3225 = vrot.slane %v3223, 5
      %v3226 = vsel %vm1956, %v3221, %v3225
      %v3227 = vshrl.u32 %v3019, 16
      %v3229 = vrot.slane %v3227, 4
      %v3230 = vor.u32 %v3229, %v3225
      %v3231 = vrot.slane %v3230, 4
      %v3233 = vshll.u32 %v3020, 16
      %v3235 = vrot.slane %v3233, 5
      %v3236 = vsel %vm1956, %v3231, %v3235
      %v3238 = vshrl.u32 %v3021, 16
      %v3240 = vrot.slane %v3238, 4
      %v3241 = vshll.u32 %v3021, 16
      %v3243 = vrot.slane %v3241, 5
      %v3244 = vor.u32 %v3240, %v3243
      %v3245 = vrot.slane %v3244, 4
      %v3247 = vshll.u32 %v3022, 16
      %v3249 = vrot.slane %v3247, 5
      %v3250 = vsel %vm1956, %v3245, %v3249
      %v3251 = vshrl.u32 %v3022, 16
      %v3253 = vrot.slane %v3251, 4
      %v3254 = vor.u32 %v3253, %v3249
      %v3255 = vrot.slane %v3254, 4
      %v3257 = vshll.u32 %v3023, 16
      %v3259 = vrot.slane %v3257, 5
      %v3260 = vsel %vm1956, %v3255, %v3259
      %v3262 = vshrl.u32 %v3024, 16
      %v3264 = vrot.slane %v3262, 4
      %v3265 = vshll.u32 %v3024, 16
      %v3267 = vrot.slane %v3265, 5
      %v3268 = vor.u32 %v3264, %v3267
      %v3269 = vrot.slane %v3268, 4
      %v3271 = vshll.u32 %v3025, 16
      %v3273 = vrot.slane %v3271, 5
      %v3274 = vsel %vm1956, %v3269, %v3273
      %v3275 = vshrl.u32 %v3025, 16
      %v3277 = vrot.slane %v3275, 4
      %v3278 = vor.u32 %v3277, %v3273
      %v3279 = vrot.slane %v3278, 4
      %v3281 = vshll.u32 %v3026, 16
      %v3283 = vrot.slane %v3281, 5
      %v3284 = vsel %vm1956, %v3279, %v3283
      %v3286 = vshrl.u32 %v3027, 16
      %v3288 = vrot.slane %v3286, 4
      %v3289 = vshll.u32 %v3027, 16
      %v3291 = vrot.slane %v3289, 5
      %v3292 = vor.u32 %v3288, %v3291
      %v3293 = vrot.slane %v3292, 4
      %v3295 = vshll.u32 %v3028, 16
      %v3297 = vrot.slane %v3295, 5
      %v3298 = vsel %vm1956, %v3293, %v3297
      %v3299 = vshrl.u32 %v3028, 16
      %v3301 = vrot.slane %v3299, 4
      %v3302 = vor.u32 %v3301, %v3297
      %v3303 = vrot.slane %v3302, 4
      %v3305 = vshll.u32 %v3029, 16
      %v3307 = vrot.slane %v3305, 5
      %v3308 = vsel %vm1956, %v3303, %v3307
      %v3310 = vshrl.u32 %v3030, 16
      %v3312 = vrot.slane %v3310, 4
      %v3313 = vshll.u32 %v3030, 16
      %v3315 = vrot.slane %v3313, 5
      %v3316 = vor.u32 %v3312, %v3315
      %v3317 = vrot.slane %v3316, 4
      %v3319 = vshll.u32 %v3031, 16
      %v3321 = vrot.slane %v3319, 5
      %v3322 = vsel %vm1956, %v3317, %v3321
      %v3323 = vshrl.u32 %v3031, 16
      %v3325 = vrot.slane %v3323, 4
      %v3326 = vor.u32 %v3325, %v3321
      %v3327 = vrot.slane %v3326, 4
      %v3329 = vshll.u32 %v3032, 16
      %v3331 = vrot.slane %v3329, 5
      %v3332 = vsel %vm1956, %v3327, %v3331
      %v3334 = vshrl.u32 %v3033, 16
      %v3336 = vrot.slane %v3334, 4
      %v3337 = vshll.u32 %v3033, 16
      %v3339 = vrot.slane %v3337, 5
      %v3340 = vor.u32 %v3336, %v3339
      %v3341 = vrot.slane %v3340, 4
      %v3343 = vshll.u32 %v3034, 16
      %v3345 = vrot.slane %v3343, 5
      %v3346 = vsel %vm1956, %v3341, %v3345
      %v3347 = vshrl.u32 %v3034, 16
      %v3349 = vrot.slane %v3347, 4
      %v3350 = vor.u32 %v3349, %v3345
      %v3351 = vrot.slane %v3350, 4
      %v3353 = vshll.u32 %v3035, 16
      %v3355 = vrot.slane %v3353, 5
      %v3356 = vsel %vm1956, %v3351, %v3355
      %v3358 = vshrl.u32 %v3036, 16
      %v3360 = vrot.slane %v3358, 4
      %v3361 = vshll.u32 %v3036, 16
      %v3363 = vrot.slane %v3361, 5
      %v3364 = vor.u32 %v3360, %v3363
      %v3365 = vrot.slane %v3364, 4
      %v3367 = vshll.u32 %v3037, 16
      %v3369 = vrot.slane %v3367, 5
      %v3370 = vsel %vm1956, %v3365, %v3369
      %v3371 = vshrl.u32 %v3037, 16
      %v3373 = vrot.slane %v3371, 4
      %v3374 = vor.u32 %v3373, %v3369
      %v3375 = vrot.slane %v3374, 4
      %v3377 = vshll.u32 %v3038, 16
      %v3379 = vrot.slane %v3377, 5
      %v3380 = vsel %vm1956, %v3375, %v3379
      %v3382 = vshrl.u32 %v3039, 16
      %v3384 = vrot.slane %v3382, 4
      %v3385 = vshll.u32 %v3039, 16
      %v3387 = vrot.slane %v3385, 5
      %v3388 = vor.u32 %v3384, %v3387
      %v3389 = vrot.slane %v3388, 4
      %v3391 = vshll.u32 %v3040, 16
      %v3393 = vrot.slane %v3391, 5
      %v3394 = vsel %vm1956, %v3389, %v3393
      %v3395 = vshrl.u32 %v3040, 16
      %v3397 = vrot.slane %v3395, 4
      %v3398 = vor.u32 %v3397, %v3393
      %v3399 = vrot.slane %v3398, 4
      %v3401 = vshll.u32 %v3041, 16
      %v3403 = vrot.slane %v3401, 5
      %v3404 = vsel %vm1956, %v3399, %v3403
      %v3406 = vshrl.u32 %v3042, 16
      %v3408 = vrot.slane %v3406, 4
      %v3409 = vshll.u32 %v3042, 16
      %v3411 = vrot.slane %v3409, 5
      %v3412 = vor.u32 %v3408, %v3411
      %v3413 = vrot.slane %v3412, 4
      %v3415 = vshll.u32 %v3043, 16
      %v3417 = vrot.slane %v3415, 5
      %v3418 = vsel %vm1956, %v3413, %v3417
      %v3419 = vshrl.u32 %v3043, 16
      %v3421 = vrot.slane %v3419, 4
      %v3422 = vor.u32 %v3421, %v3417
      %v3423 = vrot.slane %v3422, 4
      %v3425 = vshll.u32 %v3044, 16
      %v3427 = vrot.slane %v3425, 5
      %v3428 = vsel %vm1956, %v3423, %v3427
      %3429 = vrot.lane.b32.xlu0 %v3058, 64
      %v3430 = vpop.permute.xlu0 %3429
      %3431 = vrot.lane.b32.xlu0 %v3068, 64
      %v3432 = vpop.permute.xlu0 %3431
      %3433 = vrot.lane.b32.xlu0 %v3082, 64
      %v3434 = vpop.permute.xlu0 %3433
      %3435 = vrot.lane.b32.xlu0 %v3092, 64
      %v3436 = vpop.permute.xlu0 %3435
      %3437 = vrot.lane.b32.xlu0 %v3106, 64
      %v3438 = vpop.permute.xlu0 %3437
      %3439 = vrot.lane.b32.xlu0 %v3116, 64
      %v3440 = vpop.permute.xlu0 %3439
      %3441 = vrot.lane.b32.xlu0 %v3130, 64
      %v3442 = vpop.permute.xlu0 %3441
      %3443 = vrot.lane.b32.xlu0 %v3140, 64
      %v3444 = vpop.permute.xlu0 %3443
      %3445 = vrot.lane.b32.xlu0 %v3154, 64
      %v3446 = vpop.permute.xlu0 %3445
      %3447 = vrot.lane.b32.xlu0 %v3164, 64
      %v3448 = vpop.permute.xlu0 %3447
      %3449 = vrot.lane.b32.xlu0 %v3178, 64
      %v3450 = vpop.permute.xlu0 %3449
      %3451 = vrot.lane.b32.xlu0 %v3188, 64
      %v3452 = vpop.permute.xlu0 %3451
      %3453 = vrot.lane.b32.xlu0 %v3202, 64
      %v3454 = vpop.permute.xlu0 %3453
      %3455 = vrot.lane.b32.xlu0 %v3212, 64
      %v3456 = vpop.permute.xlu0 %3455
      %3457 = vrot.lane.b32.xlu0 %v3226, 64
      %v3458 = vpop.permute.xlu0 %3457
      %3459 = vrot.lane.b32.xlu0 %v3236, 64
      %v3460 = vpop.permute.xlu0 %3459
      %3461 = vrot.lane.b32.xlu0 %v3250, 64
      %v3462 = vpop.permute.xlu0 %3461
      %3463 = vrot.lane.b32.xlu0 %v3260, 64
      %v3464 = vpop.permute.xlu0 %3463
      %3465 = vrot.lane.b32.xlu0 %v3274, 64
      %v3466 = vpop.permute.xlu0 %3465
      %3467 = vrot.lane.b32.xlu0 %v3284, 64
      %v3468 = vpop.permute.xlu0 %3467
      %3469 = vrot.lane.b32.xlu0 %v3298, 64
      %v3470 = vpop.permute.xlu0 %3469
      %3471 = vrot.lane.b32.xlu0 %v3308, 64
      %v3472 = vpop.permute.xlu0 %3471
      %3473 = vrot.lane.b32.xlu0 %v3322, 64
      %v3474 = vpop.permute.xlu0 %3473
      %3475 = vrot.lane.b32.xlu0 %v3332, 64
      %v3476 = vpop.permute.xlu0 %3475
      %3477 = vrot.lane.b32.xlu0 %v3346, 64
      %v3478 = vpop.permute.xlu0 %3477
      %3479 = vrot.lane.b32.xlu0 %v3356, 64
      %v3480 = vpop.permute.xlu0 %3479
      %3481 = vrot.lane.b32.xlu0 %v3370, 64
      %v3482 = vpop.permute.xlu0 %3481
      %3483 = vrot.lane.b32.xlu0 %v3380, 64
      %v3484 = vpop.permute.xlu0 %3483
      %3485 = vrot.lane.b32.xlu0 %v3394, 64
      %v3486 = vpop.permute.xlu0 %3485
      %3487 = vrot.lane.b32.xlu0 %v3404, 64
      %v3488 = vpop.permute.xlu0 %3487
      %3489 = vrot.lane.b32.xlu0 %v3418, 64
      %v3490 = vpop.permute.xlu0 %3489
      %3491 = vrot.lane.b32.xlu0 %v3428, 64
      %v3492 = vpop.permute.xlu0 %3491
      %3525 = vst.msk [vmem:[#allocation4 + $0x8] sm:$0xf] %vm1873, %v3430
      %3526 = vst.msk [vmem:[#allocation4 + $0x1c] sm:$0xf] %vm1873, %v3432
      %3527 = vst.msk [vmem:[#allocation4 + $0x30] sm:$0xf] %vm1873, %v3434
      %3528 = vst.msk [vmem:[#allocation4 + $0x44] sm:$0xf] %vm1873, %v3436
      %3529 = vst.msk [vmem:[#allocation4 + $0x58] sm:$0xf] %vm1873, %v3438
      %3530 = vst.msk [vmem:[#allocation4 + $0x6c] sm:$0xf] %vm1873, %v3440
      %3531 = vst.msk [vmem:[#allocation4 + $0x80] sm:$0xf] %vm1873, %v3442
      %3532 = vst.msk [vmem:[#allocation4 + $0x94] sm:$0xf] %vm1873, %v3444
      %3533 = vst.msk [vmem:[#allocation4 + $0xa8] sm:$0xf] %vm1873, %v3446
      %3534 = vst.msk [vmem:[#allocation4 + $0xbc] sm:$0xf] %vm1873, %v3448
      %3535 = vst.msk [vmem:[#allocation4 + $0xd0] sm:$0xf] %vm1873, %v3450
      %3536 = vst.msk [vmem:[#allocation4 + $0xe4] sm:$0xf] %vm1873, %v3452
      %3537 = vst.msk [vmem:[#allocation4 + $0xf8] sm:$0xf] %vm1873, %v3454
      %3538 = vst.msk [vmem:[#allocation4 + $0x10c] sm:$0xf] %vm1873, %v3456
      %3539 = vst.msk [vmem:[#allocation4 + $0x120] sm:$0xf] %vm1873, %v3458
      %3540 = vst.msk [vmem:[#allocation4 + $0x134] sm:$0xf] %vm1873, %v3460
      %3541 = vst.msk [vmem:[#allocation4 + $0x148] sm:$0xf] %vm1873, %v3462
      %3542 = vst.msk [vmem:[#allocation4 + $0x15c] sm:$0xf] %vm1873, %v3464
      %3543 = vst.msk [vmem:[#allocation4 + $0x170] sm:$0xf] %vm1873, %v3466
      %3544 = vst.msk [vmem:[#allocation4 + $0x184] sm:$0xf] %vm1873, %v3468
      %3545 = vst.msk [vmem:[#allocation4 + $0x198] sm:$0xf] %vm1873, %v3470
      %3546 = vst.msk [vmem:[#allocation4 + $0x1ac] sm:$0xf] %vm1873, %v3472
      %3547 = vst.msk [vmem:[#allocation4 + $0x1c0] sm:$0xf] %vm1873, %v3474
      %3548 = vst.msk [vmem:[#allocation4 + $0x1d4] sm:$0xf] %vm1873, %v3476
      %3549 = vst.msk [vmem:[#allocation4 + $0x1e8] sm:$0xf] %vm1873, %v3478
      %3550 = vst.msk [vmem:[#allocation4 + $0x1fc] sm:$0xf] %vm1873, %v3480
      %3551 = vst.msk [vmem:[#allocation4 + $0x210] sm:$0xf] %vm1873, %v3482
      %3552 = vst.msk [vmem:[#allocation4 + $0x224] sm:$0xf] %vm1873, %v3484
      %3553 = vst.msk [vmem:[#allocation4 + $0x238] sm:$0xf] %vm1873, %v3486
      %3554 = vst.msk [vmem:[#allocation4 + $0x24c] sm:$0xf] %vm1873, %v3488
      %3555 = vst.msk [vmem:[#allocation4 + $0x260] sm:$0xf] %vm1873, %v3490
      %3556 = vst.msk [vmem:[#allocation4 + $0x274] sm:$0xf] %vm1873, %v3492
      %s3557 = scalar_lea.vmem [#allocation3], 32
      %v3558 = vld [vmem:[%s3557] sm:$0x8]
      %v3559 = vld [vmem:[%s3557 + $0x4] sm:$0xf]
      %v3560 = vld [vmem:[%s3557 + $0x8] sm:$0xf]
      %v3561 = vld [vmem:[%s3557 + $0x10] sm:$0x8]
      %v3562 = vld [vmem:[%s3557 + $0x14] sm:$0xf]
      %v3563 = vld [vmem:[%s3557 + $0x18] sm:$0xf]
      %v3564 = vld [vmem:[%s3557 + $0x20] sm:$0x8]
      %v3565 = vld [vmem:[%s3557 + $0x24] sm:$0xf]
      %v3566 = vld [vmem:[%s3557 + $0x28] sm:$0xf]
      %v3567 = vld [vmem:[%s3557 + $0x30] sm:$0x8]
      %v3568 = vld [vmem:[%s3557 + $0x34] sm:$0xf]
      %v3569 = vld [vmem:[%s3557 + $0x38] sm:$0xf]
      %v3570 = vld [vmem:[%s3557 + $0x40] sm:$0x8]
      %v3571 = vld [vmem:[%s3557 + $0x44] sm:$0xf]
      %v3572 = vld [vmem:[%s3557 + $0x48] sm:$0xf]
      %v3573 = vld [vmem:[%s3557 + $0x50] sm:$0x8]
      %v3574 = vld [vmem:[%s3557 + $0x54] sm:$0xf]
      %v3575 = vld [vmem:[%s3557 + $0x58] sm:$0xf]
      %v3576 = vld [vmem:[%s3557 + $0x60] sm:$0x8]
      %v3577 = vld [vmem:[%s3557 + $0x64] sm:$0xf]
      %v3578 = vld [vmem:[%s3557 + $0x68] sm:$0xf]
      %v3579 = vld [vmem:[%s3557 + $0x70] sm:$0x8]
      %v3580 = vld [vmem:[%s3557 + $0x74] sm:$0xf]
      %v3581 = vld [vmem:[%s3557 + $0x78] sm:$0xf]
      %v3582 = vld [vmem:[%s3557 + $0x80] sm:$0x8]
      %v3583 = vld [vmem:[%s3557 + $0x84] sm:$0xf]
      %v3584 = vld [vmem:[%s3557 + $0x88] sm:$0xf]
      %v3585 = vld [vmem:[%s3557 + $0x90] sm:$0x8]
      %v3586 = vld [vmem:[%s3557 + $0x94] sm:$0xf]
      %v3587 = vld [vmem:[%s3557 + $0x98] sm:$0xf]
      %v3588 = vld [vmem:[%s3557 + $0xa0] sm:$0x8]
      %v3589 = vld [vmem:[%s3557 + $0xa4] sm:$0xf]
      %v3590 = vld [vmem:[%s3557 + $0xa8] sm:$0xf]
      %v3591 = vld [vmem:[%s3557 + $0xb0] sm:$0x8]
      %v3592 = vld [vmem:[%s3557 + $0xb4] sm:$0xf]
      %v3593 = vld [vmem:[%s3557 + $0xb8] sm:$0xf]
      %v3594 = vld [vmem:[%s3557 + $0xc0] sm:$0x8]
      %v3595 = vld [vmem:[%s3557 + $0xc4] sm:$0xf]
      %v3596 = vld [vmem:[%s3557 + $0xc8] sm:$0xf]
      %v3597 = vld [vmem:[%s3557 + $0xd0] sm:$0x8]
      %v3598 = vld [vmem:[%s3557 + $0xd4] sm:$0xf]
      %v3599 = vld [vmem:[%s3557 + $0xd8] sm:$0xf]
      %v3600 = vld [vmem:[%s3557 + $0xe0] sm:$0x8]
      %v3601 = vld [vmem:[%s3557 + $0xe4] sm:$0xf]
      %v3602 = vld [vmem:[%s3557 + $0xe8] sm:$0xf]
      %v3603 = vld [vmem:[%s3557 + $0xf0] sm:$0x8]
      %v3604 = vld [vmem:[%s3557 + $0xf4] sm:$0xf]
      %v3605 = vld [vmem:[%s3557 + $0xf8] sm:$0xf]
      %v3607 = vshrl.u32 %v3558, 16
      %v3609 = vrot.slane %v3607, 7
      %v3610 = vrot.slane %v3609, 4
      %v3612 = vshrl.u32 %v3559, 16
      %v3614 = vrot.slane %v3612, 7
      %v3615 = vshll.u32 %v3559, 16
      %v3617 = vor.u32 %v3614, %v3615
      %v3618 = vsel %vm1295, %v3610, %v3617
      %v3619 = vrot.slane %v3614, 4
      %v3621 = vshrl.u32 %v3560, 16
      %v3623 = vrot.slane %v3621, 7
      %v3624 = vshll.u32 %v3560, 16
      %v3626 = vor.u32 %v3623, %v3624
      %v3627 = vsel %vm1295, %v3619, %v3626
      %v3629 = vshrl.u32 %v3561, 16
      %v3631 = vrot.slane %v3629, 7
      %v3632 = vrot.slane %v3631, 4
      %v3634 = vshrl.u32 %v3562, 16
      %v3636 = vrot.slane %v3634, 7
      %v3637 = vshll.u32 %v3562, 16
      %v3639 = vor.u32 %v3636, %v3637
      %v3640 = vsel %vm1295, %v3632, %v3639
      %v3641 = vrot.slane %v3636, 4
      %v3643 = vshrl.u32 %v3563, 16
      %v3645 = vrot.slane %v3643, 7
      %v3646 = vshll.u32 %v3563, 16
      %v3648 = vor.u32 %v3645, %v3646
      %v3649 = vsel %vm1295, %v3641, %v3648
      %v3651 = vshrl.u32 %v3564, 16
      %v3653 = vrot.slane %v3651, 7
      %v3654 = vrot.slane %v3653, 4
      %v3656 = vshrl.u32 %v3565, 16
      %v3658 = vrot.slane %v3656, 7
      %v3659 = vshll.u32 %v3565, 16
      %v3661 = vor.u32 %v3658, %v3659
      %v3662 = vsel %vm1295, %v3654, %v3661
      %v3663 = vrot.slane %v3658, 4
      %v3665 = vshrl.u32 %v3566, 16
      %v3667 = vrot.slane %v3665, 7
      %v3668 = vshll.u32 %v3566, 16
      %v3670 = vor.u32 %v3667, %v3668
      %v3671 = vsel %vm1295, %v3663, %v3670
      %v3673 = vshrl.u32 %v3567, 16
      %v3675 = vrot.slane %v3673, 7
      %v3676 = vrot.slane %v3675, 4
      %v3678 = vshrl.u32 %v3568, 16
      %v3680 = vrot.slane %v3678, 7
      %v3681 = vshll.u32 %v3568, 16
      %v3683 = vor.u32 %v3680, %v3681
      %v3684 = vsel %vm1295, %v3676, %v3683
      %v3685 = vrot.slane %v3680, 4
      %v3687 = vshrl.u32 %v3569, 16
      %v3689 = vrot.slane %v3687, 7
      %v3690 = vshll.u32 %v3569, 16
      %v3692 = vor.u32 %v3689, %v3690
      %v3693 = vsel %vm1295, %v3685, %v3692
      %v3695 = vshrl.u32 %v3570, 16
      %v3697 = vrot.slane %v3695, 7
      %v3698 = vrot.slane %v3697, 4
      %v3700 = vshrl.u32 %v3571, 16
      %v3702 = vrot.slane %v3700, 7
      %v3703 = vshll.u32 %v3571, 16
      %v3705 = vor.u32 %v3702, %v3703
      %v3706 = vsel %vm1295, %v3698, %v3705
      %v3707 = vrot.slane %v3702, 4
      %v3709 = vshrl.u32 %v3572, 16
      %v3711 = vrot.slane %v3709, 7
      %v3712 = vshll.u32 %v3572, 16
      %v3714 = vor.u32 %v3711, %v3712
      %v3715 = vsel %vm1295, %v3707, %v3714
      %v3717 = vshrl.u32 %v3573, 16
      %v3719 = vrot.slane %v3717, 7
      %v3720 = vrot.slane %v3719, 4
      %v3722 = vshrl.u32 %v3574, 16
      %v3724 = vrot.slane %v3722, 7
      %v3725 = vshll.u32 %v3574, 16
      %v3727 = vor.u32 %v3724, %v3725
      %v3728 = vsel %vm1295, %v3720, %v3727
      %v3729 = vrot.slane %v3724, 4
      %v3731 = vshrl.u32 %v3575, 16
      %v3733 = vrot.slane %v3731, 7
      %v3734 = vshll.u32 %v3575, 16
      %v3736 = vor.u32 %v3733, %v3734
      %v3737 = vsel %vm1295, %v3729, %v3736
      %v3739 = vshrl.u32 %v3576, 16
      %v3741 = vrot.slane %v3739, 7
      %v3742 = vrot.slane %v3741, 4
      %v3744 = vshrl.u32 %v3577, 16
      %v3746 = vrot.slane %v3744, 7
      %v3747 = vshll.u32 %v3577, 16
      %v3749 = vor.u32 %v3746, %v3747
      %v3750 = vsel %vm1295, %v3742, %v3749
      %v3751 = vrot.slane %v3746, 4
      %v3753 = vshrl.u32 %v3578, 16
      %v3755 = vrot.slane %v3753, 7
      %v3756 = vshll.u32 %v3578, 16
      %v3758 = vor.u32 %v3755, %v3756
      %v3759 = vsel %vm1295, %v3751, %v3758
      %v3761 = vshrl.u32 %v3579, 16
      %v3763 = vrot.slane %v3761, 7
      %v3764 = vrot.slane %v3763, 4
      %v3766 = vshrl.u32 %v3580, 16
      %v3768 = vrot.slane %v3766, 7
      %v3769 = vshll.u32 %v3580, 16
      %v3771 = vor.u32 %v3768, %v3769
      %v3772 = vsel %vm1295, %v3764, %v3771
      %v3773 = vrot.slane %v3768, 4
      %v3775 = vshrl.u32 %v3581, 16
      %v3777 = vrot.slane %v3775, 7
      %v3778 = vshll.u32 %v3581, 16
      %v3780 = vor.u32 %v3777, %v3778
      %v3781 = vsel %vm1295, %v3773, %v3780
      %v3783 = vshrl.u32 %v3582, 16
      %v3785 = vrot.slane %v3783, 7
      %v3786 = vrot.slane %v3785, 4
      %v3788 = vshrl.u32 %v3583, 16
      %v3790 = vrot.slane %v3788, 7
      %v3791 = vshll.u32 %v3583, 16
      %v3793 = vor.u32 %v3790, %v3791
      %v3794 = vsel %vm1295, %v3786, %v3793
      %v3795 = vrot.slane %v3790, 4
      %v3797 = vshrl.u32 %v3584, 16
      %v3799 = vrot.slane %v3797, 7
      %v3800 = vshll.u32 %v3584, 16
      %v3802 = vor.u32 %v3799, %v3800
      %v3803 = vsel %vm1295, %v3795, %v3802
      %v3805 = vshrl.u32 %v3585, 16
      %v3807 = vrot.slane %v3805, 7
      %v3808 = vrot.slane %v3807, 4
      %v3810 = vshrl.u32 %v3586, 16
      %v3812 = vrot.slane %v3810, 7
      %v3813 = vshll.u32 %v3586, 16
      %v3815 = vor.u32 %v3812, %v3813
      %v3816 = vsel %vm1295, %v3808, %v3815
      %v3817 = vrot.slane %v3812, 4
      %v3819 = vshrl.u32 %v3587, 16
      %v3821 = vrot.slane %v3819, 7
      %v3822 = vshll.u32 %v3587, 16
      %v3824 = vor.u32 %v3821, %v3822
      %v3825 = vsel %vm1295, %v3817, %v3824
      %v3827 = vshrl.u32 %v3588, 16
      %v3829 = vrot.slane %v3827, 7
      %v3830 = vrot.slane %v3829, 4
      %v3832 = vshrl.u32 %v3589, 16
      %v3834 = vrot.slane %v3832, 7
      %v3835 = vshll.u32 %v3589, 16
      %v3837 = vor.u32 %v3834, %v3835
      %v3838 = vsel %vm1295, %v3830, %v3837
      %v3839 = vrot.slane %v3834, 4
      %v3841 = vshrl.u32 %v3590, 16
      %v3843 = vrot.slane %v3841, 7
      %v3844 = vshll.u32 %v3590, 16
      %v3846 = vor.u32 %v3843, %v3844
      %v3847 = vsel %vm1295, %v3839, %v3846
      %v3849 = vshrl.u32 %v3591, 16
      %v3851 = vrot.slane %v3849, 7
      %v3852 = vrot.slane %v3851, 4
      %v3854 = vshrl.u32 %v3592, 16
      %v3856 = vrot.slane %v3854, 7
      %v3857 = vshll.u32 %v3592, 16
      %v3859 = vor.u32 %v3856, %v3857
      %v3860 = vsel %vm1295, %v3852, %v3859
      %v3861 = vrot.slane %v3856, 4
      %v3863 = vshrl.u32 %v3593, 16
      %v3865 = vrot.slane %v3863, 7
      %v3866 = vshll.u32 %v3593, 16
      %v3868 = vor.u32 %v3865, %v3866
      %v3869 = vsel %vm1295, %v3861, %v3868
      %v3871 = vshrl.u32 %v3594, 16
      %v3873 = vrot.slane %v3871, 7
      %v3874 = vrot.slane %v3873, 4
      %v3876 = vshrl.u32 %v3595, 16
      %v3878 = vrot.slane %v3876, 7
      %v3879 = vshll.u32 %v3595, 16
      %v3881 = vor.u32 %v3878, %v3879
      %v3882 = vsel %vm1295, %v3874, %v3881
      %v3883 = vrot.slane %v3878, 4
      %v3885 = vshrl.u32 %v3596, 16
      %v3887 = vrot.slane %v3885, 7
      %v3888 = vshll.u32 %v3596, 16
      %v3890 = vor.u32 %v3887, %v3888
      %v3891 = vsel %vm1295, %v3883, %v3890
      %v3893 = vshrl.u32 %v3597, 16
      %v3895 = vrot.slane %v3893, 7
      %v3896 = vrot.slane %v3895, 4
      %v3898 = vshrl.u32 %v3598, 16
      %v3900 = vrot.slane %v3898, 7
      %v3901 = vshll.u32 %v3598, 16
      %v3903 = vor.u32 %v3900, %v3901
      %v3904 = vsel %vm1295, %v3896, %v3903
      %v3905 = vrot.slane %v3900, 4
      %v3907 = vshrl.u32 %v3599, 16
      %v3909 = vrot.slane %v3907, 7
      %v3910 = vshll.u32 %v3599, 16
      %v3912 = vor.u32 %v3909, %v3910
      %v3913 = vsel %vm1295, %v3905, %v3912
      %v3915 = vshrl.u32 %v3600, 16
      %v3917 = vrot.slane %v3915, 7
      %v3918 = vrot.slane %v3917, 4
      %v3920 = vshrl.u32 %v3601, 16
      %v3922 = vrot.slane %v3920, 7
      %v3923 = vshll.u32 %v3601, 16
      %v3925 = vor.u32 %v3922, %v3923
      %v3926 = vsel %vm1295, %v3918, %v3925
      %v3927 = vrot.slane %v3922, 4
      %v3929 = vshrl.u32 %v3602, 16
      %v3931 = vrot.slane %v3929, 7
      %v3932 = vshll.u32 %v3602, 16
      %v3934 = vor.u32 %v3931, %v3932
      %v3935 = vsel %vm1295, %v3927, %v3934
      %v3937 = vshrl.u32 %v3603, 16
      %v3939 = vrot.slane %v3937, 7
      %v3940 = vrot.slane %v3939, 4
      %v3942 = vshrl.u32 %v3604, 16
      %v3944 = vrot.slane %v3942, 7
      %v3945 = vshll.u32 %v3604, 16
      %v3947 = vor.u32 %v3944, %v3945
      %v3948 = vsel %vm1295, %v3940, %v3947
      %v3949 = vrot.slane %v3944, 4
      %v3951 = vshrl.u32 %v3605, 16
      %v3953 = vrot.slane %v3951, 7
      %v3954 = vshll.u32 %v3605, 16
      %v3956 = vor.u32 %v3953, %v3954
      %v3957 = vsel %vm1295, %v3949, %v3956
      %3990 = vst.msk [vmem:[#allocation4 + $0xc] sm:$0xf] %vm1680, %v3618
      %3991 = vst.msk [vmem:[#allocation4 + $0x20] sm:$0xf] %vm1680, %v3627
      %3992 = vst.msk [vmem:[#allocation4 + $0x34] sm:$0xf] %vm1680, %v3640
      %3993 = vst.msk [vmem:[#allocation4 + $0x48] sm:$0xf] %vm1680, %v3649
      %3994 = vst.msk [vmem:[#allocation4 + $0x5c] sm:$0xf] %vm1680, %v3662
      %3995 = vst.msk [vmem:[#allocation4 + $0x70] sm:$0xf] %vm1680, %v3671
      %3996 = vst.msk [vmem:[#allocation4 + $0x84] sm:$0xf] %vm1680, %v3684
      %3997 = vst.msk [vmem:[#allocation4 + $0x98] sm:$0xf] %vm1680, %v3693
      %3998 = vst.msk [vmem:[#allocation4 + $0xac] sm:$0xf] %vm1680, %v3706
      %3999 = vst.msk [vmem:[#allocation4 + $0xc0] sm:$0xf] %vm1680, %v3715
      %4000 = vst.msk [vmem:[#allocation4 + $0xd4] sm:$0xf] %vm1680, %v3728
      %4001 = vst.msk [vmem:[#allocation4 + $0xe8] sm:$0xf] %vm1680, %v3737
      %4002 = vst.msk [vmem:[#allocation4 + $0xfc] sm:$0xf] %vm1680, %v3750
      %4003 = vst.msk [vmem:[#allocation4 + $0x110] sm:$0xf] %vm1680, %v3759
      %4004 = vst.msk [vmem:[#allocation4 + $0x124] sm:$0xf] %vm1680, %v3772
      %4005 = vst.msk [vmem:[#allocation4 + $0x138] sm:$0xf] %vm1680, %v3781
      %4006 = vst.msk [vmem:[#allocation4 + $0x14c] sm:$0xf] %vm1680, %v3794
      %4007 = vst.msk [vmem:[#allocation4 + $0x160] sm:$0xf] %vm1680, %v3803
      %4008 = vst.msk [vmem:[#allocation4 + $0x174] sm:$0xf] %vm1680, %v3816
      %4009 = vst.msk [vmem:[#allocation4 + $0x188] sm:$0xf] %vm1680, %v3825
      %4010 = vst.msk [vmem:[#allocation4 + $0x19c] sm:$0xf] %vm1680, %v3838
      %4011 = vst.msk [vmem:[#allocation4 + $0x1b0] sm:$0xf] %vm1680, %v3847
      %4012 = vst.msk [vmem:[#allocation4 + $0x1c4] sm:$0xf] %vm1680, %v3860
      %4013 = vst.msk [vmem:[#allocation4 + $0x1d8] sm:$0xf] %vm1680, %v3869
      %4014 = vst.msk [vmem:[#allocation4 + $0x1ec] sm:$0xf] %vm1680, %v3882
      %4015 = vst.msk [vmem:[#allocation4 + $0x200] sm:$0xf] %vm1680, %v3891
      %4016 = vst.msk [vmem:[#allocation4 + $0x214] sm:$0xf] %vm1680, %v3904
      %4017 = vst.msk [vmem:[#allocation4 + $0x228] sm:$0xf] %vm1680, %v3913
      %4018 = vst.msk [vmem:[#allocation4 + $0x23c] sm:$0xf] %vm1680, %v3926
      %4019 = vst.msk [vmem:[#allocation4 + $0x250] sm:$0xf] %vm1680, %v3935
      %4020 = vst.msk [vmem:[#allocation4 + $0x264] sm:$0xf] %vm1680, %v3948
      %4021 = vst.msk [vmem:[#allocation4 + $0x278] sm:$0xf] %vm1680, %v3957
      %v4022 = vld [vmem:[%s3557 + $0x4] sm:$0xf]
      %v4023 = vld [vmem:[%s3557 + $0x8] sm:$0xf]
      %v4024 = vld [vmem:[%s3557 + $0x14] sm:$0xf]
      %v4025 = vld [vmem:[%s3557 + $0x18] sm:$0xf]
      %v4026 = vld [vmem:[%s3557 + $0x24] sm:$0xf]
      %v4027 = vld [vmem:[%s3557 + $0x28] sm:$0xf]
      %v4028 = vld [vmem:[%s3557 + $0x34] sm:$0xf]
      %v4029 = vld [vmem:[%s3557 + $0x38] sm:$0xf]
      %v4030 = vld [vmem:[%s3557 + $0x44] sm:$0xf]
      %v4031 = vld [vmem:[%s3557 + $0x48] sm:$0xf]
      %v4032 = vld [vmem:[%s3557 + $0x54] sm:$0xf]
      %v4033 = vld [vmem:[%s3557 + $0x58] sm:$0xf]
      %v4034 = vld [vmem:[%s3557 + $0x64] sm:$0xf]
      %v4035 = vld [vmem:[%s3557 + $0x68] sm:$0xf]
      %v4036 = vld [vmem:[%s3557 + $0x74] sm:$0xf]
      %v4037 = vld [vmem:[%s3557 + $0x78] sm:$0xf]
      %v4038 = vld [vmem:[%s3557 + $0x84] sm:$0xf]
      %v4039 = vld [vmem:[%s3557 + $0x88] sm:$0xf]
      %v4040 = vld [vmem:[%s3557 + $0x94] sm:$0xf]
      %v4041 = vld [vmem:[%s3557 + $0x98] sm:$0xf]
      %v4042 = vld [vmem:[%s3557 + $0xa4] sm:$0xf]
      %v4043 = vld [vmem:[%s3557 + $0xa8] sm:$0xf]
      %v4044 = vld [vmem:[%s3557 + $0xb4] sm:$0xf]
      %v4045 = vld [vmem:[%s3557 + $0xb8] sm:$0xf]
      %v4046 = vld [vmem:[%s3557 + $0xc4] sm:$0xf]
      %v4047 = vld [vmem:[%s3557 + $0xc8] sm:$0xf]
      %v4048 = vld [vmem:[%s3557 + $0xd4] sm:$0xf]
      %v4049 = vld [vmem:[%s3557 + $0xd8] sm:$0xf]
      %v4050 = vld [vmem:[%s3557 + $0xe4] sm:$0xf]
      %v4051 = vld [vmem:[%s3557 + $0xe8] sm:$0xf]
      %v4052 = vld [vmem:[%s3557 + $0xf4] sm:$0xf]
      %v4053 = vld [vmem:[%s3557 + $0xf8] sm:$0xf]
      %4086 = vrot.lane.b32.xlu0 %v4022, 64
      %v4087 = vpop.permute.xlu0 %4086
      %4088 = vrot.lane.b32.xlu0 %v4023, 64
      %v4089 = vpop.permute.xlu0 %4088
      %4090 = vrot.lane.b32.xlu0 %v4024, 64
      %v4091 = vpop.permute.xlu0 %4090
      %4092 = vrot.lane.b32.xlu0 %v4025, 64
      %v4093 = vpop.permute.xlu0 %4092
      %4094 = vrot.lane.b32.xlu0 %v4026, 64
      %v4095 = vpop.permute.xlu0 %4094
      %4096 = vrot.lane.b32.xlu0 %v4027, 64
      %v4097 = vpop.permute.xlu0 %4096
      %4098 = vrot.lane.b32.xlu0 %v4028, 64
      %v4099 = vpop.permute.xlu0 %4098
      %4100 = vrot.lane.b32.xlu0 %v4029, 64
      %v4101 = vpop.permute.xlu0 %4100
      %4102 = vrot.lane.b32.xlu0 %v4030, 64
      %v4103 = vpop.permute.xlu0 %4102
      %4104 = vrot.lane.b32.xlu0 %v4031, 64
      %v4105 = vpop.permute.xlu0 %4104
      %4106 = vrot.lane.b32.xlu0 %v4032, 64
      %v4107 = vpop.permute.xlu0 %4106
      %4108 = vrot.lane.b32.xlu0 %v4033, 64
      %v4109 = vpop.permute.xlu0 %4108
      %4110 = vrot.lane.b32.xlu0 %v4034, 64
      %v4111 = vpop.permute.xlu0 %4110
      %4112 = vrot.lane.b32.xlu0 %v4035, 64
      %v4113 = vpop.permute.xlu0 %4112
      %4114 = vrot.lane.b32.xlu0 %v4036, 64
      %v4115 = vpop.permute.xlu0 %4114
      %4116 = vrot.lane.b32.xlu0 %v4037, 64
      %v4117 = vpop.permute.xlu0 %4116
      %4118 = vrot.lane.b32.xlu0 %v4038, 64
      %v4119 = vpop.permute.xlu0 %4118
      %4120 = vrot.lane.b32.xlu0 %v4039, 64
      %v4121 = vpop.permute.xlu0 %4120
      %4122 = vrot.lane.b32.xlu0 %v4040, 64
      %v4123 = vpop.permute.xlu0 %4122
      %4124 = vrot.lane.b32.xlu0 %v4041, 64
      %v4125 = vpop.permute.xlu0 %4124
      %4126 = vrot.lane.b32.xlu0 %v4042, 64
      %v4127 = vpop.permute.xlu0 %4126
      %4128 = vrot.lane.b32.xlu0 %v4043, 64
      %v4129 = vpop.permute.xlu0 %4128
      %4130 = vrot.lane.b32.xlu0 %v4044, 64
      %v4131 = vpop.permute.xlu0 %4130
      %4132 = vrot.lane.b32.xlu0 %v4045, 64
      %v4133 = vpop.permute.xlu0 %4132
      %4134 = vrot.lane.b32.xlu0 %v4046, 64
      %v4135 = vpop.permute.xlu0 %4134
      %4136 = vrot.lane.b32.xlu0 %v4047, 64
      %v4137 = vpop.permute.xlu0 %4136
      %4138 = vrot.lane.b32.xlu0 %v4048, 64
      %v4139 = vpop.permute.xlu0 %4138
      %4140 = vrot.lane.b32.xlu0 %v4049, 64
      %v4141 = vpop.permute.xlu0 %4140
      %4142 = vrot.lane.b32.xlu0 %v4050, 64
      %v4143 = vpop.permute.xlu0 %4142
      %4144 = vrot.lane.b32.xlu0 %v4051, 64
      %v4145 = vpop.permute.xlu0 %4144
      %4146 = vrot.lane.b32.xlu0 %v4052, 64
      %v4147 = vpop.permute.xlu0 %4146
      %4148 = vrot.lane.b32.xlu0 %v4053, 64
      %v4149 = vpop.permute.xlu0 %4148
      %4182 = vst.msk [vmem:[#allocation4 + $0xc] sm:$0xf] %vm1873, %v4087
      %4183 = vst.msk [vmem:[#allocation4 + $0x20] sm:$0xf] %vm1873, %v4089
      %4184 = vst.msk [vmem:[#allocation4 + $0x34] sm:$0xf] %vm1873, %v4091
      %4185 = vst.msk [vmem:[#allocation4 + $0x48] sm:$0xf] %vm1873, %v4093
      %4186 = vst.msk [vmem:[#allocation4 + $0x5c] sm:$0xf] %vm1873, %v4095
      %4187 = vst.msk [vmem:[#allocation4 + $0x70] sm:$0xf] %vm1873, %v4097
      %4188 = vst.msk [vmem:[#allocation4 + $0x84] sm:$0xf] %vm1873, %v4099
      %4189 = vst.msk [vmem:[#allocation4 + $0x98] sm:$0xf] %vm1873, %v4101
      %4190 = vst.msk [vmem:[#allocation4 + $0xac] sm:$0xf] %vm1873, %v4103
      %4191 = vst.msk [vmem:[#allocation4 + $0xc0] sm:$0xf] %vm1873, %v4105
      %4192 = vst.msk [vmem:[#allocation4 + $0xd4] sm:$0xf] %vm1873, %v4107
      %4193 = vst.msk [vmem:[#allocation4 + $0xe8] sm:$0xf] %vm1873, %v4109
      %4194 = vst.msk [vmem:[#allocation4 + $0xfc] sm:$0xf] %vm1873, %v4111
      %4195 = vst.msk [vmem:[#allocation4 + $0x110] sm:$0xf] %vm1873, %v4113
      %4196 = vst.msk [vmem:[#allocation4 + $0x124] sm:$0xf] %vm1873, %v4115
      %4197 = vst.msk [vmem:[#allocation4 + $0x138] sm:$0xf] %vm1873, %v4117
      %4198 = vst.msk [vmem:[#allocation4 + $0x14c] sm:$0xf] %vm1873, %v4119
      %4199 = vst.msk [vmem:[#allocation4 + $0x160] sm:$0xf] %vm1873, %v4121
      %4200 = vst.msk [vmem:[#allocation4 + $0x174] sm:$0xf] %vm1873, %v4123
      %4201 = vst.msk [vmem:[#allocation4 + $0x188] sm:$0xf] %vm1873, %v4125
      %4202 = vst.msk [vmem:[#allocation4 + $0x19c] sm:$0xf] %vm1873, %v4127
      %4203 = vst.msk [vmem:[#allocation4 + $0x1b0] sm:$0xf] %vm1873, %v4129
      %4204 = vst.msk [vmem:[#allocation4 + $0x1c4] sm:$0xf] %vm1873, %v4131
      %4205 = vst.msk [vmem:[#allocation4 + $0x1d8] sm:$0xf] %vm1873, %v4133
      %4206 = vst.msk [vmem:[#allocation4 + $0x1ec] sm:$0xf] %vm1873, %v4135
      %4207 = vst.msk [vmem:[#allocation4 + $0x200] sm:$0xf] %vm1873, %v4137
      %4208 = vst.msk [vmem:[#allocation4 + $0x214] sm:$0xf] %vm1873, %v4139
      %4209 = vst.msk [vmem:[#allocation4 + $0x228] sm:$0xf] %vm1873, %v4141
      %4210 = vst.msk [vmem:[#allocation4 + $0x23c] sm:$0xf] %vm1873, %v4143
      %4211 = vst.msk [vmem:[#allocation4 + $0x250] sm:$0xf] %vm1873, %v4145
      %4212 = vst.msk [vmem:[#allocation4 + $0x264] sm:$0xf] %vm1873, %v4147
      %4213 = vst.msk [vmem:[#allocation4 + $0x278] sm:$0xf] %vm1873, %v4149
      %v4214 = vld [vmem:[%s3557 + $0x4] sm:$0xf]
      %v4215 = vld [vmem:[%s3557 + $0x8] sm:$0xf]
      %v4216 = vld [vmem:[%s3557 + $0xc] sm:$0x1]
      %v4217 = vld [vmem:[%s3557 + $0x14] sm:$0xf]
      %v4218 = vld [vmem:[%s3557 + $0x18] sm:$0xf]
      %v4219 = vld [vmem:[%s3557 + $0x1c] sm:$0x1]
      %v4220 = vld [vmem:[%s3557 + $0x24] sm:$0xf]
      %v4221 = vld [vmem:[%s3557 + $0x28] sm:$0xf]
      %v4222 = vld [vmem:[%s3557 + $0x2c] sm:$0x1]
      %v4223 = vld [vmem:[%s3557 + $0x34] sm:$0xf]
      %v4224 = vld [vmem:[%s3557 + $0x38] sm:$0xf]
      %v4225 = vld [vmem:[%s3557 + $0x3c] sm:$0x1]
      %v4226 = vld [vmem:[%s3557 + $0x44] sm:$0xf]
      %v4227 = vld [vmem:[%s3557 + $0x48] sm:$0xf]
      %v4228 = vld [vmem:[%s3557 + $0x4c] sm:$0x1]
      %v4229 = vld [vmem:[%s3557 + $0x54] sm:$0xf]
      %v4230 = vld [vmem:[%s3557 + $0x58] sm:$0xf]
      %v4231 = vld [vmem:[%s3557 + $0x5c] sm:$0x1]
      %v4232 = vld [vmem:[%s3557 + $0x64] sm:$0xf]
      %v4233 = vld [vmem:[%s3557 + $0x68] sm:$0xf]
      %v4234 = vld [vmem:[%s3557 + $0x6c] sm:$0x1]
      %v4235 = vld [vmem:[%s3557 + $0x74] sm:$0xf]
      %v4236 = vld [vmem:[%s3557 + $0x78] sm:$0xf]
      %v4237 = vld [vmem:[%s3557 + $0x7c] sm:$0x1]
      %v4238 = vld [vmem:[%s3557 + $0x84] sm:$0xf]
      %v4239 = vld [vmem:[%s3557 + $0x88] sm:$0xf]
      %v4240 = vld [vmem:[%s3557 + $0x8c] sm:$0x1]
      %v4241 = vld [vmem:[%s3557 + $0x94] sm:$0xf]
      %v4242 = vld [vmem:[%s3557 + $0x98] sm:$0xf]
      %v4243 = vld [vmem:[%s3557 + $0x9c] sm:$0x1]
      %v4244 = vld [vmem:[%s3557 + $0xa4] sm:$0xf]
      %v4245 = vld [vmem:[%s3557 + $0xa8] sm:$0xf]
      %v4246 = vld [vmem:[%s3557 + $0xac] sm:$0x1]
      %v4247 = vld [vmem:[%s3557 + $0xb4] sm:$0xf]
      %v4248 = vld [vmem:[%s3557 + $0xb8] sm:$0xf]
      %v4249 = vld [vmem:[%s3557 + $0xbc] sm:$0x1]
      %v4250 = vld [vmem:[%s3557 + $0xc4] sm:$0xf]
      %v4251 = vld [vmem:[%s3557 + $0xc8] sm:$0xf]
      %v4252 = vld [vmem:[%s3557 + $0xcc] sm:$0x1]
      %v4253 = vld [vmem:[%s3557 + $0xd4] sm:$0xf]
      %v4254 = vld [vmem:[%s3557 + $0xd8] sm:$0xf]
      %v4255 = vld [vmem:[%s3557 + $0xdc] sm:$0x1]
      %v4256 = vld [vmem:[%s3557 + $0xe4] sm:$0xf]
      %v4257 = vld [vmem:[%s3557 + $0xe8] sm:$0xf]
      %v4258 = vld [vmem:[%s3557 + $0xec] sm:$0x1]
      %v4259 = vld [vmem:[%s3557 + $0xf4] sm:$0xf]
      %v4260 = vld [vmem:[%s3557 + $0xf8] sm:$0xf]
      %v4261 = vld [vmem:[%s3557 + $0xfc] sm:$0x1]
      %v4263 = vshrl.u32 %v4214, 16
      %v4265 = vrot.slane %v4263, 4
      %v4266 = vshll.u32 %v4214, 16
      %v4268 = vrot.slane %v4266, 5
      %v4269 = vor.u32 %v4265, %v4268
      %v4270 = vrot.slane %v4269, 4
      %v4272 = vshll.u32 %v4215, 16
      %v4274 = vrot.slane %v4272, 5
      %v4275 = vsel %vm1956, %v4270, %v4274
      %v4276 = vshrl.u32 %v4215, 16
      %v4278 = vrot.slane %v4276, 4
      %v4279 = vor.u32 %v4278, %v4274
      %v4280 = vrot.slane %v4279, 4
      %v4282 = vshll.u32 %v4216, 16
      %v4284 = vrot.slane %v4282, 5
      %v4285 = vsel %vm1956, %v4280, %v4284
      %v4287 = vshrl.u32 %v4217, 16
      %v4289 = vrot.slane %v4287, 4
      %v4290 = vshll.u32 %v4217, 16
      %v4292 = vrot.slane %v4290, 5
      %v4293 = vor.u32 %v4289, %v4292
      %v4294 = vrot.slane %v4293, 4
      %v4296 = vshll.u32 %v4218, 16
      %v4298 = vrot.slane %v4296, 5
      %v4299 = vsel %vm1956, %v4294, %v4298
      %v4300 = vshrl.u32 %v4218, 16
      %v4302 = vrot.slane %v4300, 4
      %v4303 = vor.u32 %v4302, %v4298
      %v4304 = vrot.slane %v4303, 4
      %v4306 = vshll.u32 %v4219, 16
      %v4308 = vrot.slane %v4306, 5
      %v4309 = vsel %vm1956, %v4304, %v4308
      %v4311 = vshrl.u32 %v4220, 16
      %v4313 = vrot.slane %v4311, 4
      %v4314 = vshll.u32 %v4220, 16
      %v4316 = vrot.slane %v4314, 5
      %v4317 = vor.u32 %v4313, %v4316
      %v4318 = vrot.slane %v4317, 4
      %v4320 = vshll.u32 %v4221, 16
      %v4322 = vrot.slane %v4320, 5
      %v4323 = vsel %vm1956, %v4318, %v4322
      %v4324 = vshrl.u32 %v4221, 16
      %v4326 = vrot.slane %v4324, 4
      %v4327 = vor.u32 %v4326, %v4322
      %v4328 = vrot.slane %v4327, 4
      %v4330 = vshll.u32 %v4222, 16
      %v4332 = vrot.slane %v4330, 5
      %v4333 = vsel %vm1956, %v4328, %v4332
      %v4335 = vshrl.u32 %v4223, 16
      %v4337 = vrot.slane %v4335, 4
      %v4338 = vshll.u32 %v4223, 16
      %v4340 = vrot.slane %v4338, 5
      %v4341 = vor.u32 %v4337, %v4340
      %v4342 = vrot.slane %v4341, 4
      %v4344 = vshll.u32 %v4224, 16
      %v4346 = vrot.slane %v4344, 5
      %v4347 = vsel %vm1956, %v4342, %v4346
      %v4348 = vshrl.u32 %v4224, 16
      %v4350 = vrot.slane %v4348, 4
      %v4351 = vor.u32 %v4350, %v4346
      %v4352 = vrot.slane %v4351, 4
      %v4354 = vshll.u32 %v4225, 16
      %v4356 = vrot.slane %v4354, 5
      %v4357 = vsel %vm1956, %v4352, %v4356
      %v4359 = vshrl.u32 %v4226, 16
      %v4361 = vrot.slane %v4359, 4
      %v4362 = vshll.u32 %v4226, 16
      %v4364 = vrot.slane %v4362, 5
      %v4365 = vor.u32 %v4361, %v4364
      %v4366 = vrot.slane %v4365, 4
      %v4368 = vshll.u32 %v4227, 16
      %v4370 = vrot.slane %v4368, 5
      %v4371 = vsel %vm1956, %v4366, %v4370
      %v4372 = vshrl.u32 %v4227, 16
      %v4374 = vrot.slane %v4372, 4
      %v4375 = vor.u32 %v4374, %v4370
      %v4376 = vrot.slane %v4375, 4
      %v4378 = vshll.u32 %v4228, 16
      %v4380 = vrot.slane %v4378, 5
      %v4381 = vsel %vm1956, %v4376, %v4380
      %v4383 = vshrl.u32 %v4229, 16
      %v4385 = vrot.slane %v4383, 4
      %v4386 = vshll.u32 %v4229, 16
      %v4388 = vrot.slane %v4386, 5
      %v4389 = vor.u32 %v4385, %v4388
      %v4390 = vrot.slane %v4389, 4
      %v4392 = vshll.u32 %v4230, 16
      %v4394 = vrot.slane %v4392, 5
      %v4395 = vsel %vm1956, %v4390, %v4394
      %v4396 = vshrl.u32 %v4230, 16
      %v4398 = vrot.slane %v4396, 4
      %v4399 = vor.u32 %v4398, %v4394
      %v4400 = vrot.slane %v4399, 4
      %v4402 = vshll.u32 %v4231, 16
      %v4404 = vrot.slane %v4402, 5
      %v4405 = vsel %vm1956, %v4400, %v4404
      %v4407 = vshrl.u32 %v4232, 16
      %v4409 = vrot.slane %v4407, 4
      %v4410 = vshll.u32 %v4232, 16
      %v4412 = vrot.slane %v4410, 5
      %v4413 = vor.u32 %v4409, %v4412
      %v4414 = vrot.slane %v4413, 4
      %v4416 = vshll.u32 %v4233, 16
      %v4418 = vrot.slane %v4416, 5
      %v4419 = vsel %vm1956, %v4414, %v4418
      %v4420 = vshrl.u32 %v4233, 16
      %v4422 = vrot.slane %v4420, 4
      %v4423 = vor.u32 %v4422, %v4418
      %v4424 = vrot.slane %v4423, 4
      %v4426 = vshll.u32 %v4234, 16
      %v4428 = vrot.slane %v4426, 5
      %v4429 = vsel %vm1956, %v4424, %v4428
      %v4431 = vshrl.u32 %v4235, 16
      %v4433 = vrot.slane %v4431, 4
      %v4434 = vshll.u32 %v4235, 16
      %v4436 = vrot.slane %v4434, 5
      %v4437 = vor.u32 %v4433, %v4436
      %v4438 = vrot.slane %v4437, 4
      %v4440 = vshll.u32 %v4236, 16
      %v4442 = vrot.slane %v4440, 5
      %v4443 = vsel %vm1956, %v4438, %v4442
      %v4444 = vshrl.u32 %v4236, 16
      %v4446 = vrot.slane %v4444, 4
      %v4447 = vor.u32 %v4446, %v4442
      %v4448 = vrot.slane %v4447, 4
      %v4450 = vshll.u32 %v4237, 16
      %v4452 = vrot.slane %v4450, 5
      %v4453 = vsel %vm1956, %v4448, %v4452
      %v4455 = vshrl.u32 %v4238, 16
      %v4457 = vrot.slane %v4455, 4
      %v4458 = vshll.u32 %v4238, 16
      %v4460 = vrot.slane %v4458, 5
      %v4461 = vor.u32 %v4457, %v4460
      %v4462 = vrot.slane %v4461, 4
      %v4464 = vshll.u32 %v4239, 16
      %v4466 = vrot.slane %v4464, 5
      %v4467 = vsel %vm1956, %v4462, %v4466
      %v4468 = vshrl.u32 %v4239, 16
      %v4470 = vrot.slane %v4468, 4
      %v4471 = vor.u32 %v4470, %v4466
      %v4472 = vrot.slane %v4471, 4
      %v4474 = vshll.u32 %v4240, 16
      %v4476 = vrot.slane %v4474, 5
      %v4477 = vsel %vm1956, %v4472, %v4476
      %v4479 = vshrl.u32 %v4241, 16
      %v4481 = vrot.slane %v4479, 4
      %v4482 = vshll.u32 %v4241, 16
      %v4484 = vrot.slane %v4482, 5
      %v4485 = vor.u32 %v4481, %v4484
      %v4486 = vrot.slane %v4485, 4
      %v4488 = vshll.u32 %v4242, 16
      %v4490 = vrot.slane %v4488, 5
      %v4491 = vsel %vm1956, %v4486, %v4490
      %v4492 = vshrl.u32 %v4242, 16
      %v4494 = vrot.slane %v4492, 4
      %v4495 = vor.u32 %v4494, %v4490
      %v4496 = vrot.slane %v4495, 4
      %v4498 = vshll.u32 %v4243, 16
      %v4500 = vrot.slane %v4498, 5
      %v4501 = vsel %vm1956, %v4496, %v4500
      %v4503 = vshrl.u32 %v4244, 16
      %v4505 = vrot.slane %v4503, 4
      %v4506 = vshll.u32 %v4244, 16
      %v4508 = vrot.slane %v4506, 5
      %v4509 = vor.u32 %v4505, %v4508
      %v4510 = vrot.slane %v4509, 4
      %v4512 = vshll.u32 %v4245, 16
      %v4514 = vrot.slane %v4512, 5
      %v4515 = vsel %vm1956, %v4510, %v4514
      %v4516 = vshrl.u32 %v4245, 16
      %v4518 = vrot.slane %v4516, 4
      %v4519 = vor.u32 %v4518, %v4514
      %v4520 = vrot.slane %v4519, 4
      %v4522 = vshll.u32 %v4246, 16
      %v4524 = vrot.slane %v4522, 5
      %v4525 = vsel %vm1956, %v4520, %v4524
      %v4527 = vshrl.u32 %v4247, 16
      %v4529 = vrot.slane %v4527, 4
      %v4530 = vshll.u32 %v4247, 16
      %v4532 = vrot.slane %v4530, 5
      %v4533 = vor.u32 %v4529, %v4532
      %v4534 = vrot.slane %v4533, 4
      %v4536 = vshll.u32 %v4248, 16
      %v4538 = vrot.slane %v4536, 5
      %v4539 = vsel %vm1956, %v4534, %v4538
      %v4540 = vshrl.u32 %v4248, 16
      %v4542 = vrot.slane %v4540, 4
      %v4543 = vor.u32 %v4542, %v4538
      %v4544 = vrot.slane %v4543, 4
      %v4546 = vshll.u32 %v4249, 16
      %v4548 = vrot.slane %v4546, 5
      %v4549 = vsel %vm1956, %v4544, %v4548
      %v4551 = vshrl.u32 %v4250, 16
      %v4553 = vrot.slane %v4551, 4
      %v4554 = vshll.u32 %v4250, 16
      %v4556 = vrot.slane %v4554, 5
      %v4557 = vor.u32 %v4553, %v4556
      %v4558 = vrot.slane %v4557, 4
      %v4560 = vshll.u32 %v4251, 16
      %v4562 = vrot.slane %v4560, 5
      %v4563 = vsel %vm1956, %v4558, %v4562
      %v4564 = vshrl.u32 %v4251, 16
      %v4566 = vrot.slane %v4564, 4
      %v4567 = vor.u32 %v4566, %v4562
      %v4568 = vrot.slane %v4567, 4
      %v4570 = vshll.u32 %v4252, 16
      %v4572 = vrot.slane %v4570, 5
      %v4573 = vsel %vm1956, %v4568, %v4572
      %v4575 = vshrl.u32 %v4253, 16
      %v4577 = vrot.slane %v4575, 4
      %v4578 = vshll.u32 %v4253, 16
      %v4580 = vrot.slane %v4578, 5
      %v4581 = vor.u32 %v4577, %v4580
      %v4582 = vrot.slane %v4581, 4
      %v4584 = vshll.u32 %v4254, 16
      %v4586 = vrot.slane %v4584, 5
      %v4587 = vsel %vm1956, %v4582, %v4586
      %v4588 = vshrl.u32 %v4254, 16
      %v4590 = vrot.slane %v4588, 4
      %v4591 = vor.u32 %v4590, %v4586
      %v4592 = vrot.slane %v4591, 4
      %v4594 = vshll.u32 %v4255, 16
      %v4596 = vrot.slane %v4594, 5
      %v4597 = vsel %vm1956, %v4592, %v4596
      %v4599 = vshrl.u32 %v4256, 16
      %v4601 = vrot.slane %v4599, 4
      %v4602 = vshll.u32 %v4256, 16
      %v4604 = vrot.slane %v4602, 5
      %v4605 = vor.u32 %v4601, %v4604
      %v4606 = vrot.slane %v4605, 4
      %v4608 = vshll.u32 %v4257, 16
      %v4610 = vrot.slane %v4608, 5
      %v4611 = vsel %vm1956, %v4606, %v4610
      %v4612 = vshrl.u32 %v4257, 16
      %v4614 = vrot.slane %v4612, 4
      %v4615 = vor.u32 %v4614, %v4610
      %v4616 = vrot.slane %v4615, 4
      %v4618 = vshll.u32 %v4258, 16
      %v4620 = vrot.slane %v4618, 5
      %v4621 = vsel %vm1956, %v4616, %v4620
      %v4623 = vshrl.u32 %v4259, 16
      %v4625 = vrot.slane %v4623, 4
      %v4626 = vshll.u32 %v4259, 16
      %v4628 = vrot.slane %v4626, 5
      %v4629 = vor.u32 %v4625, %v4628
      %v4630 = vrot.slane %v4629, 4
      %v4632 = vshll.u32 %v4260, 16
      %v4634 = vrot.slane %v4632, 5
      %v4635 = vsel %vm1956, %v4630, %v4634
      %v4636 = vshrl.u32 %v4260, 16
      %v4638 = vrot.slane %v4636, 4
      %v4639 = vor.u32 %v4638, %v4634
      %v4640 = vrot.slane %v4639, 4
      %v4642 = vshll.u32 %v4261, 16
      %v4644 = vrot.slane %v4642, 5
      %v4645 = vsel %vm1956, %v4640, %v4644
      %4678 = vst.msk [vmem:[#allocation4 + $0x10] sm:$0xf] %vm1680, %v4275
      %4679 = vst.msk [vmem:[#allocation4 + $0x24] sm:$0xf] %vm1680, %v4285
      %4680 = vst.msk [vmem:[#allocation4 + $0x38] sm:$0xf] %vm1680, %v4299
      %4681 = vst.msk [vmem:[#allocation4 + $0x4c] sm:$0xf] %vm1680, %v4309
      %4682 = vst.msk [vmem:[#allocation4 + $0x60] sm:$0xf] %vm1680, %v4323
      %4683 = vst.msk [vmem:[#allocation4 + $0x74] sm:$0xf] %vm1680, %v4333
      %4684 = vst.msk [vmem:[#allocation4 + $0x88] sm:$0xf] %vm1680, %v4347
      %4685 = vst.msk [vmem:[#allocation4 + $0x9c] sm:$0xf] %vm1680, %v4357
      %4686 = vst.msk [vmem:[#allocation4 + $0xb0] sm:$0xf] %vm1680, %v4371
      %4687 = vst.msk [vmem:[#allocation4 + $0xc4] sm:$0xf] %vm1680, %v4381
      %4688 = vst.msk [vmem:[#allocation4 + $0xd8] sm:$0xf] %vm1680, %v4395
      %4689 = vst.msk [vmem:[#allocation4 + $0xec] sm:$0xf] %vm1680, %v4405
      %4690 = vst.msk [vmem:[#allocation4 + $0x100] sm:$0xf] %vm1680, %v4419
      %4691 = vst.msk [vmem:[#allocation4 + $0x114] sm:$0xf] %vm1680, %v4429
      %4692 = vst.msk [vmem:[#allocation4 + $0x128] sm:$0xf] %vm1680, %v4443
      %4693 = vst.msk [vmem:[#allocation4 + $0x13c] sm:$0xf] %vm1680, %v4453
      %4694 = vst.msk [vmem:[#allocation4 + $0x150] sm:$0xf] %vm1680, %v4467
      %4695 = vst.msk [vmem:[#allocation4 + $0x164] sm:$0xf] %vm1680, %v4477
      %4696 = vst.msk [vmem:[#allocation4 + $0x178] sm:$0xf] %vm1680, %v4491
      %4697 = vst.msk [vmem:[#allocation4 + $0x18c] sm:$0xf] %vm1680, %v4501
      %4698 = vst.msk [vmem:[#allocation4 + $0x1a0] sm:$0xf] %vm1680, %v4515
      %4699 = vst.msk [vmem:[#allocation4 + $0x1b4] sm:$0xf] %vm1680, %v4525
      %4700 = vst.msk [vmem:[#allocation4 + $0x1c8] sm:$0xf] %vm1680, %v4539
      %4701 = vst.msk [vmem:[#allocation4 + $0x1dc] sm:$0xf] %vm1680, %v4549
      %4702 = vst.msk [vmem:[#allocation4 + $0x1f0] sm:$0xf] %vm1680, %v4563
      %4703 = vst.msk [vmem:[#allocation4 + $0x204] sm:$0xf] %vm1680, %v4573
      %4704 = vst.msk [vmem:[#allocation4 + $0x218] sm:$0xf] %vm1680, %v4587
      %4705 = vst.msk [vmem:[#allocation4 + $0x22c] sm:$0xf] %vm1680, %v4597
      %4706 = vst.msk [vmem:[#allocation4 + $0x240] sm:$0xf] %vm1680, %v4611
      %4707 = vst.msk [vmem:[#allocation4 + $0x254] sm:$0xf] %vm1680, %v4621
      %4708 = vst.msk [vmem:[#allocation4 + $0x268] sm:$0xf] %vm1680, %v4635
      %4709 = vst.msk [vmem:[#allocation4 + $0x27c] sm:$0xf] %vm1680, %v4645
      %v4710 = vld [vmem:[#allocation4] sm:$0xff]
      %v4711 = vld [vmem:[#allocation4 + $0x8] sm:$0xff]
      %v4712 = vld [vmem:[#allocation4 + $0x10] sm:$0xf]
      %v4713 = vld [vmem:[#allocation4 + $0x14] sm:$0xff]
      %v4714 = vld [vmem:[#allocation4 + $0x1c] sm:$0xff]
      %v4715 = vld [vmem:[#allocation4 + $0x24] sm:$0xf]
      %v4716 = vld [vmem:[#allocation4 + $0x28] sm:$0xff]
      %v4717 = vld [vmem:[#allocation4 + $0x30] sm:$0xff]
      %v4718 = vld [vmem:[#allocation4 + $0x38] sm:$0xf]
      %v4719 = vld [vmem:[#allocation4 + $0x3c] sm:$0xff]
      %v4720 = vld [vmem:[#allocation4 + $0x44] sm:$0xff]
      %v4721 = vld [vmem:[#allocation4 + $0x4c] sm:$0xf]
      %v4722 = vld [vmem:[#allocation4 + $0x50] sm:$0xff]
      %v4723 = vld [vmem:[#allocation4 + $0x58] sm:$0xff]
      %v4724 = vld [vmem:[#allocation4 + $0x60] sm:$0xf]
      %v4725 = vld [vmem:[#allocation4 + $0x64] sm:$0xff]
      %v4726 = vld [vmem:[#allocation4 + $0x6c] sm:$0xff]
      %v4727 = vld [vmem:[#allocation4 + $0x74] sm:$0xf]
      %v4728 = vld [vmem:[#allocation4 + $0x78] sm:$0xff]
      %v4729 = vld [vmem:[#allocation4 + $0x80] sm:$0xff]
      %v4730 = vld [vmem:[#allocation4 + $0x88] sm:$0xf]
      %v4731 = vld [vmem:[#allocation4 + $0x8c] sm:$0xff]
      %v4732 = vld [vmem:[#allocation4 + $0x94] sm:$0xff]
      %v4733 = vld [vmem:[#allocation4 + $0x9c] sm:$0xf]
      %v4734 = vld [vmem:[#allocation4 + $0xa0] sm:$0xff]
      %v4735 = vld [vmem:[#allocation4 + $0xa8] sm:$0xff]
      %v4736 = vld [vmem:[#allocation4 + $0xb0] sm:$0xf]
      %v4737 = vld [vmem:[#allocation4 + $0xb4] sm:$0xff]
      %v4738 = vld [vmem:[#allocation4 + $0xbc] sm:$0xff]
      %v4739 = vld [vmem:[#allocation4 + $0xc4] sm:$0xf]
      %v4740 = vld [vmem:[#allocation4 + $0xc8] sm:$0xff]
      %v4741 = vld [vmem:[#allocation4 + $0xd0] sm:$0xff]
      %v4742 = vld [vmem:[#allocation4 + $0xd8] sm:$0xf]
      %v4743 = vld [vmem:[#allocation4 + $0xdc] sm:$0xff]
      %v4744 = vld [vmem:[#allocation4 + $0xe4] sm:$0xff]
      %v4745 = vld [vmem:[#allocation4 + $0xec] sm:$0xf]
      %v4746 = vld [vmem:[#allocation4 + $0xf0] sm:$0xff]
      %v4747 = vld [vmem:[#allocation4 + $0xf8] sm:$0xff]
      %v4748 = vld [vmem:[#allocation4 + $0x100] sm:$0xf]
      %v4749 = vld [vmem:[#allocation4 + $0x104] sm:$0xff]
      %v4750 = vld [vmem:[#allocation4 + $0x10c] sm:$0xff]
      %v4751 = vld [vmem:[#allocation4 + $0x114] sm:$0xf]
      %v4752 = vld [vmem:[#allocation4 + $0x118] sm:$0xff]
      %v4753 = vld [vmem:[#allocation4 + $0x120] sm:$0xff]
      %v4754 = vld [vmem:[#allocation4 + $0x128] sm:$0xf]
      %v4755 = vld [vmem:[#allocation4 + $0x12c] sm:$0xff]
      %v4756 = vld [vmem:[#allocation4 + $0x134] sm:$0xff]
      %v4757 = vld [vmem:[#allocation4 + $0x13c] sm:$0xf]
      %v4758 = vld [vmem:[#allocation4 + $0x140] sm:$0xff]
      %v4759 = vld [vmem:[#allocation4 + $0x148] sm:$0xff]
      %v4760 = vld [vmem:[#allocation4 + $0x150] sm:$0xf]
      %v4761 = vld [vmem:[#allocation4 + $0x154] sm:$0xff]
      %v4762 = vld [vmem:[#allocation4 + $0x15c] sm:$0xff]
      %v4763 = vld [vmem:[#allocation4 + $0x164] sm:$0xf]
      %v4764 = vld [vmem:[#allocation4 + $0x168] sm:$0xff]
      %v4765 = vld [vmem:[#allocation4 + $0x170] sm:$0xff]
      %v4766 = vld [vmem:[#allocation4 + $0x178] sm:$0xf]
      %v4767 = vld [vmem:[#allocation4 + $0x17c] sm:$0xff]
      %v4768 = vld [vmem:[#allocation4 + $0x184] sm:$0xff]
      %v4769 = vld [vmem:[#allocation4 + $0x18c] sm:$0xf]
      %v4770 = vld [vmem:[#allocation4 + $0x190] sm:$0xff]
      %v4771 = vld [vmem:[#allocation4 + $0x198] sm:$0xff]
      %v4772 = vld [vmem:[#allocation4 + $0x1a0] sm:$0xf]
      %v4773 = vld [vmem:[#allocation4 + $0x1a4] sm:$0xff]
      %v4774 = vld [vmem:[#allocation4 + $0x1ac] sm:$0xff]
      %v4775 = vld [vmem:[#allocation4 + $0x1b4] sm:$0xf]
      %v4776 = vld [vmem:[#allocation4 + $0x1b8] sm:$0xff]
      %v4777 = vld [vmem:[#allocation4 + $0x1c0] sm:$0xff]
      %v4778 = vld [vmem:[#allocation4 + $0x1c8] sm:$0xf]
      %v4779 = vld [vmem:[#allocation4 + $0x1cc] sm:$0xff]
      %v4780 = vld [vmem:[#allocation4 + $0x1d4] sm:$0xff]
      %v4781 = vld [vmem:[#allocation4 + $0x1dc] sm:$0xf]
      %v4782 = vld [vmem:[#allocation4 + $0x1e0] sm:$0xff]
      %v4783 = vld [vmem:[#allocation4 + $0x1e8] sm:$0xff]
      %v4784 = vld [vmem:[#allocation4 + $0x1f0] sm:$0xf]
      %v4785 = vld [vmem:[#allocation4 + $0x1f4] sm:$0xff]
      %v4786 = vld [vmem:[#allocation4 + $0x1fc] sm:$0xff]
      %v4787 = vld [vmem:[#allocation4 + $0x204] sm:$0xf]
      %v4788 = vld [vmem:[#allocation4 + $0x208] sm:$0xff]
      %v4789 = vld [vmem:[#allocation4 + $0x210] sm:$0xff]
      %v4790 = vld [vmem:[#allocation4 + $0x218] sm:$0xf]
      %v4791 = vld [vmem:[#allocation4 + $0x21c] sm:$0xff]
      %v4792 = vld [vmem:[#allocation4 + $0x224] sm:$0xff]
      %v4793 = vld [vmem:[#allocation4 + $0x22c] sm:$0xf]
      %v4794 = vld [vmem:[#allocation4 + $0x230] sm:$0xff]
      %v4795 = vld [vmem:[#allocation4 + $0x238] sm:$0xff]
      %v4796 = vld [vmem:[#allocation4 + $0x240] sm:$0xf]
      %v4797 = vld [vmem:[#allocation4 + $0x244] sm:$0xff]
      %v4798 = vld [vmem:[#allocation4 + $0x24c] sm:$0xff]
      %v4799 = vld [vmem:[#allocation4 + $0x254] sm:$0xf]
      %v4800 = vld [vmem:[#allocation4 + $0x258] sm:$0xff]
      %v4801 = vld [vmem:[#allocation4 + $0x260] sm:$0xff]
      %v4802 = vld [vmem:[#allocation4 + $0x268] sm:$0xf]
      %v4803 = vld [vmem:[#allocation4 + $0x26c] sm:$0xff]
      %v4804 = vld [vmem:[#allocation4 + $0x274] sm:$0xff]
      %v4805 = vld [vmem:[#allocation4 + $0x27c] sm:$0xf]
      %v4806 = vld [vmem:[%s1] sm:$0xf]
      %v4807 = vld [vmem:[%s1 + $0x4] sm:$0xf]
      %v4808 = vld [vmem:[%s1 + $0x8] sm:$0xf]
      %v4809 = vld [vmem:[%s1 + $0xc] sm:$0xf]
      %v4810 = vld [vmem:[%s1 + $0x10] sm:$0xf]
      %v4811 = vld [vmem:[%s1 + $0x14] sm:$0xf]
      %v4812 = vld [vmem:[%s1 + $0x18] sm:$0xf]
      %v4813 = vld [vmem:[%s1 + $0x1c] sm:$0xf]
      %v4814 = vld [vmem:[%s1 + $0x20] sm:$0xf]
      %v4815 = vld [vmem:[%s1 + $0x24] sm:$0xf]
      %v4816 = vld [vmem:[%s1 + $0x28] sm:$0xf]
      %v4817 = vld [vmem:[%s1 + $0x2c] sm:$0xf]
      %v4818 = vld [vmem:[%s1 + $0x30] sm:$0xf]
      %v4819 = vld [vmem:[%s1 + $0x34] sm:$0xf]
      %v4820 = vld [vmem:[%s1 + $0x38] sm:$0xf]
      %v4821 = vld [vmem:[%s1 + $0x3c] sm:$0xf]
      %v4822 = vld [vmem:[%s1 + $0x40] sm:$0xf]
      %v4823 = vld [vmem:[%s1 + $0x44] sm:$0xf]
      %v4824 = vld [vmem:[%s1 + $0x48] sm:$0xf]
      %v4825 = vld [vmem:[%s1 + $0x4c] sm:$0xf]
      %v4826 = vld [vmem:[%s1 + $0x50] sm:$0xf]
      %v4827 = vld [vmem:[%s1 + $0x54] sm:$0xf]
      %v4828 = vld [vmem:[%s1 + $0x58] sm:$0xf]
      %v4829 = vld [vmem:[%s1 + $0x5c] sm:$0xf]
      %v4830 = vld [vmem:[%s1 + $0x60] sm:$0xf]
      %v4831 = vld [vmem:[%s1 + $0x64] sm:$0xf]
      %v4832 = vld [vmem:[%s1 + $0x68] sm:$0xf]
      %v4833 = vld [vmem:[%s1 + $0x6c] sm:$0xf]
      %v4834 = vld [vmem:[%s1 + $0x70] sm:$0xf]
      %v4835 = vld [vmem:[%s1 + $0x74] sm:$0xf]
      %v4836 = vld [vmem:[%s1 + $0x78] sm:$0xf]
      %v4837 = vld [vmem:[%s1 + $0x7c] sm:$0xf]
      %v4838 = vld [vmem:[%s1 + $0x80] sm:$0xf]
      %v4839 = vld [vmem:[%s1 + $0x84] sm:$0xf]
      %v4840 = vld [vmem:[%s1 + $0x88] sm:$0xf]
      %v4841 = vld [vmem:[%s1 + $0x8c] sm:$0xf]
      %v4842 = vld [vmem:[%s1 + $0x90] sm:$0xf]
      %v4843 = vld [vmem:[%s1 + $0x94] sm:$0xf]
      %v4844 = vld [vmem:[%s1 + $0x98] sm:$0xf]
      %v4845 = vld [vmem:[%s1 + $0x9c] sm:$0xf]
      %v4846 = vld [vmem:[%s1 + $0xa0] sm:$0xf]
      %v4847 = vld [vmem:[%s1 + $0xa4] sm:$0xf]
      %v4848 = vld [vmem:[%s1 + $0xa8] sm:$0xf]
      %v4849 = vld [vmem:[%s1 + $0xac] sm:$0xf]
      %v4850 = vld [vmem:[%s1 + $0xb0] sm:$0xf]
      %v4851 = vld [vmem:[%s1 + $0xb4] sm:$0xf]
      %v4852 = vld [vmem:[%s1 + $0xb8] sm:$0xf]
      %v4853 = vld [vmem:[%s1 + $0xbc] sm:$0xf]
      %v4854 = vld [vmem:[%s1 + $0xc0] sm:$0xf]
      %v4855 = vld [vmem:[%s1 + $0xc4] sm:$0xf]
      %v4856 = vld [vmem:[%s1 + $0xc8] sm:$0xf]
      %v4857 = vld [vmem:[%s1 + $0xcc] sm:$0xf]
      %v4858 = vld [vmem:[%s1 + $0xd0] sm:$0xf]
      %v4859 = vld [vmem:[%s1 + $0xd4] sm:$0xf]
      %v4860 = vld [vmem:[%s1 + $0xd8] sm:$0xf]
      %v4861 = vld [vmem:[%s1 + $0xdc] sm:$0xf]
      %v4862 = vld [vmem:[%s1 + $0xe0] sm:$0xf]
      %v4863 = vld [vmem:[%s1 + $0xe4] sm:$0xf]
      %v4864 = vld [vmem:[%s1 + $0xe8] sm:$0xf]
      %v4865 = vld [vmem:[%s1 + $0xec] sm:$0xf]
      %v4866 = vld [vmem:[%s1 + $0xf0] sm:$0xf]
      %v4867 = vld [vmem:[%s1 + $0xf4] sm:$0xf]
      %v4868 = vld [vmem:[%s1 + $0xf8] sm:$0xf]
      %v4869 = vld [vmem:[%s1 + $0xfc] sm:$0xf]
      %v4870 = vld [vmem:[%s1 + $0x100] sm:$0xf]
      %v4871 = vld [vmem:[%s1 + $0x104] sm:$0xf]
      %v4872 = vld [vmem:[%s1 + $0x108] sm:$0xf]
      %v4873 = vld [vmem:[%s1 + $0x10c] sm:$0xf]
      %v4874 = vld [vmem:[%s1 + $0x110] sm:$0xf]
      %v4875 = vld [vmem:[%s1 + $0x114] sm:$0xf]
      %v4876 = vld [vmem:[%s1 + $0x118] sm:$0xf]
      %v4877 = vld [vmem:[%s1 + $0x11c] sm:$0xf]
      %v4878 = vld [vmem:[%s2] sm:$0x1]
      %v4879 = vperm.slane %v4878, 0
      %v4976 = vunpack.c.l.b16 %v4710
      %v4977 = vunpack.c.h.b16 %v4710
      %v4978 = vunpack.c.l.b16 %v4711
      %v4979 = vunpack.c.h.b16 %v4711
      %v4980 = vunpack.c.l.b16 %v4712
      %v4981 = vunpack.c.l.b16 %v4713
      %v4982 = vunpack.c.h.b16 %v4713
      %v4983 = vunpack.c.l.b16 %v4714
      %v4984 = vunpack.c.h.b16 %v4714
      %v4985 = vunpack.c.l.b16 %v4715
      %v4986 = vunpack.c.l.b16 %v4716
      %v4987 = vunpack.c.h.b16 %v4716
      %v4988 = vunpack.c.l.b16 %v4717
      %v4989 = vunpack.c.h.b16 %v4717
      %v4990 = vunpack.c.l.b16 %v4718
      %v4991 = vunpack.c.l.b16 %v4719
      %v4992 = vunpack.c.h.b16 %v4719
      %v4993 = vunpack.c.l.b16 %v4720
      %v4994 = vunpack.c.h.b16 %v4720
      %v4995 = vunpack.c.l.b16 %v4721
      %v4996 = vunpack.c.l.b16 %v4722
      %v4997 = vunpack.c.h.b16 %v4722
      %v4998 = vunpack.c.l.b16 %v4723
      %v4999 = vunpack.c.h.b16 %v4723
      %v5000 = vunpack.c.l.b16 %v4724
      %v5001 = vunpack.c.l.b16 %v4725
      %v5002 = vunpack.c.h.b16 %v4725
      %v5003 = vunpack.c.l.b16 %v4726
      %v5004 = vunpack.c.h.b16 %v4726
      %v5005 = vunpack.c.l.b16 %v4727
      %v5006 = vunpack.c.l.b16 %v4728
      %v5007 = vunpack.c.h.b16 %v4728
      %v5008 = vunpack.c.l.b16 %v4729
      %v5009 = vunpack.c.h.b16 %v4729
      %v5010 = vunpack.c.l.b16 %v4730
      %v5011 = vunpack.c.l.b16 %v4731
      %v5012 = vunpack.c.h.b16 %v4731
      %v5013 = vunpack.c.l.b16 %v4732
      %v5014 = vunpack.c.h.b16 %v4732
      %v5015 = vunpack.c.l.b16 %v4733
      %v5016 = vunpack.c.l.b16 %v4734
      %v5017 = vunpack.c.h.b16 %v4734
      %v5018 = vunpack.c.l.b16 %v4735
      %v5019 = vunpack.c.h.b16 %v4735
      %v5020 = vunpack.c.l.b16 %v4736
      %v5021 = vunpack.c.l.b16 %v4737
      %v5022 = vunpack.c.h.b16 %v4737
      %v5023 = vunpack.c.l.b16 %v4738
      %v5024 = vunpack.c.h.b16 %v4738
      %v5025 = vunpack.c.l.b16 %v4739
      %v5026 = vunpack.c.l.b16 %v4740
      %v5027 = vunpack.c.h.b16 %v4740
      %v5028 = vunpack.c.l.b16 %v4741
      %v5029 = vunpack.c.h.b16 %v4741
      %v5030 = vunpack.c.l.b16 %v4742
      %v5031 = vunpack.c.l.b16 %v4743
      %v5032 = vunpack.c.h.b16 %v4743
      %v5033 = vunpack.c.l.b16 %v4744
      %v5034 = vunpack.c.h.b16 %v4744
      %v5035 = vunpack.c.l.b16 %v4745
      %v5036 = vunpack.c.l.b16 %v4746
      %v5037 = vunpack.c.h.b16 %v4746
      %v5038 = vunpack.c.l.b16 %v4747
      %v5039 = vunpack.c.h.b16 %v4747
      %v5040 = vunpack.c.l.b16 %v4748
      %v5041 = vunpack.c.l.b16 %v4749
      %v5042 = vunpack.c.h.b16 %v4749
      %v5043 = vunpack.c.l.b16 %v4750
      %v5044 = vunpack.c.h.b16 %v4750
      %v5045 = vunpack.c.l.b16 %v4751
      %v5046 = vunpack.c.l.b16 %v4752
      %v5047 = vunpack.c.h.b16 %v4752
      %v5048 = vunpack.c.l.b16 %v4753
      %v5049 = vunpack.c.h.b16 %v4753
      %v5050 = vunpack.c.l.b16 %v4754
      %v5051 = vunpack.c.l.b16 %v4755
      %v5052 = vunpack.c.h.b16 %v4755
      %v5053 = vunpack.c.l.b16 %v4756
      %v5054 = vunpack.c.h.b16 %v4756
      %v5055 = vunpack.c.l.b16 %v4757
      %v5056 = vunpack.c.l.b16 %v4758
      %v5057 = vunpack.c.h.b16 %v4758
      %v5058 = vunpack.c.l.b16 %v4759
      %v5059 = vunpack.c.h.b16 %v4759
      %v5060 = vunpack.c.l.b16 %v4760
      %v5061 = vunpack.c.l.b16 %v4761
      %v5062 = vunpack.c.h.b16 %v4761
      %v5063 = vunpack.c.l.b16 %v4762
      %v5064 = vunpack.c.h.b16 %v4762
      %v5065 = vunpack.c.l.b16 %v4763
      %v5066 = vunpack.c.l.b16 %v4764
      %v5067 = vunpack.c.h.b16 %v4764
      %v5068 = vunpack.c.l.b16 %v4765
      %v5069 = vunpack.c.h.b16 %v4765
      %v5070 = vunpack.c.l.b16 %v4766
      %v5071 = vunpack.c.l.b16 %v4767
      %v5072 = vunpack.c.h.b16 %v4767
      %v5073 = vunpack.c.l.b16 %v4768
      %v5074 = vunpack.c.h.b16 %v4768
      %v5075 = vunpack.c.l.b16 %v4769
      %v5076 = vunpack.c.l.b16 %v4770
      %v5077 = vunpack.c.h.b16 %v4770
      %v5078 = vunpack.c.l.b16 %v4771
      %v5079 = vunpack.c.h.b16 %v4771
      %v5080 = vunpack.c.l.b16 %v4772
      %v5081 = vunpack.c.l.b16 %v4773
      %v5082 = vunpack.c.h.b16 %v4773
      %v5083 = vunpack.c.l.b16 %v4774
      %v5084 = vunpack.c.h.b16 %v4774
      %v5085 = vunpack.c.l.b16 %v4775
      %v5086 = vunpack.c.l.b16 %v4776
      %v5087 = vunpack.c.h.b16 %v4776
      %v5088 = vunpack.c.l.b16 %v4777
      %v5089 = vunpack.c.h.b16 %v4777
      %v5090 = vunpack.c.l.b16 %v4778
      %v5091 = vunpack.c.l.b16 %v4779
      %v5092 = vunpack.c.h.b16 %v4779
      %v5093 = vunpack.c.l.b16 %v4780
      %v5094 = vunpack.c.h.b16 %v4780
      %v5095 = vunpack.c.l.b16 %v4781
      %v5096 = vunpack.c.l.b16 %v4782
      %v5097 = vunpack.c.h.b16 %v4782
      %v5098 = vunpack.c.l.b16 %v4783
      %v5099 = vunpack.c.h.b16 %v4783
      %v5100 = vunpack.c.l.b16 %v4784
      %v5101 = vunpack.c.l.b16 %v4785
      %v5102 = vunpack.c.h.b16 %v4785
      %v5103 = vunpack.c.l.b16 %v4786
      %v5104 = vunpack.c.h.b16 %v4786
      %v5105 = vunpack.c.l.b16 %v4787
      %v5106 = vunpack.c.l.b16 %v4788
      %v5107 = vunpack.c.h.b16 %v4788
      %v5108 = vunpack.c.l.b16 %v4789
      %v5109 = vunpack.c.h.b16 %v4789
      %v5110 = vunpack.c.l.b16 %v4790
      %v5111 = vunpack.c.l.b16 %v4791
      %v5112 = vunpack.c.h.b16 %v4791
      %v5113 = vunpack.c.l.b16 %v4792
      %v5114 = vunpack.c.h.b16 %v4792
      %v5115 = vunpack.c.l.b16 %v4793
      %v5116 = vunpack.c.l.b16 %v4794
      %v5117 = vunpack.c.h.b16 %v4794
      %v5118 = vunpack.c.l.b16 %v4795
      %v5119 = vunpack.c.h.b16 %v4795
      %v5120 = vunpack.c.l.b16 %v4796
      %v5121 = vunpack.c.l.b16 %v4797
      %v5122 = vunpack.c.h.b16 %v4797
      %v5123 = vunpack.c.l.b16 %v4798
      %v5124 = vunpack.c.h.b16 %v4798
      %v5125 = vunpack.c.l.b16 %v4799
      %v5126 = vunpack.c.l.b16 %v4800
      %v5127 = vunpack.c.h.b16 %v4800
      %v5128 = vunpack.c.l.b16 %v4801
      %v5129 = vunpack.c.h.b16 %v4801
      %v5130 = vunpack.c.l.b16 %v4802
      %v5131 = vunpack.c.l.b16 %v4803
      %v5132 = vunpack.c.h.b16 %v4803
      %v5133 = vunpack.c.l.b16 %v4804
      %v5134 = vunpack.c.h.b16 %v4804
      %v5135 = vunpack.c.l.b16 %v4805
      %v5136 = vpack.c.b16 %v4981, %v4976
      %v5137 = vpack.c.b16 %v4982, %v4977
      %v5138 = vpack.c.b16 %v4983, %v4978
      %v5139 = vpack.c.b16 %v4984, %v4979
      %v5140 = vpack.c.b16 %v4985, %v4980
      %v5141 = vpack.c.b16 %v4991, %v4986
      %v5142 = vpack.c.b16 %v4992, %v4987
      %v5143 = vpack.c.b16 %v4993, %v4988
      %v5144 = vpack.c.b16 %v4994, %v4989
      %v5145 = vpack.c.b16 %v4995, %v4990
      %v5146 = vpack.c.b16 %v5001, %v4996
      %v5147 = vpack.c.b16 %v5002, %v4997
      %v5148 = vpack.c.b16 %v5003, %v4998
      %v5149 = vpack.c.b16 %v5004, %v4999
      %v5150 = vpack.c.b16 %v5005, %v5000
      %v5151 = vpack.c.b16 %v5011, %v5006
      %v5152 = vpack.c.b16 %v5012, %v5007
      %v5153 = vpack.c.b16 %v5013, %v5008
      %v5154 = vpack.c.b16 %v5014, %v5009
      %v5155 = vpack.c.b16 %v5015, %v5010
      %v5156 = vpack.c.b16 %v5021, %v5016
      %v5157 = vpack.c.b16 %v5022, %v5017
      %v5158 = vpack.c.b16 %v5023, %v5018
      %v5159 = vpack.c.b16 %v5024, %v5019
      %v5160 = vpack.c.b16 %v5025, %v5020
      %v5161 = vpack.c.b16 %v5031, %v5026
      %v5162 = vpack.c.b16 %v5032, %v5027
      %v5163 = vpack.c.b16 %v5033, %v5028
      %v5164 = vpack.c.b16 %v5034, %v5029
      %v5165 = vpack.c.b16 %v5035, %v5030
      %v5166 = vpack.c.b16 %v5041, %v5036
      %v5167 = vpack.c.b16 %v5042, %v5037
      %v5168 = vpack.c.b16 %v5043, %v5038
      %v5169 = vpack.c.b16 %v5044, %v5039
      %v5170 = vpack.c.b16 %v5045, %v5040
      %v5171 = vpack.c.b16 %v5051, %v5046
      %v5172 = vpack.c.b16 %v5052, %v5047
      %v5173 = vpack.c.b16 %v5053, %v5048
      %v5174 = vpack.c.b16 %v5054, %v5049
      %v5175 = vpack.c.b16 %v5055, %v5050
      %v5176 = vpack.c.b16 %v5061, %v5056
      %v5177 = vpack.c.b16 %v5062, %v5057
      %v5178 = vpack.c.b16 %v5063, %v5058
      %v5179 = vpack.c.b16 %v5064, %v5059
      %v5180 = vpack.c.b16 %v5065, %v5060
      %v5181 = vpack.c.b16 %v5071, %v5066
      %v5182 = vpack.c.b16 %v5072, %v5067
      %v5183 = vpack.c.b16 %v5073, %v5068
      %v5184 = vpack.c.b16 %v5074, %v5069
      %v5185 = vpack.c.b16 %v5075, %v5070
      %v5186 = vpack.c.b16 %v5081, %v5076
      %v5187 = vpack.c.b16 %v5082, %v5077
      %v5188 = vpack.c.b16 %v5083, %v5078
      %v5189 = vpack.c.b16 %v5084, %v5079
      %v5190 = vpack.c.b16 %v5085, %v5080
      %v5191 = vpack.c.b16 %v5091, %v5086
      %v5192 = vpack.c.b16 %v5092, %v5087
      %v5193 = vpack.c.b16 %v5093, %v5088
      %v5194 = vpack.c.b16 %v5094, %v5089
      %v5195 = vpack.c.b16 %v5095, %v5090
      %v5196 = vpack.c.b16 %v5101, %v5096
      %v5197 = vpack.c.b16 %v5102, %v5097
      %v5198 = vpack.c.b16 %v5103, %v5098
      %v5199 = vpack.c.b16 %v5104, %v5099
      %v5200 = vpack.c.b16 %v5105, %v5100
      %v5201 = vpack.c.b16 %v5111, %v5106
      %v5202 = vpack.c.b16 %v5112, %v5107
      %v5203 = vpack.c.b16 %v5113, %v5108
      %v5204 = vpack.c.b16 %v5114, %v5109
      %v5205 = vpack.c.b16 %v5115, %v5110
      %v5206 = vpack.c.b16 %v5121, %v5116
      %v5207 = vpack.c.b16 %v5122, %v5117
      %v5208 = vpack.c.b16 %v5123, %v5118
      %v5209 = vpack.c.b16 %v5124, %v5119
      %v5210 = vpack.c.b16 %v5125, %v5120
      %v5211 = vpack.c.b16 %v5131, %v5126
      %v5212 = vpack.c.b16 %v5132, %v5127
      %v5213 = vpack.c.b16 %v5133, %v5128
      %v5214 = vpack.c.b16 %v5134, %v5129
      %v5215 = vpack.c.b16 %v5135, %v5130
      %v5352 = vunpack.c.l.b16 %v4806
      %v5353 = vunpack.c.l.b16 %v4807
      %v5354 = vunpack.c.l.b16 %v4808
      %v5355 = vunpack.c.l.b16 %v4809
      %v5356 = vunpack.c.l.b16 %v4810
      %v5357 = vunpack.c.l.b16 %v4811
      %v5358 = vunpack.c.l.b16 %v4812
      %v5359 = vunpack.c.l.b16 %v4813
      %v5360 = vunpack.c.l.b16 %v4814
      %v5361 = vunpack.c.l.b16 %v4815
      %v5362 = vunpack.c.l.b16 %v4816
      %v5363 = vunpack.c.l.b16 %v4817
      %v5364 = vunpack.c.l.b16 %v4818
      %v5365 = vunpack.c.l.b16 %v4819
      %v5366 = vunpack.c.l.b16 %v4820
      %v5367 = vunpack.c.l.b16 %v4821
      %v5368 = vunpack.c.l.b16 %v4822
      %v5369 = vunpack.c.l.b16 %v4823
      %v5370 = vunpack.c.l.b16 %v4824
      %v5371 = vunpack.c.l.b16 %v4825
      %v5372 = vunpack.c.l.b16 %v4826
      %v5373 = vunpack.c.l.b16 %v4827
      %v5374 = vunpack.c.l.b16 %v4828
      %v5375 = vunpack.c.l.b16 %v4829
      %v5376 = vunpack.c.l.b16 %v4830
      %v5377 = vunpack.c.l.b16 %v4831
      %v5378 = vunpack.c.l.b16 %v4832
      %v5379 = vunpack.c.l.b16 %v4833
      %v5380 = vunpack.c.l.b16 %v4834
      %v5381 = vunpack.c.l.b16 %v4835
      %v5382 = vunpack.c.l.b16 %v4836
      %v5383 = vunpack.c.l.b16 %v4837
      %v5384 = vunpack.c.l.b16 %v4838
      %v5385 = vunpack.c.l.b16 %v4839
      %v5386 = vunpack.c.l.b16 %v4840
      %v5387 = vunpack.c.l.b16 %v4841
      %v5388 = vunpack.c.l.b16 %v4842
      %v5389 = vunpack.c.l.b16 %v4843
      %v5390 = vunpack.c.l.b16 %v4844
      %v5391 = vunpack.c.l.b16 %v4845
      %v5392 = vunpack.c.l.b16 %v4846
      %v5393 = vunpack.c.l.b16 %v4847
      %v5394 = vunpack.c.l.b16 %v4848
      %v5395 = vunpack.c.l.b16 %v4849
      %v5396 = vunpack.c.l.b16 %v4850
      %v5397 = vunpack.c.l.b16 %v4851
      %v5398 = vunpack.c.l.b16 %v4852
      %v5399 = vunpack.c.l.b16 %v4853
      %v5400 = vunpack.c.l.b16 %v4854
      %v5401 = vunpack.c.l.b16 %v4855
      %v5402 = vunpack.c.l.b16 %v4856
      %v5403 = vunpack.c.l.b16 %v4857
      %v5404 = vunpack.c.l.b16 %v4858
      %v5405 = vunpack.c.l.b16 %v4859
      %v5406 = vunpack.c.l.b16 %v4860
      %v5407 = vunpack.c.l.b16 %v4861
      %v5408 = vunpack.c.l.b16 %v4862
      %v5409 = vunpack.c.l.b16 %v4863
      %v5410 = vunpack.c.l.b16 %v4864
      %v5411 = vunpack.c.l.b16 %v4865
      %v5412 = vunpack.c.l.b16 %v4866
      %v5413 = vunpack.c.l.b16 %v4867
      %v5414 = vunpack.c.l.b16 %v4868
      %v5415 = vunpack.c.l.b16 %v4869
      %v5416 = vunpack.c.l.b16 %v4870
      %v5417 = vunpack.c.l.b16 %v4871
      %v5418 = vunpack.c.l.b16 %v4872
      %v5419 = vunpack.c.l.b16 %v4873
      %v5420 = vunpack.c.l.b16 %v4874
      %v5421 = vunpack.c.l.b16 %v4875
      %v5422 = vunpack.c.l.b16 %v4876
      %v5423 = vunpack.c.l.b16 %v4877
      %v5424 = vpack.c.b16 %v5353, %v5352
      %v5425 = vpack.c.b16 %v5355, %v5354
      %v5426 = vpack.c.b16 %v5357, %v5356
      %v5427 = vpack.c.b16 %v5359, %v5358
      %v5428 = vpack.c.b16 %v5361, %v5360
      %v5429 = vpack.c.b16 %v5363, %v5362
      %v5430 = vpack.c.b16 %v5365, %v5364
      %v5431 = vpack.c.b16 %v5367, %v5366
      %v5432 = vpack.c.b16 %v5369, %v5368
      %v5433 = vpack.c.b16 %v5371, %v5370
      %v5434 = vpack.c.b16 %v5373, %v5372
      %v5435 = vpack.c.b16 %v5375, %v5374
      %v5436 = vpack.c.b16 %v5377, %v5376
      %v5437 = vpack.c.b16 %v5379, %v5378
      %v5438 = vpack.c.b16 %v5381, %v5380
      %v5439 = vpack.c.b16 %v5383, %v5382
      %v5440 = vpack.c.b16 %v5385, %v5384
      %v5441 = vpack.c.b16 %v5387, %v5386
      %v5442 = vpack.c.b16 %v5389, %v5388
      %v5443 = vpack.c.b16 %v5391, %v5390
      %v5444 = vpack.c.b16 %v5393, %v5392
      %v5445 = vpack.c.b16 %v5395, %v5394
      %v5446 = vpack.c.b16 %v5397, %v5396
      %v5447 = vpack.c.b16 %v5399, %v5398
      %v5448 = vpack.c.b16 %v5401, %v5400
      %v5449 = vpack.c.b16 %v5403, %v5402
      %v5450 = vpack.c.b16 %v5405, %v5404
      %v5451 = vpack.c.b16 %v5407, %v5406
      %v5452 = vpack.c.b16 %v5409, %v5408
      %v5453 = vpack.c.b16 %v5411, %v5410
      %v5454 = vpack.c.b16 %v5413, %v5412
      %v5455 = vpack.c.b16 %v5415, %v5414
      %v5456 = vpack.c.b16 %v5417, %v5416
      %v5457 = vpack.c.b16 %v5419, %v5418
      %v5458 = vpack.c.b16 %v5421, %v5420
      %v5459 = vpack.c.b16 %v5423, %v5422
      %vm5496 = vcmask 523264
      %v5498 = vsel %vm5496, %v5140, 0
      %v5501 = vsel %vm5496, %v5145, 0
      %v5504 = vsel %vm5496, %v5150, 0
      %v5507 = vsel %vm5496, %v5155, 0
      %v5510 = vsel %vm5496, %v5160, 0
      %v5513 = vsel %vm5496, %v5165, 0
      %v5516 = vsel %vm5496, %v5170, 0
      %v5519 = vsel %vm5496, %v5175, 0
      %v5522 = vsel %vm5496, %v5180, 0
      %v5525 = vsel %vm5496, %v5185, 0
      %v5528 = vsel %vm5496, %v5190, 0
      %v5531 = vsel %vm5496, %v5195, 0
      %v5534 = vsel %vm5496, %v5200, 0
      %v5537 = vsel %vm5496, %v5205, 0
      %v5540 = vsel %vm5496, %v5210, 0
      %v5543 = vsel %vm5496, %v5215, 0
      %5545 = vmatpush.bf16.msra.mxu0 %v5431
      %5546 = vmatpush.bf16.msra.mxu0 %v5430
      %5547 = vmatpush.bf16.msra.mxu0 %v5429
      %5548 = vmatpush.bf16.msra.mxu0 %v5428
      %5549 = vmatpush.bf16.msra.mxu0 %v5427
      %5550 = vmatpush.bf16.msra.mxu0 %v5426
      %5551 = vmatpush.bf16.msra.mxu0 %v5425
      %5552 = vmatpush.bf16.msra.mxu0 %v5424
      %5553 = vmatmul.bf16.gmra.mxu0 %v5136
      %v5554 = vpop.f32.mrf.mxu0
      %v5555 = vadd.f32 %v4879, %v5554
      %v5556 = vpop.f32.mrf.mxu0
      %v5557 = vadd.f32 %v4879, %v5556
      %5558 = vmatmul.bf16.gmra.mxu0 %v5141
      %v5559 = vpop.f32.mrf.mxu0
      %v5560 = vadd.f32 %v4879, %v5559
      %v5561 = vpop.f32.mrf.mxu0
      %v5562 = vadd.f32 %v4879, %v5561
      %5563 = vmatmul.bf16.gmra.mxu0 %v5146
      %v5564 = vpop.f32.mrf.mxu0
      %v5565 = vadd.f32 %v4879, %v5564
      %v5566 = vpop.f32.mrf.mxu0
      %v5567 = vadd.f32 %v4879, %v5566
      %5568 = vmatmul.bf16.gmra.mxu0 %v5151
      %v5569 = vpop.f32.mrf.mxu0
      %v5570 = vadd.f32 %v4879, %v5569
      %v5571 = vpop.f32.mrf.mxu0
      %v5572 = vadd.f32 %v4879, %v5571
      %5573 = vmatmul.bf16.gmra.mxu0 %v5156
      %v5574 = vpop.f32.mrf.mxu0
      %v5575 = vadd.f32 %v4879, %v5574
      %v5576 = vpop.f32.mrf.mxu0
      %v5577 = vadd.f32 %v4879, %v5576
      %5578 = vmatmul.bf16.gmra.mxu0 %v5161
      %v5579 = vpop.f32.mrf.mxu0
      %v5580 = vadd.f32 %v4879, %v5579
      %v5581 = vpop.f32.mrf.mxu0
      %v5582 = vadd.f32 %v4879, %v5581
      %5583 = vmatmul.bf16.gmra.mxu0 %v5166
      %v5584 = vpop.f32.mrf.mxu0
      %v5585 = vadd.f32 %v4879, %v5584
      %v5586 = vpop.f32.mrf.mxu0
      %v5587 = vadd.f32 %v4879, %v5586
      %5588 = vmatmul.bf16.gmra.mxu0 %v5171
      %v5589 = vpop.f32.mrf.mxu0
      %v5590 = vadd.f32 %v4879, %v5589
      %v5591 = vpop.f32.mrf.mxu0
      %v5592 = vadd.f32 %v4879, %v5591
      %5593 = vmatmul.bf16.gmra.mxu0 %v5176
      %v5594 = vpop.f32.mrf.mxu0
      %v5595 = vadd.f32 %v4879, %v5594
      %v5596 = vpop.f32.mrf.mxu0
      %v5597 = vadd.f32 %v4879, %v5596
      %5598 = vmatmul.bf16.gmra.mxu0 %v5181
      %v5599 = vpop.f32.mrf.mxu0
      %v5600 = vadd.f32 %v4879, %v5599
      %v5601 = vpop.f32.mrf.mxu0
      %v5602 = vadd.f32 %v4879, %v5601
      %5603 = vmatmul.bf16.gmra.mxu0 %v5186
      %v5604 = vpop.f32.mrf.mxu0
      %v5605 = vadd.f32 %v4879, %v5604
      %v5606 = vpop.f32.mrf.mxu0
      %v5607 = vadd.f32 %v4879, %v5606
      %5608 = vmatmul.bf16.gmra.mxu0 %v5191
      %v5609 = vpop.f32.mrf.mxu0
      %v5610 = vadd.f32 %v4879, %v5609
      %v5611 = vpop.f32.mrf.mxu0
      %v5612 = vadd.f32 %v4879, %v5611
      %5613 = vmatmul.bf16.gmra.mxu0 %v5196
      %v5614 = vpop.f32.mrf.mxu0
      %v5615 = vadd.f32 %v4879, %v5614
      %v5616 = vpop.f32.mrf.mxu0
      %v5617 = vadd.f32 %v4879, %v5616
      %5618 = vmatmul.bf16.gmra.mxu0 %v5201
      %v5619 = vpop.f32.mrf.mxu0
      %v5620 = vadd.f32 %v4879, %v5619
      %v5621 = vpop.f32.mrf.mxu0
      %v5622 = vadd.f32 %v4879, %v5621
      %5623 = vmatmul.bf16.gmra.mxu0 %v5206
      %v5624 = vpop.f32.mrf.mxu0
      %v5625 = vadd.f32 %v4879, %v5624
      %v5626 = vpop.f32.mrf.mxu0
      %v5627 = vadd.f32 %v4879, %v5626
      %5628 = vmatmul.bf16.gmra.mxu0 %v5211
      %v5629 = vpop.f32.mrf.mxu0
      %v5630 = vadd.f32 %v4879, %v5629
      %v5631 = vpop.f32.mrf.mxu0
      %v5632 = vadd.f32 %v4879, %v5631
      %5633 = vdwg.mxu0
      %5634 = vmatpush.bf16.msra.mxu0 %v5439
      %5635 = vmatpush.bf16.msra.mxu0 %v5438
      %5636 = vmatpush.bf16.msra.mxu0 %v5437
      %5637 = vmatpush.bf16.msra.mxu0 %v5436
      %5638 = vmatpush.bf16.msra.mxu0 %v5435
      %5639 = vmatpush.bf16.msra.mxu0 %v5434
      %5640 = vmatpush.bf16.msra.mxu0 %v5433
      %5641 = vmatpush.bf16.msra.mxu0 %v5432
      %5642 = vmatmul.bf16.gmra.mxu0 %v5137
      %v5643 = vpop.f32.mrf.mxu0
      %v5644 = vadd.f32 %v5555, %v5643
      %v5645 = vpop.f32.mrf.mxu0
      %v5646 = vadd.f32 %v5557, %v5645
      %5647 = vmatmul.bf16.gmra.mxu0 %v5142
      %v5648 = vpop.f32.mrf.mxu0
      %v5649 = vadd.f32 %v5560, %v5648
      %v5650 = vpop.f32.mrf.mxu0
      %v5651 = vadd.f32 %v5562, %v5650
      %5652 = vmatmul.bf16.gmra.mxu0 %v5147
      %v5653 = vpop.f32.mrf.mxu0
      %v5654 = vadd.f32 %v5565, %v5653
      %v5655 = vpop.f32.mrf.mxu0
      %v5656 = vadd.f32 %v5567, %v5655
      %5657 = vmatmul.bf16.gmra.mxu0 %v5152
      %v5658 = vpop.f32.mrf.mxu0
      %v5659 = vadd.f32 %v5570, %v5658
      %v5660 = vpop.f32.mrf.mxu0
      %v5661 = vadd.f32 %v5572, %v5660
      %5662 = vmatmul.bf16.gmra.mxu0 %v5157
      %v5663 = vpop.f32.mrf.mxu0
      %v5664 = vadd.f32 %v5575, %v5663
      %v5665 = vpop.f32.mrf.mxu0
      %v5666 = vadd.f32 %v5577, %v5665
      %5667 = vmatmul.bf16.gmra.mxu0 %v5162
      %v5668 = vpop.f32.mrf.mxu0
      %v5669 = vadd.f32 %v5580, %v5668
      %v5670 = vpop.f32.mrf.mxu0
      %v5671 = vadd.f32 %v5582, %v5670
      %5672 = vmatmul.bf16.gmra.mxu0 %v5167
      %v5673 = vpop.f32.mrf.mxu0
      %v5674 = vadd.f32 %v5585, %v5673
      %v5675 = vpop.f32.mrf.mxu0
      %v5676 = vadd.f32 %v5587, %v5675
      %5677 = vmatmul.bf16.gmra.mxu0 %v5172
      %v5678 = vpop.f32.mrf.mxu0
      %v5679 = vadd.f32 %v5590, %v5678
      %v5680 = vpop.f32.mrf.mxu0
      %v5681 = vadd.f32 %v5592, %v5680
      %5682 = vmatmul.bf16.gmra.mxu0 %v5177
      %v5683 = vpop.f32.mrf.mxu0
      %v5684 = vadd.f32 %v5595, %v5683
      %v5685 = vpop.f32.mrf.mxu0
      %v5686 = vadd.f32 %v5597, %v5685
      %5687 = vmatmul.bf16.gmra.mxu0 %v5182
      %v5688 = vpop.f32.mrf.mxu0
      %v5689 = vadd.f32 %v5600, %v5688
      %v5690 = vpop.f32.mrf.mxu0
      %v5691 = vadd.f32 %v5602, %v5690
      %5692 = vmatmul.bf16.gmra.mxu0 %v5187
      %v5693 = vpop.f32.mrf.mxu0
      %v5694 = vadd.f32 %v5605, %v5693
      %v5695 = vpop.f32.mrf.mxu0
      %v5696 = vadd.f32 %v5607, %v5695
      %5697 = vmatmul.bf16.gmra.mxu0 %v5192
      %v5698 = vpop.f32.mrf.mxu0
      %v5699 = vadd.f32 %v5610, %v5698
      %v5700 = vpop.f32.mrf.mxu0
      %v5701 = vadd.f32 %v5612, %v5700
      %5702 = vmatmul.bf16.gmra.mxu0 %v5197
      %v5703 = vpop.f32.mrf.mxu0
      %v5704 = vadd.f32 %v5615, %v5703
      %v5705 = vpop.f32.mrf.mxu0
      %v5706 = vadd.f32 %v5617, %v5705
      %5707 = vmatmul.bf16.gmra.mxu0 %v5202
      %v5708 = vpop.f32.mrf.mxu0
      %v5709 = vadd.f32 %v5620, %v5708
      %v5710 = vpop.f32.mrf.mxu0
      %v5711 = vadd.f32 %v5622, %v5710
      %5712 = vmatmul.bf16.gmra.mxu0 %v5207
      %v5713 = vpop.f32.mrf.mxu0
      %v5714 = vadd.f32 %v5625, %v5713
      %v5715 = vpop.f32.mrf.mxu0
      %v5716 = vadd.f32 %v5627, %v5715
      %5717 = vmatmul.bf16.gmra.mxu0 %v5212
      %v5718 = vpop.f32.mrf.mxu0
      %v5719 = vadd.f32 %v5630, %v5718
      %v5720 = vpop.f32.mrf.mxu0
      %v5721 = vadd.f32 %v5632, %v5720
      %5722 = vdwg.mxu0
      %5723 = vmatpush.bf16.msra.mxu0 %v5447
      %5724 = vmatpush.bf16.msra.mxu0 %v5446
      %5725 = vmatpush.bf16.msra.mxu0 %v5445
      %5726 = vmatpush.bf16.msra.mxu0 %v5444
      %5727 = vmatpush.bf16.msra.mxu0 %v5443
      %5728 = vmatpush.bf16.msra.mxu0 %v5442
      %5729 = vmatpush.bf16.msra.mxu0 %v5441
      %5730 = vmatpush.bf16.msra.mxu0 %v5440
      %5731 = vmatmul.bf16.gmra.mxu0 %v5138
      %v5732 = vpop.f32.mrf.mxu0
      %v5733 = vadd.f32 %v5644, %v5732
      %v5734 = vpop.f32.mrf.mxu0
      %v5735 = vadd.f32 %v5646, %v5734
      %5736 = vmatmul.bf16.gmra.mxu0 %v5143
      %v5737 = vpop.f32.mrf.mxu0
      %v5738 = vadd.f32 %v5649, %v5737
      %v5739 = vpop.f32.mrf.mxu0
      %v5740 = vadd.f32 %v5651, %v5739
      %5741 = vmatmul.bf16.gmra.mxu0 %v5148
      %v5742 = vpop.f32.mrf.mxu0
      %v5743 = vadd.f32 %v5654, %v5742
      %v5744 = vpop.f32.mrf.mxu0
      %v5745 = vadd.f32 %v5656, %v5744
      %5746 = vmatmul.bf16.gmra.mxu0 %v5153
      %v5747 = vpop.f32.mrf.mxu0
      %v5748 = vadd.f32 %v5659, %v5747
      %v5749 = vpop.f32.mrf.mxu0
      %v5750 = vadd.f32 %v5661, %v5749
      %5751 = vmatmul.bf16.gmra.mxu0 %v5158
      %v5752 = vpop.f32.mrf.mxu0
      %v5753 = vadd.f32 %v5664, %v5752
      %v5754 = vpop.f32.mrf.mxu0
      %v5755 = vadd.f32 %v5666, %v5754
      %5756 = vmatmul.bf16.gmra.mxu0 %v5163
      %v5757 = vpop.f32.mrf.mxu0
      %v5758 = vadd.f32 %v5669, %v5757
      %v5759 = vpop.f32.mrf.mxu0
      %v5760 = vadd.f32 %v5671, %v5759
      %5761 = vmatmul.bf16.gmra.mxu0 %v5168
      %v5762 = vpop.f32.mrf.mxu0
      %v5763 = vadd.f32 %v5674, %v5762
      %v5764 = vpop.f32.mrf.mxu0
      %v5765 = vadd.f32 %v5676, %v5764
      %5766 = vmatmul.bf16.gmra.mxu0 %v5173
      %v5767 = vpop.f32.mrf.mxu0
      %v5768 = vadd.f32 %v5679, %v5767
      %v5769 = vpop.f32.mrf.mxu0
      %v5770 = vadd.f32 %v5681, %v5769
      %5771 = vmatmul.bf16.gmra.mxu0 %v5178
      %v5772 = vpop.f32.mrf.mxu0
      %v5773 = vadd.f32 %v5684, %v5772
      %v5774 = vpop.f32.mrf.mxu0
      %v5775 = vadd.f32 %v5686, %v5774
      %5776 = vmatmul.bf16.gmra.mxu0 %v5183
      %v5777 = vpop.f32.mrf.mxu0
      %v5778 = vadd.f32 %v5689, %v5777
      %v5779 = vpop.f32.mrf.mxu0
      %v5780 = vadd.f32 %v5691, %v5779
      %5781 = vmatmul.bf16.gmra.mxu0 %v5188
      %v5782 = vpop.f32.mrf.mxu0
      %v5783 = vadd.f32 %v5694, %v5782
      %v5784 = vpop.f32.mrf.mxu0
      %v5785 = vadd.f32 %v5696, %v5784
      %5786 = vmatmul.bf16.gmra.mxu0 %v5193
      %v5787 = vpop.f32.mrf.mxu0
      %v5788 = vadd.f32 %v5699, %v5787
      %v5789 = vpop.f32.mrf.mxu0
      %v5790 = vadd.f32 %v5701, %v5789
      %5791 = vmatmul.bf16.gmra.mxu0 %v5198
      %v5792 = vpop.f32.mrf.mxu0
      %v5793 = vadd.f32 %v5704, %v5792
      %v5794 = vpop.f32.mrf.mxu0
      %v5795 = vadd.f32 %v5706, %v5794
      %5796 = vmatmul.bf16.gmra.mxu0 %v5203
      %v5797 = vpop.f32.mrf.mxu0
      %v5798 = vadd.f32 %v5709, %v5797
      %v5799 = vpop.f32.mrf.mxu0
      %v5800 = vadd.f32 %v5711, %v5799
      %5801 = vmatmul.bf16.gmra.mxu0 %v5208
      %v5802 = vpop.f32.mrf.mxu0
      %v5803 = vadd.f32 %v5714, %v5802
      %v5804 = vpop.f32.mrf.mxu0
      %v5805 = vadd.f32 %v5716, %v5804
      %5806 = vmatmul.bf16.gmra.mxu0 %v5213
      %v5807 = vpop.f32.mrf.mxu0
      %v5808 = vadd.f32 %v5719, %v5807
      %v5809 = vpop.f32.mrf.mxu0
      %v5810 = vadd.f32 %v5721, %v5809
      %5811 = vdwg.mxu0
      %5812 = vmatpush.bf16.msra.mxu0 %v5455
      %5813 = vmatpush.bf16.msra.mxu0 %v5454
      %5814 = vmatpush.bf16.msra.mxu0 %v5453
      %5815 = vmatpush.bf16.msra.mxu0 %v5452
      %5816 = vmatpush.bf16.msra.mxu0 %v5451
      %5817 = vmatpush.bf16.msra.mxu0 %v5450
      %5818 = vmatpush.bf16.msra.mxu0 %v5449
      %5819 = vmatpush.bf16.msra.mxu0 %v5448
      %5820 = vmatmul.bf16.gmra.mxu0 %v5139
      %v5821 = vpop.f32.mrf.mxu0
      %v5822 = vadd.f32 %v5733, %v5821
      %v5823 = vpop.f32.mrf.mxu0
      %v5824 = vadd.f32 %v5735, %v5823
      %5825 = vmatmul.bf16.gmra.mxu0 %v5144
      %v5826 = vpop.f32.mrf.mxu0
      %v5827 = vadd.f32 %v5738, %v5826
      %v5828 = vpop.f32.mrf.mxu0
      %v5829 = vadd.f32 %v5740, %v5828
      %5830 = vmatmul.bf16.gmra.mxu0 %v5149
      %v5831 = vpop.f32.mrf.mxu0
      %v5832 = vadd.f32 %v5743, %v5831
      %v5833 = vpop.f32.mrf.mxu0
      %v5834 = vadd.f32 %v5745, %v5833
      %5835 = vmatmul.bf16.gmra.mxu0 %v5154
      %v5836 = vpop.f32.mrf.mxu0
      %v5837 = vadd.f32 %v5748, %v5836
      %v5838 = vpop.f32.mrf.mxu0
      %v5839 = vadd.f32 %v5750, %v5838
      %5840 = vmatmul.bf16.gmra.mxu0 %v5159
      %v5841 = vpop.f32.mrf.mxu0
      %v5842 = vadd.f32 %v5753, %v5841
      %v5843 = vpop.f32.mrf.mxu0
      %v5844 = vadd.f32 %v5755, %v5843
      %5845 = vmatmul.bf16.gmra.mxu0 %v5164
      %v5846 = vpop.f32.mrf.mxu0
      %v5847 = vadd.f32 %v5758, %v5846
      %v5848 = vpop.f32.mrf.mxu0
      %v5849 = vadd.f32 %v5760, %v5848
      %5850 = vmatmul.bf16.gmra.mxu0 %v5169
      %v5851 = vpop.f32.mrf.mxu0
      %v5852 = vadd.f32 %v5763, %v5851
      %v5853 = vpop.f32.mrf.mxu0
      %v5854 = vadd.f32 %v5765, %v5853
      %5855 = vmatmul.bf16.gmra.mxu0 %v5174
      %v5856 = vpop.f32.mrf.mxu0
      %v5857 = vadd.f32 %v5768, %v5856
      %v5858 = vpop.f32.mrf.mxu0
      %v5859 = vadd.f32 %v5770, %v5858
      %5860 = vmatmul.bf16.gmra.mxu0 %v5179
      %v5861 = vpop.f32.mrf.mxu0
      %v5862 = vadd.f32 %v5773, %v5861
      %v5863 = vpop.f32.mrf.mxu0
      %v5864 = vadd.f32 %v5775, %v5863
      %5865 = vmatmul.bf16.gmra.mxu0 %v5184
      %v5866 = vpop.f32.mrf.mxu0
      %v5867 = vadd.f32 %v5778, %v5866
      %v5868 = vpop.f32.mrf.mxu0
      %v5869 = vadd.f32 %v5780, %v5868
      %5870 = vmatmul.bf16.gmra.mxu0 %v5189
      %v5871 = vpop.f32.mrf.mxu0
      %v5872 = vadd.f32 %v5783, %v5871
      %v5873 = vpop.f32.mrf.mxu0
      %v5874 = vadd.f32 %v5785, %v5873
      %5875 = vmatmul.bf16.gmra.mxu0 %v5194
      %v5876 = vpop.f32.mrf.mxu0
      %v5877 = vadd.f32 %v5788, %v5876
      %v5878 = vpop.f32.mrf.mxu0
      %v5879 = vadd.f32 %v5790, %v5878
      %5880 = vmatmul.bf16.gmra.mxu0 %v5199
      %v5881 = vpop.f32.mrf.mxu0
      %v5882 = vadd.f32 %v5793, %v5881
      %v5883 = vpop.f32.mrf.mxu0
      %v5884 = vadd.f32 %v5795, %v5883
      %5885 = vmatmul.bf16.gmra.mxu0 %v5204
      %v5886 = vpop.f32.mrf.mxu0
      %v5887 = vadd.f32 %v5798, %v5886
      %v5888 = vpop.f32.mrf.mxu0
      %v5889 = vadd.f32 %v5800, %v5888
      %5890 = vmatmul.bf16.gmra.mxu0 %v5209
      %v5891 = vpop.f32.mrf.mxu0
      %v5892 = vadd.f32 %v5803, %v5891
      %v5893 = vpop.f32.mrf.mxu0
      %v5894 = vadd.f32 %v5805, %v5893
      %5895 = vmatmul.bf16.gmra.mxu0 %v5214
      %v5896 = vpop.f32.mrf.mxu0
      %v5897 = vadd.f32 %v5808, %v5896
      %v5898 = vpop.f32.mrf.mxu0
      %v5899 = vadd.f32 %v5810, %v5898
      %5900 = vdwg.mxu0
      %5901 = vmatpush.bf16.msra.mxu0 0
      %5902 = vmatpush.bf16.msra.mxu0 0
      %5903 = vmatpush.bf16.msra.mxu0 0
      %5904 = vmatpush.bf16.msra.mxu0 0
      %5905 = vmatpush.bf16.msra.mxu0 %v5459
      %5906 = vmatpush.bf16.msra.mxu0 %v5458
      %5907 = vmatpush.bf16.msra.mxu0 %v5457
      %5908 = vmatpush.bf16.msra.mxu0 %v5456
      %5909 = vmatmul.bf16.gmra.mxu0 %v5498
      %v5910 = vpop.f32.mrf.mxu0
      %v5911 = vadd.f32 %v5822, %v5910
      %v5912 = vpop.f32.mrf.mxu0
      %v5913 = vadd.f32 %v5824, %v5912
      %5914 = vmatmul.bf16.gmra.mxu0 %v5501
      %v5915 = vpop.f32.mrf.mxu0
      %v5916 = vadd.f32 %v5827, %v5915
      %v5917 = vpop.f32.mrf.mxu0
      %v5918 = vadd.f32 %v5829, %v5917
      %5919 = vmatmul.bf16.gmra.mxu0 %v5504
      %v5920 = vpop.f32.mrf.mxu0
      %v5921 = vadd.f32 %v5832, %v5920
      %v5922 = vpop.f32.mrf.mxu0
      %v5923 = vadd.f32 %v5834, %v5922
      %5924 = vmatmul.bf16.gmra.mxu0 %v5507
      %v5925 = vpop.f32.mrf.mxu0
      %v5926 = vadd.f32 %v5837, %v5925
      %v5927 = vpop.f32.mrf.mxu0
      %v5928 = vadd.f32 %v5839, %v5927
      %5929 = vmatmul.bf16.gmra.mxu0 %v5510
      %v5930 = vpop.f32.mrf.mxu0
      %v5931 = vadd.f32 %v5842, %v5930
      %v5932 = vpop.f32.mrf.mxu0
      %v5933 = vadd.f32 %v5844, %v5932
      %5934 = vmatmul.bf16.gmra.mxu0 %v5513
      %v5935 = vpop.f32.mrf.mxu0
      %v5936 = vadd.f32 %v5847, %v5935
      %v5937 = vpop.f32.mrf.mxu0
      %v5938 = vadd.f32 %v5849, %v5937
      %5939 = vmatmul.bf16.gmra.mxu0 %v5516
      %v5940 = vpop.f32.mrf.mxu0
      %v5941 = vadd.f32 %v5852, %v5940
      %v5942 = vpop.f32.mrf.mxu0
      %v5943 = vadd.f32 %v5854, %v5942
      %5944 = vmatmul.bf16.gmra.mxu0 %v5519
      %v5945 = vpop.f32.mrf.mxu0
      %v5946 = vadd.f32 %v5857, %v5945
      %v5947 = vpop.f32.mrf.mxu0
      %v5948 = vadd.f32 %v5859, %v5947
      %5949 = vmatmul.bf16.gmra.mxu0 %v5522
      %v5950 = vpop.f32.mrf.mxu0
      %v5951 = vadd.f32 %v5862, %v5950
      %v5952 = vpop.f32.mrf.mxu0
      %v5953 = vadd.f32 %v5864, %v5952
      %5954 = vmatmul.bf16.gmra.mxu0 %v5525
      %v5955 = vpop.f32.mrf.mxu0
      %v5956 = vadd.f32 %v5867, %v5955
      %v5957 = vpop.f32.mrf.mxu0
      %v5958 = vadd.f32 %v5869, %v5957
      %5959 = vmatmul.bf16.gmra.mxu0 %v5528
      %v5960 = vpop.f32.mrf.mxu0
      %v5961 = vadd.f32 %v5872, %v5960
      %v5962 = vpop.f32.mrf.mxu0
      %v5963 = vadd.f32 %v5874, %v5962
      %5964 = vmatmul.bf16.gmra.mxu0 %v5531
      %v5965 = vpop.f32.mrf.mxu0
      %v5966 = vadd.f32 %v5877, %v5965
      %v5967 = vpop.f32.mrf.mxu0
      %v5968 = vadd.f32 %v5879, %v5967
      %5969 = vmatmul.bf16.gmra.mxu0 %v5534
      %v5970 = vpop.f32.mrf.mxu0
      %v5971 = vadd.f32 %v5882, %v5970
      %v5972 = vpop.f32.mrf.mxu0
      %v5973 = vadd.f32 %v5884, %v5972
      %5974 = vmatmul.bf16.gmra.mxu0 %v5537
      %v5975 = vpop.f32.mrf.mxu0
      %v5976 = vadd.f32 %v5887, %v5975
      %v5977 = vpop.f32.mrf.mxu0
      %v5978 = vadd.f32 %v5889, %v5977
      %5979 = vmatmul.bf16.gmra.mxu0 %v5540
      %v5980 = vpop.f32.mrf.mxu0
      %v5981 = vadd.f32 %v5892, %v5980
      %v5982 = vpop.f32.mrf.mxu0
      %v5983 = vadd.f32 %v5894, %v5982
      %5984 = vmatmul.bf16.gmra.mxu0 %v5543
      %v5985 = vpop.f32.mrf.mxu0
      %v5986 = vadd.f32 %v5897, %v5985
      %v5987 = vpop.f32.mrf.mxu0
      %v5988 = vadd.f32 %v5899, %v5987
      %5989 = vdwg.mxu0
      %v5990 = vsel %vm5496, %v5911, 0.0
      %v5991 = vsel %vm5496, %v5913, 0.0
      %v5992 = vadd.f32 %v5990, %v5991
      %v5993 = vsel %vm5496, %v5916, 0.0
      %v5994 = vadd.f32 %v5992, %v5993
      %v5995 = vsel %vm5496, %v5918, 0.0
      %v5996 = vadd.f32 %v5994, %v5995
      %v5997 = vsel %vm5496, %v5921, 0.0
      %v5998 = vadd.f32 %v5996, %v5997
      %v5999 = vsel %vm5496, %v5923, 0.0
      %v6000 = vadd.f32 %v5998, %v5999
      %v6001 = vsel %vm5496, %v5926, 0.0
      %v6002 = vadd.f32 %v6000, %v6001
      %v6003 = vsel %vm5496, %v5928, 0.0
      %v6004 = vadd.f32 %v6002, %v6003
      %v6005 = vsel %vm5496, %v5931, 0.0
      %v6006 = vadd.f32 %v6004, %v6005
      %v6007 = vsel %vm5496, %v5933, 0.0
      %v6008 = vadd.f32 %v6006, %v6007
      %v6009 = vsel %vm5496, %v5936, 0.0
      %v6010 = vadd.f32 %v6008, %v6009
      %v6011 = vsel %vm5496, %v5938, 0.0
      %v6012 = vadd.f32 %v6010, %v6011
      %v6013 = vsel %vm5496, %v5941, 0.0
      %v6014 = vadd.f32 %v6012, %v6013
      %v6015 = vsel %vm5496, %v5943, 0.0
      %v6016 = vadd.f32 %v6014, %v6015
      %v6017 = vsel %vm5496, %v5946, 0.0
      %v6018 = vadd.f32 %v6016, %v6017
      %v6019 = vsel %vm5496, %v5948, 0.0
      %v6020 = vadd.f32 %v6018, %v6019
      %v6021 = vsel %vm5496, %v5951, 0.0
      %v6022 = vadd.f32 %v6020, %v6021
      %v6023 = vsel %vm5496, %v5953, 0.0
      %v6024 = vadd.f32 %v6022, %v6023
      %v6025 = vsel %vm5496, %v5956, 0.0
      %v6026 = vadd.f32 %v6024, %v6025
      %v6027 = vsel %vm5496, %v5958, 0.0
      %v6028 = vadd.f32 %v6026, %v6027
      %v6029 = vsel %vm5496, %v5961, 0.0
      %v6030 = vadd.f32 %v6028, %v6029
      %v6031 = vsel %vm5496, %v5963, 0.0
      %v6032 = vadd.f32 %v6030, %v6031
      %v6033 = vsel %vm5496, %v5966, 0.0
      %v6034 = vadd.f32 %v6032, %v6033
      %v6035 = vsel %vm5496, %v5968, 0.0
      %v6036 = vadd.f32 %v6034, %v6035
      %v6037 = vsel %vm5496, %v5971, 0.0
      %v6038 = vadd.f32 %v6036, %v6037
      %v6039 = vsel %vm5496, %v5973, 0.0
      %v6040 = vadd.f32 %v6038, %v6039
      %v6041 = vsel %vm5496, %v5976, 0.0
      %v6042 = vadd.f32 %v6040, %v6041
      %v6043 = vsel %vm5496, %v5978, 0.0
      %v6044 = vadd.f32 %v6042, %v6043
      %v6045 = vsel %vm5496, %v5981, 0.0
      %v6046 = vadd.f32 %v6044, %v6045
      %v6047 = vsel %vm5496, %v5983, 0.0
      %v6048 = vadd.f32 %v6046, %v6047
      %v6049 = vsel %vm5496, %v5986, 0.0
      %v6050 = vadd.f32 %v6048, %v6049
      %v6051 = vsel %vm5496, %v5988, 0.0
      %v6052 = vadd.f32 %v6050, %v6051
      %v6053 = vrot.slane %v6052, 4
      %v6054 = vadd.f32 %v6052, %v6053
      %v6055 = vrot.slane %v6054, 2
      %v6056 = vadd.f32 %v6054, %v6055
      %v6057 = vrot.slane %v6056, 1
      %v6058 = vadd.f32 %v6056, %v6057
      %v6059 = vmul.f32 %v5911, %v5911
      %v6060 = vmul.f32 %v5913, %v5913
      %v6061 = vmul.f32 %v5916, %v5916
      %v6062 = vmul.f32 %v5918, %v5918
      %v6063 = vmul.f32 %v5921, %v5921
      %v6064 = vmul.f32 %v5923, %v5923
      %v6065 = vmul.f32 %v5926, %v5926
      %v6066 = vmul.f32 %v5928, %v5928
      %v6067 = vmul.f32 %v5931, %v5931
      %v6068 = vmul.f32 %v5933, %v5933
      %v6069 = vmul.f32 %v5936, %v5936
      %v6070 = vmul.f32 %v5938, %v5938
      %v6071 = vmul.f32 %v5941, %v5941
      %v6072 = vmul.f32 %v5943, %v5943
      %v6073 = vmul.f32 %v5946, %v5946
      %v6074 = vmul.f32 %v5948, %v5948
      %v6075 = vmul.f32 %v5951, %v5951
      %v6076 = vmul.f32 %v5953, %v5953
      %v6077 = vmul.f32 %v5956, %v5956
      %v6078 = vmul.f32 %v5958, %v5958
      %v6079 = vmul.f32 %v5961, %v5961
      %v6080 = vmul.f32 %v5963, %v5963
      %v6081 = vmul.f32 %v5966, %v5966
      %v6082 = vmul.f32 %v5968, %v5968
      %v6083 = vmul.f32 %v5971, %v5971
      %v6084 = vmul.f32 %v5973, %v5973
      %v6085 = vmul.f32 %v5976, %v5976
      %v6086 = vmul.f32 %v5978, %v5978
      %v6087 = vmul.f32 %v5981, %v5981
      %v6088 = vmul.f32 %v5983, %v5983
      %v6089 = vmul.f32 %v5986, %v5986
      %v6090 = vmul.f32 %v5988, %v5988
      %v6091 = vsel %vm5496, %v6059, 0.0
      %v6092 = vsel %vm5496, %v6060, 0.0
      %v6093 = vadd.f32 %v6091, %v6092
      %v6094 = vsel %vm5496, %v6061, 0.0
      %v6095 = vadd.f32 %v6093, %v6094
      %v6096 = vsel %vm5496, %v6062, 0.0
      %v6097 = vadd.f32 %v6095, %v6096
      %v6098 = vsel %vm5496, %v6063, 0.0
      %v6099 = vadd.f32 %v6097, %v6098
      %v6100 = vsel %vm5496, %v6064, 0.0
      %v6101 = vadd.f32 %v6099, %v6100
      %v6102 = vsel %vm5496, %v6065, 0.0
      %v6103 = vadd.f32 %v6101, %v6102
      %v6104 = vsel %vm5496, %v6066, 0.0
      %v6105 = vadd.f32 %v6103, %v6104
      %v6106 = vsel %vm5496, %v6067, 0.0
      %v6107 = vadd.f32 %v6105, %v6106
      %v6108 = vsel %vm5496, %v6068, 0.0
      %v6109 = vadd.f32 %v6107, %v6108
      %v6110 = vsel %vm5496, %v6069, 0.0
      %v6111 = vadd.f32 %v6109, %v6110
      %v6112 = vsel %vm5496, %v6070, 0.0
      %v6113 = vadd.f32 %v6111, %v6112
      %v6114 = vsel %vm5496, %v6071, 0.0
      %v6115 = vadd.f32 %v6113, %v6114
      %v6116 = vsel %vm5496, %v6072, 0.0
      %v6117 = vadd.f32 %v6115, %v6116
      %v6118 = vsel %vm5496, %v6073, 0.0
      %v6119 = vadd.f32 %v6117, %v6118
      %v6120 = vsel %vm5496, %v6074, 0.0
      %v6121 = vadd.f32 %v6119, %v6120
      %v6122 = vsel %vm5496, %v6075, 0.0
      %v6123 = vadd.f32 %v6121, %v6122
      %v6124 = vsel %vm5496, %v6076, 0.0
      %v6125 = vadd.f32 %v6123, %v6124
      %v6126 = vsel %vm5496, %v6077, 0.0
      %v6127 = vadd.f32 %v6125, %v6126
      %v6128 = vsel %vm5496, %v6078, 0.0
      %v6129 = vadd.f32 %v6127, %v6128
      %v6130 = vsel %vm5496, %v6079, 0.0
      %v6131 = vadd.f32 %v6129, %v6130
      %v6132 = vsel %vm5496, %v6080, 0.0
      %v6133 = vadd.f32 %v6131, %v6132
      %v6134 = vsel %vm5496, %v6081, 0.0
      %v6135 = vadd.f32 %v6133, %v6134
      %v6136 = vsel %vm5496, %v6082, 0.0
      %v6137 = vadd.f32 %v6135, %v6136
      %v6138 = vsel %vm5496, %v6083, 0.0
      %v6139 = vadd.f32 %v6137, %v6138
      %v6140 = vsel %vm5496, %v6084, 0.0
      %v6141 = vadd.f32 %v6139, %v6140
      %v6142 = vsel %vm5496, %v6085, 0.0
      %v6143 = vadd.f32 %v6141, %v6142
      %v6144 = vsel %vm5496, %v6086, 0.0
      %v6145 = vadd.f32 %v6143, %v6144
      %v6146 = vsel %vm5496, %v6087, 0.0
      %v6147 = vadd.f32 %v6145, %v6146
      %v6148 = vsel %vm5496, %v6088, 0.0
      %v6149 = vadd.f32 %v6147, %v6148
      %v6150 = vsel %vm5496, %v6089, 0.0
      %v6151 = vadd.f32 %v6149, %v6150
      %v6152 = vsel %vm5496, %v6090, 0.0
      %v6153 = vadd.f32 %v6151, %v6152
      %v6154 = vrot.slane %v6153, 4
      %v6155 = vadd.f32 %v6153, %v6154
      %v6156 = vrot.slane %v6155, 2
      %v6157 = vadd.f32 %v6155, %v6156
      %v6158 = vrot.slane %v6157, 1
      %v6159 = vadd.f32 %v6157, %v6158
      %6161 = vrot.lane.b32.xlu0 %v6058, 96
      %v6162 = vpop.permute.xlu0 %6161
      %v6164 = vrot.slane %v6162, 4
      %v6165 = vsel %vm506, %v6164, %v6058
      %v6167 = vunpack.c.l.s4 1934713408
      %v6168 = vunpack.c.0.s8 %v6167
      %v6169 = vperm.slane %v6165, %v6168
      %vm6170 = vcmask 254976
      %v6171 = vsel %vm6170, %v6169, 0.0
      %6172 = vadd.xlane.f32.xlu0 %v6171
      %v6173 = vpop.xlane.xlu0 %6172
      %6175 = vrot.lane.b32.xlu0 %v6159, 96
      %v6176 = vpop.permute.xlu0 %6175
      %v6178 = vrot.slane %v6176, 4
      %v6179 = vsel %vm506, %v6178, %v6159
      %v6181 = vunpack.c.l.s4 1934713408
      %v6182 = vunpack.c.0.s8 %v6181
      %v6183 = vperm.slane %v6179, %v6182
      %v6184 = vsel %vm6170, %v6183, 0.0
      %6185 = vadd.xlane.f32.xlu0 %v6184
      %v6186 = vpop.xlane.xlu0 %6185
      %v6187 = vmul.f32 %v6173, 0.00012207031
      %v6188 = vmul.f32 %v6186, 0.00012207031
      %v6189 = vmul.f32 %v6187, %v6187
      %v6190 = vsub.f32 %v6188, %v6189
      %v6191 = vmax.f32 %v6190, 0.0
      %v6192 = vadd.f32 %v6191, 1e-05
      %v6194 = vunpack.c.l.s4 1934713408
      %v6195 = vunpack.c.0.s8 %v6194
      %v6196 = vperm.slane %v6187, %v6195
      %v6197 = vrot.slane %v6196, 4
      %v6198 = vsel %vm506, 0.0, %v6197
      %6200 = vrot.lane.b32.xlu0 %v6198, 32
      %v6201 = vpop.permute.xlu0 %6200
      %vm6203 = vcmask 261120
      %v6204 = vsel %vm6203, %v6196, %v6201
      %v6205 = vrsqrt.pop %v6192
      %v6206 = vmul.f32 %v6205, %v6192
      %v6207 = vmul.f32 %v6206, %v6205
      %v6208 = vmul.f32 0.5, %v6207
      %v6209 = vsub.f32 1.5, %v6208
      %v6210 = vmul.f32 %v6205, %v6209
      %vm6211 = vweird.f32 %v6192
      %vm6212 = vweird.f32 %v6205
      %vm6213 = vmor %vm6211, %vm6212
      %v6214 = vsel %vm6213, %v6205, %v6210
      %v6216 = vunpack.c.l.s4 1934713408
      %v6217 = vunpack.c.0.s8 %v6216
      %v6218 = vperm.slane %v6214, %v6217
      %v6219 = vrot.slane %v6218, 4
      %v6220 = vsel %vm506, 0.0, %v6219
      %6222 = vrot.lane.b32.xlu0 %v6220, 32
      %v6223 = vpop.permute.xlu0 %6222
      %v6225 = vsel %vm6203, %v6218, %v6223
      %v6226 = vld [vmem:[%s2 + $0x1] sm:$0x1]
      %v6227 = vmul.f32 %v6226, %v6225
      %v6228 = vld [vmem:[%s2 + $0x2] sm:$0x1]
      %v6229 = vmul.f32 %v6204, %v6227
      %v6230 = vsub.f32 %v6228, %v6229
      %v6231 = vperm.slane %v6227, 0
      %v6232 = vmul.f32 %v5911, %v6231
      %v6233 = vmul.f32 %v5913, %v6231
      %v6234 = vmul.f32 %v5916, %v6231
      %v6235 = vmul.f32 %v5918, %v6231
      %v6236 = vmul.f32 %v5921, %v6231
      %v6237 = vmul.f32 %v5923, %v6231
      %v6238 = vmul.f32 %v5926, %v6231
      %v6239 = vmul.f32 %v5928, %v6231
      %v6240 = vmul.f32 %v5931, %v6231
      %v6241 = vmul.f32 %v5933, %v6231
      %v6242 = vmul.f32 %v5936, %v6231
      %v6243 = vmul.f32 %v5938, %v6231
      %v6244 = vmul.f32 %v5941, %v6231
      %v6245 = vmul.f32 %v5943, %v6231
      %v6246 = vmul.f32 %v5946, %v6231
      %v6247 = vmul.f32 %v5948, %v6231
      %v6248 = vmul.f32 %v5951, %v6231
      %v6249 = vmul.f32 %v5953, %v6231
      %v6250 = vmul.f32 %v5956, %v6231
      %v6251 = vmul.f32 %v5958, %v6231
      %v6252 = vmul.f32 %v5961, %v6231
      %v6253 = vmul.f32 %v5963, %v6231
      %v6254 = vmul.f32 %v5966, %v6231
      %v6255 = vmul.f32 %v5968, %v6231
      %v6256 = vmul.f32 %v5971, %v6231
      %v6257 = vmul.f32 %v5973, %v6231
      %v6258 = vmul.f32 %v5976, %v6231
      %v6259 = vmul.f32 %v5978, %v6231
      %v6260 = vmul.f32 %v5981, %v6231
      %v6261 = vmul.f32 %v5983, %v6231
      %v6262 = vmul.f32 %v5986, %v6231
      %v6263 = vmul.f32 %v5988, %v6231
      %v6264 = vperm.slane %v6230, 0
      %v6265 = vadd.f32 %v6232, %v6264
      %v6266 = vadd.f32 %v6233, %v6264
      %v6267 = vadd.f32 %v6234, %v6264
      %v6268 = vadd.f32 %v6235, %v6264
      %v6269 = vadd.f32 %v6236, %v6264
      %v6270 = vadd.f32 %v6237, %v6264
      %v6271 = vadd.f32 %v6238, %v6264
      %v6272 = vadd.f32 %v6239, %v6264
      %v6273 = vadd.f32 %v6240, %v6264
      %v6274 = vadd.f32 %v6241, %v6264
      %v6275 = vadd.f32 %v6242, %v6264
      %v6276 = vadd.f32 %v6243, %v6264
      %v6277 = vadd.f32 %v6244, %v6264
      %v6278 = vadd.f32 %v6245, %v6264
      %v6279 = vadd.f32 %v6246, %v6264
      %v6280 = vadd.f32 %v6247, %v6264
      %v6281 = vadd.f32 %v6248, %v6264
      %v6282 = vadd.f32 %v6249, %v6264
      %v6283 = vadd.f32 %v6250, %v6264
      %v6284 = vadd.f32 %v6251, %v6264
      %v6285 = vadd.f32 %v6252, %v6264
      %v6286 = vadd.f32 %v6253, %v6264
      %v6287 = vadd.f32 %v6254, %v6264
      %v6288 = vadd.f32 %v6255, %v6264
      %v6289 = vadd.f32 %v6256, %v6264
      %v6290 = vadd.f32 %v6257, %v6264
      %v6291 = vadd.f32 %v6258, %v6264
      %v6292 = vadd.f32 %v6259, %v6264
      %v6293 = vadd.f32 %v6260, %v6264
      %v6294 = vadd.f32 %v6261, %v6264
      %v6295 = vadd.f32 %v6262, %v6264
      %v6296 = vadd.f32 %v6263, %v6264
      %v6297 = vxor.u32 %v6265, 2147483648
      %v6298 = vxor.u32 %v6266, 2147483648
      %v6299 = vxor.u32 %v6267, 2147483648
      %v6300 = vxor.u32 %v6268, 2147483648
      %v6301 = vxor.u32 %v6269, 2147483648
      %v6302 = vxor.u32 %v6270, 2147483648
      %v6303 = vxor.u32 %v6271, 2147483648
      %v6304 = vxor.u32 %v6272, 2147483648
      %v6305 = vxor.u32 %v6273, 2147483648
      %v6306 = vxor.u32 %v6274, 2147483648
      %v6307 = vxor.u32 %v6275, 2147483648
      %v6308 = vxor.u32 %v6276, 2147483648
      %v6309 = vxor.u32 %v6277, 2147483648
      %v6310 = vxor.u32 %v6278, 2147483648
      %v6311 = vxor.u32 %v6279, 2147483648
      %v6312 = vxor.u32 %v6280, 2147483648
      %v6313 = vxor.u32 %v6281, 2147483648
      %v6314 = vxor.u32 %v6282, 2147483648
      %v6315 = vxor.u32 %v6283, 2147483648
      %v6316 = vxor.u32 %v6284, 2147483648
      %v6317 = vxor.u32 %v6285, 2147483648
      %v6318 = vxor.u32 %v6286, 2147483648
      %v6319 = vxor.u32 %v6287, 2147483648
      %v6320 = vxor.u32 %v6288, 2147483648
      %v6321 = vxor.u32 %v6289, 2147483648
      %v6322 = vxor.u32 %v6290, 2147483648
      %v6323 = vxor.u32 %v6291, 2147483648
      %v6324 = vxor.u32 %v6292, 2147483648
      %v6325 = vxor.u32 %v6293, 2147483648
      %v6326 = vxor.u32 %v6294, 2147483648
      %v6327 = vxor.u32 %v6295, 2147483648
      %v6328 = vxor.u32 %v6296, 2147483648
      %v6329 = vmul.f32 %v6297, 1.442695
      %v6330 = vpow.pop %v6329
      %v6331 = vmul.f32 %v6298, 1.442695
      %v6332 = vpow.pop %v6331
      %v6333 = vmul.f32 %v6299, 1.442695
      %v6334 = vpow.pop %v6333
      %v6335 = vmul.f32 %v6300, 1.442695
      %v6336 = vpow.pop %v6335
      %v6337 = vmul.f32 %v6301, 1.442695
      %v6338 = vpow.pop %v6337
      %v6339 = vmul.f32 %v6302, 1.442695
      %v6340 = vpow.pop %v6339
      %v6341 = vmul.f32 %v6303, 1.442695
      %v6342 = vpow.pop %v6341
      %v6343 = vmul.f32 %v6304, 1.442695
      %v6344 = vpow.pop %v6343
      %v6345 = vmul.f32 %v6305, 1.442695
      %v6346 = vpow.pop %v6345
      %v6347 = vmul.f32 %v6306, 1.442695
      %v6348 = vpow.pop %v6347
      %v6349 = vmul.f32 %v6307, 1.442695
      %v6350 = vpow.pop %v6349
      %v6351 = vmul.f32 %v6308, 1.442695
      %v6352 = vpow.pop %v6351
      %v6353 = vmul.f32 %v6309, 1.442695
      %v6354 = vpow.pop %v6353
      %v6355 = vmul.f32 %v6310, 1.442695
      %v6356 = vpow.pop %v6355
      %v6357 = vmul.f32 %v6311, 1.442695
      %v6358 = vpow.pop %v6357
      %v6359 = vmul.f32 %v6312, 1.442695
      %v6360 = vpow.pop %v6359
      %v6361 = vmul.f32 %v6313, 1.442695
      %v6362 = vpow.pop %v6361
      %v6363 = vmul.f32 %v6314, 1.442695
      %v6364 = vpow.pop %v6363
      %v6365 = vmul.f32 %v6315, 1.442695
      %v6366 = vpow.pop %v6365
      %v6367 = vmul.f32 %v6316, 1.442695
      %v6368 = vpow.pop %v6367
      %v6369 = vmul.f32 %v6317, 1.442695
      %v6370 = vpow.pop %v6369
      %v6371 = vmul.f32 %v6318, 1.442695
      %v6372 = vpow.pop %v6371
      %v6373 = vmul.f32 %v6319, 1.442695
      %v6374 = vpow.pop %v6373
      %v6375 = vmul.f32 %v6320, 1.442695
      %v6376 = vpow.pop %v6375
      %v6377 = vmul.f32 %v6321, 1.442695
      %v6378 = vpow.pop %v6377
      %v6379 = vmul.f32 %v6322, 1.442695
      %v6380 = vpow.pop %v6379
      %v6381 = vmul.f32 %v6323, 1.442695
      %v6382 = vpow.pop %v6381
      %v6383 = vmul.f32 %v6324, 1.442695
      %v6384 = vpow.pop %v6383
      %v6385 = vmul.f32 %v6325, 1.442695
      %v6386 = vpow.pop %v6385
      %v6387 = vmul.f32 %v6326, 1.442695
      %v6388 = vpow.pop %v6387
      %v6389 = vmul.f32 %v6327, 1.442695
      %v6390 = vpow.pop %v6389
      %v6391 = vmul.f32 %v6328, 1.442695
      %v6392 = vpow.pop %v6391
      %v6393 = vadd.f32 %v6330, 1.0
      %v6394 = vadd.f32 %v6332, 1.0
      %v6395 = vadd.f32 %v6334, 1.0
      %v6396 = vadd.f32 %v6336, 1.0
      %v6397 = vadd.f32 %v6338, 1.0
      %v6398 = vadd.f32 %v6340, 1.0
      %v6399 = vadd.f32 %v6342, 1.0
      %v6400 = vadd.f32 %v6344, 1.0
      %v6401 = vadd.f32 %v6346, 1.0
      %v6402 = vadd.f32 %v6348, 1.0
      %v6403 = vadd.f32 %v6350, 1.0
      %v6404 = vadd.f32 %v6352, 1.0
      %v6405 = vadd.f32 %v6354, 1.0
      %v6406 = vadd.f32 %v6356, 1.0
      %v6407 = vadd.f32 %v6358, 1.0
      %v6408 = vadd.f32 %v6360, 1.0
      %v6409 = vadd.f32 %v6362, 1.0
      %v6410 = vadd.f32 %v6364, 1.0
      %v6411 = vadd.f32 %v6366, 1.0
      %v6412 = vadd.f32 %v6368, 1.0
      %v6413 = vadd.f32 %v6370, 1.0
      %v6414 = vadd.f32 %v6372, 1.0
      %v6415 = vadd.f32 %v6374, 1.0
      %v6416 = vadd.f32 %v6376, 1.0
      %v6417 = vadd.f32 %v6378, 1.0
      %v6418 = vadd.f32 %v6380, 1.0
      %v6419 = vadd.f32 %v6382, 1.0
      %v6420 = vadd.f32 %v6384, 1.0
      %v6421 = vadd.f32 %v6386, 1.0
      %v6422 = vadd.f32 %v6388, 1.0
      %v6423 = vadd.f32 %v6390, 1.0
      %v6424 = vadd.f32 %v6392, 1.0
      %v6425 = vrcp.pop %v6393
      %v6426 = vmul.f32 %v6393, %v6425
      %v6427 = vsub.f32 1.0, %v6426
      %v6428 = vmul.f32 %v6425, %v6427
      %v6429 = vadd.f32 %v6425, %v6428
      %vm6430 = vweird.f32 %v6393
      %vm6431 = vweird.f32 %v6425
      %vm6432 = vmor %vm6430, %vm6431
      %v6433 = vsel %vm6432, %v6425, %v6429
      %v6434 = vand.u32 2147483647, %v6393
      %vm6435 = vcmp.eq.f32.partialorder %v6434, 8.507059e+37
      %v6436 = vand.u32 %v6393, 2147483648
      %v6437 = vor.u32 1.1754944e-38, %v6436
      %v6438 = vsel %vm6435, %v6437, %v6433
      %v6439 = vmul.f32 1.0, %v6438
      %v6440 = vrcp.pop %v6394
      %v6441 = vmul.f32 %v6394, %v6440
      %v6442 = vsub.f32 1.0, %v6441
      %v6443 = vmul.f32 %v6440, %v6442
      %v6444 = vadd.f32 %v6440, %v6443
      %vm6445 = vweird.f32 %v6394
      %vm6446 = vweird.f32 %v6440
      %vm6447 = vmor %vm6445, %vm6446
      %v6448 = vsel %vm6447, %v6440, %v6444
      %v6449 = vand.u32 2147483647, %v6394
      %vm6450 = vcmp.eq.f32.partialorder %v6449, 8.507059e+37
      %v6451 = vand.u32 %v6394, 2147483648
      %v6452 = vor.u32 1.1754944e-38, %v6451
      %v6453 = vsel %vm6450, %v6452, %v6448
      %v6454 = vmul.f32 1.0, %v6453
      %v6455 = vrcp.pop %v6395
      %v6456 = vmul.f32 %v6395, %v6455
      %v6457 = vsub.f32 1.0, %v6456
      %v6458 = vmul.f32 %v6455, %v6457
      %v6459 = vadd.f32 %v6455, %v6458
      %vm6460 = vweird.f32 %v6395
      %vm6461 = vweird.f32 %v6455
      %vm6462 = vmor %vm6460, %vm6461
      %v6463 = vsel %vm6462, %v6455, %v6459
      %v6464 = vand.u32 2147483647, %v6395
      %vm6465 = vcmp.eq.f32.partialorder %v6464, 8.507059e+37
      %v6466 = vand.u32 %v6395, 2147483648
      %v6467 = vor.u32 1.1754944e-38, %v6466
      %v6468 = vsel %vm6465, %v6467, %v6463
      %v6469 = vmul.f32 1.0, %v6468
      %v6470 = vrcp.pop %v6396
      %v6471 = vmul.f32 %v6396, %v6470
      %v6472 = vsub.f32 1.0, %v6471
      %v6473 = vmul.f32 %v6470, %v6472
      %v6474 = vadd.f32 %v6470, %v6473
      %vm6475 = vweird.f32 %v6396
      %vm6476 = vweird.f32 %v6470
      %vm6477 = vmor %vm6475, %vm6476
      %v6478 = vsel %vm6477, %v6470, %v6474
      %v6479 = vand.u32 2147483647, %v6396
      %vm6480 = vcmp.eq.f32.partialorder %v6479, 8.507059e+37
      %v6481 = vand.u32 %v6396, 2147483648
      %v6482 = vor.u32 1.1754944e-38, %v6481
      %v6483 = vsel %vm6480, %v6482, %v6478
      %v6484 = vmul.f32 1.0, %v6483
      %v6485 = vrcp.pop %v6397
      %v6486 = vmul.f32 %v6397, %v6485
      %v6487 = vsub.f32 1.0, %v6486
      %v6488 = vmul.f32 %v6485, %v6487
      %v6489 = vadd.f32 %v6485, %v6488
      %vm6490 = vweird.f32 %v6397
      %vm6491 = vweird.f32 %v6485
      %vm6492 = vmor %vm6490, %vm6491
      %v6493 = vsel %vm6492, %v6485, %v6489
      %v6494 = vand.u32 2147483647, %v6397
      %vm6495 = vcmp.eq.f32.partialorder %v6494, 8.507059e+37
      %v6496 = vand.u32 %v6397, 2147483648
      %v6497 = vor.u32 1.1754944e-38, %v6496
      %v6498 = vsel %vm6495, %v6497, %v6493
      %v6499 = vmul.f32 1.0, %v6498
      %v6500 = vrcp.pop %v6398
      %v6501 = vmul.f32 %v6398, %v6500
      %v6502 = vsub.f32 1.0, %v6501
      %v6503 = vmul.f32 %v6500, %v6502
      %v6504 = vadd.f32 %v6500, %v6503
      %vm6505 = vweird.f32 %v6398
      %vm6506 = vweird.f32 %v6500
      %vm6507 = vmor %vm6505, %vm6506
      %v6508 = vsel %vm6507, %v6500, %v6504
      %v6509 = vand.u32 2147483647, %v6398
      %vm6510 = vcmp.eq.f32.partialorder %v6509, 8.507059e+37
      %v6511 = vand.u32 %v6398, 2147483648
      %v6512 = vor.u32 1.1754944e-38, %v6511
      %v6513 = vsel %vm6510, %v6512, %v6508
      %v6514 = vmul.f32 1.0, %v6513
      %v6515 = vrcp.pop %v6399
      %v6516 = vmul.f32 %v6399, %v6515
      %v6517 = vsub.f32 1.0, %v6516
      %v6518 = vmul.f32 %v6515, %v6517
      %v6519 = vadd.f32 %v6515, %v6518
      %vm6520 = vweird.f32 %v6399
      %vm6521 = vweird.f32 %v6515
      %vm6522 = vmor %vm6520, %vm6521
      %v6523 = vsel %vm6522, %v6515, %v6519
      %v6524 = vand.u32 2147483647, %v6399
      %vm6525 = vcmp.eq.f32.partialorder %v6524, 8.507059e+37
      %v6526 = vand.u32 %v6399, 2147483648
      %v6527 = vor.u32 1.1754944e-38, %v6526
      %v6528 = vsel %vm6525, %v6527, %v6523
      %v6529 = vmul.f32 1.0, %v6528
      %v6530 = vrcp.pop %v6400
      %v6531 = vmul.f32 %v6400, %v6530
      %v6532 = vsub.f32 1.0, %v6531
      %v6533 = vmul.f32 %v6530, %v6532
      %v6534 = vadd.f32 %v6530, %v6533
      %vm6535 = vweird.f32 %v6400
      %vm6536 = vweird.f32 %v6530
      %vm6537 = vmor %vm6535, %vm6536
      %v6538 = vsel %vm6537, %v6530, %v6534
      %v6539 = vand.u32 2147483647, %v6400
      %vm6540 = vcmp.eq.f32.partialorder %v6539, 8.507059e+37
      %v6541 = vand.u32 %v6400, 2147483648
      %v6542 = vor.u32 1.1754944e-38, %v6541
      %v6543 = vsel %vm6540, %v6542, %v6538
      %v6544 = vmul.f32 1.0, %v6543
      %v6545 = vrcp.pop %v6401
      %v6546 = vmul.f32 %v6401, %v6545
      %v6547 = vsub.f32 1.0, %v6546
      %v6548 = vmul.f32 %v6545, %v6547
      %v6549 = vadd.f32 %v6545, %v6548
      %vm6550 = vweird.f32 %v6401
      %vm6551 = vweird.f32 %v6545
      %vm6552 = vmor %vm6550, %vm6551
      %v6553 = vsel %vm6552, %v6545, %v6549
      %v6554 = vand.u32 2147483647, %v6401
      %vm6555 = vcmp.eq.f32.partialorder %v6554, 8.507059e+37
      %v6556 = vand.u32 %v6401, 2147483648
      %v6557 = vor.u32 1.1754944e-38, %v6556
      %v6558 = vsel %vm6555, %v6557, %v6553
      %v6559 = vmul.f32 1.0, %v6558
      %v6560 = vrcp.pop %v6402
      %v6561 = vmul.f32 %v6402, %v6560
      %v6562 = vsub.f32 1.0, %v6561
      %v6563 = vmul.f32 %v6560, %v6562
      %v6564 = vadd.f32 %v6560, %v6563
      %vm6565 = vweird.f32 %v6402
      %vm6566 = vweird.f32 %v6560
      %vm6567 = vmor %vm6565, %vm6566
      %v6568 = vsel %vm6567, %v6560, %v6564
      %v6569 = vand.u32 2147483647, %v6402
      %vm6570 = vcmp.eq.f32.partialorder %v6569, 8.507059e+37
      %v6571 = vand.u32 %v6402, 2147483648
      %v6572 = vor.u32 1.1754944e-38, %v6571
      %v6573 = vsel %vm6570, %v6572, %v6568
      %v6574 = vmul.f32 1.0, %v6573
      %v6575 = vrcp.pop %v6403
      %v6576 = vmul.f32 %v6403, %v6575
      %v6577 = vsub.f32 1.0, %v6576
      %v6578 = vmul.f32 %v6575, %v6577
      %v6579 = vadd.f32 %v6575, %v6578
      %vm6580 = vweird.f32 %v6403
      %vm6581 = vweird.f32 %v6575
      %vm6582 = vmor %vm6580, %vm6581
      %v6583 = vsel %vm6582, %v6575, %v6579
      %v6584 = vand.u32 2147483647, %v6403
      %vm6585 = vcmp.eq.f32.partialorder %v6584, 8.507059e+37
      %v6586 = vand.u32 %v6403, 2147483648
      %v6587 = vor.u32 1.1754944e-38, %v6586
      %v6588 = vsel %vm6585, %v6587, %v6583
      %v6589 = vmul.f32 1.0, %v6588
      %v6590 = vrcp.pop %v6404
      %v6591 = vmul.f32 %v6404, %v6590
      %v6592 = vsub.f32 1.0, %v6591
      %v6593 = vmul.f32 %v6590, %v6592
      %v6594 = vadd.f32 %v6590, %v6593
      %vm6595 = vweird.f32 %v6404
      %vm6596 = vweird.f32 %v6590
      %vm6597 = vmor %vm6595, %vm6596
      %v6598 = vsel %vm6597, %v6590, %v6594
      %v6599 = vand.u32 2147483647, %v6404
      %vm6600 = vcmp.eq.f32.partialorder %v6599, 8.507059e+37
      %v6601 = vand.u32 %v6404, 2147483648
      %v6602 = vor.u32 1.1754944e-38, %v6601
      %v6603 = vsel %vm6600, %v6602, %v6598
      %v6604 = vmul.f32 1.0, %v6603
      %v6605 = vrcp.pop %v6405
      %v6606 = vmul.f32 %v6405, %v6605
      %v6607 = vsub.f32 1.0, %v6606
      %v6608 = vmul.f32 %v6605, %v6607
      %v6609 = vadd.f32 %v6605, %v6608
      %vm6610 = vweird.f32 %v6405
      %vm6611 = vweird.f32 %v6605
      %vm6612 = vmor %vm6610, %vm6611
      %v6613 = vsel %vm6612, %v6605, %v6609
      %v6614 = vand.u32 2147483647, %v6405
      %vm6615 = vcmp.eq.f32.partialorder %v6614, 8.507059e+37
      %v6616 = vand.u32 %v6405, 2147483648
      %v6617 = vor.u32 1.1754944e-38, %v6616
      %v6618 = vsel %vm6615, %v6617, %v6613
      %v6619 = vmul.f32 1.0, %v6618
      %v6620 = vrcp.pop %v6406
      %v6621 = vmul.f32 %v6406, %v6620
      %v6622 = vsub.f32 1.0, %v6621
      %v6623 = vmul.f32 %v6620, %v6622
      %v6624 = vadd.f32 %v6620, %v6623
      %vm6625 = vweird.f32 %v6406
      %vm6626 = vweird.f32 %v6620
      %vm6627 = vmor %vm6625, %vm6626
      %v6628 = vsel %vm6627, %v6620, %v6624
      %v6629 = vand.u32 2147483647, %v6406
      %vm6630 = vcmp.eq.f32.partialorder %v6629, 8.507059e+37
      %v6631 = vand.u32 %v6406, 2147483648
      %v6632 = vor.u32 1.1754944e-38, %v6631
      %v6633 = vsel %vm6630, %v6632, %v6628
      %v6634 = vmul.f32 1.0, %v6633
      %v6635 = vrcp.pop %v6407
      %v6636 = vmul.f32 %v6407, %v6635
      %v6637 = vsub.f32 1.0, %v6636
      %v6638 = vmul.f32 %v6635, %v6637
      %v6639 = vadd.f32 %v6635, %v6638
      %vm6640 = vweird.f32 %v6407
      %vm6641 = vweird.f32 %v6635
      %vm6642 = vmor %vm6640, %vm6641
      %v6643 = vsel %vm6642, %v6635, %v6639
      %v6644 = vand.u32 2147483647, %v6407
      %vm6645 = vcmp.eq.f32.partialorder %v6644, 8.507059e+37
      %v6646 = vand.u32 %v6407, 2147483648
      %v6647 = vor.u32 1.1754944e-38, %v6646
      %v6648 = vsel %vm6645, %v6647, %v6643
      %v6649 = vmul.f32 1.0, %v6648
      %v6650 = vrcp.pop %v6408
      %v6651 = vmul.f32 %v6408, %v6650
      %v6652 = vsub.f32 1.0, %v6651
      %v6653 = vmul.f32 %v6650, %v6652
      %v6654 = vadd.f32 %v6650, %v6653
      %vm6655 = vweird.f32 %v6408
      %vm6656 = vweird.f32 %v6650
      %vm6657 = vmor %vm6655, %vm6656
      %v6658 = vsel %vm6657, %v6650, %v6654
      %v6659 = vand.u32 2147483647, %v6408
      %vm6660 = vcmp.eq.f32.partialorder %v6659, 8.507059e+37
      %v6661 = vand.u32 %v6408, 2147483648
      %v6662 = vor.u32 1.1754944e-38, %v6661
      %v6663 = vsel %vm6660, %v6662, %v6658
      %v6664 = vmul.f32 1.0, %v6663
      %v6665 = vrcp.pop %v6409
      %v6666 = vmul.f32 %v6409, %v6665
      %v6667 = vsub.f32 1.0, %v6666
      %v6668 = vmul.f32 %v6665, %v6667
      %v6669 = vadd.f32 %v6665, %v6668
      %vm6670 = vweird.f32 %v6409
      %vm6671 = vweird.f32 %v6665
      %vm6672 = vmor %vm6670, %vm6671
      %v6673 = vsel %vm6672, %v6665, %v6669
      %v6674 = vand.u32 2147483647, %v6409
      %vm6675 = vcmp.eq.f32.partialorder %v6674, 8.507059e+37
      %v6676 = vand.u32 %v6409, 2147483648
      %v6677 = vor.u32 1.1754944e-38, %v6676
      %v6678 = vsel %vm6675, %v6677, %v6673
      %v6679 = vmul.f32 1.0, %v6678
      %v6680 = vrcp.pop %v6410
      %v6681 = vmul.f32 %v6410, %v6680
      %v6682 = vsub.f32 1.0, %v6681
      %v6683 = vmul.f32 %v6680, %v6682
      %v6684 = vadd.f32 %v6680, %v6683
      %vm6685 = vweird.f32 %v6410
      %vm6686 = vweird.f32 %v6680
      %vm6687 = vmor %vm6685, %vm6686
      %v6688 = vsel %vm6687, %v6680, %v6684
      %v6689 = vand.u32 2147483647, %v6410
      %vm6690 = vcmp.eq.f32.partialorder %v6689, 8.507059e+37
      %v6691 = vand.u32 %v6410, 2147483648
      %v6692 = vor.u32 1.1754944e-38, %v6691
      %v6693 = vsel %vm6690, %v6692, %v6688
      %v6694 = vmul.f32 1.0, %v6693
      %v6695 = vrcp.pop %v6411
      %v6696 = vmul.f32 %v6411, %v6695
      %v6697 = vsub.f32 1.0, %v6696
      %v6698 = vmul.f32 %v6695, %v6697
      %v6699 = vadd.f32 %v6695, %v6698
      %vm6700 = vweird.f32 %v6411
      %vm6701 = vweird.f32 %v6695
      %vm6702 = vmor %vm6700, %vm6701
      %v6703 = vsel %vm6702, %v6695, %v6699
      %v6704 = vand.u32 2147483647, %v6411
      %vm6705 = vcmp.eq.f32.partialorder %v6704, 8.507059e+37
      %v6706 = vand.u32 %v6411, 2147483648
      %v6707 = vor.u32 1.1754944e-38, %v6706
      %v6708 = vsel %vm6705, %v6707, %v6703
      %v6709 = vmul.f32 1.0, %v6708
      %v6710 = vrcp.pop %v6412
      %v6711 = vmul.f32 %v6412, %v6710
      %v6712 = vsub.f32 1.0, %v6711
      %v6713 = vmul.f32 %v6710, %v6712
      %v6714 = vadd.f32 %v6710, %v6713
      %vm6715 = vweird.f32 %v6412
      %vm6716 = vweird.f32 %v6710
      %vm6717 = vmor %vm6715, %vm6716
      %v6718 = vsel %vm6717, %v6710, %v6714
      %v6719 = vand.u32 2147483647, %v6412
      %vm6720 = vcmp.eq.f32.partialorder %v6719, 8.507059e+37
      %v6721 = vand.u32 %v6412, 2147483648
      %v6722 = vor.u32 1.1754944e-38, %v6721
      %v6723 = vsel %vm6720, %v6722, %v6718
      %v6724 = vmul.f32 1.0, %v6723
      %v6725 = vrcp.pop %v6413
      %v6726 = vmul.f32 %v6413, %v6725
      %v6727 = vsub.f32 1.0, %v6726
      %v6728 = vmul.f32 %v6725, %v6727
      %v6729 = vadd.f32 %v6725, %v6728
      %vm6730 = vweird.f32 %v6413
      %vm6731 = vweird.f32 %v6725
      %vm6732 = vmor %vm6730, %vm6731
      %v6733 = vsel %vm6732, %v6725, %v6729
      %v6734 = vand.u32 2147483647, %v6413
      %vm6735 = vcmp.eq.f32.partialorder %v6734, 8.507059e+37
      %v6736 = vand.u32 %v6413, 2147483648
      %v6737 = vor.u32 1.1754944e-38, %v6736
      %v6738 = vsel %vm6735, %v6737, %v6733
      %v6739 = vmul.f32 1.0, %v6738
      %v6740 = vrcp.pop %v6414
      %v6741 = vmul.f32 %v6414, %v6740
      %v6742 = vsub.f32 1.0, %v6741
      %v6743 = vmul.f32 %v6740, %v6742
      %v6744 = vadd.f32 %v6740, %v6743
      %vm6745 = vweird.f32 %v6414
      %vm6746 = vweird.f32 %v6740
      %vm6747 = vmor %vm6745, %vm6746
      %v6748 = vsel %vm6747, %v6740, %v6744
      %v6749 = vand.u32 2147483647, %v6414
      %vm6750 = vcmp.eq.f32.partialorder %v6749, 8.507059e+37
      %v6751 = vand.u32 %v6414, 2147483648
      %v6752 = vor.u32 1.1754944e-38, %v6751
      %v6753 = vsel %vm6750, %v6752, %v6748
      %v6754 = vmul.f32 1.0, %v6753
      %v6755 = vrcp.pop %v6415
      %v6756 = vmul.f32 %v6415, %v6755
      %v6757 = vsub.f32 1.0, %v6756
      %v6758 = vmul.f32 %v6755, %v6757
      %v6759 = vadd.f32 %v6755, %v6758
      %vm6760 = vweird.f32 %v6415
      %vm6761 = vweird.f32 %v6755
      %vm6762 = vmor %vm6760, %vm6761
      %v6763 = vsel %vm6762, %v6755, %v6759
      %v6764 = vand.u32 2147483647, %v6415
      %vm6765 = vcmp.eq.f32.partialorder %v6764, 8.507059e+37
      %v6766 = vand.u32 %v6415, 2147483648
      %v6767 = vor.u32 1.1754944e-38, %v6766
      %v6768 = vsel %vm6765, %v6767, %v6763
      %v6769 = vmul.f32 1.0, %v6768
      %v6770 = vrcp.pop %v6416
      %v6771 = vmul.f32 %v6416, %v6770
      %v6772 = vsub.f32 1.0, %v6771
      %v6773 = vmul.f32 %v6770, %v6772
      %v6774 = vadd.f32 %v6770, %v6773
      %vm6775 = vweird.f32 %v6416
      %vm6776 = vweird.f32 %v6770
      %vm6777 = vmor %vm6775, %vm6776
      %v6778 = vsel %vm6777, %v6770, %v6774
      %v6779 = vand.u32 2147483647, %v6416
      %vm6780 = vcmp.eq.f32.partialorder %v6779, 8.507059e+37
      %v6781 = vand.u32 %v6416, 2147483648
      %v6782 = vor.u32 1.1754944e-38, %v6781
      %v6783 = vsel %vm6780, %v6782, %v6778
      %v6784 = vmul.f32 1.0, %v6783
      %v6785 = vrcp.pop %v6417
      %v6786 = vmul.f32 %v6417, %v6785
      %v6787 = vsub.f32 1.0, %v6786
      %v6788 = vmul.f32 %v6785, %v6787
      %v6789 = vadd.f32 %v6785, %v6788
      %vm6790 = vweird.f32 %v6417
      %vm6791 = vweird.f32 %v6785
      %vm6792 = vmor %vm6790, %vm6791
      %v6793 = vsel %vm6792, %v6785, %v6789
      %v6794 = vand.u32 2147483647, %v6417
      %vm6795 = vcmp.eq.f32.partialorder %v6794, 8.507059e+37
      %v6796 = vand.u32 %v6417, 2147483648
      %v6797 = vor.u32 1.1754944e-38, %v6796
      %v6798 = vsel %vm6795, %v6797, %v6793
      %v6799 = vmul.f32 1.0, %v6798
      %v6800 = vrcp.pop %v6418
      %v6801 = vmul.f32 %v6418, %v6800
      %v6802 = vsub.f32 1.0, %v6801
      %v6803 = vmul.f32 %v6800, %v6802
      %v6804 = vadd.f32 %v6800, %v6803
      %vm6805 = vweird.f32 %v6418
      %vm6806 = vweird.f32 %v6800
      %vm6807 = vmor %vm6805, %vm6806
      %v6808 = vsel %vm6807, %v6800, %v6804
      %v6809 = vand.u32 2147483647, %v6418
      %vm6810 = vcmp.eq.f32.partialorder %v6809, 8.507059e+37
      %v6811 = vand.u32 %v6418, 2147483648
      %v6812 = vor.u32 1.1754944e-38, %v6811
      %v6813 = vsel %vm6810, %v6812, %v6808
      %v6814 = vmul.f32 1.0, %v6813
      %v6815 = vrcp.pop %v6419
      %v6816 = vmul.f32 %v6419, %v6815
      %v6817 = vsub.f32 1.0, %v6816
      %v6818 = vmul.f32 %v6815, %v6817
      %v6819 = vadd.f32 %v6815, %v6818
      %vm6820 = vweird.f32 %v6419
      %vm6821 = vweird.f32 %v6815
      %vm6822 = vmor %vm6820, %vm6821
      %v6823 = vsel %vm6822, %v6815, %v6819
      %v6824 = vand.u32 2147483647, %v6419
      %vm6825 = vcmp.eq.f32.partialorder %v6824, 8.507059e+37
      %v6826 = vand.u32 %v6419, 2147483648
      %v6827 = vor.u32 1.1754944e-38, %v6826
      %v6828 = vsel %vm6825, %v6827, %v6823
      %v6829 = vmul.f32 1.0, %v6828
      %v6830 = vrcp.pop %v6420
      %v6831 = vmul.f32 %v6420, %v6830
      %v6832 = vsub.f32 1.0, %v6831
      %v6833 = vmul.f32 %v6830, %v6832
      %v6834 = vadd.f32 %v6830, %v6833
      %vm6835 = vweird.f32 %v6420
      %vm6836 = vweird.f32 %v6830
      %vm6837 = vmor %vm6835, %vm6836
      %v6838 = vsel %vm6837, %v6830, %v6834
      %v6839 = vand.u32 2147483647, %v6420
      %vm6840 = vcmp.eq.f32.partialorder %v6839, 8.507059e+37
      %v6841 = vand.u32 %v6420, 2147483648
      %v6842 = vor.u32 1.1754944e-38, %v6841
      %v6843 = vsel %vm6840, %v6842, %v6838
      %v6844 = vmul.f32 1.0, %v6843
      %v6845 = vrcp.pop %v6421
      %v6846 = vmul.f32 %v6421, %v6845
      %v6847 = vsub.f32 1.0, %v6846
      %v6848 = vmul.f32 %v6845, %v6847
      %v6849 = vadd.f32 %v6845, %v6848
      %vm6850 = vweird.f32 %v6421
      %vm6851 = vweird.f32 %v6845
      %vm6852 = vmor %vm6850, %vm6851
      %v6853 = vsel %vm6852, %v6845, %v6849
      %v6854 = vand.u32 2147483647, %v6421
      %vm6855 = vcmp.eq.f32.partialorder %v6854, 8.507059e+37
      %v6856 = vand.u32 %v6421, 2147483648
      %v6857 = vor.u32 1.1754944e-38, %v6856
      %v6858 = vsel %vm6855, %v6857, %v6853
      %v6859 = vmul.f32 1.0, %v6858
      %v6860 = vrcp.pop %v6422
      %v6861 = vmul.f32 %v6422, %v6860
      %v6862 = vsub.f32 1.0, %v6861
      %v6863 = vmul.f32 %v6860, %v6862
      %v6864 = vadd.f32 %v6860, %v6863
      %vm6865 = vweird.f32 %v6422
      %vm6866 = vweird.f32 %v6860
      %vm6867 = vmor %vm6865, %vm6866
      %v6868 = vsel %vm6867, %v6860, %v6864
      %v6869 = vand.u32 2147483647, %v6422
      %vm6870 = vcmp.eq.f32.partialorder %v6869, 8.507059e+37
      %v6871 = vand.u32 %v6422, 2147483648
      %v6872 = vor.u32 1.1754944e-38, %v6871
      %v6873 = vsel %vm6870, %v6872, %v6868
      %v6874 = vmul.f32 1.0, %v6873
      %v6875 = vrcp.pop %v6423
      %v6876 = vmul.f32 %v6423, %v6875
      %v6877 = vsub.f32 1.0, %v6876
      %v6878 = vmul.f32 %v6875, %v6877
      %v6879 = vadd.f32 %v6875, %v6878
      %vm6880 = vweird.f32 %v6423
      %vm6881 = vweird.f32 %v6875
      %vm6882 = vmor %vm6880, %vm6881
      %v6883 = vsel %vm6882, %v6875, %v6879
      %v6884 = vand.u32 2147483647, %v6423
      %vm6885 = vcmp.eq.f32.partialorder %v6884, 8.507059e+37
      %v6886 = vand.u32 %v6423, 2147483648
      %v6887 = vor.u32 1.1754944e-38, %v6886
      %v6888 = vsel %vm6885, %v6887, %v6883
      %v6889 = vmul.f32 1.0, %v6888
      %v6890 = vrcp.pop %v6424
      %v6891 = vmul.f32 %v6424, %v6890
      %v6892 = vsub.f32 1.0, %v6891
      %v6893 = vmul.f32 %v6890, %v6892
      %v6894 = vadd.f32 %v6890, %v6893
      %vm6895 = vweird.f32 %v6424
      %vm6896 = vweird.f32 %v6890
      %vm6897 = vmor %vm6895, %vm6896
      %v6898 = vsel %vm6897, %v6890, %v6894
      %v6899 = vand.u32 2147483647, %v6424
      %vm6900 = vcmp.eq.f32.partialorder %v6899, 8.507059e+37
      %v6901 = vand.u32 %v6424, 2147483648
      %v6902 = vor.u32 1.1754944e-38, %v6901
      %v6903 = vsel %vm6900, %v6902, %v6898
      %v6904 = vmul.f32 1.0, %v6903
      %6937 = vrot.lane.b32.xlu0 %v954, 32
      %v6938 = vpop.permute.xlu0 %6937
      %6939 = vrot.lane.b32.xlu0 %v955, 32
      %v6940 = vpop.permute.xlu0 %6939
      %6941 = vrot.lane.b32.xlu0 %v956, 32
      %v6942 = vpop.permute.xlu0 %6941
      %6943 = vrot.lane.b32.xlu0 %v957, 32
      %v6944 = vpop.permute.xlu0 %6943
      %6945 = vrot.lane.b32.xlu0 %v958, 32
      %v6946 = vpop.permute.xlu0 %6945
      %6947 = vrot.lane.b32.xlu0 %v959, 32
      %v6948 = vpop.permute.xlu0 %6947
      %6949 = vrot.lane.b32.xlu0 %v960, 32
      %v6950 = vpop.permute.xlu0 %6949
      %6951 = vrot.lane.b32.xlu0 %v961, 32
      %v6952 = vpop.permute.xlu0 %6951
      %6953 = vrot.lane.b32.xlu0 %v962, 32
      %v6954 = vpop.permute.xlu0 %6953
      %6955 = vrot.lane.b32.xlu0 %v963, 32
      %v6956 = vpop.permute.xlu0 %6955
      %6957 = vrot.lane.b32.xlu0 %v964, 32
      %v6958 = vpop.permute.xlu0 %6957
      %6959 = vrot.lane.b32.xlu0 %v965, 32
      %v6960 = vpop.permute.xlu0 %6959
      %6961 = vrot.lane.b32.xlu0 %v966, 32
      %v6962 = vpop.permute.xlu0 %6961
      %6963 = vrot.lane.b32.xlu0 %v967, 32
      %v6964 = vpop.permute.xlu0 %6963
      %6965 = vrot.lane.b32.xlu0 %v968, 32
      %v6966 = vpop.permute.xlu0 %6965
      %6967 = vrot.lane.b32.xlu0 %v969, 32
      %v6968 = vpop.permute.xlu0 %6967
      %6969 = vrot.lane.b32.xlu0 %v970, 32
      %v6970 = vpop.permute.xlu0 %6969
      %6971 = vrot.lane.b32.xlu0 %v971, 32
      %v6972 = vpop.permute.xlu0 %6971
      %6973 = vrot.lane.b32.xlu0 %v972, 32
      %v6974 = vpop.permute.xlu0 %6973
      %6975 = vrot.lane.b32.xlu0 %v973, 32
      %v6976 = vpop.permute.xlu0 %6975
      %6977 = vrot.lane.b32.xlu0 %v974, 32
      %v6978 = vpop.permute.xlu0 %6977
      %6979 = vrot.lane.b32.xlu0 %v975, 32
      %v6980 = vpop.permute.xlu0 %6979
      %6981 = vrot.lane.b32.xlu0 %v976, 32
      %v6982 = vpop.permute.xlu0 %6981
      %6983 = vrot.lane.b32.xlu0 %v977, 32
      %v6984 = vpop.permute.xlu0 %6983
      %6985 = vrot.lane.b32.xlu0 %v978, 32
      %v6986 = vpop.permute.xlu0 %6985
      %6987 = vrot.lane.b32.xlu0 %v979, 32
      %v6988 = vpop.permute.xlu0 %6987
      %6989 = vrot.lane.b32.xlu0 %v980, 32
      %v6990 = vpop.permute.xlu0 %6989
      %6991 = vrot.lane.b32.xlu0 %v981, 32
      %v6992 = vpop.permute.xlu0 %6991
      %6993 = vrot.lane.b32.xlu0 %v982, 32
      %v6994 = vpop.permute.xlu0 %6993
      %6995 = vrot.lane.b32.xlu0 %v983, 32
      %v6996 = vpop.permute.xlu0 %6995
      %6997 = vrot.lane.b32.xlu0 %v984, 32
      %v6998 = vpop.permute.xlu0 %6997
      %6999 = vrot.lane.b32.xlu0 %v985, 32
      %v7000 = vpop.permute.xlu0 %6999
      %v7033 = vmul.f32 %v6439, %v6938
      %v7034 = vmul.f32 %v6454, %v6940
      %v7035 = vmul.f32 %v6469, %v6942
      %v7036 = vmul.f32 %v6484, %v6944
      %v7037 = vmul.f32 %v6499, %v6946
      %v7038 = vmul.f32 %v6514, %v6948
      %v7039 = vmul.f32 %v6529, %v6950
      %v7040 = vmul.f32 %v6544, %v6952
      %v7041 = vmul.f32 %v6559, %v6954
      %v7042 = vmul.f32 %v6574, %v6956
      %v7043 = vmul.f32 %v6589, %v6958
      %v7044 = vmul.f32 %v6604, %v6960
      %v7045 = vmul.f32 %v6619, %v6962
      %v7046 = vmul.f32 %v6634, %v6964
      %v7047 = vmul.f32 %v6649, %v6966
      %v7048 = vmul.f32 %v6664, %v6968
      %v7049 = vmul.f32 %v6679, %v6970
      %v7050 = vmul.f32 %v6694, %v6972
      %v7051 = vmul.f32 %v6709, %v6974
      %v7052 = vmul.f32 %v6724, %v6976
      %v7053 = vmul.f32 %v6739, %v6978
      %v7054 = vmul.f32 %v6754, %v6980
      %v7055 = vmul.f32 %v6769, %v6982
      %v7056 = vmul.f32 %v6784, %v6984
      %v7057 = vmul.f32 %v6799, %v6986
      %v7058 = vmul.f32 %v6814, %v6988
      %v7059 = vmul.f32 %v6829, %v6990
      %v7060 = vmul.f32 %v6844, %v6992
      %v7061 = vmul.f32 %v6859, %v6994
      %v7062 = vmul.f32 %v6874, %v6996
      %v7063 = vmul.f32 %v6889, %v6998
      %v7064 = vmul.f32 %v6904, %v7000
      %v7065 = vpack.c.bf16 %v7033, %v7033
      %v7066 = vpack.c.bf16 %v7034, %v7034
      %v7067 = vpack.c.bf16 %v7035, %v7035
      %v7068 = vpack.c.bf16 %v7036, %v7036
      %v7069 = vpack.c.bf16 %v7037, %v7037
      %v7070 = vpack.c.bf16 %v7038, %v7038
      %v7071 = vpack.c.bf16 %v7039, %v7039
      %v7072 = vpack.c.bf16 %v7040, %v7040
      %v7073 = vpack.c.bf16 %v7041, %v7041
      %v7074 = vpack.c.bf16 %v7042, %v7042
      %v7075 = vpack.c.bf16 %v7043, %v7043
      %v7076 = vpack.c.bf16 %v7044, %v7044
      %v7077 = vpack.c.bf16 %v7045, %v7045
      %v7078 = vpack.c.bf16 %v7046, %v7046
      %v7079 = vpack.c.bf16 %v7047, %v7047
      %v7080 = vpack.c.bf16 %v7048, %v7048
      %v7081 = vpack.c.bf16 %v7049, %v7049
      %v7082 = vpack.c.bf16 %v7050, %v7050
      %v7083 = vpack.c.bf16 %v7051, %v7051
      %v7084 = vpack.c.bf16 %v7052, %v7052
      %v7085 = vpack.c.bf16 %v7053, %v7053
      %v7086 = vpack.c.bf16 %v7054, %v7054
      %v7087 = vpack.c.bf16 %v7055, %v7055
      %v7088 = vpack.c.bf16 %v7056, %v7056
      %v7089 = vpack.c.bf16 %v7057, %v7057
      %v7090 = vpack.c.bf16 %v7058, %v7058
      %v7091 = vpack.c.bf16 %v7059, %v7059
      %v7092 = vpack.c.bf16 %v7060, %v7060
      %v7093 = vpack.c.bf16 %v7061, %v7061
      %v7094 = vpack.c.bf16 %v7062, %v7062
      %v7095 = vpack.c.bf16 %v7063, %v7063
      %v7096 = vpack.c.bf16 %v7064, %v7064
      %7129 = vrot.lane.b32.xlu0 %v7065, 96
      %v7130 = vpop.permute.xlu0 %7129
      %7131 = vrot.lane.b32.xlu0 %v7066, 96
      %v7132 = vpop.permute.xlu0 %7131
      %7133 = vrot.lane.b32.xlu0 %v7067, 96
      %v7134 = vpop.permute.xlu0 %7133
      %7135 = vrot.lane.b32.xlu0 %v7068, 96
      %v7136 = vpop.permute.xlu0 %7135
      %7137 = vrot.lane.b32.xlu0 %v7069, 96
      %v7138 = vpop.permute.xlu0 %7137
      %7139 = vrot.lane.b32.xlu0 %v7070, 96
      %v7140 = vpop.permute.xlu0 %7139
      %7141 = vrot.lane.b32.xlu0 %v7071, 96
      %v7142 = vpop.permute.xlu0 %7141
      %7143 = vrot.lane.b32.xlu0 %v7072, 96
      %v7144 = vpop.permute.xlu0 %7143
      %7145 = vrot.lane.b32.xlu0 %v7073, 96
      %v7146 = vpop.permute.xlu0 %7145
      %7147 = vrot.lane.b32.xlu0 %v7074, 96
      %v7148 = vpop.permute.xlu0 %7147
      %7149 = vrot.lane.b32.xlu0 %v7075, 96
      %v7150 = vpop.permute.xlu0 %7149
      %7151 = vrot.lane.b32.xlu0 %v7076, 96
      %v7152 = vpop.permute.xlu0 %7151
      %7153 = vrot.lane.b32.xlu0 %v7077, 96
      %v7154 = vpop.permute.xlu0 %7153
      %7155 = vrot.lane.b32.xlu0 %v7078, 96
      %v7156 = vpop.permute.xlu0 %7155
      %7157 = vrot.lane.b32.xlu0 %v7079, 96
      %v7158 = vpop.permute.xlu0 %7157
      %7159 = vrot.lane.b32.xlu0 %v7080, 96
      %v7160 = vpop.permute.xlu0 %7159
      %7161 = vrot.lane.b32.xlu0 %v7081, 96
      %v7162 = vpop.permute.xlu0 %7161
      %7163 = vrot.lane.b32.xlu0 %v7082, 96
      %v7164 = vpop.permute.xlu0 %7163
      %7165 = vrot.lane.b32.xlu0 %v7083, 96
      %v7166 = vpop.permute.xlu0 %7165
      %7167 = vrot.lane.b32.xlu0 %v7084, 96
      %v7168 = vpop.permute.xlu0 %7167
      %7169 = vrot.lane.b32.xlu0 %v7085, 96
      %v7170 = vpop.permute.xlu0 %7169
      %7171 = vrot.lane.b32.xlu0 %v7086, 96
      %v7172 = vpop.permute.xlu0 %7171
      %7173 = vrot.lane.b32.xlu0 %v7087, 96
      %v7174 = vpop.permute.xlu0 %7173
      %7175 = vrot.lane.b32.xlu0 %v7088, 96
      %v7176 = vpop.permute.xlu0 %7175
      %7177 = vrot.lane.b32.xlu0 %v7089, 96
      %v7178 = vpop.permute.xlu0 %7177
      %7179 = vrot.lane.b32.xlu0 %v7090, 96
      %v7180 = vpop.permute.xlu0 %7179
      %7181 = vrot.lane.b32.xlu0 %v7091, 96
      %v7182 = vpop.permute.xlu0 %7181
      %7183 = vrot.lane.b32.xlu0 %v7092, 96
      %v7184 = vpop.permute.xlu0 %7183
      %7185 = vrot.lane.b32.xlu0 %v7093, 96
      %v7186 = vpop.permute.xlu0 %7185
      %7187 = vrot.lane.b32.xlu0 %v7094, 96
      %v7188 = vpop.permute.xlu0 %7187
      %7189 = vrot.lane.b32.xlu0 %v7095, 96
      %v7190 = vpop.permute.xlu0 %7189
      %7191 = vrot.lane.b32.xlu0 %v7096, 96
      %v7192 = vpop.permute.xlu0 %7191
      %7225 = vst.msk [vmem:[%s1146 + $0x4] sm:$0xf] %vm1212, %v7130
      %7226 = vst.msk [vmem:[%s1146 + $0x8] sm:$0xf] %vm1212, %v7132
      %7227 = vst.msk [vmem:[%s1146 + $0x14] sm:$0xf] %vm1212, %v7134
      %7228 = vst.msk [vmem:[%s1146 + $0x18] sm:$0xf] %vm1212, %v7136
      %7229 = vst.msk [vmem:[%s1146 + $0x24] sm:$0xf] %vm1212, %v7138
      %7230 = vst.msk [vmem:[%s1146 + $0x28] sm:$0xf] %vm1212, %v7140
      %7231 = vst.msk [vmem:[%s1146 + $0x34] sm:$0xf] %vm1212, %v7142
      %7232 = vst.msk [vmem:[%s1146 + $0x38] sm:$0xf] %vm1212, %v7144
      %7233 = vst.msk [vmem:[%s1146 + $0x44] sm:$0xf] %vm1212, %v7146
      %7234 = vst.msk [vmem:[%s1146 + $0x48] sm:$0xf] %vm1212, %v7148
      %7235 = vst.msk [vmem:[%s1146 + $0x54] sm:$0xf] %vm1212, %v7150
      %7236 = vst.msk [vmem:[%s1146 + $0x58] sm:$0xf] %vm1212, %v7152
      %7237 = vst.msk [vmem:[%s1146 + $0x64] sm:$0xf] %vm1212, %v7154
      %7238 = vst.msk [vmem:[%s1146 + $0x68] sm:$0xf] %vm1212, %v7156
      %7239 = vst.msk [vmem:[%s1146 + $0x74] sm:$0xf] %vm1212, %v7158
      %7240 = vst.msk [vmem:[%s1146 + $0x78] sm:$0xf] %vm1212, %v7160
      %7241 = vst.msk [vmem:[%s1146 + $0x84] sm:$0xf] %vm1212, %v7162
      %7242 = vst.msk [vmem:[%s1146 + $0x88] sm:$0xf] %vm1212, %v7164
      %7243 = vst.msk [vmem:[%s1146 + $0x94] sm:$0xf] %vm1212, %v7166
      %7244 = vst.msk [vmem:[%s1146 + $0x98] sm:$0xf] %vm1212, %v7168
      %7245 = vst.msk [vmem:[%s1146 + $0xa4] sm:$0xf] %vm1212, %v7170
      %7246 = vst.msk [vmem:[%s1146 + $0xa8] sm:$0xf] %vm1212, %v7172
      %7247 = vst.msk [vmem:[%s1146 + $0xb4] sm:$0xf] %vm1212, %v7174
      %7248 = vst.msk [vmem:[%s1146 + $0xb8] sm:$0xf] %vm1212, %v7176
      %7249 = vst.msk [vmem:[%s1146 + $0xc4] sm:$0xf] %vm1212, %v7178
      %7250 = vst.msk [vmem:[%s1146 + $0xc8] sm:$0xf] %vm1212, %v7180
      %7251 = vst.msk [vmem:[%s1146 + $0xd4] sm:$0xf] %vm1212, %v7182
      %7252 = vst.msk [vmem:[%s1146 + $0xd8] sm:$0xf] %vm1212, %v7184
      %7253 = vst.msk [vmem:[%s1146 + $0xe4] sm:$0xf] %vm1212, %v7186
      %7254 = vst.msk [vmem:[%s1146 + $0xe8] sm:$0xf] %vm1212, %v7188
      %7255 = vst.msk [vmem:[%s1146 + $0xf4] sm:$0xf] %vm1212, %v7190
      %7256 = vst.msk [vmem:[%s1146 + $0xf8] sm:$0xf] %vm1212, %v7192
      %v7257 = vld [vmem:[#allocation3] sm:$0x8]
      %v7258 = vld [vmem:[#allocation3 + $0x4] sm:$0xf]
      %v7259 = vld [vmem:[#allocation3 + $0x8] sm:$0xf]
      %v7260 = vld [vmem:[#allocation3 + $0x10] sm:$0x8]
      %v7261 = vld [vmem:[#allocation3 + $0x14] sm:$0xf]
      %v7262 = vld [vmem:[#allocation3 + $0x18] sm:$0xf]
      %v7263 = vld [vmem:[#allocation3 + $0x20] sm:$0x8]
      %v7264 = vld [vmem:[#allocation3 + $0x24] sm:$0xf]
      %v7265 = vld [vmem:[#allocation3 + $0x28] sm:$0xf]
      %v7266 = vld [vmem:[#allocation3 + $0x30] sm:$0x8]
      %v7267 = vld [vmem:[#allocation3 + $0x34] sm:$0xf]
      %v7268 = vld [vmem:[#allocation3 + $0x38] sm:$0xf]
      %v7269 = vld [vmem:[#allocation3 + $0x40] sm:$0x8]
      %v7270 = vld [vmem:[#allocation3 + $0x44] sm:$0xf]
      %v7271 = vld [vmem:[#allocation3 + $0x48] sm:$0xf]
      %v7272 = vld [vmem:[#allocation3 + $0x50] sm:$0x8]
      %v7273 = vld [vmem:[#allocation3 + $0x54] sm:$0xf]
      %v7274 = vld [vmem:[#allocation3 + $0x58] sm:$0xf]
      %v7275 = vld [vmem:[#allocation3 + $0x60] sm:$0x8]
      %v7276 = vld [vmem:[#allocation3 + $0x64] sm:$0xf]
      %v7277 = vld [vmem:[#allocation3 + $0x68] sm:$0xf]
      %v7278 = vld [vmem:[#allocation3 + $0x70] sm:$0x8]
      %v7279 = vld [vmem:[#allocation3 + $0x74] sm:$0xf]
      %v7280 = vld [vmem:[#allocation3 + $0x78] sm:$0xf]
      %v7281 = vld [vmem:[#allocation3 + $0x80] sm:$0x8]
      %v7282 = vld [vmem:[#allocation3 + $0x84] sm:$0xf]
      %v7283 = vld [vmem:[#allocation3 + $0x88] sm:$0xf]
      %v7284 = vld [vmem:[#allocation3 + $0x90] sm:$0x8]
      %v7285 = vld [vmem:[#allocation3 + $0x94] sm:$0xf]
      %v7286 = vld [vmem:[#allocation3 + $0x98] sm:$0xf]
      %v7287 = vld [vmem:[#allocation3 + $0xa0] sm:$0x8]
      %v7288 = vld [vmem:[#allocation3 + $0xa4] sm:$0xf]
      %v7289 = vld [vmem:[#allocation3 + $0xa8] sm:$0xf]
      %v7290 = vld [vmem:[#allocation3 + $0xb0] sm:$0x8]
      %v7291 = vld [vmem:[#allocation3 + $0xb4] sm:$0xf]
      %v7292 = vld [vmem:[#allocation3 + $0xb8] sm:$0xf]
      %v7293 = vld [vmem:[#allocation3 + $0xc0] sm:$0x8]
      %v7294 = vld [vmem:[#allocation3 + $0xc4] sm:$0xf]
      %v7295 = vld [vmem:[#allocation3 + $0xc8] sm:$0xf]
      %v7296 = vld [vmem:[#allocation3 + $0xd0] sm:$0x8]
      %v7297 = vld [vmem:[#allocation3 + $0xd4] sm:$0xf]
      %v7298 = vld [vmem:[#allocation3 + $0xd8] sm:$0xf]
      %v7299 = vld [vmem:[#allocation3 + $0xe0] sm:$0x8]
      %v7300 = vld [vmem:[#allocation3 + $0xe4] sm:$0xf]
      %v7301 = vld [vmem:[#allocation3 + $0xe8] sm:$0xf]
      %v7302 = vld [vmem:[#allocation3 + $0xf0] sm:$0x8]
      %v7303 = vld [vmem:[#allocation3 + $0xf4] sm:$0xf]
      %v7304 = vld [vmem:[#allocation3 + $0xf8] sm:$0xf]
      %v7306 = vshrl.u32 %v7257, 16
      %v7308 = vrot.slane %v7306, 7
      %v7309 = vrot.slane %v7308, 4
      %v7311 = vshrl.u32 %v7258, 16
      %v7313 = vrot.slane %v7311, 7
      %v7314 = vshll.u32 %v7258, 16
      %v7316 = vor.u32 %v7313, %v7314
      %v7317 = vsel %vm1295, %v7309, %v7316
      %v7318 = vrot.slane %v7313, 4
      %v7320 = vshrl.u32 %v7259, 16
      %v7322 = vrot.slane %v7320, 7
      %v7323 = vshll.u32 %v7259, 16
      %v7325 = vor.u32 %v7322, %v7323
      %v7326 = vsel %vm1295, %v7318, %v7325
      %v7328 = vshrl.u32 %v7260, 16
      %v7330 = vrot.slane %v7328, 7
      %v7331 = vrot.slane %v7330, 4
      %v7333 = vshrl.u32 %v7261, 16
      %v7335 = vrot.slane %v7333, 7
      %v7336 = vshll.u32 %v7261, 16
      %v7338 = vor.u32 %v7335, %v7336
      %v7339 = vsel %vm1295, %v7331, %v7338
      %v7340 = vrot.slane %v7335, 4
      %v7342 = vshrl.u32 %v7262, 16
      %v7344 = vrot.slane %v7342, 7
      %v7345 = vshll.u32 %v7262, 16
      %v7347 = vor.u32 %v7344, %v7345
      %v7348 = vsel %vm1295, %v7340, %v7347
      %v7350 = vshrl.u32 %v7263, 16
      %v7352 = vrot.slane %v7350, 7
      %v7353 = vrot.slane %v7352, 4
      %v7355 = vshrl.u32 %v7264, 16
      %v7357 = vrot.slane %v7355, 7
      %v7358 = vshll.u32 %v7264, 16
      %v7360 = vor.u32 %v7357, %v7358
      %v7361 = vsel %vm1295, %v7353, %v7360
      %v7362 = vrot.slane %v7357, 4
      %v7364 = vshrl.u32 %v7265, 16
      %v7366 = vrot.slane %v7364, 7
      %v7367 = vshll.u32 %v7265, 16
      %v7369 = vor.u32 %v7366, %v7367
      %v7370 = vsel %vm1295, %v7362, %v7369
      %v7372 = vshrl.u32 %v7266, 16
      %v7374 = vrot.slane %v7372, 7
      %v7375 = vrot.slane %v7374, 4
      %v7377 = vshrl.u32 %v7267, 16
      %v7379 = vrot.slane %v7377, 7
      %v7380 = vshll.u32 %v7267, 16
      %v7382 = vor.u32 %v7379, %v7380
      %v7383 = vsel %vm1295, %v7375, %v7382
      %v7384 = vrot.slane %v7379, 4
      %v7386 = vshrl.u32 %v7268, 16
      %v7388 = vrot.slane %v7386, 7
      %v7389 = vshll.u32 %v7268, 16
      %v7391 = vor.u32 %v7388, %v7389
      %v7392 = vsel %vm1295, %v7384, %v7391
      %v7394 = vshrl.u32 %v7269, 16
      %v7396 = vrot.slane %v7394, 7
      %v7397 = vrot.slane %v7396, 4
      %v7399 = vshrl.u32 %v7270, 16
      %v7401 = vrot.slane %v7399, 7
      %v7402 = vshll.u32 %v7270, 16
      %v7404 = vor.u32 %v7401, %v7402
      %v7405 = vsel %vm1295, %v7397, %v7404
      %v7406 = vrot.slane %v7401, 4
      %v7408 = vshrl.u32 %v7271, 16
      %v7410 = vrot.slane %v7408, 7
      %v7411 = vshll.u32 %v7271, 16
      %v7413 = vor.u32 %v7410, %v7411
      %v7414 = vsel %vm1295, %v7406, %v7413
      %v7416 = vshrl.u32 %v7272, 16
      %v7418 = vrot.slane %v7416, 7
      %v7419 = vrot.slane %v7418, 4
      %v7421 = vshrl.u32 %v7273, 16
      %v7423 = vrot.slane %v7421, 7
      %v7424 = vshll.u32 %v7273, 16
      %v7426 = vor.u32 %v7423, %v7424
      %v7427 = vsel %vm1295, %v7419, %v7426
      %v7428 = vrot.slane %v7423, 4
      %v7430 = vshrl.u32 %v7274, 16
      %v7432 = vrot.slane %v7430, 7
      %v7433 = vshll.u32 %v7274, 16
      %v7435 = vor.u32 %v7432, %v7433
      %v7436 = vsel %vm1295, %v7428, %v7435
      %v7438 = vshrl.u32 %v7275, 16
      %v7440 = vrot.slane %v7438, 7
      %v7441 = vrot.slane %v7440, 4
      %v7443 = vshrl.u32 %v7276, 16
      %v7445 = vrot.slane %v7443, 7
      %v7446 = vshll.u32 %v7276, 16
      %v7448 = vor.u32 %v7445, %v7446
      %v7449 = vsel %vm1295, %v7441, %v7448
      %v7450 = vrot.slane %v7445, 4
      %v7452 = vshrl.u32 %v7277, 16
      %v7454 = vrot.slane %v7452, 7
      %v7455 = vshll.u32 %v7277, 16
      %v7457 = vor.u32 %v7454, %v7455
      %v7458 = vsel %vm1295, %v7450, %v7457
      %v7460 = vshrl.u32 %v7278, 16
      %v7462 = vrot.slane %v7460, 7
      %v7463 = vrot.slane %v7462, 4
      %v7465 = vshrl.u32 %v7279, 16
      %v7467 = vrot.slane %v7465, 7
      %v7468 = vshll.u32 %v7279, 16
      %v7470 = vor.u32 %v7467, %v7468
      %v7471 = vsel %vm1295, %v7463, %v7470
      %v7472 = vrot.slane %v7467, 4
      %v7474 = vshrl.u32 %v7280, 16
      %v7476 = vrot.slane %v7474, 7
      %v7477 = vshll.u32 %v7280, 16
      %v7479 = vor.u32 %v7476, %v7477
      %v7480 = vsel %vm1295, %v7472, %v7479
      %v7482 = vshrl.u32 %v7281, 16
      %v7484 = vrot.slane %v7482, 7
      %v7485 = vrot.slane %v7484, 4
      %v7487 = vshrl.u32 %v7282, 16
      %v7489 = vrot.slane %v7487, 7
      %v7490 = vshll.u32 %v7282, 16
      %v7492 = vor.u32 %v7489, %v7490
      %v7493 = vsel %vm1295, %v7485, %v7492
      %v7494 = vrot.slane %v7489, 4
      %v7496 = vshrl.u32 %v7283, 16
      %v7498 = vrot.slane %v7496, 7
      %v7499 = vshll.u32 %v7283, 16
      %v7501 = vor.u32 %v7498, %v7499
      %v7502 = vsel %vm1295, %v7494, %v7501
      %v7504 = vshrl.u32 %v7284, 16
      %v7506 = vrot.slane %v7504, 7
      %v7507 = vrot.slane %v7506, 4
      %v7509 = vshrl.u32 %v7285, 16
      %v7511 = vrot.slane %v7509, 7
      %v7512 = vshll.u32 %v7285, 16
      %v7514 = vor.u32 %v7511, %v7512
      %v7515 = vsel %vm1295, %v7507, %v7514
      %v7516 = vrot.slane %v7511, 4
      %v7518 = vshrl.u32 %v7286, 16
      %v7520 = vrot.slane %v7518, 7
      %v7521 = vshll.u32 %v7286, 16
      %v7523 = vor.u32 %v7520, %v7521
      %v7524 = vsel %vm1295, %v7516, %v7523
      %v7526 = vshrl.u32 %v7287, 16
      %v7528 = vrot.slane %v7526, 7
      %v7529 = vrot.slane %v7528, 4
      %v7531 = vshrl.u32 %v7288, 16
      %v7533 = vrot.slane %v7531, 7
      %v7534 = vshll.u32 %v7288, 16
      %v7536 = vor.u32 %v7533, %v7534
      %v7537 = vsel %vm1295, %v7529, %v7536
      %v7538 = vrot.slane %v7533, 4
      %v7540 = vshrl.u32 %v7289, 16
      %v7542 = vrot.slane %v7540, 7
      %v7543 = vshll.u32 %v7289, 16
      %v7545 = vor.u32 %v7542, %v7543
      %v7546 = vsel %vm1295, %v7538, %v7545
      %v7548 = vshrl.u32 %v7290, 16
      %v7550 = vrot.slane %v7548, 7
      %v7551 = vrot.slane %v7550, 4
      %v7553 = vshrl.u32 %v7291, 16
      %v7555 = vrot.slane %v7553, 7
      %v7556 = vshll.u32 %v7291, 16
      %v7558 = vor.u32 %v7555, %v7556
      %v7559 = vsel %vm1295, %v7551, %v7558
      %v7560 = vrot.slane %v7555, 4
      %v7562 = vshrl.u32 %v7292, 16
      %v7564 = vrot.slane %v7562, 7
      %v7565 = vshll.u32 %v7292, 16
      %v7567 = vor.u32 %v7564, %v7565
      %v7568 = vsel %vm1295, %v7560, %v7567
      %v7570 = vshrl.u32 %v7293, 16
      %v7572 = vrot.slane %v7570, 7
      %v7573 = vrot.slane %v7572, 4
      %v7575 = vshrl.u32 %v7294, 16
      %v7577 = vrot.slane %v7575, 7
      %v7578 = vshll.u32 %v7294, 16
      %v7580 = vor.u32 %v7577, %v7578
      %v7581 = vsel %vm1295, %v7573, %v7580
      %v7582 = vrot.slane %v7577, 4
      %v7584 = vshrl.u32 %v7295, 16
      %v7586 = vrot.slane %v7584, 7
      %v7587 = vshll.u32 %v7295, 16
      %v7589 = vor.u32 %v7586, %v7587
      %v7590 = vsel %vm1295, %v7582, %v7589
      %v7592 = vshrl.u32 %v7296, 16
      %v7594 = vrot.slane %v7592, 7
      %v7595 = vrot.slane %v7594, 4
      %v7597 = vshrl.u32 %v7297, 16
      %v7599 = vrot.slane %v7597, 7
      %v7600 = vshll.u32 %v7297, 16
      %v7602 = vor.u32 %v7599, %v7600
      %v7603 = vsel %vm1295, %v7595, %v7602
      %v7604 = vrot.slane %v7599, 4
      %v7606 = vshrl.u32 %v7298, 16
      %v7608 = vrot.slane %v7606, 7
      %v7609 = vshll.u32 %v7298, 16
      %v7611 = vor.u32 %v7608, %v7609
      %v7612 = vsel %vm1295, %v7604, %v7611
      %v7614 = vshrl.u32 %v7299, 16
      %v7616 = vrot.slane %v7614, 7
      %v7617 = vrot.slane %v7616, 4
      %v7619 = vshrl.u32 %v7300, 16
      %v7621 = vrot.slane %v7619, 7
      %v7622 = vshll.u32 %v7300, 16
      %v7624 = vor.u32 %v7621, %v7622
      %v7625 = vsel %vm1295, %v7617, %v7624
      %v7626 = vrot.slane %v7621, 4
      %v7628 = vshrl.u32 %v7301, 16
      %v7630 = vrot.slane %v7628, 7
      %v7631 = vshll.u32 %v7301, 16
      %v7633 = vor.u32 %v7630, %v7631
      %v7634 = vsel %vm1295, %v7626, %v7633
      %v7636 = vshrl.u32 %v7302, 16
      %v7638 = vrot.slane %v7636, 7
      %v7639 = vrot.slane %v7638, 4
      %v7641 = vshrl.u32 %v7303, 16
      %v7643 = vrot.slane %v7641, 7
      %v7644 = vshll.u32 %v7303, 16
      %v7646 = vor.u32 %v7643, %v7644
      %v7647 = vsel %vm1295, %v7639, %v7646
      %v7648 = vrot.slane %v7643, 4
      %v7650 = vshrl.u32 %v7304, 16
      %v7652 = vrot.slane %v7650, 7
      %v7653 = vshll.u32 %v7304, 16
      %v7655 = vor.u32 %v7652, %v7653
      %v7656 = vsel %vm1295, %v7648, %v7655
      %7689 = vst.msk [vmem:[#allocation4] sm:$0xf] %vm1680, %v7317
      %7690 = vst.msk [vmem:[#allocation4 + $0x14] sm:$0xf] %vm1680, %v7326
      %7691 = vst.msk [vmem:[#allocation4 + $0x28] sm:$0xf] %vm1680, %v7339
      %7692 = vst.msk [vmem:[#allocation4 + $0x3c] sm:$0xf] %vm1680, %v7348
      %7693 = vst.msk [vmem:[#allocation4 + $0x50] sm:$0xf] %vm1680, %v7361
      %7694 = vst.msk [vmem:[#allocation4 + $0x64] sm:$0xf] %vm1680, %v7370
      %7695 = vst.msk [vmem:[#allocation4 + $0x78] sm:$0xf] %vm1680, %v7383
      %7696 = vst.msk [vmem:[#allocation4 + $0x8c] sm:$0xf] %vm1680, %v7392
      %7697 = vst.msk [vmem:[#allocation4 + $0xa0] sm:$0xf] %vm1680, %v7405
      %7698 = vst.msk [vmem:[#allocation4 + $0xb4] sm:$0xf] %vm1680, %v7414
      %7699 = vst.msk [vmem:[#allocation4 + $0xc8] sm:$0xf] %vm1680, %v7427
      %7700 = vst.msk [vmem:[#allocation4 + $0xdc] sm:$0xf] %vm1680, %v7436
      %7701 = vst.msk [vmem:[#allocation4 + $0xf0] sm:$0xf] %vm1680, %v7449
      %7702 = vst.msk [vmem:[#allocation4 + $0x104] sm:$0xf] %vm1680, %v7458
      %7703 = vst.msk [vmem:[#allocation4 + $0x118] sm:$0xf] %vm1680, %v7471
      %7704 = vst.msk [vmem:[#allocation4 + $0x12c] sm:$0xf] %vm1680, %v7480
      %7705 = vst.msk [vmem:[#allocation4 + $0x140] sm:$0xf] %vm1680, %v7493
      %7706 = vst.msk [vmem:[#allocation4 + $0x154] sm:$0xf] %vm1680, %v7502
      %7707 = vst.msk [vmem:[#allocation4 + $0x168] sm:$0xf] %vm1680, %v7515
      %7708 = vst.msk [vmem:[#allocation4 + $0x17c] sm:$0xf] %vm1680, %v7524
      %7709 = vst.msk [vmem:[#allocation4 + $0x190] sm:$0xf] %vm1680, %v7537
      %7710 = vst.msk [vmem:[#allocation4 + $0x1a4] sm:$0xf] %vm1680, %v7546
      %7711 = vst.msk [vmem:[#allocation4 + $0x1b8] sm:$0xf] %vm1680, %v7559
      %7712 = vst.msk [vmem:[#allocation4 + $0x1cc] sm:$0xf] %vm1680, %v7568
      %7713 = vst.msk [vmem:[#allocation4 + $0x1e0] sm:$0xf] %vm1680, %v7581
      %7714 = vst.msk [vmem:[#allocation4 + $0x1f4] sm:$0xf] %vm1680, %v7590
      %7715 = vst.msk [vmem:[#allocation4 + $0x208] sm:$0xf] %vm1680, %v7603
      %7716 = vst.msk [vmem:[#allocation4 + $0x21c] sm:$0xf] %vm1680, %v7612
      %7717 = vst.msk [vmem:[#allocation4 + $0x230] sm:$0xf] %vm1680, %v7625
      %7718 = vst.msk [vmem:[#allocation4 + $0x244] sm:$0xf] %vm1680, %v7634
      %7719 = vst.msk [vmem:[#allocation4 + $0x258] sm:$0xf] %vm1680, %v7647
      %7720 = vst.msk [vmem:[#allocation4 + $0x26c] sm:$0xf] %vm1680, %v7656
      %v7721 = vld [vmem:[#allocation3 + $0x4] sm:$0xf]
      %v7722 = vld [vmem:[#allocation3 + $0x8] sm:$0xf]
      %v7723 = vld [vmem:[#allocation3 + $0x14] sm:$0xf]
      %v7724 = vld [vmem:[#allocation3 + $0x18] sm:$0xf]
      %v7725 = vld [vmem:[#allocation3 + $0x24] sm:$0xf]
      %v7726 = vld [vmem:[#allocation3 + $0x28] sm:$0xf]
      %v7727 = vld [vmem:[#allocation3 + $0x34] sm:$0xf]
      %v7728 = vld [vmem:[#allocation3 + $0x38] sm:$0xf]
      %v7729 = vld [vmem:[#allocation3 + $0x44] sm:$0xf]
      %v7730 = vld [vmem:[#allocation3 + $0x48] sm:$0xf]
      %v7731 = vld [vmem:[#allocation3 + $0x54] sm:$0xf]
      %v7732 = vld [vmem:[#allocation3 + $0x58] sm:$0xf]
      %v7733 = vld [vmem:[#allocation3 + $0x64] sm:$0xf]
      %v7734 = vld [vmem:[#allocation3 + $0x68] sm:$0xf]
      %v7735 = vld [vmem:[#allocation3 + $0x74] sm:$0xf]
      %v7736 = vld [vmem:[#allocation3 + $0x78] sm:$0xf]
      %v7737 = vld [vmem:[#allocation3 + $0x84] sm:$0xf]
      %v7738 = vld [vmem:[#allocation3 + $0x88] sm:$0xf]
      %v7739 = vld [vmem:[#allocation3 + $0x94] sm:$0xf]
      %v7740 = vld [vmem:[#allocation3 + $0x98] sm:$0xf]
      %v7741 = vld [vmem:[#allocation3 + $0xa4] sm:$0xf]
      %v7742 = vld [vmem:[#allocation3 + $0xa8] sm:$0xf]
      %v7743 = vld [vmem:[#allocation3 + $0xb4] sm:$0xf]
      %v7744 = vld [vmem:[#allocation3 + $0xb8] sm:$0xf]
      %v7745 = vld [vmem:[#allocation3 + $0xc4] sm:$0xf]
      %v7746 = vld [vmem:[#allocation3 + $0xc8] sm:$0xf]
      %v7747 = vld [vmem:[#allocation3 + $0xd4] sm:$0xf]
      %v7748 = vld [vmem:[#allocation3 + $0xd8] sm:$0xf]
      %v7749 = vld [vmem:[#allocation3 + $0xe4] sm:$0xf]
      %v7750 = vld [vmem:[#allocation3 + $0xe8] sm:$0xf]
      %v7751 = vld [vmem:[#allocation3 + $0xf4] sm:$0xf]
      %v7752 = vld [vmem:[#allocation3 + $0xf8] sm:$0xf]
      %7785 = vrot.lane.b32.xlu0 %v7721, 64
      %v7786 = vpop.permute.xlu0 %7785
      %7787 = vrot.lane.b32.xlu0 %v7722, 64
      %v7788 = vpop.permute.xlu0 %7787
      %7789 = vrot.lane.b32.xlu0 %v7723, 64
      %v7790 = vpop.permute.xlu0 %7789
      %7791 = vrot.lane.b32.xlu0 %v7724, 64
      %v7792 = vpop.permute.xlu0 %7791
      %7793 = vrot.lane.b32.xlu0 %v7725, 64
      %v7794 = vpop.permute.xlu0 %7793
      %7795 = vrot.lane.b32.xlu0 %v7726, 64
      %v7796 = vpop.permute.xlu0 %7795
      %7797 = vrot.lane.b32.xlu0 %v7727, 64
      %v7798 = vpop.permute.xlu0 %7797
      %7799 = vrot.lane.b32.xlu0 %v7728, 64
      %v7800 = vpop.permute.xlu0 %7799
      %7801 = vrot.lane.b32.xlu0 %v7729, 64
      %v7802 = vpop.permute.xlu0 %7801
      %7803 = vrot.lane.b32.xlu0 %v7730, 64
      %v7804 = vpop.permute.xlu0 %7803
      %7805 = vrot.lane.b32.xlu0 %v7731, 64
      %v7806 = vpop.permute.xlu0 %7805
      %7807 = vrot.lane.b32.xlu0 %v7732, 64
      %v7808 = vpop.permute.xlu0 %7807
      %7809 = vrot.lane.b32.xlu0 %v7733, 64
      %v7810 = vpop.permute.xlu0 %7809
      %7811 = vrot.lane.b32.xlu0 %v7734, 64
      %v7812 = vpop.permute.xlu0 %7811
      %7813 = vrot.lane.b32.xlu0 %v7735, 64
      %v7814 = vpop.permute.xlu0 %7813
      %7815 = vrot.lane.b32.xlu0 %v7736, 64
      %v7816 = vpop.permute.xlu0 %7815
      %7817 = vrot.lane.b32.xlu0 %v7737, 64
      %v7818 = vpop.permute.xlu0 %7817
      %7819 = vrot.lane.b32.xlu0 %v7738, 64
      %v7820 = vpop.permute.xlu0 %7819
      %7821 = vrot.lane.b32.xlu0 %v7739, 64
      %v7822 = vpop.permute.xlu0 %7821
      %7823 = vrot.lane.b32.xlu0 %v7740, 64
      %v7824 = vpop.permute.xlu0 %7823
      %7825 = vrot.lane.b32.xlu0 %v7741, 64
      %v7826 = vpop.permute.xlu0 %7825
      %7827 = vrot.lane.b32.xlu0 %v7742, 64
      %v7828 = vpop.permute.xlu0 %7827
      %7829 = vrot.lane.b32.xlu0 %v7743, 64
      %v7830 = vpop.permute.xlu0 %7829
      %7831 = vrot.lane.b32.xlu0 %v7744, 64
      %v7832 = vpop.permute.xlu0 %7831
      %7833 = vrot.lane.b32.xlu0 %v7745, 64
      %v7834 = vpop.permute.xlu0 %7833
      %7835 = vrot.lane.b32.xlu0 %v7746, 64
      %v7836 = vpop.permute.xlu0 %7835
      %7837 = vrot.lane.b32.xlu0 %v7747, 64
      %v7838 = vpop.permute.xlu0 %7837
      %7839 = vrot.lane.b32.xlu0 %v7748, 64
      %v7840 = vpop.permute.xlu0 %7839
      %7841 = vrot.lane.b32.xlu0 %v7749, 64
      %v7842 = vpop.permute.xlu0 %7841
      %7843 = vrot.lane.b32.xlu0 %v7750, 64
      %v7844 = vpop.permute.xlu0 %7843
      %7845 = vrot.lane.b32.xlu0 %v7751, 64
      %v7846 = vpop.permute.xlu0 %7845
      %7847 = vrot.lane.b32.xlu0 %v7752, 64
      %v7848 = vpop.permute.xlu0 %7847
      %7881 = vst.msk [vmem:[#allocation4] sm:$0xf] %vm1873, %v7786
      %7882 = vst.msk [vmem:[#allocation4 + $0x14] sm:$0xf] %vm1873, %v7788
      %7883 = vst.msk [vmem:[#allocation4 + $0x28] sm:$0xf] %vm1873, %v7790
      %7884 = vst.msk [vmem:[#allocation4 + $0x3c] sm:$0xf] %vm1873, %v7792
      %7885 = vst.msk [vmem:[#allocation4 + $0x50] sm:$0xf] %vm1873, %v7794
      %7886 = vst.msk [vmem:[#allocation4 + $0x64] sm:$0xf] %vm1873, %v7796
      %7887 = vst.msk [vmem:[#allocation4 + $0x78] sm:$0xf] %vm1873, %v7798
      %7888 = vst.msk [vmem:[#allocation4 + $0x8c] sm:$0xf] %vm1873, %v7800
      %7889 = vst.msk [vmem:[#allocation4 + $0xa0] sm:$0xf] %vm1873, %v7802
      %7890 = vst.msk [vmem:[#allocation4 + $0xb4] sm:$0xf] %vm1873, %v7804
      %7891 = vst.msk [vmem:[#allocation4 + $0xc8] sm:$0xf] %vm1873, %v7806
      %7892 = vst.msk [vmem:[#allocation4 + $0xdc] sm:$0xf] %vm1873, %v7808
      %7893 = vst.msk [vmem:[#allocation4 + $0xf0] sm:$0xf] %vm1873, %v7810
      %7894 = vst.msk [vmem:[#allocation4 + $0x104] sm:$0xf] %vm1873, %v7812
      %7895 = vst.msk [vmem:[#allocation4 + $0x118] sm:$0xf] %vm1873, %v7814
      %7896 = vst.msk [vmem:[#allocation4 + $0x12c] sm:$0xf] %vm1873, %v7816
      %7897 = vst.msk [vmem:[#allocation4 + $0x140] sm:$0xf] %vm1873, %v7818
      %7898 = vst.msk [vmem:[#allocation4 + $0x154] sm:$0xf] %vm1873, %v7820
      %7899 = vst.msk [vmem:[#allocation4 + $0x168] sm:$0xf] %vm1873, %v7822
      %7900 = vst.msk [vmem:[#allocation4 + $0x17c] sm:$0xf] %vm1873, %v7824
      %7901 = vst.msk [vmem:[#allocation4 + $0x190] sm:$0xf] %vm1873, %v7826
      %7902 = vst.msk [vmem:[#allocation4 + $0x1a4] sm:$0xf] %vm1873, %v7828
      %7903 = vst.msk [vmem:[#allocation4 + $0x1b8] sm:$0xf] %vm1873, %v7830
      %7904 = vst.msk [vmem:[#allocation4 + $0x1cc] sm:$0xf] %vm1873, %v7832
      %7905 = vst.msk [vmem:[#allocation4 + $0x1e0] sm:$0xf] %vm1873, %v7834
      %7906 = vst.msk [vmem:[#allocation4 + $0x1f4] sm:$0xf] %vm1873, %v7836
      %7907 = vst.msk [vmem:[#allocation4 + $0x208] sm:$0xf] %vm1873, %v7838
      %7908 = vst.msk [vmem:[#allocation4 + $0x21c] sm:$0xf] %vm1873, %v7840
      %7909 = vst.msk [vmem:[#allocation4 + $0x230] sm:$0xf] %vm1873, %v7842
      %7910 = vst.msk [vmem:[#allocation4 + $0x244] sm:$0xf] %vm1873, %v7844
      %7911 = vst.msk [vmem:[#allocation4 + $0x258] sm:$0xf] %vm1873, %v7846
      %7912 = vst.msk [vmem:[#allocation4 + $0x26c] sm:$0xf] %vm1873, %v7848
      %v7913 = vld [vmem:[#allocation3 + $0x4] sm:$0xf]
      %v7914 = vld [vmem:[#allocation3 + $0x8] sm:$0xf]
      %v7915 = vld [vmem:[#allocation3 + $0xc] sm:$0x1]
      %v7916 = vld [vmem:[#allocation3 + $0x14] sm:$0xf]
      %v7917 = vld [vmem:[#allocation3 + $0x18] sm:$0xf]
      %v7918 = vld [vmem:[#allocation3 + $0x1c] sm:$0x1]
      %v7919 = vld [vmem:[#allocation3 + $0x24] sm:$0xf]
      %v7920 = vld [vmem:[#allocation3 + $0x28] sm:$0xf]
      %v7921 = vld [vmem:[#allocation3 + $0x2c] sm:$0x1]
      %v7922 = vld [vmem:[#allocation3 + $0x34] sm:$0xf]
      %v7923 = vld [vmem:[#allocation3 + $0x38] sm:$0xf]
      %v7924 = vld [vmem:[#allocation3 + $0x3c] sm:$0x1]
      %v7925 = vld [vmem:[#allocation3 + $0x44] sm:$0xf]
      %v7926 = vld [vmem:[#allocation3 + $0x48] sm:$0xf]
      %v7927 = vld [vmem:[#allocation3 + $0x4c] sm:$0x1]
      %v7928 = vld [vmem:[#allocation3 + $0x54] sm:$0xf]
      %v7929 = vld [vmem:[#allocation3 + $0x58] sm:$0xf]
      %v7930 = vld [vmem:[#allocation3 + $0x5c] sm:$0x1]
      %v7931 = vld [vmem:[#allocation3 + $0x64] sm:$0xf]
      %v7932 = vld [vmem:[#allocation3 + $0x68] sm:$0xf]
      %v7933 = vld [vmem:[#allocation3 + $0x6c] sm:$0x1]
      %v7934 = vld [vmem:[#allocation3 + $0x74] sm:$0xf]
      %v7935 = vld [vmem:[#allocation3 + $0x78] sm:$0xf]
      %v7936 = vld [vmem:[#allocation3 + $0x7c] sm:$0x1]
      %v7937 = vld [vmem:[#allocation3 + $0x84] sm:$0xf]
      %v7938 = vld [vmem:[#allocation3 + $0x88] sm:$0xf]
      %v7939 = vld [vmem:[#allocation3 + $0x8c] sm:$0x1]
      %v7940 = vld [vmem:[#allocation3 + $0x94] sm:$0xf]
      %v7941 = vld [vmem:[#allocation3 + $0x98] sm:$0xf]
      %v7942 = vld [vmem:[#allocation3 + $0x9c] sm:$0x1]
      %v7943 = vld [vmem:[#allocation3 + $0xa4] sm:$0xf]
      %v7944 = vld [vmem:[#allocation3 + $0xa8] sm:$0xf]
      %v7945 = vld [vmem:[#allocation3 + $0xac] sm:$0x1]
      %v7946 = vld [vmem:[#allocation3 + $0xb4] sm:$0xf]
      %v7947 = vld [vmem:[#allocation3 + $0xb8] sm:$0xf]
      %v7948 = vld [vmem:[#allocation3 + $0xbc] sm:$0x1]
      %v7949 = vld [vmem:[#allocation3 + $0xc4] sm:$0xf]
      %v7950 = vld [vmem:[#allocation3 + $0xc8] sm:$0xf]
      %v7951 = vld [vmem:[#allocation3 + $0xcc] sm:$0x1]
      %v7952 = vld [vmem:[#allocation3 + $0xd4] sm:$0xf]
      %v7953 = vld [vmem:[#allocation3 + $0xd8] sm:$0xf]
      %v7954 = vld [vmem:[#allocation3 + $0xdc] sm:$0x1]
      %v7955 = vld [vmem:[#allocation3 + $0xe4] sm:$0xf]
      %v7956 = vld [vmem:[#allocation3 + $0xe8] sm:$0xf]
      %v7957 = vld [vmem:[#allocation3 + $0xec] sm:$0x1]
      %v7958 = vld [vmem:[#allocation3 + $0xf4] sm:$0xf]
      %v7959 = vld [vmem:[#allocation3 + $0xf8] sm:$0xf]
      %v7960 = vld [vmem:[#allocation3 + $0xfc] sm:$0x1]
      %v7962 = vshrl.u32 %v7913, 16
      %v7964 = vrot.slane %v7962, 4
      %v7965 = vshll.u32 %v7913, 16
      %v7967 = vrot.slane %v7965, 5
      %v7968 = vor.u32 %v7964, %v7967
      %v7969 = vrot.slane %v7968, 4
      %v7971 = vshll.u32 %v7914, 16
      %v7973 = vrot.slane %v7971, 5
      %v7974 = vsel %vm1956, %v7969, %v7973
      %v7975 = vshrl.u32 %v7914, 16
      %v7977 = vrot.slane %v7975, 4
      %v7978 = vor.u32 %v7977, %v7973
      %v7979 = vrot.slane %v7978, 4
      %v7981 = vshll.u32 %v7915, 16
      %v7983 = vrot.slane %v7981, 5
      %v7984 = vsel %vm1956, %v7979, %v7983
      %v7986 = vshrl.u32 %v7916, 16
      %v7988 = vrot.slane %v7986, 4
      %v7989 = vshll.u32 %v7916, 16
      %v7991 = vrot.slane %v7989, 5
      %v7992 = vor.u32 %v7988, %v7991
      %v7993 = vrot.slane %v7992, 4
      %v7995 = vshll.u32 %v7917, 16
      %v7997 = vrot.slane %v7995, 5
      %v7998 = vsel %vm1956, %v7993, %v7997
      %v7999 = vshrl.u32 %v7917, 16
      %v8001 = vrot.slane %v7999, 4
      %v8002 = vor.u32 %v8001, %v7997
      %v8003 = vrot.slane %v8002, 4
      %v8005 = vshll.u32 %v7918, 16
      %v8007 = vrot.slane %v8005, 5
      %v8008 = vsel %vm1956, %v8003, %v8007
      %v8010 = vshrl.u32 %v7919, 16
      %v8012 = vrot.slane %v8010, 4
      %v8013 = vshll.u32 %v7919, 16
      %v8015 = vrot.slane %v8013, 5
      %v8016 = vor.u32 %v8012, %v8015
      %v8017 = vrot.slane %v8016, 4
      %v8019 = vshll.u32 %v7920, 16
      %v8021 = vrot.slane %v8019, 5
      %v8022 = vsel %vm1956, %v8017, %v8021
      %v8023 = vshrl.u32 %v7920, 16
      %v8025 = vrot.slane %v8023, 4
      %v8026 = vor.u32 %v8025, %v8021
      %v8027 = vrot.slane %v8026, 4
      %v8029 = vshll.u32 %v7921, 16
      %v8031 = vrot.slane %v8029, 5
      %v8032 = vsel %vm1956, %v8027, %v8031
      %v8034 = vshrl.u32 %v7922, 16
      %v8036 = vrot.slane %v8034, 4
      %v8037 = vshll.u32 %v7922, 16
      %v8039 = vrot.slane %v8037, 5
      %v8040 = vor.u32 %v8036, %v8039
      %v8041 = vrot.slane %v8040, 4
      %v8043 = vshll.u32 %v7923, 16
      %v8045 = vrot.slane %v8043, 5
      %v8046 = vsel %vm1956, %v8041, %v8045
      %v8047 = vshrl.u32 %v7923, 16
      %v8049 = vrot.slane %v8047, 4
      %v8050 = vor.u32 %v8049, %v8045
      %v8051 = vrot.slane %v8050, 4
      %v8053 = vshll.u32 %v7924, 16
      %v8055 = vrot.slane %v8053, 5
      %v8056 = vsel %vm1956, %v8051, %v8055
      %v8058 = vshrl.u32 %v7925, 16
      %v8060 = vrot.slane %v8058, 4
      %v8061 = vshll.u32 %v7925, 16
      %v8063 = vrot.slane %v8061, 5
      %v8064 = vor.u32 %v8060, %v8063
      %v8065 = vrot.slane %v8064, 4
      %v8067 = vshll.u32 %v7926, 16
      %v8069 = vrot.slane %v8067, 5
      %v8070 = vsel %vm1956, %v8065, %v8069
      %v8071 = vshrl.u32 %v7926, 16
      %v8073 = vrot.slane %v8071, 4
      %v8074 = vor.u32 %v8073, %v8069
      %v8075 = vrot.slane %v8074, 4
      %v8077 = vshll.u32 %v7927, 16
      %v8079 = vrot.slane %v8077, 5
      %v8080 = vsel %vm1956, %v8075, %v8079
      %v8082 = vshrl.u32 %v7928, 16
      %v8084 = vrot.slane %v8082, 4
      %v8085 = vshll.u32 %v7928, 16
      %v8087 = vrot.slane %v8085, 5
      %v8088 = vor.u32 %v8084, %v8087
      %v8089 = vrot.slane %v8088, 4
      %v8091 = vshll.u32 %v7929, 16
      %v8093 = vrot.slane %v8091, 5
      %v8094 = vsel %vm1956, %v8089, %v8093
      %v8095 = vshrl.u32 %v7929, 16
      %v8097 = vrot.slane %v8095, 4
      %v8098 = vor.u32 %v8097, %v8093
      %v8099 = vrot.slane %v8098, 4
      %v8101 = vshll.u32 %v7930, 16
      %v8103 = vrot.slane %v8101, 5
      %v8104 = vsel %vm1956, %v8099, %v8103
      %v8106 = vshrl.u32 %v7931, 16
      %v8108 = vrot.slane %v8106, 4
      %v8109 = vshll.u32 %v7931, 16
      %v8111 = vrot.slane %v8109, 5
      %v8112 = vor.u32 %v8108, %v8111
      %v8113 = vrot.slane %v8112, 4
      %v8115 = vshll.u32 %v7932, 16
      %v8117 = vrot.slane %v8115, 5
      %v8118 = vsel %vm1956, %v8113, %v8117
      %v8119 = vshrl.u32 %v7932, 16
      %v8121 = vrot.slane %v8119, 4
      %v8122 = vor.u32 %v8121, %v8117
      %v8123 = vrot.slane %v8122, 4
      %v8125 = vshll.u32 %v7933, 16
      %v8127 = vrot.slane %v8125, 5
      %v8128 = vsel %vm1956, %v8123, %v8127
      %v8130 = vshrl.u32 %v7934, 16
      %v8132 = vrot.slane %v8130, 4
      %v8133 = vshll.u32 %v7934, 16
      %v8135 = vrot.slane %v8133, 5
      %v8136 = vor.u32 %v8132, %v8135
      %v8137 = vrot.slane %v8136, 4
      %v8139 = vshll.u32 %v7935, 16
      %v8141 = vrot.slane %v8139, 5
      %v8142 = vsel %vm1956, %v8137, %v8141
      %v8143 = vshrl.u32 %v7935, 16
      %v8145 = vrot.slane %v8143, 4
      %v8146 = vor.u32 %v8145, %v8141
      %v8147 = vrot.slane %v8146, 4
      %v8149 = vshll.u32 %v7936, 16
      %v8151 = vrot.slane %v8149, 5
      %v8152 = vsel %vm1956, %v8147, %v8151
      %v8154 = vshrl.u32 %v7937, 16
      %v8156 = vrot.slane %v8154, 4
      %v8157 = vshll.u32 %v7937, 16
      %v8159 = vrot.slane %v8157, 5
      %v8160 = vor.u32 %v8156, %v8159
      %v8161 = vrot.slane %v8160, 4
      %v8163 = vshll.u32 %v7938, 16
      %v8165 = vrot.slane %v8163, 5
      %v8166 = vsel %vm1956, %v8161, %v8165
      %v8167 = vshrl.u32 %v7938, 16
      %v8169 = vrot.slane %v8167, 4
      %v8170 = vor.u32 %v8169, %v8165
      %v8171 = vrot.slane %v8170, 4
      %v8173 = vshll.u32 %v7939, 16
      %v8175 = vrot.slane %v8173, 5
      %v8176 = vsel %vm1956, %v8171, %v8175
      %v8178 = vshrl.u32 %v7940, 16
      %v8180 = vrot.slane %v8178, 4
      %v8181 = vshll.u32 %v7940, 16
      %v8183 = vrot.slane %v8181, 5
      %v8184 = vor.u32 %v8180, %v8183
      %v8185 = vrot.slane %v8184, 4
      %v8187 = vshll.u32 %v7941, 16
      %v8189 = vrot.slane %v8187, 5
      %v8190 = vsel %vm1956, %v8185, %v8189
      %v8191 = vshrl.u32 %v7941, 16
      %v8193 = vrot.slane %v8191, 4
      %v8194 = vor.u32 %v8193, %v8189
      %v8195 = vrot.slane %v8194, 4
      %v8197 = vshll.u32 %v7942, 16
      %v8199 = vrot.slane %v8197, 5
      %v8200 = vsel %vm1956, %v8195, %v8199
      %v8202 = vshrl.u32 %v7943, 16
      %v8204 = vrot.slane %v8202, 4
      %v8205 = vshll.u32 %v7943, 16
      %v8207 = vrot.slane %v8205, 5
      %v8208 = vor.u32 %v8204, %v8207
      %v8209 = vrot.slane %v8208, 4
      %v8211 = vshll.u32 %v7944, 16
      %v8213 = vrot.slane %v8211, 5
      %v8214 = vsel %vm1956, %v8209, %v8213
      %v8215 = vshrl.u32 %v7944, 16
      %v8217 = vrot.slane %v8215, 4
      %v8218 = vor.u32 %v8217, %v8213
      %v8219 = vrot.slane %v8218, 4
      %v8221 = vshll.u32 %v7945, 16
      %v8223 = vrot.slane %v8221, 5
      %v8224 = vsel %vm1956, %v8219, %v8223
      %v8226 = vshrl.u32 %v7946, 16
      %v8228 = vrot.slane %v8226, 4
      %v8229 = vshll.u32 %v7946, 16
      %v8231 = vrot.slane %v8229, 5
      %v8232 = vor.u32 %v8228, %v8231
      %v8233 = vrot.slane %v8232, 4
      %v8235 = vshll.u32 %v7947, 16
      %v8237 = vrot.slane %v8235, 5
      %v8238 = vsel %vm1956, %v8233, %v8237
      %v8239 = vshrl.u32 %v7947, 16
      %v8241 = vrot.slane %v8239, 4
      %v8242 = vor.u32 %v8241, %v8237
      %v8243 = vrot.slane %v8242, 4
      %v8245 = vshll.u32 %v7948, 16
      %v8247 = vrot.slane %v8245, 5
      %v8248 = vsel %vm1956, %v8243, %v8247
      %v8250 = vshrl.u32 %v7949, 16
      %v8252 = vrot.slane %v8250, 4
      %v8253 = vshll.u32 %v7949, 16
      %v8255 = vrot.slane %v8253, 5
      %v8256 = vor.u32 %v8252, %v8255
      %v8257 = vrot.slane %v8256, 4
      %v8259 = vshll.u32 %v7950, 16
      %v8261 = vrot.slane %v8259, 5
      %v8262 = vsel %vm1956, %v8257, %v8261
      %v8263 = vshrl.u32 %v7950, 16
      %v8265 = vrot.slane %v8263, 4
      %v8266 = vor.u32 %v8265, %v8261
      %v8267 = vrot.slane %v8266, 4
      %v8269 = vshll.u32 %v7951, 16
      %v8271 = vrot.slane %v8269, 5
      %v8272 = vsel %vm1956, %v8267, %v8271
      %v8274 = vshrl.u32 %v7952, 16
      %v8276 = vrot.slane %v8274, 4
      %v8277 = vshll.u32 %v7952, 16
      %v8279 = vrot.slane %v8277, 5
      %v8280 = vor.u32 %v8276, %v8279
      %v8281 = vrot.slane %v8280, 4
      %v8283 = vshll.u32 %v7953, 16
      %v8285 = vrot.slane %v8283, 5
      %v8286 = vsel %vm1956, %v8281, %v8285
      %v8287 = vshrl.u32 %v7953, 16
      %v8289 = vrot.slane %v8287, 4
      %v8290 = vor.u32 %v8289, %v8285
      %v8291 = vrot.slane %v8290, 4
      %v8293 = vshll.u32 %v7954, 16
      %v8295 = vrot.slane %v8293, 5
      %v8296 = vsel %vm1956, %v8291, %v8295
      %v8298 = vshrl.u32 %v7955, 16
      %v8300 = vrot.slane %v8298, 4
      %v8301 = vshll.u32 %v7955, 16
      %v8303 = vrot.slane %v8301, 5
      %v8304 = vor.u32 %v8300, %v8303
      %v8305 = vrot.slane %v8304, 4
      %v8307 = vshll.u32 %v7956, 16
      %v8309 = vrot.slane %v8307, 5
      %v8310 = vsel %vm1956, %v8305, %v8309
      %v8311 = vshrl.u32 %v7956, 16
      %v8313 = vrot.slane %v8311, 4
      %v8314 = vor.u32 %v8313, %v8309
      %v8315 = vrot.slane %v8314, 4
      %v8317 = vshll.u32 %v7957, 16
      %v8319 = vrot.slane %v8317, 5
      %v8320 = vsel %vm1956, %v8315, %v8319
      %v8322 = vshrl.u32 %v7958, 16
      %v8324 = vrot.slane %v8322, 4
      %v8325 = vshll.u32 %v7958, 16
      %v8327 = vrot.slane %v8325, 5
      %v8328 = vor.u32 %v8324, %v8327
      %v8329 = vrot.slane %v8328, 4
      %v8331 = vshll.u32 %v7959, 16
      %v8333 = vrot.slane %v8331, 5
      %v8334 = vsel %vm1956, %v8329, %v8333
      %v8335 = vshrl.u32 %v7959, 16
      %v8337 = vrot.slane %v8335, 4
      %v8338 = vor.u32 %v8337, %v8333
      %v8339 = vrot.slane %v8338, 4
      %v8341 = vshll.u32 %v7960, 16
      %v8343 = vrot.slane %v8341, 5
      %v8344 = vsel %vm1956, %v8339, %v8343
      %8377 = vst.msk [vmem:[#allocation4 + $0x4] sm:$0xf] %vm1680, %v7974
      %8378 = vst.msk [vmem:[#allocation4 + $0x18] sm:$0xf] %vm1680, %v7984
      %8379 = vst.msk [vmem:[#allocation4 + $0x2c] sm:$0xf] %vm1680, %v7998
      %8380 = vst.msk [vmem:[#allocation4 + $0x40] sm:$0xf] %vm1680, %v8008
      %8381 = vst.msk [vmem:[#allocation4 + $0x54] sm:$0xf] %vm1680, %v8022
      %8382 = vst.msk [vmem:[#allocation4 + $0x68] sm:$0xf] %vm1680, %v8032
      %8383 = vst.msk [vmem:[#allocation4 + $0x7c] sm:$0xf] %vm1680, %v8046
      %8384 = vst.msk [vmem:[#allocation4 + $0x90] sm:$0xf] %vm1680, %v8056
      %8385 = vst.msk [vmem:[#allocation4 + $0xa4] sm:$0xf] %vm1680, %v8070
      %8386 = vst.msk [vmem:[#allocation4 + $0xb8] sm:$0xf] %vm1680, %v8080
      %8387 = vst.msk [vmem:[#allocation4 + $0xcc] sm:$0xf] %vm1680, %v8094
      %8388 = vst.msk [vmem:[#allocation4 + $0xe0] sm:$0xf] %vm1680, %v8104
      %8389 = vst.msk [vmem:[#allocation4 + $0xf4] sm:$0xf] %vm1680, %v8118
      %8390 = vst.msk [vmem:[#allocation4 + $0x108] sm:$0xf] %vm1680, %v8128
      %8391 = vst.msk [vmem:[#allocation4 + $0x11c] sm:$0xf] %vm1680, %v8142
      %8392 = vst.msk [vmem:[#allocation4 + $0x130] sm:$0xf] %vm1680, %v8152
      %8393 = vst.msk [vmem:[#allocation4 + $0x144] sm:$0xf] %vm1680, %v8166
      %8394 = vst.msk [vmem:[#allocation4 + $0x158] sm:$0xf] %vm1680, %v8176
      %8395 = vst.msk [vmem:[#allocation4 + $0x16c] sm:$0xf] %vm1680, %v8190
      %8396 = vst.msk [vmem:[#allocation4 + $0x180] sm:$0xf] %vm1680, %v8200
      %8397 = vst.msk [vmem:[#allocation4 + $0x194] sm:$0xf] %vm1680, %v8214
      %8398 = vst.msk [vmem:[#allocation4 + $0x1a8] sm:$0xf] %vm1680, %v8224
      %8399 = vst.msk [vmem:[#allocation4 + $0x1bc] sm:$0xf] %vm1680, %v8238
      %8400 = vst.msk [vmem:[#allocation4 + $0x1d0] sm:$0xf] %vm1680, %v8248
      %8401 = vst.msk [vmem:[#allocation4 + $0x1e4] sm:$0xf] %vm1680, %v8262
      %8402 = vst.msk [vmem:[#allocation4 + $0x1f8] sm:$0xf] %vm1680, %v8272
      %8403 = vst.msk [vmem:[#allocation4 + $0x20c] sm:$0xf] %vm1680, %v8286
      %8404 = vst.msk [vmem:[#allocation4 + $0x220] sm:$0xf] %vm1680, %v8296
      %8405 = vst.msk [vmem:[#allocation4 + $0x234] sm:$0xf] %vm1680, %v8310
      %8406 = vst.msk [vmem:[#allocation4 + $0x248] sm:$0xf] %vm1680, %v8320
      %8407 = vst.msk [vmem:[#allocation4 + $0x25c] sm:$0xf] %vm1680, %v8334
      %8408 = vst.msk [vmem:[#allocation4 + $0x270] sm:$0xf] %vm1680, %v8344
      %v8409 = vld [vmem:[%s1146] sm:$0x8]
      %v8410 = vld [vmem:[%s1146 + $0x4] sm:$0xf]
      %v8411 = vld [vmem:[%s1146 + $0x8] sm:$0xf]
      %v8412 = vld [vmem:[%s1146 + $0x10] sm:$0x8]
      %v8413 = vld [vmem:[%s1146 + $0x14] sm:$0xf]
      %v8414 = vld [vmem:[%s1146 + $0x18] sm:$0xf]
      %v8415 = vld [vmem:[%s1146 + $0x20] sm:$0x8]
      %v8416 = vld [vmem:[%s1146 + $0x24] sm:$0xf]
      %v8417 = vld [vmem:[%s1146 + $0x28] sm:$0xf]
      %v8418 = vld [vmem:[%s1146 + $0x30] sm:$0x8]
      %v8419 = vld [vmem:[%s1146 + $0x34] sm:$0xf]
      %v8420 = vld [vmem:[%s1146 + $0x38] sm:$0xf]
      %v8421 = vld [vmem:[%s1146 + $0x40] sm:$0x8]
      %v8422 = vld [vmem:[%s1146 + $0x44] sm:$0xf]
      %v8423 = vld [vmem:[%s1146 + $0x48] sm:$0xf]
      %v8424 = vld [vmem:[%s1146 + $0x50] sm:$0x8]
      %v8425 = vld [vmem:[%s1146 + $0x54] sm:$0xf]
      %v8426 = vld [vmem:[%s1146 + $0x58] sm:$0xf]
      %v8427 = vld [vmem:[%s1146 + $0x60] sm:$0x8]
      %v8428 = vld [vmem:[%s1146 + $0x64] sm:$0xf]
      %v8429 = vld [vmem:[%s1146 + $0x68] sm:$0xf]
      %v8430 = vld [vmem:[%s1146 + $0x70] sm:$0x8]
      %v8431 = vld [vmem:[%s1146 + $0x74] sm:$0xf]
      %v8432 = vld [vmem:[%s1146 + $0x78] sm:$0xf]
      %v8433 = vld [vmem:[%s1146 + $0x80] sm:$0x8]
      %v8434 = vld [vmem:[%s1146 + $0x84] sm:$0xf]
      %v8435 = vld [vmem:[%s1146 + $0x88] sm:$0xf]
      %v8436 = vld [vmem:[%s1146 + $0x90] sm:$0x8]
      %v8437 = vld [vmem:[%s1146 + $0x94] sm:$0xf]
      %v8438 = vld [vmem:[%s1146 + $0x98] sm:$0xf]
      %v8439 = vld [vmem:[%s1146 + $0xa0] sm:$0x8]
      %v8440 = vld [vmem:[%s1146 + $0xa4] sm:$0xf]
      %v8441 = vld [vmem:[%s1146 + $0xa8] sm:$0xf]
      %v8442 = vld [vmem:[%s1146 + $0xb0] sm:$0x8]
      %v8443 = vld [vmem:[%s1146 + $0xb4] sm:$0xf]
      %v8444 = vld [vmem:[%s1146 + $0xb8] sm:$0xf]
      %v8445 = vld [vmem:[%s1146 + $0xc0] sm:$0x8]
      %v8446 = vld [vmem:[%s1146 + $0xc4] sm:$0xf]
      %v8447 = vld [vmem:[%s1146 + $0xc8] sm:$0xf]
      %v8448 = vld [vmem:[%s1146 + $0xd0] sm:$0x8]
      %v8449 = vld [vmem:[%s1146 + $0xd4] sm:$0xf]
      %v8450 = vld [vmem:[%s1146 + $0xd8] sm:$0xf]
      %v8451 = vld [vmem:[%s1146 + $0xe0] sm:$0x8]
      %v8452 = vld [vmem:[%s1146 + $0xe4] sm:$0xf]
      %v8453 = vld [vmem:[%s1146 + $0xe8] sm:$0xf]
      %v8454 = vld [vmem:[%s1146 + $0xf0] sm:$0x8]
      %v8455 = vld [vmem:[%s1146 + $0xf4] sm:$0xf]
      %v8456 = vld [vmem:[%s1146 + $0xf8] sm:$0xf]
      %v8458 = vshrl.u32 %v8409, 16
      %v8460 = vrot.slane %v8458, 7
      %v8461 = vrot.slane %v8460, 4
      %v8463 = vshrl.u32 %v8410, 16
      %v8465 = vrot.slane %v8463, 7
      %v8466 = vshll.u32 %v8410, 16
      %v8468 = vor.u32 %v8465, %v8466
      %v8469 = vsel %vm1295, %v8461, %v8468
      %v8470 = vrot.slane %v8465, 4
      %v8472 = vshrl.u32 %v8411, 16
      %v8474 = vrot.slane %v8472, 7
      %v8475 = vshll.u32 %v8411, 16
      %v8477 = vor.u32 %v8474, %v8475
      %v8478 = vsel %vm1295, %v8470, %v8477
      %v8480 = vshrl.u32 %v8412, 16
      %v8482 = vrot.slane %v8480, 7
      %v8483 = vrot.slane %v8482, 4
      %v8485 = vshrl.u32 %v8413, 16
      %v8487 = vrot.slane %v8485, 7
      %v8488 = vshll.u32 %v8413, 16
      %v8490 = vor.u32 %v8487, %v8488
      %v8491 = vsel %vm1295, %v8483, %v8490
      %v8492 = vrot.slane %v8487, 4
      %v8494 = vshrl.u32 %v8414, 16
      %v8496 = vrot.slane %v8494, 7
      %v8497 = vshll.u32 %v8414, 16
      %v8499 = vor.u32 %v8496, %v8497
      %v8500 = vsel %vm1295, %v8492, %v8499
      %v8502 = vshrl.u32 %v8415, 16
      %v8504 = vrot.slane %v8502, 7
      %v8505 = vrot.slane %v8504, 4
      %v8507 = vshrl.u32 %v8416, 16
      %v8509 = vrot.slane %v8507, 7
      %v8510 = vshll.u32 %v8416, 16
      %v8512 = vor.u32 %v8509, %v8510
      %v8513 = vsel %vm1295, %v8505, %v8512
      %v8514 = vrot.slane %v8509, 4
      %v8516 = vshrl.u32 %v8417, 16
      %v8518 = vrot.slane %v8516, 7
      %v8519 = vshll.u32 %v8417, 16
      %v8521 = vor.u32 %v8518, %v8519
      %v8522 = vsel %vm1295, %v8514, %v8521
      %v8524 = vshrl.u32 %v8418, 16
      %v8526 = vrot.slane %v8524, 7
      %v8527 = vrot.slane %v8526, 4
      %v8529 = vshrl.u32 %v8419, 16
      %v8531 = vrot.slane %v8529, 7
      %v8532 = vshll.u32 %v8419, 16
      %v8534 = vor.u32 %v8531, %v8532
      %v8535 = vsel %vm1295, %v8527, %v8534
      %v8536 = vrot.slane %v8531, 4
      %v8538 = vshrl.u32 %v8420, 16
      %v8540 = vrot.slane %v8538, 7
      %v8541 = vshll.u32 %v8420, 16
      %v8543 = vor.u32 %v8540, %v8541
      %v8544 = vsel %vm1295, %v8536, %v8543
      %v8546 = vshrl.u32 %v8421, 16
      %v8548 = vrot.slane %v8546, 7
      %v8549 = vrot.slane %v8548, 4
      %v8551 = vshrl.u32 %v8422, 16
      %v8553 = vrot.slane %v8551, 7
      %v8554 = vshll.u32 %v8422, 16
      %v8556 = vor.u32 %v8553, %v8554
      %v8557 = vsel %vm1295, %v8549, %v8556
      %v8558 = vrot.slane %v8553, 4
      %v8560 = vshrl.u32 %v8423, 16
      %v8562 = vrot.slane %v8560, 7
      %v8563 = vshll.u32 %v8423, 16
      %v8565 = vor.u32 %v8562, %v8563
      %v8566 = vsel %vm1295, %v8558, %v8565
      %v8568 = vshrl.u32 %v8424, 16
      %v8570 = vrot.slane %v8568, 7
      %v8571 = vrot.slane %v8570, 4
      %v8573 = vshrl.u32 %v8425, 16
      %v8575 = vrot.slane %v8573, 7
      %v8576 = vshll.u32 %v8425, 16
      %v8578 = vor.u32 %v8575, %v8576
      %v8579 = vsel %vm1295, %v8571, %v8578
      %v8580 = vrot.slane %v8575, 4
      %v8582 = vshrl.u32 %v8426, 16
      %v8584 = vrot.slane %v8582, 7
      %v8585 = vshll.u32 %v8426, 16
      %v8587 = vor.u32 %v8584, %v8585
      %v8588 = vsel %vm1295, %v8580, %v8587
      %v8590 = vshrl.u32 %v8427, 16
      %v8592 = vrot.slane %v8590, 7
      %v8593 = vrot.slane %v8592, 4
      %v8595 = vshrl.u32 %v8428, 16
      %v8597 = vrot.slane %v8595, 7
      %v8598 = vshll.u32 %v8428, 16
      %v8600 = vor.u32 %v8597, %v8598
      %v8601 = vsel %vm1295, %v8593, %v8600
      %v8602 = vrot.slane %v8597, 4
      %v8604 = vshrl.u32 %v8429, 16
      %v8606 = vrot.slane %v8604, 7
      %v8607 = vshll.u32 %v8429, 16
      %v8609 = vor.u32 %v8606, %v8607
      %v8610 = vsel %vm1295, %v8602, %v8609
      %v8612 = vshrl.u32 %v8430, 16
      %v8614 = vrot.slane %v8612, 7
      %v8615 = vrot.slane %v8614, 4
      %v8617 = vshrl.u32 %v8431, 16
      %v8619 = vrot.slane %v8617, 7
      %v8620 = vshll.u32 %v8431, 16
      %v8622 = vor.u32 %v8619, %v8620
      %v8623 = vsel %vm1295, %v8615, %v8622
      %v8624 = vrot.slane %v8619, 4
      %v8626 = vshrl.u32 %v8432, 16
      %v8628 = vrot.slane %v8626, 7
      %v8629 = vshll.u32 %v8432, 16
      %v8631 = vor.u32 %v8628, %v8629
      %v8632 = vsel %vm1295, %v8624, %v8631
      %v8634 = vshrl.u32 %v8433, 16
      %v8636 = vrot.slane %v8634, 7
      %v8637 = vrot.slane %v8636, 4
      %v8639 = vshrl.u32 %v8434, 16
      %v8641 = vrot.slane %v8639, 7
      %v8642 = vshll.u32 %v8434, 16
      %v8644 = vor.u32 %v8641, %v8642
      %v8645 = vsel %vm1295, %v8637, %v8644
      %v8646 = vrot.slane %v8641, 4
      %v8648 = vshrl.u32 %v8435, 16
      %v8650 = vrot.slane %v8648, 7
      %v8651 = vshll.u32 %v8435, 16
      %v8653 = vor.u32 %v8650, %v8651
      %v8654 = vsel %vm1295, %v8646, %v8653
      %v8656 = vshrl.u32 %v8436, 16
      %v8658 = vrot.slane %v8656, 7
      %v8659 = vrot.slane %v8658, 4
      %v8661 = vshrl.u32 %v8437, 16
      %v8663 = vrot.slane %v8661, 7
      %v8664 = vshll.u32 %v8437, 16
      %v8666 = vor.u32 %v8663, %v8664
      %v8667 = vsel %vm1295, %v8659, %v8666
      %v8668 = vrot.slane %v8663, 4
      %v8670 = vshrl.u32 %v8438, 16
      %v8672 = vrot.slane %v8670, 7
      %v8673 = vshll.u32 %v8438, 16
      %v8675 = vor.u32 %v8672, %v8673
      %v8676 = vsel %vm1295, %v8668, %v8675
      %v8678 = vshrl.u32 %v8439, 16
      %v8680 = vrot.slane %v8678, 7
      %v8681 = vrot.slane %v8680, 4
      %v8683 = vshrl.u32 %v8440, 16
      %v8685 = vrot.slane %v8683, 7
      %v8686 = vshll.u32 %v8440, 16
      %v8688 = vor.u32 %v8685, %v8686
      %v8689 = vsel %vm1295, %v8681, %v8688
      %v8690 = vrot.slane %v8685, 4
      %v8692 = vshrl.u32 %v8441, 16
      %v8694 = vrot.slane %v8692, 7
      %v8695 = vshll.u32 %v8441, 16
      %v8697 = vor.u32 %v8694, %v8695
      %v8698 = vsel %vm1295, %v8690, %v8697
      %v8700 = vshrl.u32 %v8442, 16
      %v8702 = vrot.slane %v8700, 7
      %v8703 = vrot.slane %v8702, 4
      %v8705 = vshrl.u32 %v8443, 16
      %v8707 = vrot.slane %v8705, 7
      %v8708 = vshll.u32 %v8443, 16
      %v8710 = vor.u32 %v8707, %v8708
      %v8711 = vsel %vm1295, %v8703, %v8710
      %v8712 = vrot.slane %v8707, 4
      %v8714 = vshrl.u32 %v8444, 16
      %v8716 = vrot.slane %v8714, 7
      %v8717 = vshll.u32 %v8444, 16
      %v8719 = vor.u32 %v8716, %v8717
      %v8720 = vsel %vm1295, %v8712, %v8719
      %v8722 = vshrl.u32 %v8445, 16
      %v8724 = vrot.slane %v8722, 7
      %v8725 = vrot.slane %v8724, 4
      %v8727 = vshrl.u32 %v8446, 16
      %v8729 = vrot.slane %v8727, 7
      %v8730 = vshll.u32 %v8446, 16
      %v8732 = vor.u32 %v8729, %v8730
      %v8733 = vsel %vm1295, %v8725, %v8732
      %v8734 = vrot.slane %v8729, 4
      %v8736 = vshrl.u32 %v8447, 16
      %v8738 = vrot.slane %v8736, 7
      %v8739 = vshll.u32 %v8447, 16
      %v8741 = vor.u32 %v8738, %v8739
      %v8742 = vsel %vm1295, %v8734, %v8741
      %v8744 = vshrl.u32 %v8448, 16
      %v8746 = vrot.slane %v8744, 7
      %v8747 = vrot.slane %v8746, 4
      %v8749 = vshrl.u32 %v8449, 16
      %v8751 = vrot.slane %v8749, 7
      %v8752 = vshll.u32 %v8449, 16
      %v8754 = vor.u32 %v8751, %v8752
      %v8755 = vsel %vm1295, %v8747, %v8754
      %v8756 = vrot.slane %v8751, 4
      %v8758 = vshrl.u32 %v8450, 16
      %v8760 = vrot.slane %v8758, 7
      %v8761 = vshll.u32 %v8450, 16
      %v8763 = vor.u32 %v8760, %v8761
      %v8764 = vsel %vm1295, %v8756, %v8763
      %v8766 = vshrl.u32 %v8451, 16
      %v8768 = vrot.slane %v8766, 7
      %v8769 = vrot.slane %v8768, 4
      %v8771 = vshrl.u32 %v8452, 16
      %v8773 = vrot.slane %v8771, 7
      %v8774 = vshll.u32 %v8452, 16
      %v8776 = vor.u32 %v8773, %v8774
      %v8777 = vsel %vm1295, %v8769, %v8776
      %v8778 = vrot.slane %v8773, 4
      %v8780 = vshrl.u32 %v8453, 16
      %v8782 = vrot.slane %v8780, 7
      %v8783 = vshll.u32 %v8453, 16
      %v8785 = vor.u32 %v8782, %v8783
      %v8786 = vsel %vm1295, %v8778, %v8785
      %v8788 = vshrl.u32 %v8454, 16
      %v8790 = vrot.slane %v8788, 7
      %v8791 = vrot.slane %v8790, 4
      %v8793 = vshrl.u32 %v8455, 16
      %v8795 = vrot.slane %v8793, 7
      %v8796 = vshll.u32 %v8455, 16
      %v8798 = vor.u32 %v8795, %v8796
      %v8799 = vsel %vm1295, %v8791, %v8798
      %v8800 = vrot.slane %v8795, 4
      %v8802 = vshrl.u32 %v8456, 16
      %v8804 = vrot.slane %v8802, 7
      %v8805 = vshll.u32 %v8456, 16
      %v8807 = vor.u32 %v8804, %v8805
      %v8808 = vsel %vm1295, %v8800, %v8807
      %8809 = vrot.lane.b32.xlu0 %v8469, 64
      %v8810 = vpop.permute.xlu0 %8809
      %8811 = vrot.lane.b32.xlu0 %v8478, 64
      %v8812 = vpop.permute.xlu0 %8811
      %8813 = vrot.lane.b32.xlu0 %v8491, 64
      %v8814 = vpop.permute.xlu0 %8813
      %8815 = vrot.lane.b32.xlu0 %v8500, 64
      %v8816 = vpop.permute.xlu0 %8815
      %8817 = vrot.lane.b32.xlu0 %v8513, 64
      %v8818 = vpop.permute.xlu0 %8817
      %8819 = vrot.lane.b32.xlu0 %v8522, 64
      %v8820 = vpop.permute.xlu0 %8819
      %8821 = vrot.lane.b32.xlu0 %v8535, 64
      %v8822 = vpop.permute.xlu0 %8821
      %8823 = vrot.lane.b32.xlu0 %v8544, 64
      %v8824 = vpop.permute.xlu0 %8823
      %8825 = vrot.lane.b32.xlu0 %v8557, 64
      %v8826 = vpop.permute.xlu0 %8825
      %8827 = vrot.lane.b32.xlu0 %v8566, 64
      %v8828 = vpop.permute.xlu0 %8827
      %8829 = vrot.lane.b32.xlu0 %v8579, 64
      %v8830 = vpop.permute.xlu0 %8829
      %8831 = vrot.lane.b32.xlu0 %v8588, 64
      %v8832 = vpop.permute.xlu0 %8831
      %8833 = vrot.lane.b32.xlu0 %v8601, 64
      %v8834 = vpop.permute.xlu0 %8833
      %8835 = vrot.lane.b32.xlu0 %v8610, 64
      %v8836 = vpop.permute.xlu0 %8835
      %8837 = vrot.lane.b32.xlu0 %v8623, 64
      %v8838 = vpop.permute.xlu0 %8837
      %8839 = vrot.lane.b32.xlu0 %v8632, 64
      %v8840 = vpop.permute.xlu0 %8839
      %8841 = vrot.lane.b32.xlu0 %v8645, 64
      %v8842 = vpop.permute.xlu0 %8841
      %8843 = vrot.lane.b32.xlu0 %v8654, 64
      %v8844 = vpop.permute.xlu0 %8843
      %8845 = vrot.lane.b32.xlu0 %v8667, 64
      %v8846 = vpop.permute.xlu0 %8845
      %8847 = vrot.lane.b32.xlu0 %v8676, 64
      %v8848 = vpop.permute.xlu0 %8847
      %8849 = vrot.lane.b32.xlu0 %v8689, 64
      %v8850 = vpop.permute.xlu0 %8849
      %8851 = vrot.lane.b32.xlu0 %v8698, 64
      %v8852 = vpop.permute.xlu0 %8851
      %8853 = vrot.lane.b32.xlu0 %v8711, 64
      %v8854 = vpop.permute.xlu0 %8853
      %8855 = vrot.lane.b32.xlu0 %v8720, 64
      %v8856 = vpop.permute.xlu0 %8855
      %8857 = vrot.lane.b32.xlu0 %v8733, 64
      %v8858 = vpop.permute.xlu0 %8857
      %8859 = vrot.lane.b32.xlu0 %v8742, 64
      %v8860 = vpop.permute.xlu0 %8859
      %8861 = vrot.lane.b32.xlu0 %v8755, 64
      %v8862 = vpop.permute.xlu0 %8861
      %8863 = vrot.lane.b32.xlu0 %v8764, 64
      %v8864 = vpop.permute.xlu0 %8863
      %8865 = vrot.lane.b32.xlu0 %v8777, 64
      %v8866 = vpop.permute.xlu0 %8865
      %8867 = vrot.lane.b32.xlu0 %v8786, 64
      %v8868 = vpop.permute.xlu0 %8867
      %8869 = vrot.lane.b32.xlu0 %v8799, 64
      %v8870 = vpop.permute.xlu0 %8869
      %8871 = vrot.lane.b32.xlu0 %v8808, 64
      %v8872 = vpop.permute.xlu0 %8871
      %8905 = vst.msk [vmem:[#allocation4 + $0x4] sm:$0xf] %vm1873, %v8810
      %8906 = vst.msk [vmem:[#allocation4 + $0x18] sm:$0xf] %vm1873, %v8812
      %8907 = vst.msk [vmem:[#allocation4 + $0x2c] sm:$0xf] %vm1873, %v8814
      %8908 = vst.msk [vmem:[#allocation4 + $0x40] sm:$0xf] %vm1873, %v8816
      %8909 = vst.msk [vmem:[#allocation4 + $0x54] sm:$0xf] %vm1873, %v8818
      %8910 = vst.msk [vmem:[#allocation4 + $0x68] sm:$0xf] %vm1873, %v8820
      %8911 = vst.msk [vmem:[#allocation4 + $0x7c] sm:$0xf] %vm1873, %v8822
      %8912 = vst.msk [vmem:[#allocation4 + $0x90] sm:$0xf] %vm1873, %v8824
      %8913 = vst.msk [vmem:[#allocation4 + $0xa4] sm:$0xf] %vm1873, %v8826
      %8914 = vst.msk [vmem:[#allocation4 + $0xb8] sm:$0xf] %vm1873, %v8828
      %8915 = vst.msk [vmem:[#allocation4 + $0xcc] sm:$0xf] %vm1873, %v8830
      %8916 = vst.msk [vmem:[#allocation4 + $0xe0] sm:$0xf] %vm1873, %v8832
      %8917 = vst.msk [vmem:[#allocation4 + $0xf4] sm:$0xf] %vm1873, %v8834
      %8918 = vst.msk [vmem:[#allocation4 + $0x108] sm:$0xf] %vm1873, %v8836
      %8919 = vst.msk [vmem:[#allocation4 + $0x11c] sm:$0xf] %vm1873, %v8838
      %8920 = vst.msk [vmem:[#allocation4 + $0x130] sm:$0xf] %vm1873, %v8840
      %8921 = vst.msk [vmem:[#allocation4 + $0x144] sm:$0xf] %vm1873, %v8842
      %8922 = vst.msk [vmem:[#allocation4 + $0x158] sm:$0xf] %vm1873, %v8844
      %8923 = vst.msk [vmem:[#allocation4 + $0x16c] sm:$0xf] %vm1873, %v8846
      %8924 = vst.msk [vmem:[#allocation4 + $0x180] sm:$0xf] %vm1873, %v8848
      %8925 = vst.msk [vmem:[#allocation4 + $0x194] sm:$0xf] %vm1873, %v8850
      %8926 = vst.msk [vmem:[#allocation4 + $0x1a8] sm:$0xf] %vm1873, %v8852
      %8927 = vst.msk [vmem:[#allocation4 + $0x1bc] sm:$0xf] %vm1873, %v8854
      %8928 = vst.msk [vmem:[#allocation4 + $0x1d0] sm:$0xf] %vm1873, %v8856
      %8929 = vst.msk [vmem:[#allocation4 + $0x1e4] sm:$0xf] %vm1873, %v8858
      %8930 = vst.msk [vmem:[#allocation4 + $0x1f8] sm:$0xf] %vm1873, %v8860
      %8931 = vst.msk [vmem:[#allocation4 + $0x20c] sm:$0xf] %vm1873, %v8862
      %8932 = vst.msk [vmem:[#allocation4 + $0x220] sm:$0xf] %vm1873, %v8864
      %8933 = vst.msk [vmem:[#allocation4 + $0x234] sm:$0xf] %vm1873, %v8866
      %8934 = vst.msk [vmem:[#allocation4 + $0x248] sm:$0xf] %vm1873, %v8868
      %8935 = vst.msk [vmem:[#allocation4 + $0x25c] sm:$0xf] %vm1873, %v8870
      %8936 = vst.msk [vmem:[#allocation4 + $0x270] sm:$0xf] %vm1873, %v8872
      %v8937 = vld [vmem:[%s1146 + $0x4] sm:$0xf]
      %v8938 = vld [vmem:[%s1146 + $0x8] sm:$0xf]
      %v8939 = vld [vmem:[%s1146 + $0x14] sm:$0xf]
      %v8940 = vld [vmem:[%s1146 + $0x18] sm:$0xf]
      %v8941 = vld [vmem:[%s1146 + $0x24] sm:$0xf]
      %v8942 = vld [vmem:[%s1146 + $0x28] sm:$0xf]
      %v8943 = vld [vmem:[%s1146 + $0x34] sm:$0xf]
      %v8944 = vld [vmem:[%s1146 + $0x38] sm:$0xf]
      %v8945 = vld [vmem:[%s1146 + $0x44] sm:$0xf]
      %v8946 = vld [vmem:[%s1146 + $0x48] sm:$0xf]
      %v8947 = vld [vmem:[%s1146 + $0x54] sm:$0xf]
      %v8948 = vld [vmem:[%s1146 + $0x58] sm:$0xf]
      %v8949 = vld [vmem:[%s1146 + $0x64] sm:$0xf]
      %v8950 = vld [vmem:[%s1146 + $0x68] sm:$0xf]
      %v8951 = vld [vmem:[%s1146 + $0x74] sm:$0xf]
      %v8952 = vld [vmem:[%s1146 + $0x78] sm:$0xf]
      %v8953 = vld [vmem:[%s1146 + $0x84] sm:$0xf]
      %v8954 = vld [vmem:[%s1146 + $0x88] sm:$0xf]
      %v8955 = vld [vmem:[%s1146 + $0x94] sm:$0xf]
      %v8956 = vld [vmem:[%s1146 + $0x98] sm:$0xf]
      %v8957 = vld [vmem:[%s1146 + $0xa4] sm:$0xf]
      %v8958 = vld [vmem:[%s1146 + $0xa8] sm:$0xf]
      %v8959 = vld [vmem:[%s1146 + $0xb4] sm:$0xf]
      %v8960 = vld [vmem:[%s1146 + $0xb8] sm:$0xf]
      %v8961 = vld [vmem:[%s1146 + $0xc4] sm:$0xf]
      %v8962 = vld [vmem:[%s1146 + $0xc8] sm:$0xf]
      %v8963 = vld [vmem:[%s1146 + $0xd4] sm:$0xf]
      %v8964 = vld [vmem:[%s1146 + $0xd8] sm:$0xf]
      %v8965 = vld [vmem:[%s1146 + $0xe4] sm:$0xf]
      %v8966 = vld [vmem:[%s1146 + $0xe8] sm:$0xf]
      %v8967 = vld [vmem:[%s1146 + $0xf4] sm:$0xf]
      %v8968 = vld [vmem:[%s1146 + $0xf8] sm:$0xf]
      %8969 = vst.msk [vmem:[#allocation4 + $0x8] sm:$0xf] %vm1680, %v8937
      %8970 = vst.msk [vmem:[#allocation4 + $0x1c] sm:$0xf] %vm1680, %v8938
      %8971 = vst.msk [vmem:[#allocation4 + $0x30] sm:$0xf] %vm1680, %v8939
      %8972 = vst.msk [vmem:[#allocation4 + $0x44] sm:$0xf] %vm1680, %v8940
      %8973 = vst.msk [vmem:[#allocation4 + $0x58] sm:$0xf] %vm1680, %v8941
      %8974 = vst.msk [vmem:[#allocation4 + $0x6c] sm:$0xf] %vm1680, %v8942
      %8975 = vst.msk [vmem:[#allocation4 + $0x80] sm:$0xf] %vm1680, %v8943
      %8976 = vst.msk [vmem:[#allocation4 + $0x94] sm:$0xf] %vm1680, %v8944
      %8977 = vst.msk [vmem:[#allocation4 + $0xa8] sm:$0xf] %vm1680, %v8945
      %8978 = vst.msk [vmem:[#allocation4 + $0xbc] sm:$0xf] %vm1680, %v8946
      %8979 = vst.msk [vmem:[#allocation4 + $0xd0] sm:$0xf] %vm1680, %v8947
      %8980 = vst.msk [vmem:[#allocation4 + $0xe4] sm:$0xf] %vm1680, %v8948
      %8981 = vst.msk [vmem:[#allocation4 + $0xf8] sm:$0xf] %vm1680, %v8949
      %8982 = vst.msk [vmem:[#allocation4 + $0x10c] sm:$0xf] %vm1680, %v8950
      %8983 = vst.msk [vmem:[#allocation4 + $0x120] sm:$0xf] %vm1680, %v8951
      %8984 = vst.msk [vmem:[#allocation4 + $0x134] sm:$0xf] %vm1680, %v8952
      %8985 = vst.msk [vmem:[#allocation4 + $0x148] sm:$0xf] %vm1680, %v8953
      %8986 = vst.msk [vmem:[#allocation4 + $0x15c] sm:$0xf] %vm1680, %v8954
      %8987 = vst.msk [vmem:[#allocation4 + $0x170] sm:$0xf] %vm1680, %v8955
      %8988 = vst.msk [vmem:[#allocation4 + $0x184] sm:$0xf] %vm1680, %v8956
      %8989 = vst.msk [vmem:[#allocation4 + $0x198] sm:$0xf] %vm1680, %v8957
      %8990 = vst.msk [vmem:[#allocation4 + $0x1ac] sm:$0xf] %vm1680, %v8958
      %8991 = vst.msk [vmem:[#allocation4 + $0x1c0] sm:$0xf] %vm1680, %v8959
      %8992 = vst.msk [vmem:[#allocation4 + $0x1d4] sm:$0xf] %vm1680, %v8960
      %8993 = vst.msk [vmem:[#allocation4 + $0x1e8] sm:$0xf] %vm1680, %v8961
      %8994 = vst.msk [vmem:[#allocation4 + $0x1fc] sm:$0xf] %vm1680, %v8962
      %8995 = vst.msk [vmem:[#allocation4 + $0x210] sm:$0xf] %vm1680, %v8963
      %8996 = vst.msk [vmem:[#allocation4 + $0x224] sm:$0xf] %vm1680, %v8964
      %8997 = vst.msk [vmem:[#allocation4 + $0x238] sm:$0xf] %vm1680, %v8965
      %8998 = vst.msk [vmem:[#allocation4 + $0x24c] sm:$0xf] %vm1680, %v8966
      %8999 = vst.msk [vmem:[#allocation4 + $0x260] sm:$0xf] %vm1680, %v8967
      %9000 = vst.msk [vmem:[#allocation4 + $0x274] sm:$0xf] %vm1680, %v8968
      %v9001 = vld [vmem:[%s1146 + $0x4] sm:$0xf]
      %v9002 = vld [vmem:[%s1146 + $0x8] sm:$0xf]
      %v9003 = vld [vmem:[%s1146 + $0xc] sm:$0x1]
      %v9004 = vld [vmem:[%s1146 + $0x14] sm:$0xf]
      %v9005 = vld [vmem:[%s1146 + $0x18] sm:$0xf]
      %v9006 = vld [vmem:[%s1146 + $0x1c] sm:$0x1]
      %v9007 = vld [vmem:[%s1146 + $0x24] sm:$0xf]
      %v9008 = vld [vmem:[%s1146 + $0x28] sm:$0xf]
      %v9009 = vld [vmem:[%s1146 + $0x2c] sm:$0x1]
      %v9010 = vld [vmem:[%s1146 + $0x34] sm:$0xf]
      %v9011 = vld [vmem:[%s1146 + $0x38] sm:$0xf]
      %v9012 = vld [vmem:[%s1146 + $0x3c] sm:$0x1]
      %v9013 = vld [vmem:[%s1146 + $0x44] sm:$0xf]
      %v9014 = vld [vmem:[%s1146 + $0x48] sm:$0xf]
      %v9015 = vld [vmem:[%s1146 + $0x4c] sm:$0x1]
      %v9016 = vld [vmem:[%s1146 + $0x54] sm:$0xf]
      %v9017 = vld [vmem:[%s1146 + $0x58] sm:$0xf]
      %v9018 = vld [vmem:[%s1146 + $0x5c] sm:$0x1]
      %v9019 = vld [vmem:[%s1146 + $0x64] sm:$0xf]
      %v9020 = vld [vmem:[%s1146 + $0x68] sm:$0xf]
      %v9021 = vld [vmem:[%s1146 + $0x6c] sm:$0x1]
      %v9022 = vld [vmem:[%s1146 + $0x74] sm:$0xf]
      %v9023 = vld [vmem:[%s1146 + $0x78] sm:$0xf]
      %v9024 = vld [vmem:[%s1146 + $0x7c] sm:$0x1]
      %v9025 = vld [vmem:[%s1146 + $0x84] sm:$0xf]
      %v9026 = vld [vmem:[%s1146 + $0x88] sm:$0xf]
      %v9027 = vld [vmem:[%s1146 + $0x8c] sm:$0x1]
      %v9028 = vld [vmem:[%s1146 + $0x94] sm:$0xf]
      %v9029 = vld [vmem:[%s1146 + $0x98] sm:$0xf]
      %v9030 = vld [vmem:[%s1146 + $0x9c] sm:$0x1]
      %v9031 = vld [vmem:[%s1146 + $0xa4] sm:$0xf]
      %v9032 = vld [vmem:[%s1146 + $0xa8] sm:$0xf]
      %v9033 = vld [vmem:[%s1146 + $0xac] sm:$0x1]
      %v9034 = vld [vmem:[%s1146 + $0xb4] sm:$0xf]
      %v9035 = vld [vmem:[%s1146 + $0xb8] sm:$0xf]
      %v9036 = vld [vmem:[%s1146 + $0xbc] sm:$0x1]
      %v9037 = vld [vmem:[%s1146 + $0xc4] sm:$0xf]
      %v9038 = vld [vmem:[%s1146 + $0xc8] sm:$0xf]
      %v9039 = vld [vmem:[%s1146 + $0xcc] sm:$0x1]
      %v9040 = vld [vmem:[%s1146 + $0xd4] sm:$0xf]
      %v9041 = vld [vmem:[%s1146 + $0xd8] sm:$0xf]
      %v9042 = vld [vmem:[%s1146 + $0xdc] sm:$0x1]
      %v9043 = vld [vmem:[%s1146 + $0xe4] sm:$0xf]
      %v9044 = vld [vmem:[%s1146 + $0xe8] sm:$0xf]
      %v9045 = vld [vmem:[%s1146 + $0xec] sm:$0x1]
      %v9046 = vld [vmem:[%s1146 + $0xf4] sm:$0xf]
      %v9047 = vld [vmem:[%s1146 + $0xf8] sm:$0xf]
      %v9048 = vld [vmem:[%s1146 + $0xfc] sm:$0x1]
      %v9050 = vshrl.u32 %v9001, 16
      %v9052 = vrot.slane %v9050, 4
      %v9053 = vshll.u32 %v9001, 16
      %v9055 = vrot.slane %v9053, 5
      %v9056 = vor.u32 %v9052, %v9055
      %v9057 = vrot.slane %v9056, 4
      %v9059 = vshll.u32 %v9002, 16
      %v9061 = vrot.slane %v9059, 5
      %v9062 = vsel %vm1956, %v9057, %v9061
      %v9063 = vshrl.u32 %v9002, 16
      %v9065 = vrot.slane %v9063, 4
      %v9066 = vor.u32 %v9065, %v9061
      %v9067 = vrot.slane %v9066, 4
      %v9069 = vshll.u32 %v9003, 16
      %v9071 = vrot.slane %v9069, 5
      %v9072 = vsel %vm1956, %v9067, %v9071
      %v9074 = vshrl.u32 %v9004, 16
      %v9076 = vrot.slane %v9074, 4
      %v9077 = vshll.u32 %v9004, 16
      %v9079 = vrot.slane %v9077, 5
      %v9080 = vor.u32 %v9076, %v9079
      %v9081 = vrot.slane %v9080, 4
      %v9083 = vshll.u32 %v9005, 16
      %v9085 = vrot.slane %v9083, 5
      %v9086 = vsel %vm1956, %v9081, %v9085
      %v9087 = vshrl.u32 %v9005, 16
      %v9089 = vrot.slane %v9087, 4
      %v9090 = vor.u32 %v9089, %v9085
      %v9091 = vrot.slane %v9090, 4
      %v9093 = vshll.u32 %v9006, 16
      %v9095 = vrot.slane %v9093, 5
      %v9096 = vsel %vm1956, %v9091, %v9095
      %v9098 = vshrl.u32 %v9007, 16
      %v9100 = vrot.slane %v9098, 4
      %v9101 = vshll.u32 %v9007, 16
      %v9103 = vrot.slane %v9101, 5
      %v9104 = vor.u32 %v9100, %v9103
      %v9105 = vrot.slane %v9104, 4
      %v9107 = vshll.u32 %v9008, 16
      %v9109 = vrot.slane %v9107, 5
      %v9110 = vsel %vm1956, %v9105, %v9109
      %v9111 = vshrl.u32 %v9008, 16
      %v9113 = vrot.slane %v9111, 4
      %v9114 = vor.u32 %v9113, %v9109
      %v9115 = vrot.slane %v9114, 4
      %v9117 = vshll.u32 %v9009, 16
      %v9119 = vrot.slane %v9117, 5
      %v9120 = vsel %vm1956, %v9115, %v9119
      %v9122 = vshrl.u32 %v9010, 16
      %v9124 = vrot.slane %v9122, 4
      %v9125 = vshll.u32 %v9010, 16
      %v9127 = vrot.slane %v9125, 5
      %v9128 = vor.u32 %v9124, %v9127
      %v9129 = vrot.slane %v9128, 4
      %v9131 = vshll.u32 %v9011, 16
      %v9133 = vrot.slane %v9131, 5
      %v9134 = vsel %vm1956, %v9129, %v9133
      %v9135 = vshrl.u32 %v9011, 16
      %v9137 = vrot.slane %v9135, 4
      %v9138 = vor.u32 %v9137, %v9133
      %v9139 = vrot.slane %v9138, 4
      %v9141 = vshll.u32 %v9012, 16
      %v9143 = vrot.slane %v9141, 5
      %v9144 = vsel %vm1956, %v9139, %v9143
      %v9146 = vshrl.u32 %v9013, 16
      %v9148 = vrot.slane %v9146, 4
      %v9149 = vshll.u32 %v9013, 16
      %v9151 = vrot.slane %v9149, 5
      %v9152 = vor.u32 %v9148, %v9151
      %v9153 = vrot.slane %v9152, 4
      %v9155 = vshll.u32 %v9014, 16
      %v9157 = vrot.slane %v9155, 5
      %v9158 = vsel %vm1956, %v9153, %v9157
      %v9159 = vshrl.u32 %v9014, 16
      %v9161 = vrot.slane %v9159, 4
      %v9162 = vor.u32 %v9161, %v9157
      %v9163 = vrot.slane %v9162, 4
      %v9165 = vshll.u32 %v9015, 16
      %v9167 = vrot.slane %v9165, 5
      %v9168 = vsel %vm1956, %v9163, %v9167
      %v9170 = vshrl.u32 %v9016, 16
      %v9172 = vrot.slane %v9170, 4
      %v9173 = vshll.u32 %v9016, 16
      %v9175 = vrot.slane %v9173, 5
      %v9176 = vor.u32 %v9172, %v9175
      %v9177 = vrot.slane %v9176, 4
      %v9179 = vshll.u32 %v9017, 16
      %v9181 = vrot.slane %v9179, 5
      %v9182 = vsel %vm1956, %v9177, %v9181
      %v9183 = vshrl.u32 %v9017, 16
      %v9185 = vrot.slane %v9183, 4
      %v9186 = vor.u32 %v9185, %v9181
      %v9187 = vrot.slane %v9186, 4
      %v9189 = vshll.u32 %v9018, 16
      %v9191 = vrot.slane %v9189, 5
      %v9192 = vsel %vm1956, %v9187, %v9191
      %v9194 = vshrl.u32 %v9019, 16
      %v9196 = vrot.slane %v9194, 4
      %v9197 = vshll.u32 %v9019, 16
      %v9199 = vrot.slane %v9197, 5
      %v9200 = vor.u32 %v9196, %v9199
      %v9201 = vrot.slane %v9200, 4
      %v9203 = vshll.u32 %v9020, 16
      %v9205 = vrot.slane %v9203, 5
      %v9206 = vsel %vm1956, %v9201, %v9205
      %v9207 = vshrl.u32 %v9020, 16
      %v9209 = vrot.slane %v9207, 4
      %v9210 = vor.u32 %v9209, %v9205
      %v9211 = vrot.slane %v9210, 4
      %v9213 = vshll.u32 %v9021, 16
      %v9215 = vrot.slane %v9213, 5
      %v9216 = vsel %vm1956, %v9211, %v9215
      %v9218 = vshrl.u32 %v9022, 16
      %v9220 = vrot.slane %v9218, 4
      %v9221 = vshll.u32 %v9022, 16
      %v9223 = vrot.slane %v9221, 5
      %v9224 = vor.u32 %v9220, %v9223
      %v9225 = vrot.slane %v9224, 4
      %v9227 = vshll.u32 %v9023, 16
      %v9229 = vrot.slane %v9227, 5
      %v9230 = vsel %vm1956, %v9225, %v9229
      %v9231 = vshrl.u32 %v9023, 16
      %v9233 = vrot.slane %v9231, 4
      %v9234 = vor.u32 %v9233, %v9229
      %v9235 = vrot.slane %v9234, 4
      %v9237 = vshll.u32 %v9024, 16
      %v9239 = vrot.slane %v9237, 5
      %v9240 = vsel %vm1956, %v9235, %v9239
      %v9242 = vshrl.u32 %v9025, 16
      %v9244 = vrot.slane %v9242, 4
      %v9245 = vshll.u32 %v9025, 16
      %v9247 = vrot.slane %v9245, 5
      %v9248 = vor.u32 %v9244, %v9247
      %v9249 = vrot.slane %v9248, 4
      %v9251 = vshll.u32 %v9026, 16
      %v9253 = vrot.slane %v9251, 5
      %v9254 = vsel %vm1956, %v9249, %v9253
      %v9255 = vshrl.u32 %v9026, 16
      %v9257 = vrot.slane %v9255, 4
      %v9258 = vor.u32 %v9257, %v9253
      %v9259 = vrot.slane %v9258, 4
      %v9261 = vshll.u32 %v9027, 16
      %v9263 = vrot.slane %v9261, 5
      %v9264 = vsel %vm1956, %v9259, %v9263
      %v9266 = vshrl.u32 %v9028, 16
      %v9268 = vrot.slane %v9266, 4
      %v9269 = vshll.u32 %v9028, 16
      %v9271 = vrot.slane %v9269, 5
      %v9272 = vor.u32 %v9268, %v9271
      %v9273 = vrot.slane %v9272, 4
      %v9275 = vshll.u32 %v9029, 16
      %v9277 = vrot.slane %v9275, 5
      %v9278 = vsel %vm1956, %v9273, %v9277
      %v9279 = vshrl.u32 %v9029, 16
      %v9281 = vrot.slane %v9279, 4
      %v9282 = vor.u32 %v9281, %v9277
      %v9283 = vrot.slane %v9282, 4
      %v9285 = vshll.u32 %v9030, 16
      %v9287 = vrot.slane %v9285, 5
      %v9288 = vsel %vm1956, %v9283, %v9287
      %v9290 = vshrl.u32 %v9031, 16
      %v9292 = vrot.slane %v9290, 4
      %v9293 = vshll.u32 %v9031, 16
      %v9295 = vrot.slane %v9293, 5
      %v9296 = vor.u32 %v9292, %v9295
      %v9297 = vrot.slane %v9296, 4
      %v9299 = vshll.u32 %v9032, 16
      %v9301 = vrot.slane %v9299, 5
      %v9302 = vsel %vm1956, %v9297, %v9301
      %v9303 = vshrl.u32 %v9032, 16
      %v9305 = vrot.slane %v9303, 4
      %v9306 = vor.u32 %v9305, %v9301
      %v9307 = vrot.slane %v9306, 4
      %v9309 = vshll.u32 %v9033, 16
      %v9311 = vrot.slane %v9309, 5
      %v9312 = vsel %vm1956, %v9307, %v9311
      %v9314 = vshrl.u32 %v9034, 16
      %v9316 = vrot.slane %v9314, 4
      %v9317 = vshll.u32 %v9034, 16
      %v9319 = vrot.slane %v9317, 5
      %v9320 = vor.u32 %v9316, %v9319
      %v9321 = vrot.slane %v9320, 4
      %v9323 = vshll.u32 %v9035, 16
      %v9325 = vrot.slane %v9323, 5
      %v9326 = vsel %vm1956, %v9321, %v9325
      %v9327 = vshrl.u32 %v9035, 16
      %v9329 = vrot.slane %v9327, 4
      %v9330 = vor.u32 %v9329, %v9325
      %v9331 = vrot.slane %v9330, 4
      %v9333 = vshll.u32 %v9036, 16
      %v9335 = vrot.slane %v9333, 5
      %v9336 = vsel %vm1956, %v9331, %v9335
      %v9338 = vshrl.u32 %v9037, 16
      %v9340 = vrot.slane %v9338, 4
      %v9341 = vshll.u32 %v9037, 16
      %v9343 = vrot.slane %v9341, 5
      %v9344 = vor.u32 %v9340, %v9343
      %v9345 = vrot.slane %v9344, 4
      %v9347 = vshll.u32 %v9038, 16
      %v9349 = vrot.slane %v9347, 5
      %v9350 = vsel %vm1956, %v9345, %v9349
      %v9351 = vshrl.u32 %v9038, 16
      %v9353 = vrot.slane %v9351, 4
      %v9354 = vor.u32 %v9353, %v9349
      %v9355 = vrot.slane %v9354, 4
      %v9357 = vshll.u32 %v9039, 16
      %v9359 = vrot.slane %v9357, 5
      %v9360 = vsel %vm1956, %v9355, %v9359
      %v9362 = vshrl.u32 %v9040, 16
      %v9364 = vrot.slane %v9362, 4
      %v9365 = vshll.u32 %v9040, 16
      %v9367 = vrot.slane %v9365, 5
      %v9368 = vor.u32 %v9364, %v9367
      %v9369 = vrot.slane %v9368, 4
      %v9371 = vshll.u32 %v9041, 16
      %v9373 = vrot.slane %v9371, 5
      %v9374 = vsel %vm1956, %v9369, %v9373
      %v9375 = vshrl.u32 %v9041, 16
      %v9377 = vrot.slane %v9375, 4
      %v9378 = vor.u32 %v9377, %v9373
      %v9379 = vrot.slane %v9378, 4
      %v9381 = vshll.u32 %v9042, 16
      %v9383 = vrot.slane %v9381, 5
      %v9384 = vsel %vm1956, %v9379, %v9383
      %v9386 = vshrl.u32 %v9043, 16
      %v9388 = vrot.slane %v9386, 4
      %v9389 = vshll.u32 %v9043, 16
      %v9391 = vrot.slane %v9389, 5
      %v9392 = vor.u32 %v9388, %v9391
      %v9393 = vrot.slane %v9392, 4
      %v9395 = vshll.u32 %v9044, 16
      %v9397 = vrot.slane %v9395, 5
      %v9398 = vsel %vm1956, %v9393, %v9397
      %v9399 = vshrl.u32 %v9044, 16
      %v9401 = vrot.slane %v9399, 4
      %v9402 = vor.u32 %v9401, %v9397
      %v9403 = vrot.slane %v9402, 4
      %v9405 = vshll.u32 %v9045, 16
      %v9407 = vrot.slane %v9405, 5
      %v9408 = vsel %vm1956, %v9403, %v9407
      %v9410 = vshrl.u32 %v9046, 16
      %v9412 = vrot.slane %v9410, 4
      %v9413 = vshll.u32 %v9046, 16
      %v9415 = vrot.slane %v9413, 5
      %v9416 = vor.u32 %v9412, %v9415
      %v9417 = vrot.slane %v9416, 4
      %v9419 = vshll.u32 %v9047, 16
      %v9421 = vrot.slane %v9419, 5
      %v9422 = vsel %vm1956, %v9417, %v9421
      %v9423 = vshrl.u32 %v9047, 16
      %v9425 = vrot.slane %v9423, 4
      %v9426 = vor.u32 %v9425, %v9421
      %v9427 = vrot.slane %v9426, 4
      %v9429 = vshll.u32 %v9048, 16
      %v9431 = vrot.slane %v9429, 5
      %v9432 = vsel %vm1956, %v9427, %v9431
      %9433 = vrot.lane.b32.xlu0 %v9062, 64
      %v9434 = vpop.permute.xlu0 %9433
      %9435 = vrot.lane.b32.xlu0 %v9072, 64
      %v9436 = vpop.permute.xlu0 %9435
      %9437 = vrot.lane.b32.xlu0 %v9086, 64
      %v9438 = vpop.permute.xlu0 %9437
      %9439 = vrot.lane.b32.xlu0 %v9096, 64
      %v9440 = vpop.permute.xlu0 %9439
      %9441 = vrot.lane.b32.xlu0 %v9110, 64
      %v9442 = vpop.permute.xlu0 %9441
      %9443 = vrot.lane.b32.xlu0 %v9120, 64
      %v9444 = vpop.permute.xlu0 %9443
      %9445 = vrot.lane.b32.xlu0 %v9134, 64
      %v9446 = vpop.permute.xlu0 %9445
      %9447 = vrot.lane.b32.xlu0 %v9144, 64
      %v9448 = vpop.permute.xlu0 %9447
      %9449 = vrot.lane.b32.xlu0 %v9158, 64
      %v9450 = vpop.permute.xlu0 %9449
      %9451 = vrot.lane.b32.xlu0 %v9168, 64
      %v9452 = vpop.permute.xlu0 %9451
      %9453 = vrot.lane.b32.xlu0 %v9182, 64
      %v9454 = vpop.permute.xlu0 %9453
      %9455 = vrot.lane.b32.xlu0 %v9192, 64
      %v9456 = vpop.permute.xlu0 %9455
      %9457 = vrot.lane.b32.xlu0 %v9206, 64
      %v9458 = vpop.permute.xlu0 %9457
      %9459 = vrot.lane.b32.xlu0 %v9216, 64
      %v9460 = vpop.permute.xlu0 %9459
      %9461 = vrot.lane.b32.xlu0 %v9230, 64
      %v9462 = vpop.permute.xlu0 %9461
      %9463 = vrot.lane.b32.xlu0 %v9240, 64
      %v9464 = vpop.permute.xlu0 %9463
      %9465 = vrot.lane.b32.xlu0 %v9254, 64
      %v9466 = vpop.permute.xlu0 %9465
      %9467 = vrot.lane.b32.xlu0 %v9264, 64
      %v9468 = vpop.permute.xlu0 %9467
      %9469 = vrot.lane.b32.xlu0 %v9278, 64
      %v9470 = vpop.permute.xlu0 %9469
      %9471 = vrot.lane.b32.xlu0 %v9288, 64
      %v9472 = vpop.permute.xlu0 %9471
      %9473 = vrot.lane.b32.xlu0 %v9302, 64
      %v9474 = vpop.permute.xlu0 %9473
      %9475 = vrot.lane.b32.xlu0 %v9312, 64
      %v9476 = vpop.permute.xlu0 %9475
      %9477 = vrot.lane.b32.xlu0 %v9326, 64
      %v9478 = vpop.permute.xlu0 %9477
      %9479 = vrot.lane.b32.xlu0 %v9336, 64
      %v9480 = vpop.permute.xlu0 %9479
      %9481 = vrot.lane.b32.xlu0 %v9350, 64
      %v9482 = vpop.permute.xlu0 %9481
      %9483 = vrot.lane.b32.xlu0 %v9360, 64
      %v9484 = vpop.permute.xlu0 %9483
      %9485 = vrot.lane.b32.xlu0 %v9374, 64
      %v9486 = vpop.permute.xlu0 %9485
      %9487 = vrot.lane.b32.xlu0 %v9384, 64
      %v9488 = vpop.permute.xlu0 %9487
      %9489 = vrot.lane.b32.xlu0 %v9398, 64
      %v9490 = vpop.permute.xlu0 %9489
      %9491 = vrot.lane.b32.xlu0 %v9408, 64
      %v9492 = vpop.permute.xlu0 %9491
      %9493 = vrot.lane.b32.xlu0 %v9422, 64
      %v9494 = vpop.permute.xlu0 %9493
      %9495 = vrot.lane.b32.xlu0 %v9432, 64
      %v9496 = vpop.permute.xlu0 %9495
      %9529 = vst.msk [vmem:[#allocation4 + $0x8] sm:$0xf] %vm1873, %v9434
      %9530 = vst.msk [vmem:[#allocation4 + $0x1c] sm:$0xf] %vm1873, %v9436
      %9531 = vst.msk [vmem:[#allocation4 + $0x30] sm:$0xf] %vm1873, %v9438
      %9532 = vst.msk [vmem:[#allocation4 + $0x44] sm:$0xf] %vm1873, %v9440
      %9533 = vst.msk [vmem:[#allocation4 + $0x58] sm:$0xf] %vm1873, %v9442
      %9534 = vst.msk [vmem:[#allocation4 + $0x6c] sm:$0xf] %vm1873, %v9444
      %9535 = vst.msk [vmem:[#allocation4 + $0x80] sm:$0xf] %vm1873, %v9446
      %9536 = vst.msk [vmem:[#allocation4 + $0x94] sm:$0xf] %vm1873, %v9448
      %9537 = vst.msk [vmem:[#allocation4 + $0xa8] sm:$0xf] %vm1873, %v9450
      %9538 = vst.msk [vmem:[#allocation4 + $0xbc] sm:$0xf] %vm1873, %v9452
      %9539 = vst.msk [vmem:[#allocation4 + $0xd0] sm:$0xf] %vm1873, %v9454
      %9540 = vst.msk [vmem:[#allocation4 + $0xe4] sm:$0xf] %vm1873, %v9456
      %9541 = vst.msk [vmem:[#allocation4 + $0xf8] sm:$0xf] %vm1873, %v9458
      %9542 = vst.msk [vmem:[#allocation4 + $0x10c] sm:$0xf] %vm1873, %v9460
      %9543 = vst.msk [vmem:[#allocation4 + $0x120] sm:$0xf] %vm1873, %v9462
      %9544 = vst.msk [vmem:[#allocation4 + $0x134] sm:$0xf] %vm1873, %v9464
      %9545 = vst.msk [vmem:[#allocation4 + $0x148] sm:$0xf] %vm1873, %v9466
      %9546 = vst.msk [vmem:[#allocation4 + $0x15c] sm:$0xf] %vm1873, %v9468
      %9547 = vst.msk [vmem:[#allocation4 + $0x170] sm:$0xf] %vm1873, %v9470
      %9548 = vst.msk [vmem:[#allocation4 + $0x184] sm:$0xf] %vm1873, %v9472
      %9549 = vst.msk [vmem:[#allocation4 + $0x198] sm:$0xf] %vm1873, %v9474
      %9550 = vst.msk [vmem:[#allocation4 + $0x1ac] sm:$0xf] %vm1873, %v9476
      %9551 = vst.msk [vmem:[#allocation4 + $0x1c0] sm:$0xf] %vm1873, %v9478
      %9552 = vst.msk [vmem:[#allocation4 + $0x1d4] sm:$0xf] %vm1873, %v9480
      %9553 = vst.msk [vmem:[#allocation4 + $0x1e8] sm:$0xf] %vm1873, %v9482
      %9554 = vst.msk [vmem:[#allocation4 + $0x1fc] sm:$0xf] %vm1873, %v9484
      %9555 = vst.msk [vmem:[#allocation4 + $0x210] sm:$0xf] %vm1873, %v9486
      %9556 = vst.msk [vmem:[#allocation4 + $0x224] sm:$0xf] %vm1873, %v9488
      %9557 = vst.msk [vmem:[#allocation4 + $0x238] sm:$0xf] %vm1873, %v9490
      %9558 = vst.msk [vmem:[#allocation4 + $0x24c] sm:$0xf] %vm1873, %v9492
      %9559 = vst.msk [vmem:[#allocation4 + $0x260] sm:$0xf] %vm1873, %v9494
      %9560 = vst.msk [vmem:[#allocation4 + $0x274] sm:$0xf] %vm1873, %v9496
      %v9561 = vld [vmem:[%s3557] sm:$0x8]
      %v9562 = vld [vmem:[%s3557 + $0x4] sm:$0xf]
      %v9563 = vld [vmem:[%s3557 + $0x8] sm:$0xf]
      %v9564 = vld [vmem:[%s3557 + $0x10] sm:$0x8]
      %v9565 = vld [vmem:[%s3557 + $0x14] sm:$0xf]
      %v9566 = vld [vmem:[%s3557 + $0x18] sm:$0xf]
      %v9567 = vld [vmem:[%s3557 + $0x20] sm:$0x8]
      %v9568 = vld [vmem:[%s3557 + $0x24] sm:$0xf]
      %v9569 = vld [vmem:[%s3557 + $0x28] sm:$0xf]
      %v9570 = vld [vmem:[%s3557 + $0x30] sm:$0x8]
      %v9571 = vld [vmem:[%s3557 + $0x34] sm:$0xf]
      %v9572 = vld [vmem:[%s3557 + $0x38] sm:$0xf]
      %v9573 = vld [vmem:[%s3557 + $0x40] sm:$0x8]
      %v9574 = vld [vmem:[%s3557 + $0x44] sm:$0xf]
      %v9575 = vld [vmem:[%s3557 + $0x48] sm:$0xf]
      %v9576 = vld [vmem:[%s3557 + $0x50] sm:$0x8]
      %v9577 = vld [vmem:[%s3557 + $0x54] sm:$0xf]
      %v9578 = vld [vmem:[%s3557 + $0x58] sm:$0xf]
      %v9579 = vld [vmem:[%s3557 + $0x60] sm:$0x8]
      %v9580 = vld [vmem:[%s3557 + $0x64] sm:$0xf]
      %v9581 = vld [vmem:[%s3557 + $0x68] sm:$0xf]
      %v9582 = vld [vmem:[%s3557 + $0x70] sm:$0x8]
      %v9583 = vld [vmem:[%s3557 + $0x74] sm:$0xf]
      %v9584 = vld [vmem:[%s3557 + $0x78] sm:$0xf]
      %v9585 = vld [vmem:[%s3557 + $0x80] sm:$0x8]
      %v9586 = vld [vmem:[%s3557 + $0x84] sm:$0xf]
      %v9587 = vld [vmem:[%s3557 + $0x88] sm:$0xf]
      %v9588 = vld [vmem:[%s3557 + $0x90] sm:$0x8]
      %v9589 = vld [vmem:[%s3557 + $0x94] sm:$0xf]
      %v9590 = vld [vmem:[%s3557 + $0x98] sm:$0xf]
      %v9591 = vld [vmem:[%s3557 + $0xa0] sm:$0x8]
      %v9592 = vld [vmem:[%s3557 + $0xa4] sm:$0xf]
      %v9593 = vld [vmem:[%s3557 + $0xa8] sm:$0xf]
      %v9594 = vld [vmem:[%s3557 + $0xb0] sm:$0x8]
      %v9595 = vld [vmem:[%s3557 + $0xb4] sm:$0xf]
      %v9596 = vld [vmem:[%s3557 + $0xb8] sm:$0xf]
      %v9597 = vld [vmem:[%s3557 + $0xc0] sm:$0x8]
      %v9598 = vld [vmem:[%s3557 + $0xc4] sm:$0xf]
      %v9599 = vld [vmem:[%s3557 + $0xc8] sm:$0xf]
      %v9600 = vld [vmem:[%s3557 + $0xd0] sm:$0x8]
      %v9601 = vld [vmem:[%s3557 + $0xd4] sm:$0xf]
      %v9602 = vld [vmem:[%s3557 + $0xd8] sm:$0xf]
      %v9603 = vld [vmem:[%s3557 + $0xe0] sm:$0x8]
      %v9604 = vld [vmem:[%s3557 + $0xe4] sm:$0xf]
      %v9605 = vld [vmem:[%s3557 + $0xe8] sm:$0xf]
      %v9606 = vld [vmem:[%s3557 + $0xf0] sm:$0x8]
      %v9607 = vld [vmem:[%s3557 + $0xf4] sm:$0xf]
      %v9608 = vld [vmem:[%s3557 + $0xf8] sm:$0xf]
      %v9610 = vshrl.u32 %v9561, 16
      %v9612 = vrot.slane %v9610, 7
      %v9613 = vrot.slane %v9612, 4
      %v9615 = vshrl.u32 %v9562, 16
      %v9617 = vrot.slane %v9615, 7
      %v9618 = vshll.u32 %v9562, 16
      %v9620 = vor.u32 %v9617, %v9618
      %v9621 = vsel %vm1295, %v9613, %v9620
      %v9622 = vrot.slane %v9617, 4
      %v9624 = vshrl.u32 %v9563, 16
      %v9626 = vrot.slane %v9624, 7
      %v9627 = vshll.u32 %v9563, 16
      %v9629 = vor.u32 %v9626, %v9627
      %v9630 = vsel %vm1295, %v9622, %v9629
      %v9632 = vshrl.u32 %v9564, 16
      %v9634 = vrot.slane %v9632, 7
      %v9635 = vrot.slane %v9634, 4
      %v9637 = vshrl.u32 %v9565, 16
      %v9639 = vrot.slane %v9637, 7
      %v9640 = vshll.u32 %v9565, 16
      %v9642 = vor.u32 %v9639, %v9640
      %v9643 = vsel %vm1295, %v9635, %v9642
      %v9644 = vrot.slane %v9639, 4
      %v9646 = vshrl.u32 %v9566, 16
      %v9648 = vrot.slane %v9646, 7
      %v9649 = vshll.u32 %v9566, 16
      %v9651 = vor.u32 %v9648, %v9649
      %v9652 = vsel %vm1295, %v9644, %v9651
      %v9654 = vshrl.u32 %v9567, 16
      %v9656 = vrot.slane %v9654, 7
      %v9657 = vrot.slane %v9656, 4
      %v9659 = vshrl.u32 %v9568, 16
      %v9661 = vrot.slane %v9659, 7
      %v9662 = vshll.u32 %v9568, 16
      %v9664 = vor.u32 %v9661, %v9662
      %v9665 = vsel %vm1295, %v9657, %v9664
      %v9666 = vrot.slane %v9661, 4
      %v9668 = vshrl.u32 %v9569, 16
      %v9670 = vrot.slane %v9668, 7
      %v9671 = vshll.u32 %v9569, 16
      %v9673 = vor.u32 %v9670, %v9671
      %v9674 = vsel %vm1295, %v9666, %v9673
      %v9676 = vshrl.u32 %v9570, 16
      %v9678 = vrot.slane %v9676, 7
      %v9679 = vrot.slane %v9678, 4
      %v9681 = vshrl.u32 %v9571, 16
      %v9683 = vrot.slane %v9681, 7
      %v9684 = vshll.u32 %v9571, 16
      %v9686 = vor.u32 %v9683, %v9684
      %v9687 = vsel %vm1295, %v9679, %v9686
      %v9688 = vrot.slane %v9683, 4
      %v9690 = vshrl.u32 %v9572, 16
      %v9692 = vrot.slane %v9690, 7
      %v9693 = vshll.u32 %v9572, 16
      %v9695 = vor.u32 %v9692, %v9693
      %v9696 = vsel %vm1295, %v9688, %v9695
      %v9698 = vshrl.u32 %v9573, 16
      %v9700 = vrot.slane %v9698, 7
      %v9701 = vrot.slane %v9700, 4
      %v9703 = vshrl.u32 %v9574, 16
      %v9705 = vrot.slane %v9703, 7
      %v9706 = vshll.u32 %v9574, 16
      %v9708 = vor.u32 %v9705, %v9706
      %v9709 = vsel %vm1295, %v9701, %v9708
      %v9710 = vrot.slane %v9705, 4
      %v9712 = vshrl.u32 %v9575, 16
      %v9714 = vrot.slane %v9712, 7
      %v9715 = vshll.u32 %v9575, 16
      %v9717 = vor.u32 %v9714, %v9715
      %v9718 = vsel %vm1295, %v9710, %v9717
      %v9720 = vshrl.u32 %v9576, 16
      %v9722 = vrot.slane %v9720, 7
      %v9723 = vrot.slane %v9722, 4
      %v9725 = vshrl.u32 %v9577, 16
      %v9727 = vrot.slane %v9725, 7
      %v9728 = vshll.u32 %v9577, 16
      %v9730 = vor.u32 %v9727, %v9728
      %v9731 = vsel %vm1295, %v9723, %v9730
      %v9732 = vrot.slane %v9727, 4
      %v9734 = vshrl.u32 %v9578, 16
      %v9736 = vrot.slane %v9734, 7
      %v9737 = vshll.u32 %v9578, 16
      %v9739 = vor.u32 %v9736, %v9737
      %v9740 = vsel %vm1295, %v9732, %v9739
      %v9742 = vshrl.u32 %v9579, 16
      %v9744 = vrot.slane %v9742, 7
      %v9745 = vrot.slane %v9744, 4
      %v9747 = vshrl.u32 %v9580, 16
      %v9749 = vrot.slane %v9747, 7
      %v9750 = vshll.u32 %v9580, 16
      %v9752 = vor.u32 %v9749, %v9750
      %v9753 = vsel %vm1295, %v9745, %v9752
      %v9754 = vrot.slane %v9749, 4
      %v9756 = vshrl.u32 %v9581, 16
      %v9758 = vrot.slane %v9756, 7
      %v9759 = vshll.u32 %v9581, 16
      %v9761 = vor.u32 %v9758, %v9759
      %v9762 = vsel %vm1295, %v9754, %v9761
      %v9764 = vshrl.u32 %v9582, 16
      %v9766 = vrot.slane %v9764, 7
      %v9767 = vrot.slane %v9766, 4
      %v9769 = vshrl.u32 %v9583, 16
      %v9771 = vrot.slane %v9769, 7
      %v9772 = vshll.u32 %v9583, 16
      %v9774 = vor.u32 %v9771, %v9772
      %v9775 = vsel %vm1295, %v9767, %v9774
      %v9776 = vrot.slane %v9771, 4
      %v9778 = vshrl.u32 %v9584, 16
      %v9780 = vrot.slane %v9778, 7
      %v9781 = vshll.u32 %v9584, 16
      %v9783 = vor.u32 %v9780, %v9781
      %v9784 = vsel %vm1295, %v9776, %v9783
      %v9786 = vshrl.u32 %v9585, 16
      %v9788 = vrot.slane %v9786, 7
      %v9789 = vrot.slane %v9788, 4
      %v9791 = vshrl.u32 %v9586, 16
      %v9793 = vrot.slane %v9791, 7
      %v9794 = vshll.u32 %v9586, 16
      %v9796 = vor.u32 %v9793, %v9794
      %v9797 = vsel %vm1295, %v9789, %v9796
      %v9798 = vrot.slane %v9793, 4
      %v9800 = vshrl.u32 %v9587, 16
      %v9802 = vrot.slane %v9800, 7
      %v9803 = vshll.u32 %v9587, 16
      %v9805 = vor.u32 %v9802, %v9803
      %v9806 = vsel %vm1295, %v9798, %v9805
      %v9808 = vshrl.u32 %v9588, 16
      %v9810 = vrot.slane %v9808, 7
      %v9811 = vrot.slane %v9810, 4
      %v9813 = vshrl.u32 %v9589, 16
      %v9815 = vrot.slane %v9813, 7
      %v9816 = vshll.u32 %v9589, 16
      %v9818 = vor.u32 %v9815, %v9816
      %v9819 = vsel %vm1295, %v9811, %v9818
      %v9820 = vrot.slane %v9815, 4
      %v9822 = vshrl.u32 %v9590, 16
      %v9824 = vrot.slane %v9822, 7
      %v9825 = vshll.u32 %v9590, 16
      %v9827 = vor.u32 %v9824, %v9825
      %v9828 = vsel %vm1295, %v9820, %v9827
      %v9830 = vshrl.u32 %v9591, 16
      %v9832 = vrot.slane %v9830, 7
      %v9833 = vrot.slane %v9832, 4
      %v9835 = vshrl.u32 %v9592, 16
      %v9837 = vrot.slane %v9835, 7
      %v9838 = vshll.u32 %v9592, 16
      %v9840 = vor.u32 %v9837, %v9838
      %v9841 = vsel %vm1295, %v9833, %v9840
      %v9842 = vrot.slane %v9837, 4
      %v9844 = vshrl.u32 %v9593, 16
      %v9846 = vrot.slane %v9844, 7
      %v9847 = vshll.u32 %v9593, 16
      %v9849 = vor.u32 %v9846, %v9847
      %v9850 = vsel %vm1295, %v9842, %v9849
      %v9852 = vshrl.u32 %v9594, 16
      %v9854 = vrot.slane %v9852, 7
      %v9855 = vrot.slane %v9854, 4
      %v9857 = vshrl.u32 %v9595, 16
      %v9859 = vrot.slane %v9857, 7
      %v9860 = vshll.u32 %v9595, 16
      %v9862 = vor.u32 %v9859, %v9860
      %v9863 = vsel %vm1295, %v9855, %v9862
      %v9864 = vrot.slane %v9859, 4
      %v9866 = vshrl.u32 %v9596, 16
      %v9868 = vrot.slane %v9866, 7
      %v9869 = vshll.u32 %v9596, 16
      %v9871 = vor.u32 %v9868, %v9869
      %v9872 = vsel %vm1295, %v9864, %v9871
      %v9874 = vshrl.u32 %v9597, 16
      %v9876 = vrot.slane %v9874, 7
      %v9877 = vrot.slane %v9876, 4
      %v9879 = vshrl.u32 %v9598, 16
      %v9881 = vrot.slane %v9879, 7
      %v9882 = vshll.u32 %v9598, 16
      %v9884 = vor.u32 %v9881, %v9882
      %v9885 = vsel %vm1295, %v9877, %v9884
      %v9886 = vrot.slane %v9881, 4
      %v9888 = vshrl.u32 %v9599, 16
      %v9890 = vrot.slane %v9888, 7
      %v9891 = vshll.u32 %v9599, 16
      %v9893 = vor.u32 %v9890, %v9891
      %v9894 = vsel %vm1295, %v9886, %v9893
      %v9896 = vshrl.u32 %v9600, 16
      %v9898 = vrot.slane %v9896, 7
      %v9899 = vrot.slane %v9898, 4
      %v9901 = vshrl.u32 %v9601, 16
      %v9903 = vrot.slane %v9901, 7
      %v9904 = vshll.u32 %v9601, 16
      %v9906 = vor.u32 %v9903, %v9904
      %v9907 = vsel %vm1295, %v9899, %v9906
      %v9908 = vrot.slane %v9903, 4
      %v9910 = vshrl.u32 %v9602, 16
      %v9912 = vrot.slane %v9910, 7
      %v9913 = vshll.u32 %v9602, 16
      %v9915 = vor.u32 %v9912, %v9913
      %v9916 = vsel %vm1295, %v9908, %v9915
      %v9918 = vshrl.u32 %v9603, 16
      %v9920 = vrot.slane %v9918, 7
      %v9921 = vrot.slane %v9920, 4
      %v9923 = vshrl.u32 %v9604, 16
      %v9925 = vrot.slane %v9923, 7
      %v9926 = vshll.u32 %v9604, 16
      %v9928 = vor.u32 %v9925, %v9926
      %v9929 = vsel %vm1295, %v9921, %v9928
      %v9930 = vrot.slane %v9925, 4
      %v9932 = vshrl.u32 %v9605, 16
      %v9934 = vrot.slane %v9932, 7
      %v9935 = vshll.u32 %v9605, 16
      %v9937 = vor.u32 %v9934, %v9935
      %v9938 = vsel %vm1295, %v9930, %v9937
      %v9940 = vshrl.u32 %v9606, 16
      %v9942 = vrot.slane %v9940, 7
      %v9943 = vrot.slane %v9942, 4
      %v9945 = vshrl.u32 %v9607, 16
      %v9947 = vrot.slane %v9945, 7
      %v9948 = vshll.u32 %v9607, 16
      %v9950 = vor.u32 %v9947, %v9948
      %v9951 = vsel %vm1295, %v9943, %v9950
      %v9952 = vrot.slane %v9947, 4
      %v9954 = vshrl.u32 %v9608, 16
      %v9956 = vrot.slane %v9954, 7
      %v9957 = vshll.u32 %v9608, 16
      %v9959 = vor.u32 %v9956, %v9957
      %v9960 = vsel %vm1295, %v9952, %v9959
      %9993 = vst.msk [vmem:[#allocation4 + $0xc] sm:$0xf] %vm1680, %v9621
      %9994 = vst.msk [vmem:[#allocation4 + $0x20] sm:$0xf] %vm1680, %v9630
      %9995 = vst.msk [vmem:[#allocation4 + $0x34] sm:$0xf] %vm1680, %v9643
      %9996 = vst.msk [vmem:[#allocation4 + $0x48] sm:$0xf] %vm1680, %v9652
      %9997 = vst.msk [vmem:[#allocation4 + $0x5c] sm:$0xf] %vm1680, %v9665
      %9998 = vst.msk [vmem:[#allocation4 + $0x70] sm:$0xf] %vm1680, %v9674
      %9999 = vst.msk [vmem:[#allocation4 + $0x84] sm:$0xf] %vm1680, %v9687
      %10000 = vst.msk [vmem:[#allocation4 + $0x98] sm:$0xf] %vm1680, %v9696
      %10001 = vst.msk [vmem:[#allocation4 + $0xac] sm:$0xf] %vm1680, %v9709
      %10002 = vst.msk [vmem:[#allocation4 + $0xc0] sm:$0xf] %vm1680, %v9718
      %10003 = vst.msk [vmem:[#allocation4 + $0xd4] sm:$0xf] %vm1680, %v9731
      %10004 = vst.msk [vmem:[#allocation4 + $0xe8] sm:$0xf] %vm1680, %v9740
      %10005 = vst.msk [vmem:[#allocation4 + $0xfc] sm:$0xf] %vm1680, %v9753
      %10006 = vst.msk [vmem:[#allocation4 + $0x110] sm:$0xf] %vm1680, %v9762
      %10007 = vst.msk [vmem:[#allocation4 + $0x124] sm:$0xf] %vm1680, %v9775
      %10008 = vst.msk [vmem:[#allocation4 + $0x138] sm:$0xf] %vm1680, %v9784
      %10009 = vst.msk [vmem:[#allocation4 + $0x14c] sm:$0xf] %vm1680, %v9797
      %10010 = vst.msk [vmem:[#allocation4 + $0x160] sm:$0xf] %vm1680, %v9806
      %10011 = vst.msk [vmem:[#allocation4 + $0x174] sm:$0xf] %vm1680, %v9819
      %10012 = vst.msk [vmem:[#allocation4 + $0x188] sm:$0xf] %vm1680, %v9828
      %10013 = vst.msk [vmem:[#allocation4 + $0x19c] sm:$0xf] %vm1680, %v9841
      %10014 = vst.msk [vmem:[#allocation4 + $0x1b0] sm:$0xf] %vm1680, %v9850
      %10015 = vst.msk [vmem:[#allocation4 + $0x1c4] sm:$0xf] %vm1680, %v9863
      %10016 = vst.msk [vmem:[#allocation4 + $0x1d8] sm:$0xf] %vm1680, %v9872
      %10017 = vst.msk [vmem:[#allocation4 + $0x1ec] sm:$0xf] %vm1680, %v9885
      %10018 = vst.msk [vmem:[#allocation4 + $0x200] sm:$0xf] %vm1680, %v9894
      %10019 = vst.msk [vmem:[#allocation4 + $0x214] sm:$0xf] %vm1680, %v9907
      %10020 = vst.msk [vmem:[#allocation4 + $0x228] sm:$0xf] %vm1680, %v9916
      %10021 = vst.msk [vmem:[#allocation4 + $0x23c] sm:$0xf] %vm1680, %v9929
      %10022 = vst.msk [vmem:[#allocation4 + $0x250] sm:$0xf] %vm1680, %v9938
      %10023 = vst.msk [vmem:[#allocation4 + $0x264] sm:$0xf] %vm1680, %v9951
      %10024 = vst.msk [vmem:[#allocation4 + $0x278] sm:$0xf] %vm1680, %v9960
      %v10025 = vld [vmem:[%s3557 + $0x4] sm:$0xf]
      %v10026 = vld [vmem:[%s3557 + $0x8] sm:$0xf]
      %v10027 = vld [vmem:[%s3557 + $0x14] sm:$0xf]
      %v10028 = vld [vmem:[%s3557 + $0x18] sm:$0xf]
      %v10029 = vld [vmem:[%s3557 + $0x24] sm:$0xf]
      %v10030 = vld [vmem:[%s3557 + $0x28] sm:$0xf]
      %v10031 = vld [vmem:[%s3557 + $0x34] sm:$0xf]
      %v10032 = vld [vmem:[%s3557 + $0x38] sm:$0xf]
      %v10033 = vld [vmem:[%s3557 + $0x44] sm:$0xf]
      %v10034 = vld [vmem:[%s3557 + $0x48] sm:$0xf]
      %v10035 = vld [vmem:[%s3557 + $0x54] sm:$0xf]
      %v10036 = vld [vmem:[%s3557 + $0x58] sm:$0xf]
      %v10037 = vld [vmem:[%s3557 + $0x64] sm:$0xf]
      %v10038 = vld [vmem:[%s3557 + $0x68] sm:$0xf]
      %v10039 = vld [vmem:[%s3557 + $0x74] sm:$0xf]
      %v10040 = vld [vmem:[%s3557 + $0x78] sm:$0xf]
      %v10041 = vld [vmem:[%s3557 + $0x84] sm:$0xf]
      %v10042 = vld [vmem:[%s3557 + $0x88] sm:$0xf]
      %v10043 = vld [vmem:[%s3557 + $0x94] sm:$0xf]
      %v10044 = vld [vmem:[%s3557 + $0x98] sm:$0xf]
      %v10045 = vld [vmem:[%s3557 + $0xa4] sm:$0xf]
      %v10046 = vld [vmem:[%s3557 + $0xa8] sm:$0xf]
      %v10047 = vld [vmem:[%s3557 + $0xb4] sm:$0xf]
      %v10048 = vld [vmem:[%s3557 + $0xb8] sm:$0xf]
      %v10049 = vld [vmem:[%s3557 + $0xc4] sm:$0xf]
      %v10050 = vld [vmem:[%s3557 + $0xc8] sm:$0xf]
      %v10051 = vld [vmem:[%s3557 + $0xd4] sm:$0xf]
      %v10052 = vld [vmem:[%s3557 + $0xd8] sm:$0xf]
      %v10053 = vld [vmem:[%s3557 + $0xe4] sm:$0xf]
      %v10054 = vld [vmem:[%s3557 + $0xe8] sm:$0xf]
      %v10055 = vld [vmem:[%s3557 + $0xf4] sm:$0xf]
      %v10056 = vld [vmem:[%s3557 + $0xf8] sm:$0xf]
      %10089 = vrot.lane.b32.xlu0 %v10025, 64
      %v10090 = vpop.permute.xlu0 %10089
      %10091 = vrot.lane.b32.xlu0 %v10026, 64
      %v10092 = vpop.permute.xlu0 %10091
      %10093 = vrot.lane.b32.xlu0 %v10027, 64
      %v10094 = vpop.permute.xlu0 %10093
      %10095 = vrot.lane.b32.xlu0 %v10028, 64
      %v10096 = vpop.permute.xlu0 %10095
      %10097 = vrot.lane.b32.xlu0 %v10029, 64
      %v10098 = vpop.permute.xlu0 %10097
      %10099 = vrot.lane.b32.xlu0 %v10030, 64
      %v10100 = vpop.permute.xlu0 %10099
      %10101 = vrot.lane.b32.xlu0 %v10031, 64
      %v10102 = vpop.permute.xlu0 %10101
      %10103 = vrot.lane.b32.xlu0 %v10032, 64
      %v10104 = vpop.permute.xlu0 %10103
      %10105 = vrot.lane.b32.xlu0 %v10033, 64
      %v10106 = vpop.permute.xlu0 %10105
      %10107 = vrot.lane.b32.xlu0 %v10034, 64
      %v10108 = vpop.permute.xlu0 %10107
      %10109 = vrot.lane.b32.xlu0 %v10035, 64
      %v10110 = vpop.permute.xlu0 %10109
      %10111 = vrot.lane.b32.xlu0 %v10036, 64
      %v10112 = vpop.permute.xlu0 %10111
      %10113 = vrot.lane.b32.xlu0 %v10037, 64
      %v10114 = vpop.permute.xlu0 %10113
      %10115 = vrot.lane.b32.xlu0 %v10038, 64
      %v10116 = vpop.permute.xlu0 %10115
      %10117 = vrot.lane.b32.xlu0 %v10039, 64
      %v10118 = vpop.permute.xlu0 %10117
      %10119 = vrot.lane.b32.xlu0 %v10040, 64
      %v10120 = vpop.permute.xlu0 %10119
      %10121 = vrot.lane.b32.xlu0 %v10041, 64
      %v10122 = vpop.permute.xlu0 %10121
      %10123 = vrot.lane.b32.xlu0 %v10042, 64
      %v10124 = vpop.permute.xlu0 %10123
      %10125 = vrot.lane.b32.xlu0 %v10043, 64
      %v10126 = vpop.permute.xlu0 %10125
      %10127 = vrot.lane.b32.xlu0 %v10044, 64
      %v10128 = vpop.permute.xlu0 %10127
      %10129 = vrot.lane.b32.xlu0 %v10045, 64
      %v10130 = vpop.permute.xlu0 %10129
      %10131 = vrot.lane.b32.xlu0 %v10046, 64
      %v10132 = vpop.permute.xlu0 %10131
      %10133 = vrot.lane.b32.xlu0 %v10047, 64
      %v10134 = vpop.permute.xlu0 %10133
      %10135 = vrot.lane.b32.xlu0 %v10048, 64
      %v10136 = vpop.permute.xlu0 %10135
      %10137 = vrot.lane.b32.xlu0 %v10049, 64
      %v10138 = vpop.permute.xlu0 %10137
      %10139 = vrot.lane.b32.xlu0 %v10050, 64
      %v10140 = vpop.permute.xlu0 %10139
      %10141 = vrot.lane.b32.xlu0 %v10051, 64
      %v10142 = vpop.permute.xlu0 %10141
      %10143 = vrot.lane.b32.xlu0 %v10052, 64
      %v10144 = vpop.permute.xlu0 %10143
      %10145 = vrot.lane.b32.xlu0 %v10053, 64
      %v10146 = vpop.permute.xlu0 %10145
      %10147 = vrot.lane.b32.xlu0 %v10054, 64
      %v10148 = vpop.permute.xlu0 %10147
      %10149 = vrot.lane.b32.xlu0 %v10055, 64
      %v10150 = vpop.permute.xlu0 %10149
      %10151 = vrot.lane.b32.xlu0 %v10056, 64
      %v10152 = vpop.permute.xlu0 %10151
      %10185 = vst.msk [vmem:[#allocation4 + $0xc] sm:$0xf] %vm1873, %v10090
      %10186 = vst.msk [vmem:[#allocation4 + $0x20] sm:$0xf] %vm1873, %v10092
      %10187 = vst.msk [vmem:[#allocation4 + $0x34] sm:$0xf] %vm1873, %v10094
      %10188 = vst.msk [vmem:[#allocation4 + $0x48] sm:$0xf] %vm1873, %v10096
      %10189 = vst.msk [vmem:[#allocation4 + $0x5c] sm:$0xf] %vm1873, %v10098
      %10190 = vst.msk [vmem:[#allocation4 + $0x70] sm:$0xf] %vm1873, %v10100
      %10191 = vst.msk [vmem:[#allocation4 + $0x84] sm:$0xf] %vm1873, %v10102
      %10192 = vst.msk [vmem:[#allocation4 + $0x98] sm:$0xf] %vm1873, %v10104
      %10193 = vst.msk [vmem:[#allocation4 + $0xac] sm:$0xf] %vm1873, %v10106
      %10194 = vst.msk [vmem:[#allocation4 + $0xc0] sm:$0xf] %vm1873, %v10108
      %10195 = vst.msk [vmem:[#allocation4 + $0xd4] sm:$0xf] %vm1873, %v10110
      %10196 = vst.msk [vmem:[#allocation4 + $0xe8] sm:$0xf] %vm1873, %v10112
      %10197 = vst.msk [vmem:[#allocation4 + $0xfc] sm:$0xf] %vm1873, %v10114
      %10198 = vst.msk [vmem:[#allocation4 + $0x110] sm:$0xf] %vm1873, %v10116
      %10199 = vst.msk [vmem:[#allocation4 + $0x124] sm:$0xf] %vm1873, %v10118
      %10200 = vst.msk [vmem:[#allocation4 + $0x138] sm:$0xf] %vm1873, %v10120
      %10201 = vst.msk [vmem:[#allocation4 + $0x14c] sm:$0xf] %vm1873, %v10122
      %10202 = vst.msk [vmem:[#allocation4 + $0x160] sm:$0xf] %vm1873, %v10124
      %10203 = vst.msk [vmem:[#allocation4 + $0x174] sm:$0xf] %vm1873, %v10126
      %10204 = vst.msk [vmem:[#allocation4 + $0x188] sm:$0xf] %vm1873, %v10128
      %10205 = vst.msk [vmem:[#allocation4 + $0x19c] sm:$0xf] %vm1873, %v10130
      %10206 = vst.msk [vmem:[#allocation4 + $0x1b0] sm:$0xf] %vm1873, %v10132
      %10207 = vst.msk [vmem:[#allocation4 + $0x1c4] sm:$0xf] %vm1873, %v10134
      %10208 = vst.msk [vmem:[#allocation4 + $0x1d8] sm:$0xf] %vm1873, %v10136
      %10209 = vst.msk [vmem:[#allocation4 + $0x1ec] sm:$0xf] %vm1873, %v10138
      %10210 = vst.msk [vmem:[#allocation4 + $0x200] sm:$0xf] %vm1873, %v10140
      %10211 = vst.msk [vmem:[#allocation4 + $0x214] sm:$0xf] %vm1873, %v10142
      %10212 = vst.msk [vmem:[#allocation4 + $0x228] sm:$0xf] %vm1873, %v10144
      %10213 = vst.msk [vmem:[#allocation4 + $0x23c] sm:$0xf] %vm1873, %v10146
      %10214 = vst.msk [vmem:[#allocation4 + $0x250] sm:$0xf] %vm1873, %v10148
      %10215 = vst.msk [vmem:[#allocation4 + $0x264] sm:$0xf] %vm1873, %v10150
      %10216 = vst.msk [vmem:[#allocation4 + $0x278] sm:$0xf] %vm1873, %v10152
      %v10217 = vld [vmem:[%s3557 + $0x4] sm:$0xf]
      %v10218 = vld [vmem:[%s3557 + $0x8] sm:$0xf]
      %v10219 = vld [vmem:[%s3557 + $0xc] sm:$0x1]
      %v10220 = vld [vmem:[%s3557 + $0x14] sm:$0xf]
      %v10221 = vld [vmem:[%s3557 + $0x18] sm:$0xf]
      %v10222 = vld [vmem:[%s3557 + $0x1c] sm:$0x1]
      %v10223 = vld [vmem:[%s3557 + $0x24] sm:$0xf]
      %v10224 = vld [vmem:[%s3557 + $0x28] sm:$0xf]
      %v10225 = vld [vmem:[%s3557 + $0x2c] sm:$0x1]
      %v10226 = vld [vmem:[%s3557 + $0x34] sm:$0xf]
      %v10227 = vld [vmem:[%s3557 + $0x38] sm:$0xf]
      %v10228 = vld [vmem:[%s3557 + $0x3c] sm:$0x1]
      %v10229 = vld [vmem:[%s3557 + $0x44] sm:$0xf]
      %v10230 = vld [vmem:[%s3557 + $0x48] sm:$0xf]
      %v10231 = vld [vmem:[%s3557 + $0x4c] sm:$0x1]
      %v10232 = vld [vmem:[%s3557 + $0x54] sm:$0xf]
      %v10233 = vld [vmem:[%s3557 + $0x58] sm:$0xf]
      %v10234 = vld [vmem:[%s3557 + $0x5c] sm:$0x1]
      %v10235 = vld [vmem:[%s3557 + $0x64] sm:$0xf]
      %v10236 = vld [vmem:[%s3557 + $0x68] sm:$0xf]
      %v10237 = vld [vmem:[%s3557 + $0x6c] sm:$0x1]
      %v10238 = vld [vmem:[%s3557 + $0x74] sm:$0xf]
      %v10239 = vld [vmem:[%s3557 + $0x78] sm:$0xf]
      %v10240 = vld [vmem:[%s3557 + $0x7c] sm:$0x1]
      %v10241 = vld [vmem:[%s3557 + $0x84] sm:$0xf]
      %v10242 = vld [vmem:[%s3557 + $0x88] sm:$0xf]
      %v10243 = vld [vmem:[%s3557 + $0x8c] sm:$0x1]
      %v10244 = vld [vmem:[%s3557 + $0x94] sm:$0xf]
      %v10245 = vld [vmem:[%s3557 + $0x98] sm:$0xf]
      %v10246 = vld [vmem:[%s3557 + $0x9c] sm:$0x1]
      %v10247 = vld [vmem:[%s3557 + $0xa4] sm:$0xf]
      %v10248 = vld [vmem:[%s3557 + $0xa8] sm:$0xf]
      %v10249 = vld [vmem:[%s3557 + $0xac] sm:$0x1]
      %v10250 = vld [vmem:[%s3557 + $0xb4] sm:$0xf]
      %v10251 = vld [vmem:[%s3557 + $0xb8] sm:$0xf]
      %v10252 = vld [vmem:[%s3557 + $0xbc] sm:$0x1]
      %v10253 = vld [vmem:[%s3557 + $0xc4] sm:$0xf]
      %v10254 = vld [vmem:[%s3557 + $0xc8] sm:$0xf]
      %v10255 = vld [vmem:[%s3557 + $0xcc] sm:$0x1]
      %v10256 = vld [vmem:[%s3557 + $0xd4] sm:$0xf]
      %v10257 = vld [vmem:[%s3557 + $0xd8] sm:$0xf]
      %v10258 = vld [vmem:[%s3557 + $0xdc] sm:$0x1]
      %v10259 = vld [vmem:[%s3557 + $0xe4] sm:$0xf]
      %v10260 = vld [vmem:[%s3557 + $0xe8] sm:$0xf]
      %v10261 = vld [vmem:[%s3557 + $0xec] sm:$0x1]
      %v10262 = vld [vmem:[%s3557 + $0xf4] sm:$0xf]
      %v10263 = vld [vmem:[%s3557 + $0xf8] sm:$0xf]
      %v10264 = vld [vmem:[%s3557 + $0xfc] sm:$0x1]
      %v10266 = vshrl.u32 %v10217, 16
      %v10268 = vrot.slane %v10266, 4
      %v10269 = vshll.u32 %v10217, 16
      %v10271 = vrot.slane %v10269, 5
      %v10272 = vor.u32 %v10268, %v10271
      %v10273 = vrot.slane %v10272, 4
      %v10275 = vshll.u32 %v10218, 16
      %v10277 = vrot.slane %v10275, 5
      %v10278 = vsel %vm1956, %v10273, %v10277
      %v10279 = vshrl.u32 %v10218, 16
      %v10281 = vrot.slane %v10279, 4
      %v10282 = vor.u32 %v10281, %v10277
      %v10283 = vrot.slane %v10282, 4
      %v10285 = vshll.u32 %v10219, 16
      %v10287 = vrot.slane %v10285, 5
      %v10288 = vsel %vm1956, %v10283, %v10287
      %v10290 = vshrl.u32 %v10220, 16
      %v10292 = vrot.slane %v10290, 4
      %v10293 = vshll.u32 %v10220, 16
      %v10295 = vrot.slane %v10293, 5
      %v10296 = vor.u32 %v10292, %v10295
      %v10297 = vrot.slane %v10296, 4
      %v10299 = vshll.u32 %v10221, 16
      %v10301 = vrot.slane %v10299, 5
      %v10302 = vsel %vm1956, %v10297, %v10301
      %v10303 = vshrl.u32 %v10221, 16
      %v10305 = vrot.slane %v10303, 4
      %v10306 = vor.u32 %v10305, %v10301
      %v10307 = vrot.slane %v10306, 4
      %v10309 = vshll.u32 %v10222, 16
      %v10311 = vrot.slane %v10309, 5
      %v10312 = vsel %vm1956, %v10307, %v10311
      %v10314 = vshrl.u32 %v10223, 16
      %v10316 = vrot.slane %v10314, 4
      %v10317 = vshll.u32 %v10223, 16
      %v10319 = vrot.slane %v10317, 5
      %v10320 = vor.u32 %v10316, %v10319
      %v10321 = vrot.slane %v10320, 4
      %v10323 = vshll.u32 %v10224, 16
      %v10325 = vrot.slane %v10323, 5
      %v10326 = vsel %vm1956, %v10321, %v10325
      %v10327 = vshrl.u32 %v10224, 16
      %v10329 = vrot.slane %v10327, 4
      %v10330 = vor.u32 %v10329, %v10325
      %v10331 = vrot.slane %v10330, 4
      %v10333 = vshll.u32 %v10225, 16
      %v10335 = vrot.slane %v10333, 5
      %v10336 = vsel %vm1956, %v10331, %v10335
      %v10338 = vshrl.u32 %v10226, 16
      %v10340 = vrot.slane %v10338, 4
      %v10341 = vshll.u32 %v10226, 16
      %v10343 = vrot.slane %v10341, 5
      %v10344 = vor.u32 %v10340, %v10343
      %v10345 = vrot.slane %v10344, 4
      %v10347 = vshll.u32 %v10227, 16
      %v10349 = vrot.slane %v10347, 5
      %v10350 = vsel %vm1956, %v10345, %v10349
      %v10351 = vshrl.u32 %v10227, 16
      %v10353 = vrot.slane %v10351, 4
      %v10354 = vor.u32 %v10353, %v10349
      %v10355 = vrot.slane %v10354, 4
      %v10357 = vshll.u32 %v10228, 16
      %v10359 = vrot.slane %v10357, 5
      %v10360 = vsel %vm1956, %v10355, %v10359
      %v10362 = vshrl.u32 %v10229, 16
      %v10364 = vrot.slane %v10362, 4
      %v10365 = vshll.u32 %v10229, 16
      %v10367 = vrot.slane %v10365, 5
      %v10368 = vor.u32 %v10364, %v10367
      %v10369 = vrot.slane %v10368, 4
      %v10371 = vshll.u32 %v10230, 16
      %v10373 = vrot.slane %v10371, 5
      %v10374 = vsel %vm1956, %v10369, %v10373
      %v10375 = vshrl.u32 %v10230, 16
      %v10377 = vrot.slane %v10375, 4
      %v10378 = vor.u32 %v10377, %v10373
      %v10379 = vrot.slane %v10378, 4
      %v10381 = vshll.u32 %v10231, 16
      %v10383 = vrot.slane %v10381, 5
      %v10384 = vsel %vm1956, %v10379, %v10383
      %v10386 = vshrl.u32 %v10232, 16
      %v10388 = vrot.slane %v10386, 4
      %v10389 = vshll.u32 %v10232, 16
      %v10391 = vrot.slane %v10389, 5
      %v10392 = vor.u32 %v10388, %v10391
      %v10393 = vrot.slane %v10392, 4
      %v10395 = vshll.u32 %v10233, 16
      %v10397 = vrot.slane %v10395, 5
      %v10398 = vsel %vm1956, %v10393, %v10397
      %v10399 = vshrl.u32 %v10233, 16
      %v10401 = vrot.slane %v10399, 4
      %v10402 = vor.u32 %v10401, %v10397
      %v10403 = vrot.slane %v10402, 4
      %v10405 = vshll.u32 %v10234, 16
      %v10407 = vrot.slane %v10405, 5
      %v10408 = vsel %vm1956, %v10403, %v10407
      %v10410 = vshrl.u32 %v10235, 16
      %v10412 = vrot.slane %v10410, 4
      %v10413 = vshll.u32 %v10235, 16
      %v10415 = vrot.slane %v10413, 5
      %v10416 = vor.u32 %v10412, %v10415
      %v10417 = vrot.slane %v10416, 4
      %v10419 = vshll.u32 %v10236, 16
      %v10421 = vrot.slane %v10419, 5
      %v10422 = vsel %vm1956, %v10417, %v10421
      %v10423 = vshrl.u32 %v10236, 16
      %v10425 = vrot.slane %v10423, 4
      %v10426 = vor.u32 %v10425, %v10421
      %v10427 = vrot.slane %v10426, 4
      %v10429 = vshll.u32 %v10237, 16
      %v10431 = vrot.slane %v10429, 5
      %v10432 = vsel %vm1956, %v10427, %v10431
      %v10434 = vshrl.u32 %v10238, 16
      %v10436 = vrot.slane %v10434, 4
      %v10437 = vshll.u32 %v10238, 16
      %v10439 = vrot.slane %v10437, 5
      %v10440 = vor.u32 %v10436, %v10439
      %v10441 = vrot.slane %v10440, 4
      %v10443 = vshll.u32 %v10239, 16
      %v10445 = vrot.slane %v10443, 5
      %v10446 = vsel %vm1956, %v10441, %v10445
      %v10447 = vshrl.u32 %v10239, 16
      %v10449 = vrot.slane %v10447, 4
      %v10450 = vor.u32 %v10449, %v10445
      %v10451 = vrot.slane %v10450, 4
      %v10453 = vshll.u32 %v10240, 16
      %v10455 = vrot.slane %v10453, 5
      %v10456 = vsel %vm1956, %v10451, %v10455
      %v10458 = vshrl.u32 %v10241, 16
      %v10460 = vrot.slane %v10458, 4
      %v10461 = vshll.u32 %v10241, 16
      %v10463 = vrot.slane %v10461, 5
      %v10464 = vor.u32 %v10460, %v10463
      %v10465 = vrot.slane %v10464, 4
      %v10467 = vshll.u32 %v10242, 16
      %v10469 = vrot.slane %v10467, 5
      %v10470 = vsel %vm1956, %v10465, %v10469
      %v10471 = vshrl.u32 %v10242, 16
      %v10473 = vrot.slane %v10471, 4
      %v10474 = vor.u32 %v10473, %v10469
      %v10475 = vrot.slane %v10474, 4
      %v10477 = vshll.u32 %v10243, 16
      %v10479 = vrot.slane %v10477, 5
      %v10480 = vsel %vm1956, %v10475, %v10479
      %v10482 = vshrl.u32 %v10244, 16
      %v10484 = vrot.slane %v10482, 4
      %v10485 = vshll.u32 %v10244, 16
      %v10487 = vrot.slane %v10485, 5
      %v10488 = vor.u32 %v10484, %v10487
      %v10489 = vrot.slane %v10488, 4
      %v10491 = vshll.u32 %v10245, 16
      %v10493 = vrot.slane %v10491, 5
      %v10494 = vsel %vm1956, %v10489, %v10493
      %v10495 = vshrl.u32 %v10245, 16
      %v10497 = vrot.slane %v10495, 4
      %v10498 = vor.u32 %v10497, %v10493
      %v10499 = vrot.slane %v10498, 4
      %v10501 = vshll.u32 %v10246, 16
      %v10503 = vrot.slane %v10501, 5
      %v10504 = vsel %vm1956, %v10499, %v10503
      %v10506 = vshrl.u32 %v10247, 16
      %v10508 = vrot.slane %v10506, 4
      %v10509 = vshll.u32 %v10247, 16
      %v10511 = vrot.slane %v10509, 5
      %v10512 = vor.u32 %v10508, %v10511
      %v10513 = vrot.slane %v10512, 4
      %v10515 = vshll.u32 %v10248, 16
      %v10517 = vrot.slane %v10515, 5
      %v10518 = vsel %vm1956, %v10513, %v10517
      %v10519 = vshrl.u32 %v10248, 16
      %v10521 = vrot.slane %v10519, 4
      %v10522 = vor.u32 %v10521, %v10517
      %v10523 = vrot.slane %v10522, 4
      %v10525 = vshll.u32 %v10249, 16
      %v10527 = vrot.slane %v10525, 5
      %v10528 = vsel %vm1956, %v10523, %v10527
      %v10530 = vshrl.u32 %v10250, 16
      %v10532 = vrot.slane %v10530, 4
      %v10533 = vshll.u32 %v10250, 16
      %v10535 = vrot.slane %v10533, 5
      %v10536 = vor.u32 %v10532, %v10535
      %v10537 = vrot.slane %v10536, 4
      %v10539 = vshll.u32 %v10251, 16
      %v10541 = vrot.slane %v10539, 5
      %v10542 = vsel %vm1956, %v10537, %v10541
      %v10543 = vshrl.u32 %v10251, 16
      %v10545 = vrot.slane %v10543, 4
      %v10546 = vor.u32 %v10545, %v10541
      %v10547 = vrot.slane %v10546, 4
      %v10549 = vshll.u32 %v10252, 16
      %v10551 = vrot.slane %v10549, 5
      %v10552 = vsel %vm1956, %v10547, %v10551
      %v10554 = vshrl.u32 %v10253, 16
      %v10556 = vrot.slane %v10554, 4
      %v10557 = vshll.u32 %v10253, 16
      %v10559 = vrot.slane %v10557, 5
      %v10560 = vor.u32 %v10556, %v10559
      %v10561 = vrot.slane %v10560, 4
      %v10563 = vshll.u32 %v10254, 16
      %v10565 = vrot.slane %v10563, 5
      %v10566 = vsel %vm1956, %v10561, %v10565
      %v10567 = vshrl.u32 %v10254, 16
      %v10569 = vrot.slane %v10567, 4
      %v10570 = vor.u32 %v10569, %v10565
      %v10571 = vrot.slane %v10570, 4
      %v10573 = vshll.u32 %v10255, 16
      %v10575 = vrot.slane %v10573, 5
      %v10576 = vsel %vm1956, %v10571, %v10575
      %v10578 = vshrl.u32 %v10256, 16
      %v10580 = vrot.slane %v10578, 4
      %v10581 = vshll.u32 %v10256, 16
      %v10583 = vrot.slane %v10581, 5
      %v10584 = vor.u32 %v10580, %v10583
      %v10585 = vrot.slane %v10584, 4
      %v10587 = vshll.u32 %v10257, 16
      %v10589 = vrot.slane %v10587, 5
      %v10590 = vsel %vm1956, %v10585, %v10589
      %v10591 = vshrl.u32 %v10257, 16
      %v10593 = vrot.slane %v10591, 4
      %v10594 = vor.u32 %v10593, %v10589
      %v10595 = vrot.slane %v10594, 4
      %v10597 = vshll.u32 %v10258, 16
      %v10599 = vrot.slane %v10597, 5
      %v10600 = vsel %vm1956, %v10595, %v10599
      %v10602 = vshrl.u32 %v10259, 16
      %v10604 = vrot.slane %v10602, 4
      %v10605 = vshll.u32 %v10259, 16
      %v10607 = vrot.slane %v10605, 5
      %v10608 = vor.u32 %v10604, %v10607
      %v10609 = vrot.slane %v10608, 4
      %v10611 = vshll.u32 %v10260, 16
      %v10613 = vrot.slane %v10611, 5
      %v10614 = vsel %vm1956, %v10609, %v10613
      %v10615 = vshrl.u32 %v10260, 16
      %v10617 = vrot.slane %v10615, 4
      %v10618 = vor.u32 %v10617, %v10613
      %v10619 = vrot.slane %v10618, 4
      %v10621 = vshll.u32 %v10261, 16
      %v10623 = vrot.slane %v10621, 5
      %v10624 = vsel %vm1956, %v10619, %v10623
      %v10626 = vshrl.u32 %v10262, 16
      %v10628 = vrot.slane %v10626, 4
      %v10629 = vshll.u32 %v10262, 16
      %v10631 = vrot.slane %v10629, 5
      %v10632 = vor.u32 %v10628, %v10631
      %v10633 = vrot.slane %v10632, 4
      %v10635 = vshll.u32 %v10263, 16
      %v10637 = vrot.slane %v10635, 5
      %v10638 = vsel %vm1956, %v10633, %v10637
      %v10639 = vshrl.u32 %v10263, 16
      %v10641 = vrot.slane %v10639, 4
      %v10642 = vor.u32 %v10641, %v10637
      %v10643 = vrot.slane %v10642, 4
      %v10645 = vshll.u32 %v10264, 16
      %v10647 = vrot.slane %v10645, 5
      %v10648 = vsel %vm1956, %v10643, %v10647
      %10681 = vst.msk [vmem:[#allocation4 + $0x10] sm:$0xf] %vm1680, %v10278
      %10682 = vst.msk [vmem:[#allocation4 + $0x24] sm:$0xf] %vm1680, %v10288
      %10683 = vst.msk [vmem:[#allocation4 + $0x38] sm:$0xf] %vm1680, %v10302
      %10684 = vst.msk [vmem:[#allocation4 + $0x4c] sm:$0xf] %vm1680, %v10312
      %10685 = vst.msk [vmem:[#allocation4 + $0x60] sm:$0xf] %vm1680, %v10326
      %10686 = vst.msk [vmem:[#allocation4 + $0x74] sm:$0xf] %vm1680, %v10336
      %10687 = vst.msk [vmem:[#allocation4 + $0x88] sm:$0xf] %vm1680, %v10350
      %10688 = vst.msk [vmem:[#allocation4 + $0x9c] sm:$0xf] %vm1680, %v10360
      %10689 = vst.msk [vmem:[#allocation4 + $0xb0] sm:$0xf] %vm1680, %v10374
      %10690 = vst.msk [vmem:[#allocation4 + $0xc4] sm:$0xf] %vm1680, %v10384
      %10691 = vst.msk [vmem:[#allocation4 + $0xd8] sm:$0xf] %vm1680, %v10398
      %10692 = vst.msk [vmem:[#allocation4 + $0xec] sm:$0xf] %vm1680, %v10408
      %10693 = vst.msk [vmem:[#allocation4 + $0x100] sm:$0xf] %vm1680, %v10422
      %10694 = vst.msk [vmem:[#allocation4 + $0x114] sm:$0xf] %vm1680, %v10432
      %10695 = vst.msk [vmem:[#allocation4 + $0x128] sm:$0xf] %vm1680, %v10446
      %10696 = vst.msk [vmem:[#allocation4 + $0x13c] sm:$0xf] %vm1680, %v10456
      %10697 = vst.msk [vmem:[#allocation4 + $0x150] sm:$0xf] %vm1680, %v10470
      %10698 = vst.msk [vmem:[#allocation4 + $0x164] sm:$0xf] %vm1680, %v10480
      %10699 = vst.msk [vmem:[#allocation4 + $0x178] sm:$0xf] %vm1680, %v10494
      %10700 = vst.msk [vmem:[#allocation4 + $0x18c] sm:$0xf] %vm1680, %v10504
      %10701 = vst.msk [vmem:[#allocation4 + $0x1a0] sm:$0xf] %vm1680, %v10518
      %10702 = vst.msk [vmem:[#allocation4 + $0x1b4] sm:$0xf] %vm1680, %v10528
      %10703 = vst.msk [vmem:[#allocation4 + $0x1c8] sm:$0xf] %vm1680, %v10542
      %10704 = vst.msk [vmem:[#allocation4 + $0x1dc] sm:$0xf] %vm1680, %v10552
      %10705 = vst.msk [vmem:[#allocation4 + $0x1f0] sm:$0xf] %vm1680, %v10566
      %10706 = vst.msk [vmem:[#allocation4 + $0x204] sm:$0xf] %vm1680, %v10576
      %10707 = vst.msk [vmem:[#allocation4 + $0x218] sm:$0xf] %vm1680, %v10590
      %10708 = vst.msk [vmem:[#allocation4 + $0x22c] sm:$0xf] %vm1680, %v10600
      %10709 = vst.msk [vmem:[#allocation4 + $0x240] sm:$0xf] %vm1680, %v10614
      %10710 = vst.msk [vmem:[#allocation4 + $0x254] sm:$0xf] %vm1680, %v10624
      %10711 = vst.msk [vmem:[#allocation4 + $0x268] sm:$0xf] %vm1680, %v10638
      %10712 = vst.msk [vmem:[#allocation4 + $0x27c] sm:$0xf] %vm1680, %v10648
      %v10713 = vld [vmem:[#allocation4] sm:$0xff]
      %v10714 = vld [vmem:[#allocation4 + $0x8] sm:$0xff]
      %v10715 = vld [vmem:[#allocation4 + $0x10] sm:$0xf]
      %v10716 = vld [vmem:[#allocation4 + $0x14] sm:$0xff]
      %v10717 = vld [vmem:[#allocation4 + $0x1c] sm:$0xff]
      %v10718 = vld [vmem:[#allocation4 + $0x24] sm:$0xf]
      %v10719 = vld [vmem:[#allocation4 + $0x28] sm:$0xff]
      %v10720 = vld [vmem:[#allocation4 + $0x30] sm:$0xff]
      %v10721 = vld [vmem:[#allocation4 + $0x38] sm:$0xf]
      %v10722 = vld [vmem:[#allocation4 + $0x3c] sm:$0xff]
      %v10723 = vld [vmem:[#allocation4 + $0x44] sm:$0xff]
      %v10724 = vld [vmem:[#allocation4 + $0x4c] sm:$0xf]
      %v10725 = vld [vmem:[#allocation4 + $0x50] sm:$0xff]
      %v10726 = vld [vmem:[#allocation4 + $0x58] sm:$0xff]
      %v10727 = vld [vmem:[#allocation4 + $0x60] sm:$0xf]
      %v10728 = vld [vmem:[#allocation4 + $0x64] sm:$0xff]
      %v10729 = vld [vmem:[#allocation4 + $0x6c] sm:$0xff]
      %v10730 = vld [vmem:[#allocation4 + $0x74] sm:$0xf]
      %v10731 = vld [vmem:[#allocation4 + $0x78] sm:$0xff]
      %v10732 = vld [vmem:[#allocation4 + $0x80] sm:$0xff]
      %v10733 = vld [vmem:[#allocation4 + $0x88] sm:$0xf]
      %v10734 = vld [vmem:[#allocation4 + $0x8c] sm:$0xff]
      %v10735 = vld [vmem:[#allocation4 + $0x94] sm:$0xff]
      %v10736 = vld [vmem:[#allocation4 + $0x9c] sm:$0xf]
      %v10737 = vld [vmem:[#allocation4 + $0xa0] sm:$0xff]
      %v10738 = vld [vmem:[#allocation4 + $0xa8] sm:$0xff]
      %v10739 = vld [vmem:[#allocation4 + $0xb0] sm:$0xf]
      %v10740 = vld [vmem:[#allocation4 + $0xb4] sm:$0xff]
      %v10741 = vld [vmem:[#allocation4 + $0xbc] sm:$0xff]
      %v10742 = vld [vmem:[#allocation4 + $0xc4] sm:$0xf]
      %v10743 = vld [vmem:[#allocation4 + $0xc8] sm:$0xff]
      %v10744 = vld [vmem:[#allocation4 + $0xd0] sm:$0xff]
      %v10745 = vld [vmem:[#allocation4 + $0xd8] sm:$0xf]
      %v10746 = vld [vmem:[#allocation4 + $0xdc] sm:$0xff]
      %v10747 = vld [vmem:[#allocation4 + $0xe4] sm:$0xff]
      %v10748 = vld [vmem:[#allocation4 + $0xec] sm:$0xf]
      %v10749 = vld [vmem:[#allocation4 + $0xf0] sm:$0xff]
      %v10750 = vld [vmem:[#allocation4 + $0xf8] sm:$0xff]
      %v10751 = vld [vmem:[#allocation4 + $0x100] sm:$0xf]
      %v10752 = vld [vmem:[#allocation4 + $0x104] sm:$0xff]
      %v10753 = vld [vmem:[#allocation4 + $0x10c] sm:$0xff]
      %v10754 = vld [vmem:[#allocation4 + $0x114] sm:$0xf]
      %v10755 = vld [vmem:[#allocation4 + $0x118] sm:$0xff]
      %v10756 = vld [vmem:[#allocation4 + $0x120] sm:$0xff]
      %v10757 = vld [vmem:[#allocation4 + $0x128] sm:$0xf]
      %v10758 = vld [vmem:[#allocation4 + $0x12c] sm:$0xff]
      %v10759 = vld [vmem:[#allocation4 + $0x134] sm:$0xff]
      %v10760 = vld [vmem:[#allocation4 + $0x13c] sm:$0xf]
      %v10761 = vld [vmem:[#allocation4 + $0x140] sm:$0xff]
      %v10762 = vld [vmem:[#allocation4 + $0x148] sm:$0xff]
      %v10763 = vld [vmem:[#allocation4 + $0x150] sm:$0xf]
      %v10764 = vld [vmem:[#allocation4 + $0x154] sm:$0xff]
      %v10765 = vld [vmem:[#allocation4 + $0x15c] sm:$0xff]
      %v10766 = vld [vmem:[#allocation4 + $0x164] sm:$0xf]
      %v10767 = vld [vmem:[#allocation4 + $0x168] sm:$0xff]
      %v10768 = vld [vmem:[#allocation4 + $0x170] sm:$0xff]
      %v10769 = vld [vmem:[#allocation4 + $0x178] sm:$0xf]
      %v10770 = vld [vmem:[#allocation4 + $0x17c] sm:$0xff]
      %v10771 = vld [vmem:[#allocation4 + $0x184] sm:$0xff]
      %v10772 = vld [vmem:[#allocation4 + $0x18c] sm:$0xf]
      %v10773 = vld [vmem:[#allocation4 + $0x190] sm:$0xff]
      %v10774 = vld [vmem:[#allocation4 + $0x198] sm:$0xff]
      %v10775 = vld [vmem:[#allocation4 + $0x1a0] sm:$0xf]
      %v10776 = vld [vmem:[#allocation4 + $0x1a4] sm:$0xff]
      %v10777 = vld [vmem:[#allocation4 + $0x1ac] sm:$0xff]
      %v10778 = vld [vmem:[#allocation4 + $0x1b4] sm:$0xf]
      %v10779 = vld [vmem:[#allocation4 + $0x1b8] sm:$0xff]
      %v10780 = vld [vmem:[#allocation4 + $0x1c0] sm:$0xff]
      %v10781 = vld [vmem:[#allocation4 + $0x1c8] sm:$0xf]
      %v10782 = vld [vmem:[#allocation4 + $0x1cc] sm:$0xff]
      %v10783 = vld [vmem:[#allocation4 + $0x1d4] sm:$0xff]
      %v10784 = vld [vmem:[#allocation4 + $0x1dc] sm:$0xf]
      %v10785 = vld [vmem:[#allocation4 + $0x1e0] sm:$0xff]
      %v10786 = vld [vmem:[#allocation4 + $0x1e8] sm:$0xff]
      %v10787 = vld [vmem:[#allocation4 + $0x1f0] sm:$0xf]
      %v10788 = vld [vmem:[#allocation4 + $0x1f4] sm:$0xff]
      %v10789 = vld [vmem:[#allocation4 + $0x1fc] sm:$0xff]
      %v10790 = vld [vmem:[#allocation4 + $0x204] sm:$0xf]
      %v10791 = vld [vmem:[#allocation4 + $0x208] sm:$0xff]
      %v10792 = vld [vmem:[#allocation4 + $0x210] sm:$0xff]
      %v10793 = vld [vmem:[#allocation4 + $0x218] sm:$0xf]
      %v10794 = vld [vmem:[#allocation4 + $0x21c] sm:$0xff]
      %v10795 = vld [vmem:[#allocation4 + $0x224] sm:$0xff]
      %v10796 = vld [vmem:[#allocation4 + $0x22c] sm:$0xf]
      %v10797 = vld [vmem:[#allocation4 + $0x230] sm:$0xff]
      %v10798 = vld [vmem:[#allocation4 + $0x238] sm:$0xff]
      %v10799 = vld [vmem:[#allocation4 + $0x240] sm:$0xf]
      %v10800 = vld [vmem:[#allocation4 + $0x244] sm:$0xff]
      %v10801 = vld [vmem:[#allocation4 + $0x24c] sm:$0xff]
      %v10802 = vld [vmem:[#allocation4 + $0x254] sm:$0xf]
      %v10803 = vld [vmem:[#allocation4 + $0x258] sm:$0xff]
      %v10804 = vld [vmem:[#allocation4 + $0x260] sm:$0xff]
      %v10805 = vld [vmem:[#allocation4 + $0x268] sm:$0xf]
      %v10806 = vld [vmem:[#allocation4 + $0x26c] sm:$0xff]
      %v10807 = vld [vmem:[#allocation4 + $0x274] sm:$0xff]
      %v10808 = vld [vmem:[#allocation4 + $0x27c] sm:$0xf]
      %v10809 = vld [vmem:[%s3] sm:$0xf]
      %v10810 = vld [vmem:[%s3 + $0x4] sm:$0xf]
      %v10811 = vld [vmem:[%s3 + $0x8] sm:$0xf]
      %v10812 = vld [vmem:[%s3 + $0xc] sm:$0xf]
      %v10813 = vld [vmem:[%s3 + $0x10] sm:$0xf]
      %v10814 = vld [vmem:[%s3 + $0x14] sm:$0xf]
      %v10815 = vld [vmem:[%s3 + $0x18] sm:$0xf]
      %v10816 = vld [vmem:[%s3 + $0x1c] sm:$0xf]
      %v10817 = vld [vmem:[%s3 + $0x20] sm:$0xf]
      %v10818 = vld [vmem:[%s3 + $0x24] sm:$0xf]
      %v10819 = vld [vmem:[%s3 + $0x28] sm:$0xf]
      %v10820 = vld [vmem:[%s3 + $0x2c] sm:$0xf]
      %v10821 = vld [vmem:[%s3 + $0x30] sm:$0xf]
      %v10822 = vld [vmem:[%s3 + $0x34] sm:$0xf]
      %v10823 = vld [vmem:[%s3 + $0x38] sm:$0xf]
      %v10824 = vld [vmem:[%s3 + $0x3c] sm:$0xf]
      %v10825 = vld [vmem:[%s3 + $0x40] sm:$0xf]
      %v10826 = vld [vmem:[%s3 + $0x44] sm:$0xf]
      %v10827 = vld [vmem:[%s3 + $0x48] sm:$0xf]
      %v10828 = vld [vmem:[%s3 + $0x4c] sm:$0xf]
      %v10829 = vld [vmem:[%s3 + $0x50] sm:$0xf]
      %v10830 = vld [vmem:[%s3 + $0x54] sm:$0xf]
      %v10831 = vld [vmem:[%s3 + $0x58] sm:$0xf]
      %v10832 = vld [vmem:[%s3 + $0x5c] sm:$0xf]
      %v10833 = vld [vmem:[%s3 + $0x60] sm:$0xf]
      %v10834 = vld [vmem:[%s3 + $0x64] sm:$0xf]
      %v10835 = vld [vmem:[%s3 + $0x68] sm:$0xf]
      %v10836 = vld [vmem:[%s3 + $0x6c] sm:$0xf]
      %v10837 = vld [vmem:[%s3 + $0x70] sm:$0xf]
      %v10838 = vld [vmem:[%s3 + $0x74] sm:$0xf]
      %v10839 = vld [vmem:[%s3 + $0x78] sm:$0xf]
      %v10840 = vld [vmem:[%s3 + $0x7c] sm:$0xf]
      %v10841 = vld [vmem:[%s3 + $0x80] sm:$0xf]
      %v10842 = vld [vmem:[%s3 + $0x84] sm:$0xf]
      %v10843 = vld [vmem:[%s3 + $0x88] sm:$0xf]
      %v10844 = vld [vmem:[%s3 + $0x8c] sm:$0xf]
      %v10845 = vld [vmem:[%s3 + $0x90] sm:$0xf]
      %v10846 = vld [vmem:[%s3 + $0x94] sm:$0xf]
      %v10847 = vld [vmem:[%s3 + $0x98] sm:$0xf]
      %v10848 = vld [vmem:[%s3 + $0x9c] sm:$0xf]
      %v10849 = vld [vmem:[%s3 + $0xa0] sm:$0xf]
      %v10850 = vld [vmem:[%s3 + $0xa4] sm:$0xf]
      %v10851 = vld [vmem:[%s3 + $0xa8] sm:$0xf]
      %v10852 = vld [vmem:[%s3 + $0xac] sm:$0xf]
      %v10853 = vld [vmem:[%s3 + $0xb0] sm:$0xf]
      %v10854 = vld [vmem:[%s3 + $0xb4] sm:$0xf]
      %v10855 = vld [vmem:[%s3 + $0xb8] sm:$0xf]
      %v10856 = vld [vmem:[%s3 + $0xbc] sm:$0xf]
      %v10857 = vld [vmem:[%s3 + $0xc0] sm:$0xf]
      %v10858 = vld [vmem:[%s3 + $0xc4] sm:$0xf]
      %v10859 = vld [vmem:[%s3 + $0xc8] sm:$0xf]
      %v10860 = vld [vmem:[%s3 + $0xcc] sm:$0xf]
      %v10861 = vld [vmem:[%s3 + $0xd0] sm:$0xf]
      %v10862 = vld [vmem:[%s3 + $0xd4] sm:$0xf]
      %v10863 = vld [vmem:[%s3 + $0xd8] sm:$0xf]
      %v10864 = vld [vmem:[%s3 + $0xdc] sm:$0xf]
      %v10865 = vld [vmem:[%s3 + $0xe0] sm:$0xf]
      %v10866 = vld [vmem:[%s3 + $0xe4] sm:$0xf]
      %v10867 = vld [vmem:[%s3 + $0xe8] sm:$0xf]
      %v10868 = vld [vmem:[%s3 + $0xec] sm:$0xf]
      %v10869 = vld [vmem:[%s3 + $0xf0] sm:$0xf]
      %v10870 = vld [vmem:[%s3 + $0xf4] sm:$0xf]
      %v10871 = vld [vmem:[%s3 + $0xf8] sm:$0xf]
      %v10872 = vld [vmem:[%s3 + $0xfc] sm:$0xf]
      %v10873 = vld [vmem:[%s3 + $0x100] sm:$0xf]
      %v10874 = vld [vmem:[%s3 + $0x104] sm:$0xf]
      %v10875 = vld [vmem:[%s3 + $0x108] sm:$0xf]
      %v10876 = vld [vmem:[%s3 + $0x10c] sm:$0xf]
      %v10877 = vld [vmem:[%s3 + $0x110] sm:$0xf]
      %v10878 = vld [vmem:[%s3 + $0x114] sm:$0xf]
      %v10879 = vld [vmem:[%s3 + $0x118] sm:$0xf]
      %v10880 = vld [vmem:[%s3 + $0x11c] sm:$0xf]
      %v10881 = vld [vmem:[%s4] sm:$0x1]
      %v10882 = vperm.slane %v10881, 0
      %v10979 = vunpack.c.l.b16 %v10713
      %v10980 = vunpack.c.h.b16 %v10713
      %v10981 = vunpack.c.l.b16 %v10714
      %v10982 = vunpack.c.h.b16 %v10714
      %v10983 = vunpack.c.l.b16 %v10715
      %v10984 = vunpack.c.l.b16 %v10716
      %v10985 = vunpack.c.h.b16 %v10716
      %v10986 = vunpack.c.l.b16 %v10717
      %v10987 = vunpack.c.h.b16 %v10717
      %v10988 = vunpack.c.l.b16 %v10718
      %v10989 = vunpack.c.l.b16 %v10719
      %v10990 = vunpack.c.h.b16 %v10719
      %v10991 = vunpack.c.l.b16 %v10720
      %v10992 = vunpack.c.h.b16 %v10720
      %v10993 = vunpack.c.l.b16 %v10721
      %v10994 = vunpack.c.l.b16 %v10722
      %v10995 = vunpack.c.h.b16 %v10722
      %v10996 = vunpack.c.l.b16 %v10723
      %v10997 = vunpack.c.h.b16 %v10723
      %v10998 = vunpack.c.l.b16 %v10724
      %v10999 = vunpack.c.l.b16 %v10725
      %v11000 = vunpack.c.h.b16 %v10725
      %v11001 = vunpack.c.l.b16 %v10726
      %v11002 = vunpack.c.h.b16 %v10726
      %v11003 = vunpack.c.l.b16 %v10727
      %v11004 = vunpack.c.l.b16 %v10728
      %v11005 = vunpack.c.h.b16 %v10728
      %v11006 = vunpack.c.l.b16 %v10729
      %v11007 = vunpack.c.h.b16 %v10729
      %v11008 = vunpack.c.l.b16 %v10730
      %v11009 = vunpack.c.l.b16 %v10731
      %v11010 = vunpack.c.h.b16 %v10731
      %v11011 = vunpack.c.l.b16 %v10732
      %v11012 = vunpack.c.h.b16 %v10732
      %v11013 = vunpack.c.l.b16 %v10733
      %v11014 = vunpack.c.l.b16 %v10734
      %v11015 = vunpack.c.h.b16 %v10734
      %v11016 = vunpack.c.l.b16 %v10735
      %v11017 = vunpack.c.h.b16 %v10735
      %v11018 = vunpack.c.l.b16 %v10736
      %v11019 = vunpack.c.l.b16 %v10737
      %v11020 = vunpack.c.h.b16 %v10737
      %v11021 = vunpack.c.l.b16 %v10738
      %v11022 = vunpack.c.h.b16 %v10738
      %v11023 = vunpack.c.l.b16 %v10739
      %v11024 = vunpack.c.l.b16 %v10740
      %v11025 = vunpack.c.h.b16 %v10740
      %v11026 = vunpack.c.l.b16 %v10741
      %v11027 = vunpack.c.h.b16 %v10741
      %v11028 = vunpack.c.l.b16 %v10742
      %v11029 = vunpack.c.l.b16 %v10743
      %v11030 = vunpack.c.h.b16 %v10743
      %v11031 = vunpack.c.l.b16 %v10744
      %v11032 = vunpack.c.h.b16 %v10744
      %v11033 = vunpack.c.l.b16 %v10745
      %v11034 = vunpack.c.l.b16 %v10746
      %v11035 = vunpack.c.h.b16 %v10746
      %v11036 = vunpack.c.l.b16 %v10747
      %v11037 = vunpack.c.h.b16 %v10747
      %v11038 = vunpack.c.l.b16 %v10748
      %v11039 = vunpack.c.l.b16 %v10749
      %v11040 = vunpack.c.h.b16 %v10749
      %v11041 = vunpack.c.l.b16 %v10750
      %v11042 = vunpack.c.h.b16 %v10750
      %v11043 = vunpack.c.l.b16 %v10751
      %v11044 = vunpack.c.l.b16 %v10752
      %v11045 = vunpack.c.h.b16 %v10752
      %v11046 = vunpack.c.l.b16 %v10753
      %v11047 = vunpack.c.h.b16 %v10753
      %v11048 = vunpack.c.l.b16 %v10754
      %v11049 = vunpack.c.l.b16 %v10755
      %v11050 = vunpack.c.h.b16 %v10755
      %v11051 = vunpack.c.l.b16 %v10756
      %v11052 = vunpack.c.h.b16 %v10756
      %v11053 = vunpack.c.l.b16 %v10757
      %v11054 = vunpack.c.l.b16 %v10758
      %v11055 = vunpack.c.h.b16 %v10758
      %v11056 = vunpack.c.l.b16 %v10759
      %v11057 = vunpack.c.h.b16 %v10759
      %v11058 = vunpack.c.l.b16 %v10760
      %v11059 = vunpack.c.l.b16 %v10761
      %v11060 = vunpack.c.h.b16 %v10761
      %v11061 = vunpack.c.l.b16 %v10762
      %v11062 = vunpack.c.h.b16 %v10762
      %v11063 = vunpack.c.l.b16 %v10763
      %v11064 = vunpack.c.l.b16 %v10764
      %v11065 = vunpack.c.h.b16 %v10764
      %v11066 = vunpack.c.l.b16 %v10765
      %v11067 = vunpack.c.h.b16 %v10765
      %v11068 = vunpack.c.l.b16 %v10766
      %v11069 = vunpack.c.l.b16 %v10767
      %v11070 = vunpack.c.h.b16 %v10767
      %v11071 = vunpack.c.l.b16 %v10768
      %v11072 = vunpack.c.h.b16 %v10768
      %v11073 = vunpack.c.l.b16 %v10769
      %v11074 = vunpack.c.l.b16 %v10770
      %v11075 = vunpack.c.h.b16 %v10770
      %v11076 = vunpack.c.l.b16 %v10771
      %v11077 = vunpack.c.h.b16 %v10771
      %v11078 = vunpack.c.l.b16 %v10772
      %v11079 = vunpack.c.l.b16 %v10773
      %v11080 = vunpack.c.h.b16 %v10773
      %v11081 = vunpack.c.l.b16 %v10774
      %v11082 = vunpack.c.h.b16 %v10774
      %v11083 = vunpack.c.l.b16 %v10775
      %v11084 = vunpack.c.l.b16 %v10776
      %v11085 = vunpack.c.h.b16 %v10776
      %v11086 = vunpack.c.l.b16 %v10777
      %v11087 = vunpack.c.h.b16 %v10777
      %v11088 = vunpack.c.l.b16 %v10778
      %v11089 = vunpack.c.l.b16 %v10779
      %v11090 = vunpack.c.h.b16 %v10779
      %v11091 = vunpack.c.l.b16 %v10780
      %v11092 = vunpack.c.h.b16 %v10780
      %v11093 = vunpack.c.l.b16 %v10781
      %v11094 = vunpack.c.l.b16 %v10782
      %v11095 = vunpack.c.h.b16 %v10782
      %v11096 = vunpack.c.l.b16 %v10783
      %v11097 = vunpack.c.h.b16 %v10783
      %v11098 = vunpack.c.l.b16 %v10784
      %v11099 = vunpack.c.l.b16 %v10785
      %v11100 = vunpack.c.h.b16 %v10785
      %v11101 = vunpack.c.l.b16 %v10786
      %v11102 = vunpack.c.h.b16 %v10786
      %v11103 = vunpack.c.l.b16 %v10787
      %v11104 = vunpack.c.l.b16 %v10788
      %v11105 = vunpack.c.h.b16 %v10788
      %v11106 = vunpack.c.l.b16 %v10789
      %v11107 = vunpack.c.h.b16 %v10789
      %v11108 = vunpack.c.l.b16 %v10790
      %v11109 = vunpack.c.l.b16 %v10791
      %v11110 = vunpack.c.h.b16 %v10791
      %v11111 = vunpack.c.l.b16 %v10792
      %v11112 = vunpack.c.h.b16 %v10792
      %v11113 = vunpack.c.l.b16 %v10793
      %v11114 = vunpack.c.l.b16 %v10794
      %v11115 = vunpack.c.h.b16 %v10794
      %v11116 = vunpack.c.l.b16 %v10795
      %v11117 = vunpack.c.h.b16 %v10795
      %v11118 = vunpack.c.l.b16 %v10796
      %v11119 = vunpack.c.l.b16 %v10797
      %v11120 = vunpack.c.h.b16 %v10797
      %v11121 = vunpack.c.l.b16 %v10798
      %v11122 = vunpack.c.h.b16 %v10798
      %v11123 = vunpack.c.l.b16 %v10799
      %v11124 = vunpack.c.l.b16 %v10800
      %v11125 = vunpack.c.h.b16 %v10800
      %v11126 = vunpack.c.l.b16 %v10801
      %v11127 = vunpack.c.h.b16 %v10801
      %v11128 = vunpack.c.l.b16 %v10802
      %v11129 = vunpack.c.l.b16 %v10803
      %v11130 = vunpack.c.h.b16 %v10803
      %v11131 = vunpack.c.l.b16 %v10804
      %v11132 = vunpack.c.h.b16 %v10804
      %v11133 = vunpack.c.l.b16 %v10805
      %v11134 = vunpack.c.l.b16 %v10806
      %v11135 = vunpack.c.h.b16 %v10806
      %v11136 = vunpack.c.l.b16 %v10807
      %v11137 = vunpack.c.h.b16 %v10807
      %v11138 = vunpack.c.l.b16 %v10808
      %v11139 = vpack.c.b16 %v10984, %v10979
      %v11140 = vpack.c.b16 %v10985, %v10980
      %v11141 = vpack.c.b16 %v10986, %v10981
      %v11142 = vpack.c.b16 %v10987, %v10982
      %v11143 = vpack.c.b16 %v10988, %v10983
      %v11144 = vpack.c.b16 %v10994, %v10989
      %v11145 = vpack.c.b16 %v10995, %v10990
      %v11146 = vpack.c.b16 %v10996, %v10991
      %v11147 = vpack.c.b16 %v10997, %v10992
      %v11148 = vpack.c.b16 %v10998, %v10993
      %v11149 = vpack.c.b16 %v11004, %v10999
      %v11150 = vpack.c.b16 %v11005, %v11000
      %v11151 = vpack.c.b16 %v11006, %v11001
      %v11152 = vpack.c.b16 %v11007, %v11002
      %v11153 = vpack.c.b16 %v11008, %v11003
      %v11154 = vpack.c.b16 %v11014, %v11009
      %v11155 = vpack.c.b16 %v11015, %v11010
      %v11156 = vpack.c.b16 %v11016, %v11011
      %v11157 = vpack.c.b16 %v11017, %v11012
      %v11158 = vpack.c.b16 %v11018, %v11013
      %v11159 = vpack.c.b16 %v11024, %v11019
      %v11160 = vpack.c.b16 %v11025, %v11020
      %v11161 = vpack.c.b16 %v11026, %v11021
      %v11162 = vpack.c.b16 %v11027, %v11022
      %v11163 = vpack.c.b16 %v11028, %v11023
      %v11164 = vpack.c.b16 %v11034, %v11029
      %v11165 = vpack.c.b16 %v11035, %v11030
      %v11166 = vpack.c.b16 %v11036, %v11031
      %v11167 = vpack.c.b16 %v11037, %v11032
      %v11168 = vpack.c.b16 %v11038, %v11033
      %v11169 = vpack.c.b16 %v11044, %v11039
      %v11170 = vpack.c.b16 %v11045, %v11040
      %v11171 = vpack.c.b16 %v11046, %v11041
      %v11172 = vpack.c.b16 %v11047, %v11042
      %v11173 = vpack.c.b16 %v11048, %v11043
      %v11174 = vpack.c.b16 %v11054, %v11049
      %v11175 = vpack.c.b16 %v11055, %v11050
      %v11176 = vpack.c.b16 %v11056, %v11051
      %v11177 = vpack.c.b16 %v11057, %v11052
      %v11178 = vpack.c.b16 %v11058, %v11053
      %v11179 = vpack.c.b16 %v11064, %v11059
      %v11180 = vpack.c.b16 %v11065, %v11060
      %v11181 = vpack.c.b16 %v11066, %v11061
      %v11182 = vpack.c.b16 %v11067, %v11062
      %v11183 = vpack.c.b16 %v11068, %v11063
      %v11184 = vpack.c.b16 %v11074, %v11069
      %v11185 = vpack.c.b16 %v11075, %v11070
      %v11186 = vpack.c.b16 %v11076, %v11071
      %v11187 = vpack.c.b16 %v11077, %v11072
      %v11188 = vpack.c.b16 %v11078, %v11073
      %v11189 = vpack.c.b16 %v11084, %v11079
      %v11190 = vpack.c.b16 %v11085, %v11080
      %v11191 = vpack.c.b16 %v11086, %v11081
      %v11192 = vpack.c.b16 %v11087, %v11082
      %v11193 = vpack.c.b16 %v11088, %v11083
      %v11194 = vpack.c.b16 %v11094, %v11089
      %v11195 = vpack.c.b16 %v11095, %v11090
      %v11196 = vpack.c.b16 %v11096, %v11091
      %v11197 = vpack.c.b16 %v11097, %v11092
      %v11198 = vpack.c.b16 %v11098, %v11093
      %v11199 = vpack.c.b16 %v11104, %v11099
      %v11200 = vpack.c.b16 %v11105, %v11100
      %v11201 = vpack.c.b16 %v11106, %v11101
      %v11202 = vpack.c.b16 %v11107, %v11102
      %v11203 = vpack.c.b16 %v11108, %v11103
      %v11204 = vpack.c.b16 %v11114, %v11109
      %v11205 = vpack.c.b16 %v11115, %v11110
      %v11206 = vpack.c.b16 %v11116, %v11111
      %v11207 = vpack.c.b16 %v11117, %v11112
      %v11208 = vpack.c.b16 %v11118, %v11113
      %v11209 = vpack.c.b16 %v11124, %v11119
      %v11210 = vpack.c.b16 %v11125, %v11120
      %v11211 = vpack.c.b16 %v11126, %v11121
      %v11212 = vpack.c.b16 %v11127, %v11122
      %v11213 = vpack.c.b16 %v11128, %v11123
      %v11214 = vpack.c.b16 %v11134, %v11129
      %v11215 = vpack.c.b16 %v11135, %v11130
      %v11216 = vpack.c.b16 %v11136, %v11131
      %v11217 = vpack.c.b16 %v11137, %v11132
      %v11218 = vpack.c.b16 %v11138, %v11133
      %v11355 = vunpack.c.l.b16 %v10809
      %v11356 = vunpack.c.l.b16 %v10810
      %v11357 = vunpack.c.l.b16 %v10811
      %v11358 = vunpack.c.l.b16 %v10812
      %v11359 = vunpack.c.l.b16 %v10813
      %v11360 = vunpack.c.l.b16 %v10814
      %v11361 = vunpack.c.l.b16 %v10815
      %v11362 = vunpack.c.l.b16 %v10816
      %v11363 = vunpack.c.l.b16 %v10817
      %v11364 = vunpack.c.l.b16 %v10818
      %v11365 = vunpack.c.l.b16 %v10819
      %v11366 = vunpack.c.l.b16 %v10820
      %v11367 = vunpack.c.l.b16 %v10821
      %v11368 = vunpack.c.l.b16 %v10822
      %v11369 = vunpack.c.l.b16 %v10823
      %v11370 = vunpack.c.l.b16 %v10824
      %v11371 = vunpack.c.l.b16 %v10825
      %v11372 = vunpack.c.l.b16 %v10826
      %v11373 = vunpack.c.l.b16 %v10827
      %v11374 = vunpack.c.l.b16 %v10828
      %v11375 = vunpack.c.l.b16 %v10829
      %v11376 = vunpack.c.l.b16 %v10830
      %v11377 = vunpack.c.l.b16 %v10831
      %v11378 = vunpack.c.l.b16 %v10832
      %v11379 = vunpack.c.l.b16 %v10833
      %v11380 = vunpack.c.l.b16 %v10834
      %v11381 = vunpack.c.l.b16 %v10835
      %v11382 = vunpack.c.l.b16 %v10836
      %v11383 = vunpack.c.l.b16 %v10837
      %v11384 = vunpack.c.l.b16 %v10838
      %v11385 = vunpack.c.l.b16 %v10839
      %v11386 = vunpack.c.l.b16 %v10840
      %v11387 = vunpack.c.l.b16 %v10841
      %v11388 = vunpack.c.l.b16 %v10842
      %v11389 = vunpack.c.l.b16 %v10843
      %v11390 = vunpack.c.l.b16 %v10844
      %v11391 = vunpack.c.l.b16 %v10845
      %v11392 = vunpack.c.l.b16 %v10846
      %v11393 = vunpack.c.l.b16 %v10847
      %v11394 = vunpack.c.l.b16 %v10848
      %v11395 = vunpack.c.l.b16 %v10849
      %v11396 = vunpack.c.l.b16 %v10850
      %v11397 = vunpack.c.l.b16 %v10851
      %v11398 = vunpack.c.l.b16 %v10852
      %v11399 = vunpack.c.l.b16 %v10853
      %v11400 = vunpack.c.l.b16 %v10854
      %v11401 = vunpack.c.l.b16 %v10855
      %v11402 = vunpack.c.l.b16 %v10856
      %v11403 = vunpack.c.l.b16 %v10857
      %v11404 = vunpack.c.l.b16 %v10858
      %v11405 = vunpack.c.l.b16 %v10859
      %v11406 = vunpack.c.l.b16 %v10860
      %v11407 = vunpack.c.l.b16 %v10861
      %v11408 = vunpack.c.l.b16 %v10862
      %v11409 = vunpack.c.l.b16 %v10863
      %v11410 = vunpack.c.l.b16 %v10864
      %v11411 = vunpack.c.l.b16 %v10865
      %v11412 = vunpack.c.l.b16 %v10866
      %v11413 = vunpack.c.l.b16 %v10867
      %v11414 = vunpack.c.l.b16 %v10868
      %v11415 = vunpack.c.l.b16 %v10869
      %v11416 = vunpack.c.l.b16 %v10870
      %v11417 = vunpack.c.l.b16 %v10871
      %v11418 = vunpack.c.l.b16 %v10872
      %v11419 = vunpack.c.l.b16 %v10873
      %v11420 = vunpack.c.l.b16 %v10874
      %v11421 = vunpack.c.l.b16 %v10875
      %v11422 = vunpack.c.l.b16 %v10876
      %v11423 = vunpack.c.l.b16 %v10877
      %v11424 = vunpack.c.l.b16 %v10878
      %v11425 = vunpack.c.l.b16 %v10879
      %v11426 = vunpack.c.l.b16 %v10880
      %v11427 = vpack.c.b16 %v11356, %v11355
      %v11428 = vpack.c.b16 %v11358, %v11357
      %v11429 = vpack.c.b16 %v11360, %v11359
      %v11430 = vpack.c.b16 %v11362, %v11361
      %v11431 = vpack.c.b16 %v11364, %v11363
      %v11432 = vpack.c.b16 %v11366, %v11365
      %v11433 = vpack.c.b16 %v11368, %v11367
      %v11434 = vpack.c.b16 %v11370, %v11369
      %v11435 = vpack.c.b16 %v11372, %v11371
      %v11436 = vpack.c.b16 %v11374, %v11373
      %v11437 = vpack.c.b16 %v11376, %v11375
      %v11438 = vpack.c.b16 %v11378, %v11377
      %v11439 = vpack.c.b16 %v11380, %v11379
      %v11440 = vpack.c.b16 %v11382, %v11381
      %v11441 = vpack.c.b16 %v11384, %v11383
      %v11442 = vpack.c.b16 %v11386, %v11385
      %v11443 = vpack.c.b16 %v11388, %v11387
      %v11444 = vpack.c.b16 %v11390, %v11389
      %v11445 = vpack.c.b16 %v11392, %v11391
      %v11446 = vpack.c.b16 %v11394, %v11393
      %v11447 = vpack.c.b16 %v11396, %v11395
      %v11448 = vpack.c.b16 %v11398, %v11397
      %v11449 = vpack.c.b16 %v11400, %v11399
      %v11450 = vpack.c.b16 %v11402, %v11401
      %v11451 = vpack.c.b16 %v11404, %v11403
      %v11452 = vpack.c.b16 %v11406, %v11405
      %v11453 = vpack.c.b16 %v11408, %v11407
      %v11454 = vpack.c.b16 %v11410, %v11409
      %v11455 = vpack.c.b16 %v11412, %v11411
      %v11456 = vpack.c.b16 %v11414, %v11413
      %v11457 = vpack.c.b16 %v11416, %v11415
      %v11458 = vpack.c.b16 %v11418, %v11417
      %v11459 = vpack.c.b16 %v11420, %v11419
      %v11460 = vpack.c.b16 %v11422, %v11421
      %v11461 = vpack.c.b16 %v11424, %v11423
      %v11462 = vpack.c.b16 %v11426, %v11425
      %v11500 = vsel %vm5496, %v11143, 0
      %v11503 = vsel %vm5496, %v11148, 0
      %v11506 = vsel %vm5496, %v11153, 0
      %v11509 = vsel %vm5496, %v11158, 0
      %v11512 = vsel %vm5496, %v11163, 0
      %v11515 = vsel %vm5496, %v11168, 0
      %v11518 = vsel %vm5496, %v11173, 0
      %v11521 = vsel %vm5496, %v11178, 0
      %v11524 = vsel %vm5496, %v11183, 0
      %v11527 = vsel %vm5496, %v11188, 0
      %v11530 = vsel %vm5496, %v11193, 0
      %v11533 = vsel %vm5496, %v11198, 0
      %v11536 = vsel %vm5496, %v11203, 0
      %v11539 = vsel %vm5496, %v11208, 0
      %v11542 = vsel %vm5496, %v11213, 0
      %v11545 = vsel %vm5496, %v11218, 0
      %11547 = vmatpush.bf16.msra.mxu0 %v11434
      %11548 = vmatpush.bf16.msra.mxu0 %v11433
      %11549 = vmatpush.bf16.msra.mxu0 %v11432
      %11550 = vmatpush.bf16.msra.mxu0 %v11431
      %11551 = vmatpush.bf16.msra.mxu0 %v11430
      %11552 = vmatpush.bf16.msra.mxu0 %v11429
      %11553 = vmatpush.bf16.msra.mxu0 %v11428
      %11554 = vmatpush.bf16.msra.mxu0 %v11427
      %11555 = vmatmul.bf16.gmra.mxu0 %v11139
      %v11556 = vpop.f32.mrf.mxu0
      %v11557 = vadd.f32 %v10882, %v11556
      %v11558 = vpop.f32.mrf.mxu0
      %v11559 = vadd.f32 %v10882, %v11558
      %11560 = vmatmul.bf16.gmra.mxu0 %v11144
      %v11561 = vpop.f32.mrf.mxu0
      %v11562 = vadd.f32 %v10882, %v11561
      %v11563 = vpop.f32.mrf.mxu0
      %v11564 = vadd.f32 %v10882, %v11563
      %11565 = vmatmul.bf16.gmra.mxu0 %v11149
      %v11566 = vpop.f32.mrf.mxu0
      %v11567 = vadd.f32 %v10882, %v11566
      %v11568 = vpop.f32.mrf.mxu0
      %v11569 = vadd.f32 %v10882, %v11568
      %11570 = vmatmul.bf16.gmra.mxu0 %v11154
      %v11571 = vpop.f32.mrf.mxu0
      %v11572 = vadd.f32 %v10882, %v11571
      %v11573 = vpop.f32.mrf.mxu0
      %v11574 = vadd.f32 %v10882, %v11573
      %11575 = vmatmul.bf16.gmra.mxu0 %v11159
      %v11576 = vpop.f32.mrf.mxu0
      %v11577 = vadd.f32 %v10882, %v11576
      %v11578 = vpop.f32.mrf.mxu0
      %v11579 = vadd.f32 %v10882, %v11578
      %11580 = vmatmul.bf16.gmra.mxu0 %v11164
      %v11581 = vpop.f32.mrf.mxu0
      %v11582 = vadd.f32 %v10882, %v11581
      %v11583 = vpop.f32.mrf.mxu0
      %v11584 = vadd.f32 %v10882, %v11583
      %11585 = vmatmul.bf16.gmra.mxu0 %v11169
      %v11586 = vpop.f32.mrf.mxu0
      %v11587 = vadd.f32 %v10882, %v11586
      %v11588 = vpop.f32.mrf.mxu0
      %v11589 = vadd.f32 %v10882, %v11588
      %11590 = vmatmul.bf16.gmra.mxu0 %v11174
      %v11591 = vpop.f32.mrf.mxu0
      %v11592 = vadd.f32 %v10882, %v11591
      %v11593 = vpop.f32.mrf.mxu0
      %v11594 = vadd.f32 %v10882, %v11593
      %11595 = vmatmul.bf16.gmra.mxu0 %v11179
      %v11596 = vpop.f32.mrf.mxu0
      %v11597 = vadd.f32 %v10882, %v11596
      %v11598 = vpop.f32.mrf.mxu0
      %v11599 = vadd.f32 %v10882, %v11598
      %11600 = vmatmul.bf16.gmra.mxu0 %v11184
      %v11601 = vpop.f32.mrf.mxu0
      %v11602 = vadd.f32 %v10882, %v11601
      %v11603 = vpop.f32.mrf.mxu0
      %v11604 = vadd.f32 %v10882, %v11603
      %11605 = vmatmul.bf16.gmra.mxu0 %v11189
      %v11606 = vpop.f32.mrf.mxu0
      %v11607 = vadd.f32 %v10882, %v11606
      %v11608 = vpop.f32.mrf.mxu0
      %v11609 = vadd.f32 %v10882, %v11608
      %11610 = vmatmul.bf16.gmra.mxu0 %v11194
      %v11611 = vpop.f32.mrf.mxu0
      %v11612 = vadd.f32 %v10882, %v11611
      %v11613 = vpop.f32.mrf.mxu0
      %v11614 = vadd.f32 %v10882, %v11613
      %11615 = vmatmul.bf16.gmra.mxu0 %v11199
      %v11616 = vpop.f32.mrf.mxu0
      %v11617 = vadd.f32 %v10882, %v11616
      %v11618 = vpop.f32.mrf.mxu0
      %v11619 = vadd.f32 %v10882, %v11618
      %11620 = vmatmul.bf16.gmra.mxu0 %v11204
      %v11621 = vpop.f32.mrf.mxu0
      %v11622 = vadd.f32 %v10882, %v11621
      %v11623 = vpop.f32.mrf.mxu0
      %v11624 = vadd.f32 %v10882, %v11623
      %11625 = vmatmul.bf16.gmra.mxu0 %v11209
      %v11626 = vpop.f32.mrf.mxu0
      %v11627 = vadd.f32 %v10882, %v11626
      %v11628 = vpop.f32.mrf.mxu0
      %v11629 = vadd.f32 %v10882, %v11628
      %11630 = vmatmul.bf16.gmra.mxu0 %v11214
      %v11631 = vpop.f32.mrf.mxu0
      %v11632 = vadd.f32 %v10882, %v11631
      %v11633 = vpop.f32.mrf.mxu0
      %v11634 = vadd.f32 %v10882, %v11633
      %11635 = vdwg.mxu0
      %11636 = vmatpush.bf16.msra.mxu0 %v11442
      %11637 = vmatpush.bf16.msra.mxu0 %v11441
      %11638 = vmatpush.bf16.msra.mxu0 %v11440
      %11639 = vmatpush.bf16.msra.mxu0 %v11439
      %11640 = vmatpush.bf16.msra.mxu0 %v11438
      %11641 = vmatpush.bf16.msra.mxu0 %v11437
      %11642 = vmatpush.bf16.msra.mxu0 %v11436
      %11643 = vmatpush.bf16.msra.mxu0 %v11435
      %11644 = vmatmul.bf16.gmra.mxu0 %v11140
      %v11645 = vpop.f32.mrf.mxu0
      %v11646 = vadd.f32 %v11557, %v11645
      %v11647 = vpop.f32.mrf.mxu0
      %v11648 = vadd.f32 %v11559, %v11647
      %11649 = vmatmul.bf16.gmra.mxu0 %v11145
      %v11650 = vpop.f32.mrf.mxu0
      %v11651 = vadd.f32 %v11562, %v11650
      %v11652 = vpop.f32.mrf.mxu0
      %v11653 = vadd.f32 %v11564, %v11652
      %11654 = vmatmul.bf16.gmra.mxu0 %v11150
      %v11655 = vpop.f32.mrf.mxu0
      %v11656 = vadd.f32 %v11567, %v11655
      %v11657 = vpop.f32.mrf.mxu0
      %v11658 = vadd.f32 %v11569, %v11657
      %11659 = vmatmul.bf16.gmra.mxu0 %v11155
      %v11660 = vpop.f32.mrf.mxu0
      %v11661 = vadd.f32 %v11572, %v11660
      %v11662 = vpop.f32.mrf.mxu0
      %v11663 = vadd.f32 %v11574, %v11662
      %11664 = vmatmul.bf16.gmra.mxu0 %v11160
      %v11665 = vpop.f32.mrf.mxu0
      %v11666 = vadd.f32 %v11577, %v11665
      %v11667 = vpop.f32.mrf.mxu0
      %v11668 = vadd.f32 %v11579, %v11667
      %11669 = vmatmul.bf16.gmra.mxu0 %v11165
      %v11670 = vpop.f32.mrf.mxu0
      %v11671 = vadd.f32 %v11582, %v11670
      %v11672 = vpop.f32.mrf.mxu0
      %v11673 = vadd.f32 %v11584, %v11672
      %11674 = vmatmul.bf16.gmra.mxu0 %v11170
      %v11675 = vpop.f32.mrf.mxu0
      %v11676 = vadd.f32 %v11587, %v11675
      %v11677 = vpop.f32.mrf.mxu0
      %v11678 = vadd.f32 %v11589, %v11677
      %11679 = vmatmul.bf16.gmra.mxu0 %v11175
      %v11680 = vpop.f32.mrf.mxu0
      %v11681 = vadd.f32 %v11592, %v11680
      %v11682 = vpop.f32.mrf.mxu0
      %v11683 = vadd.f32 %v11594, %v11682
      %11684 = vmatmul.bf16.gmra.mxu0 %v11180
      %v11685 = vpop.f32.mrf.mxu0
      %v11686 = vadd.f32 %v11597, %v11685
      %v11687 = vpop.f32.mrf.mxu0
      %v11688 = vadd.f32 %v11599, %v11687
      %11689 = vmatmul.bf16.gmra.mxu0 %v11185
      %v11690 = vpop.f32.mrf.mxu0
      %v11691 = vadd.f32 %v11602, %v11690
      %v11692 = vpop.f32.mrf.mxu0
      %v11693 = vadd.f32 %v11604, %v11692
      %11694 = vmatmul.bf16.gmra.mxu0 %v11190
      %v11695 = vpop.f32.mrf.mxu0
      %v11696 = vadd.f32 %v11607, %v11695
      %v11697 = vpop.f32.mrf.mxu0
      %v11698 = vadd.f32 %v11609, %v11697
      %11699 = vmatmul.bf16.gmra.mxu0 %v11195
      %v11700 = vpop.f32.mrf.mxu0
      %v11701 = vadd.f32 %v11612, %v11700
      %v11702 = vpop.f32.mrf.mxu0
      %v11703 = vadd.f32 %v11614, %v11702
      %11704 = vmatmul.bf16.gmra.mxu0 %v11200
      %v11705 = vpop.f32.mrf.mxu0
      %v11706 = vadd.f32 %v11617, %v11705
      %v11707 = vpop.f32.mrf.mxu0
      %v11708 = vadd.f32 %v11619, %v11707
      %11709 = vmatmul.bf16.gmra.mxu0 %v11205
      %v11710 = vpop.f32.mrf.mxu0
      %v11711 = vadd.f32 %v11622, %v11710
      %v11712 = vpop.f32.mrf.mxu0
      %v11713 = vadd.f32 %v11624, %v11712
      %11714 = vmatmul.bf16.gmra.mxu0 %v11210
      %v11715 = vpop.f32.mrf.mxu0
      %v11716 = vadd.f32 %v11627, %v11715
      %v11717 = vpop.f32.mrf.mxu0
      %v11718 = vadd.f32 %v11629, %v11717
      %11719 = vmatmul.bf16.gmra.mxu0 %v11215
      %v11720 = vpop.f32.mrf.mxu0
      %v11721 = vadd.f32 %v11632, %v11720
      %v11722 = vpop.f32.mrf.mxu0
      %v11723 = vadd.f32 %v11634, %v11722
      %11724 = vdwg.mxu0
      %11725 = vmatpush.bf16.msra.mxu0 %v11450
      %11726 = vmatpush.bf16.msra.mxu0 %v11449
      %11727 = vmatpush.bf16.msra.mxu0 %v11448
      %11728 = vmatpush.bf16.msra.mxu0 %v11447
      %11729 = vmatpush.bf16.msra.mxu0 %v11446
      %11730 = vmatpush.bf16.msra.mxu0 %v11445
      %11731 = vmatpush.bf16.msra.mxu0 %v11444
      %11732 = vmatpush.bf16.msra.mxu0 %v11443
      %11733 = vmatmul.bf16.gmra.mxu0 %v11141
      %v11734 = vpop.f32.mrf.mxu0
      %v11735 = vadd.f32 %v11646, %v11734
      %v11736 = vpop.f32.mrf.mxu0
      %v11737 = vadd.f32 %v11648, %v11736
      %11738 = vmatmul.bf16.gmra.mxu0 %v11146
      %v11739 = vpop.f32.mrf.mxu0
      %v11740 = vadd.f32 %v11651, %v11739
      %v11741 = vpop.f32.mrf.mxu0
      %v11742 = vadd.f32 %v11653, %v11741
      %11743 = vmatmul.bf16.gmra.mxu0 %v11151
      %v11744 = vpop.f32.mrf.mxu0
      %v11745 = vadd.f32 %v11656, %v11744
      %v11746 = vpop.f32.mrf.mxu0
      %v11747 = vadd.f32 %v11658, %v11746
      %11748 = vmatmul.bf16.gmra.mxu0 %v11156
      %v11749 = vpop.f32.mrf.mxu0
      %v11750 = vadd.f32 %v11661, %v11749
      %v11751 = vpop.f32.mrf.mxu0
      %v11752 = vadd.f32 %v11663, %v11751
      %11753 = vmatmul.bf16.gmra.mxu0 %v11161
      %v11754 = vpop.f32.mrf.mxu0
      %v11755 = vadd.f32 %v11666, %v11754
      %v11756 = vpop.f32.mrf.mxu0
      %v11757 = vadd.f32 %v11668, %v11756
      %11758 = vmatmul.bf16.gmra.mxu0 %v11166
      %v11759 = vpop.f32.mrf.mxu0
      %v11760 = vadd.f32 %v11671, %v11759
      %v11761 = vpop.f32.mrf.mxu0
      %v11762 = vadd.f32 %v11673, %v11761
      %11763 = vmatmul.bf16.gmra.mxu0 %v11171
      %v11764 = vpop.f32.mrf.mxu0
      %v11765 = vadd.f32 %v11676, %v11764
      %v11766 = vpop.f32.mrf.mxu0
      %v11767 = vadd.f32 %v11678, %v11766
      %11768 = vmatmul.bf16.gmra.mxu0 %v11176
      %v11769 = vpop.f32.mrf.mxu0
      %v11770 = vadd.f32 %v11681, %v11769
      %v11771 = vpop.f32.mrf.mxu0
      %v11772 = vadd.f32 %v11683, %v11771
      %11773 = vmatmul.bf16.gmra.mxu0 %v11181
      %v11774 = vpop.f32.mrf.mxu0
      %v11775 = vadd.f32 %v11686, %v11774
      %v11776 = vpop.f32.mrf.mxu0
      %v11777 = vadd.f32 %v11688, %v11776
      %11778 = vmatmul.bf16.gmra.mxu0 %v11186
      %v11779 = vpop.f32.mrf.mxu0
      %v11780 = vadd.f32 %v11691, %v11779
      %v11781 = vpop.f32.mrf.mxu0
      %v11782 = vadd.f32 %v11693, %v11781
      %11783 = vmatmul.bf16.gmra.mxu0 %v11191
      %v11784 = vpop.f32.mrf.mxu0
      %v11785 = vadd.f32 %v11696, %v11784
      %v11786 = vpop.f32.mrf.mxu0
      %v11787 = vadd.f32 %v11698, %v11786
      %11788 = vmatmul.bf16.gmra.mxu0 %v11196
      %v11789 = vpop.f32.mrf.mxu0
      %v11790 = vadd.f32 %v11701, %v11789
      %v11791 = vpop.f32.mrf.mxu0
      %v11792 = vadd.f32 %v11703, %v11791
      %11793 = vmatmul.bf16.gmra.mxu0 %v11201
      %v11794 = vpop.f32.mrf.mxu0
      %v11795 = vadd.f32 %v11706, %v11794
      %v11796 = vpop.f32.mrf.mxu0
      %v11797 = vadd.f32 %v11708, %v11796
      %11798 = vmatmul.bf16.gmra.mxu0 %v11206
      %v11799 = vpop.f32.mrf.mxu0
      %v11800 = vadd.f32 %v11711, %v11799
      %v11801 = vpop.f32.mrf.mxu0
      %v11802 = vadd.f32 %v11713, %v11801
      %11803 = vmatmul.bf16.gmra.mxu0 %v11211
      %v11804 = vpop.f32.mrf.mxu0
      %v11805 = vadd.f32 %v11716, %v11804
      %v11806 = vpop.f32.mrf.mxu0
      %v11807 = vadd.f32 %v11718, %v11806
      %11808 = vmatmul.bf16.gmra.mxu0 %v11216
      %v11809 = vpop.f32.mrf.mxu0
      %v11810 = vadd.f32 %v11721, %v11809
      %v11811 = vpop.f32.mrf.mxu0
      %v11812 = vadd.f32 %v11723, %v11811
      %11813 = vdwg.mxu0
      %11814 = vmatpush.bf16.msra.mxu0 %v11458
      %11815 = vmatpush.bf16.msra.mxu0 %v11457
      %11816 = vmatpush.bf16.msra.mxu0 %v11456
      %11817 = vmatpush.bf16.msra.mxu0 %v11455
      %11818 = vmatpush.bf16.msra.mxu0 %v11454
      %11819 = vmatpush.bf16.msra.mxu0 %v11453
      %11820 = vmatpush.bf16.msra.mxu0 %v11452
      %11821 = vmatpush.bf16.msra.mxu0 %v11451
      %11822 = vmatmul.bf16.gmra.mxu0 %v11142
      %v11823 = vpop.f32.mrf.mxu0
      %v11824 = vadd.f32 %v11735, %v11823
      %v11825 = vpop.f32.mrf.mxu0
      %v11826 = vadd.f32 %v11737, %v11825
      %11827 = vmatmul.bf16.gmra.mxu0 %v11147
      %v11828 = vpop.f32.mrf.mxu0
      %v11829 = vadd.f32 %v11740, %v11828
      %v11830 = vpop.f32.mrf.mxu0
      %v11831 = vadd.f32 %v11742, %v11830
      %11832 = vmatmul.bf16.gmra.mxu0 %v11152
      %v11833 = vpop.f32.mrf.mxu0
      %v11834 = vadd.f32 %v11745, %v11833
      %v11835 = vpop.f32.mrf.mxu0
      %v11836 = vadd.f32 %v11747, %v11835
      %11837 = vmatmul.bf16.gmra.mxu0 %v11157
      %v11838 = vpop.f32.mrf.mxu0
      %v11839 = vadd.f32 %v11750, %v11838
      %v11840 = vpop.f32.mrf.mxu0
      %v11841 = vadd.f32 %v11752, %v11840
      %11842 = vmatmul.bf16.gmra.mxu0 %v11162
      %v11843 = vpop.f32.mrf.mxu0
      %v11844 = vadd.f32 %v11755, %v11843
      %v11845 = vpop.f32.mrf.mxu0
      %v11846 = vadd.f32 %v11757, %v11845
      %11847 = vmatmul.bf16.gmra.mxu0 %v11167
      %v11848 = vpop.f32.mrf.mxu0
      %v11849 = vadd.f32 %v11760, %v11848
      %v11850 = vpop.f32.mrf.mxu0
      %v11851 = vadd.f32 %v11762, %v11850
      %11852 = vmatmul.bf16.gmra.mxu0 %v11172
      %v11853 = vpop.f32.mrf.mxu0
      %v11854 = vadd.f32 %v11765, %v11853
      %v11855 = vpop.f32.mrf.mxu0
      %v11856 = vadd.f32 %v11767, %v11855
      %11857 = vmatmul.bf16.gmra.mxu0 %v11177
      %v11858 = vpop.f32.mrf.mxu0
      %v11859 = vadd.f32 %v11770, %v11858
      %v11860 = vpop.f32.mrf.mxu0
      %v11861 = vadd.f32 %v11772, %v11860
      %11862 = vmatmul.bf16.gmra.mxu0 %v11182
      %v11863 = vpop.f32.mrf.mxu0
      %v11864 = vadd.f32 %v11775, %v11863
      %v11865 = vpop.f32.mrf.mxu0
      %v11866 = vadd.f32 %v11777, %v11865
      %11867 = vmatmul.bf16.gmra.mxu0 %v11187
      %v11868 = vpop.f32.mrf.mxu0
      %v11869 = vadd.f32 %v11780, %v11868
      %v11870 = vpop.f32.mrf.mxu0
      %v11871 = vadd.f32 %v11782, %v11870
      %11872 = vmatmul.bf16.gmra.mxu0 %v11192
      %v11873 = vpop.f32.mrf.mxu0
      %v11874 = vadd.f32 %v11785, %v11873
      %v11875 = vpop.f32.mrf.mxu0
      %v11876 = vadd.f32 %v11787, %v11875
      %11877 = vmatmul.bf16.gmra.mxu0 %v11197
      %v11878 = vpop.f32.mrf.mxu0
      %v11879 = vadd.f32 %v11790, %v11878
      %v11880 = vpop.f32.mrf.mxu0
      %v11881 = vadd.f32 %v11792, %v11880
      %11882 = vmatmul.bf16.gmra.mxu0 %v11202
      %v11883 = vpop.f32.mrf.mxu0
      %v11884 = vadd.f32 %v11795, %v11883
      %v11885 = vpop.f32.mrf.mxu0
      %v11886 = vadd.f32 %v11797, %v11885
      %11887 = vmatmul.bf16.gmra.mxu0 %v11207
      %v11888 = vpop.f32.mrf.mxu0
      %v11889 = vadd.f32 %v11800, %v11888
      %v11890 = vpop.f32.mrf.mxu0
      %v11891 = vadd.f32 %v11802, %v11890
      %11892 = vmatmul.bf16.gmra.mxu0 %v11212
      %v11893 = vpop.f32.mrf.mxu0
      %v11894 = vadd.f32 %v11805, %v11893
      %v11895 = vpop.f32.mrf.mxu0
      %v11896 = vadd.f32 %v11807, %v11895
      %11897 = vmatmul.bf16.gmra.mxu0 %v11217
      %v11898 = vpop.f32.mrf.mxu0
      %v11899 = vadd.f32 %v11810, %v11898
      %v11900 = vpop.f32.mrf.mxu0
      %v11901 = vadd.f32 %v11812, %v11900
      %11902 = vdwg.mxu0
      %11903 = vmatpush.bf16.msra.mxu0 0
      %11904 = vmatpush.bf16.msra.mxu0 0
      %11905 = vmatpush.bf16.msra.mxu0 0
      %11906 = vmatpush.bf16.msra.mxu0 0
      %11907 = vmatpush.bf16.msra.mxu0 %v11462
      %11908 = vmatpush.bf16.msra.mxu0 %v11461
      %11909 = vmatpush.bf16.msra.mxu0 %v11460
      %11910 = vmatpush.bf16.msra.mxu0 %v11459
      %11911 = vmatmul.bf16.gmra.mxu0 %v11500
      %v11912 = vpop.f32.mrf.mxu0
      %v11913 = vadd.f32 %v11824, %v11912
      %v11914 = vpop.f32.mrf.mxu0
      %v11915 = vadd.f32 %v11826, %v11914
      %11916 = vmatmul.bf16.gmra.mxu0 %v11503
      %v11917 = vpop.f32.mrf.mxu0
      %v11918 = vadd.f32 %v11829, %v11917
      %v11919 = vpop.f32.mrf.mxu0
      %v11920 = vadd.f32 %v11831, %v11919
      %11921 = vmatmul.bf16.gmra.mxu0 %v11506
      %v11922 = vpop.f32.mrf.mxu0
      %v11923 = vadd.f32 %v11834, %v11922
      %v11924 = vpop.f32.mrf.mxu0
      %v11925 = vadd.f32 %v11836, %v11924
      %11926 = vmatmul.bf16.gmra.mxu0 %v11509
      %v11927 = vpop.f32.mrf.mxu0
      %v11928 = vadd.f32 %v11839, %v11927
      %v11929 = vpop.f32.mrf.mxu0
      %v11930 = vadd.f32 %v11841, %v11929
      %11931 = vmatmul.bf16.gmra.mxu0 %v11512
      %v11932 = vpop.f32.mrf.mxu0
      %v11933 = vadd.f32 %v11844, %v11932
      %v11934 = vpop.f32.mrf.mxu0
      %v11935 = vadd.f32 %v11846, %v11934
      %11936 = vmatmul.bf16.gmra.mxu0 %v11515
      %v11937 = vpop.f32.mrf.mxu0
      %v11938 = vadd.f32 %v11849, %v11937
      %v11939 = vpop.f32.mrf.mxu0
      %v11940 = vadd.f32 %v11851, %v11939
      %11941 = vmatmul.bf16.gmra.mxu0 %v11518
      %v11942 = vpop.f32.mrf.mxu0
      %v11943 = vadd.f32 %v11854, %v11942
      %v11944 = vpop.f32.mrf.mxu0
      %v11945 = vadd.f32 %v11856, %v11944
      %11946 = vmatmul.bf16.gmra.mxu0 %v11521
      %v11947 = vpop.f32.mrf.mxu0
      %v11948 = vadd.f32 %v11859, %v11947
      %v11949 = vpop.f32.mrf.mxu0
      %v11950 = vadd.f32 %v11861, %v11949
      %11951 = vmatmul.bf16.gmra.mxu0 %v11524
      %v11952 = vpop.f32.mrf.mxu0
      %v11953 = vadd.f32 %v11864, %v11952
      %v11954 = vpop.f32.mrf.mxu0
      %v11955 = vadd.f32 %v11866, %v11954
      %11956 = vmatmul.bf16.gmra.mxu0 %v11527
      %v11957 = vpop.f32.mrf.mxu0
      %v11958 = vadd.f32 %v11869, %v11957
      %v11959 = vpop.f32.mrf.mxu0
      %v11960 = vadd.f32 %v11871, %v11959
      %11961 = vmatmul.bf16.gmra.mxu0 %v11530
      %v11962 = vpop.f32.mrf.mxu0
      %v11963 = vadd.f32 %v11874, %v11962
      %v11964 = vpop.f32.mrf.mxu0
      %v11965 = vadd.f32 %v11876, %v11964
      %11966 = vmatmul.bf16.gmra.mxu0 %v11533
      %v11967 = vpop.f32.mrf.mxu0
      %v11968 = vadd.f32 %v11879, %v11967
      %v11969 = vpop.f32.mrf.mxu0
      %v11970 = vadd.f32 %v11881, %v11969
      %11971 = vmatmul.bf16.gmra.mxu0 %v11536
      %v11972 = vpop.f32.mrf.mxu0
      %v11973 = vadd.f32 %v11884, %v11972
      %v11974 = vpop.f32.mrf.mxu0
      %v11975 = vadd.f32 %v11886, %v11974
      %11976 = vmatmul.bf16.gmra.mxu0 %v11539
      %v11977 = vpop.f32.mrf.mxu0
      %v11978 = vadd.f32 %v11889, %v11977
      %v11979 = vpop.f32.mrf.mxu0
      %v11980 = vadd.f32 %v11891, %v11979
      %11981 = vmatmul.bf16.gmra.mxu0 %v11542
      %v11982 = vpop.f32.mrf.mxu0
      %v11983 = vadd.f32 %v11894, %v11982
      %v11984 = vpop.f32.mrf.mxu0
      %v11985 = vadd.f32 %v11896, %v11984
      %11986 = vmatmul.bf16.gmra.mxu0 %v11545
      %v11987 = vpop.f32.mrf.mxu0
      %v11988 = vadd.f32 %v11899, %v11987
      %v11989 = vpop.f32.mrf.mxu0
      %v11990 = vadd.f32 %v11901, %v11989
      %11991 = vdwg.mxu0
      %v11992 = vsel %vm6203, %v11913, 0.0
      %v11993 = vsel %vm6203, %v11915, 0.0
      %v11994 = vadd.f32 %v11992, %v11993
      %v11995 = vsel %vm6203, %v11918, 0.0
      %v11996 = vadd.f32 %v11994, %v11995
      %v11997 = vsel %vm6203, %v11920, 0.0
      %v11998 = vadd.f32 %v11996, %v11997
      %v11999 = vsel %vm6203, %v11923, 0.0
      %v12000 = vadd.f32 %v11998, %v11999
      %v12001 = vsel %vm6203, %v11925, 0.0
      %v12002 = vadd.f32 %v12000, %v12001
      %v12003 = vsel %vm6203, %v11928, 0.0
      %v12004 = vadd.f32 %v12002, %v12003
      %v12005 = vsel %vm6203, %v11930, 0.0
      %v12006 = vadd.f32 %v12004, %v12005
      %v12007 = vsel %vm6203, %v11933, 0.0
      %v12008 = vadd.f32 %v12006, %v12007
      %v12009 = vsel %vm6203, %v11935, 0.0
      %v12010 = vadd.f32 %v12008, %v12009
      %v12011 = vsel %vm6203, %v11938, 0.0
      %v12012 = vadd.f32 %v12010, %v12011
      %v12013 = vsel %vm6203, %v11940, 0.0
      %v12014 = vadd.f32 %v12012, %v12013
      %v12015 = vsel %vm6203, %v11943, 0.0
      %v12016 = vadd.f32 %v12014, %v12015
      %v12017 = vsel %vm6203, %v11945, 0.0
      %v12018 = vadd.f32 %v12016, %v12017
      %v12019 = vsel %vm6203, %v11948, 0.0
      %v12020 = vadd.f32 %v12018, %v12019
      %v12021 = vsel %vm6203, %v11950, 0.0
      %v12022 = vadd.f32 %v12020, %v12021
      %v12023 = vsel %vm6203, %v11953, 0.0
      %v12024 = vadd.f32 %v12022, %v12023
      %v12025 = vsel %vm6203, %v11955, 0.0
      %v12026 = vadd.f32 %v12024, %v12025
      %v12027 = vsel %vm6203, %v11958, 0.0
      %v12028 = vadd.f32 %v12026, %v12027
      %v12029 = vsel %vm6203, %v11960, 0.0
      %v12030 = vadd.f32 %v12028, %v12029
      %v12031 = vsel %vm6203, %v11963, 0.0
      %v12032 = vadd.f32 %v12030, %v12031
      %v12033 = vsel %vm6203, %v11965, 0.0
      %v12034 = vadd.f32 %v12032, %v12033
      %v12035 = vsel %vm6203, %v11968, 0.0
      %v12036 = vadd.f32 %v12034, %v12035
      %v12037 = vsel %vm6203, %v11970, 0.0
      %v12038 = vadd.f32 %v12036, %v12037
      %v12039 = vsel %vm6203, %v11973, 0.0
      %v12040 = vadd.f32 %v12038, %v12039
      %v12041 = vsel %vm6203, %v11975, 0.0
      %v12042 = vadd.f32 %v12040, %v12041
      %v12043 = vsel %vm6203, %v11978, 0.0
      %v12044 = vadd.f32 %v12042, %v12043
      %v12045 = vsel %vm6203, %v11980, 0.0
      %v12046 = vadd.f32 %v12044, %v12045
      %v12047 = vsel %vm6203, %v11983, 0.0
      %v12048 = vadd.f32 %v12046, %v12047
      %v12049 = vsel %vm6203, %v11985, 0.0
      %v12050 = vadd.f32 %v12048, %v12049
      %v12051 = vsel %vm6203, %v11988, 0.0
      %v12052 = vadd.f32 %v12050, %v12051
      %v12053 = vsel %vm6203, %v11990, 0.0
      %v12054 = vadd.f32 %v12052, %v12053
      %v12055 = vrot.slane %v12054, 4
      %v12056 = vadd.f32 %v12054, %v12055
      %v12057 = vrot.slane %v12056, 2
      %v12058 = vadd.f32 %v12056, %v12057
      %v12059 = vrot.slane %v12058, 1
      %v12060 = vadd.f32 %v12058, %v12059
      %v12061 = vmul.f32 %v11913, %v11913
      %v12062 = vmul.f32 %v11915, %v11915
      %v12063 = vmul.f32 %v11918, %v11918
      %v12064 = vmul.f32 %v11920, %v11920
      %v12065 = vmul.f32 %v11923, %v11923
      %v12066 = vmul.f32 %v11925, %v11925
      %v12067 = vmul.f32 %v11928, %v11928
      %v12068 = vmul.f32 %v11930, %v11930
      %v12069 = vmul.f32 %v11933, %v11933
      %v12070 = vmul.f32 %v11935, %v11935
      %v12071 = vmul.f32 %v11938, %v11938
      %v12072 = vmul.f32 %v11940, %v11940
      %v12073 = vmul.f32 %v11943, %v11943
      %v12074 = vmul.f32 %v11945, %v11945
      %v12075 = vmul.f32 %v11948, %v11948
      %v12076 = vmul.f32 %v11950, %v11950
      %v12077 = vmul.f32 %v11953, %v11953
      %v12078 = vmul.f32 %v11955, %v11955
      %v12079 = vmul.f32 %v11958, %v11958
      %v12080 = vmul.f32 %v11960, %v11960
      %v12081 = vmul.f32 %v11963, %v11963
      %v12082 = vmul.f32 %v11965, %v11965
      %v12083 = vmul.f32 %v11968, %v11968
      %v12084 = vmul.f32 %v11970, %v11970
      %v12085 = vmul.f32 %v11973, %v11973
      %v12086 = vmul.f32 %v11975, %v11975
      %v12087 = vmul.f32 %v11978, %v11978
      %v12088 = vmul.f32 %v11980, %v11980
      %v12089 = vmul.f32 %v11983, %v11983
      %v12090 = vmul.f32 %v11985, %v11985
      %v12091 = vmul.f32 %v11988, %v11988
      %v12092 = vmul.f32 %v11990, %v11990
      %v12093 = vsel %vm6203, %v12061, 0.0
      %v12094 = vsel %vm6203, %v12062, 0.0
      %v12095 = vadd.f32 %v12093, %v12094
      %v12096 = vsel %vm6203, %v12063, 0.0
      %v12097 = vadd.f32 %v12095, %v12096
      %v12098 = vsel %vm6203, %v12064, 0.0
      %v12099 = vadd.f32 %v12097, %v12098
      %v12100 = vsel %vm6203, %v12065, 0.0
      %v12101 = vadd.f32 %v12099, %v12100
      %v12102 = vsel %vm6203, %v12066, 0.0
      %v12103 = vadd.f32 %v12101, %v12102
      %v12104 = vsel %vm6203, %v12067, 0.0
      %v12105 = vadd.f32 %v12103, %v12104
      %v12106 = vsel %vm6203, %v12068, 0.0
      %v12107 = vadd.f32 %v12105, %v12106
      %v12108 = vsel %vm6203, %v12069, 0.0
      %v12109 = vadd.f32 %v12107, %v12108
      %v12110 = vsel %vm6203, %v12070, 0.0
      %v12111 = vadd.f32 %v12109, %v12110
      %v12112 = vsel %vm6203, %v12071, 0.0
      %v12113 = vadd.f32 %v12111, %v12112
      %v12114 = vsel %vm6203, %v12072, 0.0
      %v12115 = vadd.f32 %v12113, %v12114
      %v12116 = vsel %vm6203, %v12073, 0.0
      %v12117 = vadd.f32 %v12115, %v12116
      %v12118 = vsel %vm6203, %v12074, 0.0
      %v12119 = vadd.f32 %v12117, %v12118
      %v12120 = vsel %vm6203, %v12075, 0.0
      %v12121 = vadd.f32 %v12119, %v12120
      %v12122 = vsel %vm6203, %v12076, 0.0
      %v12123 = vadd.f32 %v12121, %v12122
      %v12124 = vsel %vm6203, %v12077, 0.0
      %v12125 = vadd.f32 %v12123, %v12124
      %v12126 = vsel %vm6203, %v12078, 0.0
      %v12127 = vadd.f32 %v12125, %v12126
      %v12128 = vsel %vm6203, %v12079, 0.0
      %v12129 = vadd.f32 %v12127, %v12128
      %v12130 = vsel %vm6203, %v12080, 0.0
      %v12131 = vadd.f32 %v12129, %v12130
      %v12132 = vsel %vm6203, %v12081, 0.0
      %v12133 = vadd.f32 %v12131, %v12132
      %v12134 = vsel %vm6203, %v12082, 0.0
      %v12135 = vadd.f32 %v12133, %v12134
      %v12136 = vsel %vm6203, %v12083, 0.0
      %v12137 = vadd.f32 %v12135, %v12136
      %v12138 = vsel %vm6203, %v12084, 0.0
      %v12139 = vadd.f32 %v12137, %v12138
      %v12140 = vsel %vm6203, %v12085, 0.0
      %v12141 = vadd.f32 %v12139, %v12140
      %v12142 = vsel %vm6203, %v12086, 0.0
      %v12143 = vadd.f32 %v12141, %v12142
      %v12144 = vsel %vm6203, %v12087, 0.0
      %v12145 = vadd.f32 %v12143, %v12144
      %v12146 = vsel %vm6203, %v12088, 0.0
      %v12147 = vadd.f32 %v12145, %v12146
      %v12148 = vsel %vm6203, %v12089, 0.0
      %v12149 = vadd.f32 %v12147, %v12148
      %v12150 = vsel %vm6203, %v12090, 0.0
      %v12151 = vadd.f32 %v12149, %v12150
      %v12152 = vsel %vm6203, %v12091, 0.0
      %v12153 = vadd.f32 %v12151, %v12152
      %v12154 = vsel %vm6203, %v12092, 0.0
      %v12155 = vadd.f32 %v12153, %v12154
      %v12156 = vrot.slane %v12155, 4
      %v12157 = vadd.f32 %v12155, %v12156
      %v12158 = vrot.slane %v12157, 2
      %v12159 = vadd.f32 %v12157, %v12158
      %v12160 = vrot.slane %v12159, 1
      %v12161 = vadd.f32 %v12159, %v12160
      %v12162 = vsel %vm6203, %v12060, 0.0
      %12163 = vadd.xlane.f32.xlu0 %v12162
      %v12164 = vpop.xlane.xlu0 %12163
      %v12165 = vsel %vm6203, %v12161, 0.0
      %12166 = vadd.xlane.f32.xlu0 %v12165
      %v12167 = vpop.xlane.xlu0 %12166
      %v12168 = vmul.f32 %v12164, 0.00012207031
      %v12169 = vmul.f32 %v12167, 0.00012207031
      %v12170 = vmul.f32 %v12168, %v12168
      %v12171 = vsub.f32 %v12169, %v12170
      %v12172 = vmax.f32 %v12171, 0.0
      %v12173 = vadd.f32 %v12172, 1e-05
      %v12174 = vrsqrt.pop %v12173
      %v12175 = vmul.f32 %v12174, %v12173
      %v12176 = vmul.f32 %v12175, %v12174
      %v12177 = vmul.f32 0.5, %v12176
      %v12178 = vsub.f32 1.5, %v12177
      %v12179 = vmul.f32 %v12174, %v12178
      %vm12180 = vweird.f32 %v12173
      %vm12181 = vweird.f32 %v12174
      %vm12182 = vmor %vm12180, %vm12181
      %v12183 = vsel %vm12182, %v12174, %v12179
      %v12184 = vld [vmem:[%s4 + $0x1] sm:$0x1]
      %v12185 = vmul.f32 %v12184, %v12183
      %v12186 = vld [vmem:[%s4 + $0x2] sm:$0x1]
      %v12187 = vmul.f32 %v12168, %v12185
      %v12188 = vsub.f32 %v12186, %v12187
      %v12189 = vperm.slane %v12185, 0
      %v12190 = vmul.f32 %v11913, %v12189
      %v12191 = vmul.f32 %v11915, %v12189
      %v12192 = vmul.f32 %v11918, %v12189
      %v12193 = vmul.f32 %v11920, %v12189
      %v12194 = vmul.f32 %v11923, %v12189
      %v12195 = vmul.f32 %v11925, %v12189
      %v12196 = vmul.f32 %v11928, %v12189
      %v12197 = vmul.f32 %v11930, %v12189
      %v12198 = vmul.f32 %v11933, %v12189
      %v12199 = vmul.f32 %v11935, %v12189
      %v12200 = vmul.f32 %v11938, %v12189
      %v12201 = vmul.f32 %v11940, %v12189
      %v12202 = vmul.f32 %v11943, %v12189
      %v12203 = vmul.f32 %v11945, %v12189
      %v12204 = vmul.f32 %v11948, %v12189
      %v12205 = vmul.f32 %v11950, %v12189
      %v12206 = vmul.f32 %v11953, %v12189
      %v12207 = vmul.f32 %v11955, %v12189
      %v12208 = vmul.f32 %v11958, %v12189
      %v12209 = vmul.f32 %v11960, %v12189
      %v12210 = vmul.f32 %v11963, %v12189
      %v12211 = vmul.f32 %v11965, %v12189
      %v12212 = vmul.f32 %v11968, %v12189
      %v12213 = vmul.f32 %v11970, %v12189
      %v12214 = vmul.f32 %v11973, %v12189
      %v12215 = vmul.f32 %v11975, %v12189
      %v12216 = vmul.f32 %v11978, %v12189
      %v12217 = vmul.f32 %v11980, %v12189
      %v12218 = vmul.f32 %v11983, %v12189
      %v12219 = vmul.f32 %v11985, %v12189
      %v12220 = vmul.f32 %v11988, %v12189
      %v12221 = vmul.f32 %v11990, %v12189
      %v12222 = vperm.slane %v12188, 0
      %v12223 = vadd.f32 %v12190, %v12222
      %v12224 = vadd.f32 %v12191, %v12222
      %v12225 = vadd.f32 %v12192, %v12222
      %v12226 = vadd.f32 %v12193, %v12222
      %v12227 = vadd.f32 %v12194, %v12222
      %v12228 = vadd.f32 %v12195, %v12222
      %v12229 = vadd.f32 %v12196, %v12222
      %v12230 = vadd.f32 %v12197, %v12222
      %v12231 = vadd.f32 %v12198, %v12222
      %v12232 = vadd.f32 %v12199, %v12222
      %v12233 = vadd.f32 %v12200, %v12222
      %v12234 = vadd.f32 %v12201, %v12222
      %v12235 = vadd.f32 %v12202, %v12222
      %v12236 = vadd.f32 %v12203, %v12222
      %v12237 = vadd.f32 %v12204, %v12222
      %v12238 = vadd.f32 %v12205, %v12222
      %v12239 = vadd.f32 %v12206, %v12222
      %v12240 = vadd.f32 %v12207, %v12222
      %v12241 = vadd.f32 %v12208, %v12222
      %v12242 = vadd.f32 %v12209, %v12222
      %v12243 = vadd.f32 %v12210, %v12222
      %v12244 = vadd.f32 %v12211, %v12222
      %v12245 = vadd.f32 %v12212, %v12222
      %v12246 = vadd.f32 %v12213, %v12222
      %v12247 = vadd.f32 %v12214, %v12222
      %v12248 = vadd.f32 %v12215, %v12222
      %v12249 = vadd.f32 %v12216, %v12222
      %v12250 = vadd.f32 %v12217, %v12222
      %v12251 = vadd.f32 %v12218, %v12222
      %v12252 = vadd.f32 %v12219, %v12222
      %v12253 = vadd.f32 %v12220, %v12222
      %v12254 = vadd.f32 %v12221, %v12222
      %v12255 = vtanh.pop %v12223
      %v12256 = vtanh.pop %v12224
      %v12257 = vtanh.pop %v12225
      %v12258 = vtanh.pop %v12226
      %v12259 = vtanh.pop %v12227
      %v12260 = vtanh.pop %v12228
      %v12261 = vtanh.pop %v12229
      %v12262 = vtanh.pop %v12230
      %v12263 = vtanh.pop %v12231
      %v12264 = vtanh.pop %v12232
      %v12265 = vtanh.pop %v12233
      %v12266 = vtanh.pop %v12234
      %v12267 = vtanh.pop %v12235
      %v12268 = vtanh.pop %v12236
      %v12269 = vtanh.pop %v12237
      %v12270 = vtanh.pop %v12238
      %v12271 = vtanh.pop %v12239
      %v12272 = vtanh.pop %v12240
      %v12273 = vtanh.pop %v12241
      %v12274 = vtanh.pop %v12242
      %v12275 = vtanh.pop %v12243
      %v12276 = vtanh.pop %v12244
      %v12277 = vtanh.pop %v12245
      %v12278 = vtanh.pop %v12246
      %v12279 = vtanh.pop %v12247
      %v12280 = vtanh.pop %v12248
      %v12281 = vtanh.pop %v12249
      %v12282 = vtanh.pop %v12250
      %v12283 = vtanh.pop %v12251
      %v12284 = vtanh.pop %v12252
      %v12285 = vtanh.pop %v12253
      %v12286 = vtanh.pop %v12254
      %v12287 = vsub.f32 %v12255, %v954
      %v12288 = vsub.f32 %v12256, %v955
      %v12289 = vsub.f32 %v12257, %v956
      %v12290 = vsub.f32 %v12258, %v957
      %v12291 = vsub.f32 %v12259, %v958
      %v12292 = vsub.f32 %v12260, %v959
      %v12293 = vsub.f32 %v12261, %v960
      %v12294 = vsub.f32 %v12262, %v961
      %v12295 = vsub.f32 %v12263, %v962
      %v12296 = vsub.f32 %v12264, %v963
      %v12297 = vsub.f32 %v12265, %v964
      %v12298 = vsub.f32 %v12266, %v965
      %v12299 = vsub.f32 %v12267, %v966
      %v12300 = vsub.f32 %v12268, %v967
      %v12301 = vsub.f32 %v12269, %v968
      %v12302 = vsub.f32 %v12270, %v969
      %v12303 = vsub.f32 %v12271, %v970
      %v12304 = vsub.f32 %v12272, %v971
      %v12305 = vsub.f32 %v12273, %v972
      %v12306 = vsub.f32 %v12274, %v973
      %v12307 = vsub.f32 %v12275, %v974
      %v12308 = vsub.f32 %v12276, %v975
      %v12309 = vsub.f32 %v12277, %v976
      %v12310 = vsub.f32 %v12278, %v977
      %v12311 = vsub.f32 %v12279, %v978
      %v12312 = vsub.f32 %v12280, %v979
      %v12313 = vsub.f32 %v12281, %v980
      %v12314 = vsub.f32 %v12282, %v981
      %v12315 = vsub.f32 %v12283, %v982
      %v12316 = vsub.f32 %v12284, %v983
      %v12317 = vsub.f32 %v12285, %v984
      %v12318 = vsub.f32 %v12286, %v985
      %v12319 = vmul.f32 %v6439, %v12287
      %v12320 = vmul.f32 %v6454, %v12288
      %v12321 = vmul.f32 %v6469, %v12289
      %v12322 = vmul.f32 %v6484, %v12290
      %v12323 = vmul.f32 %v6499, %v12291
      %v12324 = vmul.f32 %v6514, %v12292
      %v12325 = vmul.f32 %v6529, %v12293
      %v12326 = vmul.f32 %v6544, %v12294
      %v12327 = vmul.f32 %v6559, %v12295
      %v12328 = vmul.f32 %v6574, %v12296
      %v12329 = vmul.f32 %v6589, %v12297
      %v12330 = vmul.f32 %v6604, %v12298
      %v12331 = vmul.f32 %v6619, %v12299
      %v12332 = vmul.f32 %v6634, %v12300
      %v12333 = vmul.f32 %v6649, %v12301
      %v12334 = vmul.f32 %v6664, %v12302
      %v12335 = vmul.f32 %v6679, %v12303
      %v12336 = vmul.f32 %v6694, %v12304
      %v12337 = vmul.f32 %v6709, %v12305
      %v12338 = vmul.f32 %v6724, %v12306
      %v12339 = vmul.f32 %v6739, %v12307
      %v12340 = vmul.f32 %v6754, %v12308
      %v12341 = vmul.f32 %v6769, %v12309
      %v12342 = vmul.f32 %v6784, %v12310
      %v12343 = vmul.f32 %v6799, %v12311
      %v12344 = vmul.f32 %v6814, %v12312
      %v12345 = vmul.f32 %v6829, %v12313
      %v12346 = vmul.f32 %v6844, %v12314
      %v12347 = vmul.f32 %v6859, %v12315
      %v12348 = vmul.f32 %v6874, %v12316
      %v12349 = vmul.f32 %v6889, %v12317
      %v12350 = vmul.f32 %v6904, %v12318
      %v12351 = vadd.f32 %v954, %v12319
      %v12352 = vadd.f32 %v955, %v12320
      %v12353 = vadd.f32 %v956, %v12321
      %v12354 = vadd.f32 %v957, %v12322
      %v12355 = vadd.f32 %v958, %v12323
      %v12356 = vadd.f32 %v959, %v12324
      %v12357 = vadd.f32 %v960, %v12325
      %v12358 = vadd.f32 %v961, %v12326
      %v12359 = vadd.f32 %v962, %v12327
      %v12360 = vadd.f32 %v963, %v12328
      %v12361 = vadd.f32 %v964, %v12329
      %v12362 = vadd.f32 %v965, %v12330
      %v12363 = vadd.f32 %v966, %v12331
      %v12364 = vadd.f32 %v967, %v12332
      %v12365 = vadd.f32 %v968, %v12333
      %v12366 = vadd.f32 %v969, %v12334
      %v12367 = vadd.f32 %v970, %v12335
      %v12368 = vadd.f32 %v971, %v12336
      %v12369 = vadd.f32 %v972, %v12337
      %v12370 = vadd.f32 %v973, %v12338
      %v12371 = vadd.f32 %v974, %v12339
      %v12372 = vadd.f32 %v975, %v12340
      %v12373 = vadd.f32 %v976, %v12341
      %v12374 = vadd.f32 %v977, %v12342
      %v12375 = vadd.f32 %v978, %v12343
      %v12376 = vadd.f32 %v979, %v12344
      %v12377 = vadd.f32 %v980, %v12345
      %v12378 = vadd.f32 %v981, %v12346
      %v12379 = vadd.f32 %v982, %v12347
      %v12380 = vadd.f32 %v983, %v12348
      %v12381 = vadd.f32 %v984, %v12349
      %v12382 = vadd.f32 %v985, %v12350
      %12383 = vst.msk [vmem:[#allocation2] sm:$0xff] %vm6203, %v12351
      %12384 = vst.msk [vmem:[#allocation2 + $0x8] sm:$0xff] %vm6203, %v12352
      %12385 = vst.msk [vmem:[#allocation2 + $0x10] sm:$0xff] %vm6203, %v12353
      %12386 = vst.msk [vmem:[#allocation2 + $0x18] sm:$0xff] %vm6203, %v12354
      %12387 = vst.msk [vmem:[#allocation2 + $0x20] sm:$0xff] %vm6203, %v12355
      %12388 = vst.msk [vmem:[#allocation2 + $0x28] sm:$0xff] %vm6203, %v12356
      %12389 = vst.msk [vmem:[#allocation2 + $0x30] sm:$0xff] %vm6203, %v12357
      %12390 = vst.msk [vmem:[#allocation2 + $0x38] sm:$0xff] %vm6203, %v12358
      %12391 = vst.msk [vmem:[#allocation2 + $0x40] sm:$0xff] %vm6203, %v12359
      %12392 = vst.msk [vmem:[#allocation2 + $0x48] sm:$0xff] %vm6203, %v12360
      %12393 = vst.msk [vmem:[#allocation2 + $0x50] sm:$0xff] %vm6203, %v12361
      %12394 = vst.msk [vmem:[#allocation2 + $0x58] sm:$0xff] %vm6203, %v12362
      %12395 = vst.msk [vmem:[#allocation2 + $0x60] sm:$0xff] %vm6203, %v12363
      %12396 = vst.msk [vmem:[#allocation2 + $0x68] sm:$0xff] %vm6203, %v12364
      %12397 = vst.msk [vmem:[#allocation2 + $0x70] sm:$0xff] %vm6203, %v12365
      %12398 = vst.msk [vmem:[#allocation2 + $0x78] sm:$0xff] %vm6203, %v12366
      %12399 = vst.msk [vmem:[#allocation2 + $0x80] sm:$0xff] %vm6203, %v12367
      %12400 = vst.msk [vmem:[#allocation2 + $0x88] sm:$0xff] %vm6203, %v12368
      %12401 = vst.msk [vmem:[#allocation2 + $0x90] sm:$0xff] %vm6203, %v12369
      %12402 = vst.msk [vmem:[#allocation2 + $0x98] sm:$0xff] %vm6203, %v12370
      %12403 = vst.msk [vmem:[#allocation2 + $0xa0] sm:$0xff] %vm6203, %v12371
      %12404 = vst.msk [vmem:[#allocation2 + $0xa8] sm:$0xff] %vm6203, %v12372
      %12405 = vst.msk [vmem:[#allocation2 + $0xb0] sm:$0xff] %vm6203, %v12373
      %12406 = vst.msk [vmem:[#allocation2 + $0xb8] sm:$0xff] %vm6203, %v12374
      %12407 = vst.msk [vmem:[#allocation2 + $0xc0] sm:$0xff] %vm6203, %v12375
      %12408 = vst.msk [vmem:[#allocation2 + $0xc8] sm:$0xff] %vm6203, %v12376
      %12409 = vst.msk [vmem:[#allocation2 + $0xd0] sm:$0xff] %vm6203, %v12377
      %12410 = vst.msk [vmem:[#allocation2 + $0xd8] sm:$0xff] %vm6203, %v12378
      %12411 = vst.msk [vmem:[#allocation2 + $0xe0] sm:$0xff] %vm6203, %v12379
      %12412 = vst.msk [vmem:[#allocation2 + $0xe8] sm:$0xff] %vm6203, %v12380
      %12413 = vst.msk [vmem:[#allocation2 + $0xf0] sm:$0xff] %vm6203, %v12381
      %12414 = vst.msk [vmem:[#allocation2 + $0xf8] sm:$0xff] %vm6203, %v12382
      %12415 = vst.msk [vmem:[%s260] sm:$0xff] %vm6203, %v12351
      %12416 = vst.msk [vmem:[%s260 + $0x8] sm:$0xff] %vm6203, %v12352
      %12417 = vst.msk [vmem:[%s260 + $0x10] sm:$0xff] %vm6203, %v12353
      %12418 = vst.msk [vmem:[%s260 + $0x18] sm:$0xff] %vm6203, %v12354
      %12419 = vst.msk [vmem:[%s260 + $0x20] sm:$0xff] %vm6203, %v12355
      %12420 = vst.msk [vmem:[%s260 + $0x28] sm:$0xff] %vm6203, %v12356
      %12421 = vst.msk [vmem:[%s260 + $0x30] sm:$0xff] %vm6203, %v12357
      %12422 = vst.msk [vmem:[%s260 + $0x38] sm:$0xff] %vm6203, %v12358
      %12423 = vst.msk [vmem:[%s260 + $0x40] sm:$0xff] %vm6203, %v12359
      %12424 = vst.msk [vmem:[%s260 + $0x48] sm:$0xff] %vm6203, %v12360
      %12425 = vst.msk [vmem:[%s260 + $0x50] sm:$0xff] %vm6203, %v12361
      %12426 = vst.msk [vmem:[%s260 + $0x58] sm:$0xff] %vm6203, %v12362
      %12427 = vst.msk [vmem:[%s260 + $0x60] sm:$0xff] %vm6203, %v12363
      %12428 = vst.msk [vmem:[%s260 + $0x68] sm:$0xff] %vm6203, %v12364
      %12429 = vst.msk [vmem:[%s260 + $0x70] sm:$0xff] %vm6203, %v12365
      %12430 = vst.msk [vmem:[%s260 + $0x78] sm:$0xff] %vm6203, %v12366
      %12431 = vst.msk [vmem:[%s260 + $0x80] sm:$0xff] %vm6203, %v12367
      %12432 = vst.msk [vmem:[%s260 + $0x88] sm:$0xff] %vm6203, %v12368
      %12433 = vst.msk [vmem:[%s260 + $0x90] sm:$0xff] %vm6203, %v12369
      %12434 = vst.msk [vmem:[%s260 + $0x98] sm:$0xff] %vm6203, %v12370
      %12435 = vst.msk [vmem:[%s260 + $0xa0] sm:$0xff] %vm6203, %v12371
      %12436 = vst.msk [vmem:[%s260 + $0xa8] sm:$0xff] %vm6203, %v12372
      %12437 = vst.msk [vmem:[%s260 + $0xb0] sm:$0xff] %vm6203, %v12373
      %12438 = vst.msk [vmem:[%s260 + $0xb8] sm:$0xff] %vm6203, %v12374
      %12439 = vst.msk [vmem:[%s260 + $0xc0] sm:$0xff] %vm6203, %v12375
      %12440 = vst.msk [vmem:[%s260 + $0xc8] sm:$0xff] %vm6203, %v12376
      %12441 = vst.msk [vmem:[%s260 + $0xd0] sm:$0xff] %vm6203, %v12377
      %12442 = vst.msk [vmem:[%s260 + $0xd8] sm:$0xff] %vm6203, %v12378
      %12443 = vst.msk [vmem:[%s260 + $0xe0] sm:$0xff] %vm6203, %v12379
      %12444 = vst.msk [vmem:[%s260 + $0xe8] sm:$0xff] %vm6203, %v12380
      %12445 = vst.msk [vmem:[%s260 + $0xf0] sm:$0xff] %vm6203, %v12381
      %12446 = vst.msk [vmem:[%s260 + $0xf8] sm:$0xff] %vm6203, %v12382
      %p12447 = scmp.lt.s32.totalorder %s21, 3
      %s12448 = scalar_select %p12447, %s21, 3
      %p12449 = scmp.lt.s32.totalorder %s20, 1
      %s12450 = scalar_select %p12449, %s20, 1
      %s12451 = smul.addr %s12450, 32
      %s12452 = smul.addr %s12448, 64
      %s12453 = sadd.s32 %s12451, %s12452
      %s12454 = smul.addr %s12453, 8
      %s12455 = scalar_lea.vmem %s5, %s12454
      // Predicated region
      $region45: #{cgru_forward.1} parent=39 // pred_check
        %p12456 = pneg %p160
      $region46: #{cgru_forward.1} parent=39 // pred_check_branch
        %12458 = sbr.rel (%p12456) target = $region48
      $region47: #{cgru_forward.1} parent=39 // pred_region
        _
      $region48: #{cgru_forward.1} parent=39 // pred_fallthru
        _
    $region40: #{cgru_forward.1} parent=5 // pred_fallthru
      _
    %p12459 = scmp.le.s32.totalorder 2, %s11
    // Predicated region
    $region49: #{cgru_forward.1} parent=5 // pred_check
      %p12460 = pneg %p12459
    $region50: #{cgru_forward.1} parent=5 // pred_check_branch
      %12462 = sbr.rel (%p12460) target = $region52
    $region51: #{cgru_forward.1} parent=5 // pred_region
      %s12463 = ssub.s32 %s11, 2
      // Predicated region
      $region53: #{cgru_forward.1} parent=51 // pred_check
        %p12464 = pneg %p166
      $region54: #{cgru_forward.1} parent=51 // pred_check_branch
        %12466 = sbr.rel (%p12464) target = $region56
      $region55: #{cgru_forward.1} parent=51 // pred_region
        %p12467 = scmp.lt.s32.totalorder %s23, 3
        %s12468 = scalar_select %p12467, %s23, 3
        %p12469 = scmp.lt.s32.totalorder %s22, 1
        %s12470 = scalar_select %p12469, %s22, 1
        %s12471 = smul.addr %s12470, 32
        %s12472 = smul.addr %s12468, 64
        %s12473 = sadd.s32 %s12471, %s12472
        %s12474 = smul.addr %s12473, 8
        %s12475 = scalar_lea.vmem %s5, %s12474
      $region56: #{cgru_forward.1} parent=51 // pred_fallthru
        _
    $region52: #{cgru_forward.1} parent=5 // pred_fallthru
      _
  $region6: #{cgru_forward.1} parent=0 // loop_footer
    %s15 = sadd.s32 1, %s11
  $region7: #{cgru_forward.1} parent=0 // loop_footer_branch
    %10 = sbr.rel target = $region3
  $region8: #{cgru_forward.1} parent=0 // loop_exit
    _

</llo_original>
